<compile_context>
chip_gen: v5e
topology: v5e:2x2
jax: 0.10.0
libtpu: 0.0.40
codegen_flags: <defaults>
</compile_context>

<pallas_src>
import functools

import jax
import jax.numpy as jnp
from jax import lax
from jax.experimental import pallas as pl
from jax.experimental.pallas import tpu as pltpu

BN_EPS = 1e-5
PAD_BOTTOM = 3   # extra zero rows so shifted flat conv windows never run past the buffer


# ----------------------------- Pallas kernel ----------------------------------
def _decoder_block_kernel(x_ref, skip_ref, interior_ref, selr_ref, selc_ref,
                          wd_ref, bup_ref, w1u_ref, w1s_ref, shift1_ref,
                          w2_ref, shift2_ref, out_ref, h1pad_ref, *, Wp, M):
    """One batch element per grid step. Spatial data is flat [rows, C] with row pitch Wp."""
    f32 = jnp.float32
    cout = out_ref.shape[2]

    x = x_ref[0]                   # [N, Cin]  bf16 nearest-upsampled, zero padded input
    skip = skip_ref[0]             # [N, Cout] bf16 zero padded skip
    interior = interior_ref[...]   # [N, 1] f32, 1.0 inside the un-padded image
    sel_r0 = selr_ref[...]         # [N, 1] f32, 1.0 where deconv row phase == 0
    sel_c0 = selc_ref[...]         # [N, 1] f32, 1.0 where deconv col phase == 0

    # --- ConvTranspose2d(k=2, s=2): four per-phase matmuls + parity select (MXU) -------------
    u00 = jnp.dot(x, wd_ref[0], preferred_element_type=f32)
    u01 = jnp.dot(x, wd_ref[1], preferred_element_type=f32)
    u10 = jnp.dot(x, wd_ref[2], preferred_element_type=f32)
    u11 = jnp.dot(x, wd_ref[3], preferred_element_type=f32)
    up = (sel_r0 * (sel_c0 * u00 + (1.0 - sel_c0) * u01)
          + (1.0 - sel_r0) * (sel_c0 * u10 + (1.0 - sel_c0) * u11))
    up = (up + bup_ref[...]) * interior          # zero the padding ring (also kills the bias there)
    up = up.astype(jnp.bfloat16)

    # --- conv1 (3x3, pad=1) over cat([up, skip]) as two channel groups; BN folded; ReLU ------
    acc = jnp.zeros((M, cout), f32)
    for k in range(9):
        dh, dw = k // 3, k % 3
        off = dh * Wp + dw
        acc = acc + jnp.dot(up[off:off + M, :], w1u_ref[k], preferred_element_type=f32)
        acc = acc + jnp.dot(skip[off:off + M, :], w1s_ref[k], preferred_element_type=f32)
    h1 = jnp.maximum(acc + shift1_ref[...], 0.0)   # [M, Cout]; last 2 cols of each row are junk

    # --- re-pad h1 (flat, pitch Wp) into VMEM scratch for the second conv --------------------
    h1pad_ref[...] = jnp.zeros_like(h1pad_ref)     # borders must be zero on every grid step
    valid = interior[Wp + 1:Wp + 1 + M, :]         # zeroes the junk columns of h1
    h1pad_ref[Wp + 1:Wp + 1 + M, :] = (h1 * valid).astype(jnp.bfloat16)

    # --- conv2 (3x3, pad=1) + folded BN + ReLU ------------------------------------------------
    acc2 = jnp.zeros((M, cout), f32)
    for k in range(9):
        dh, dw = k // 3, k % 3
        off = dh * Wp + dw
        acc2 = acc2 + jnp.dot(h1pad_ref[off:off + M, :], w2_ref[k],
                              preferred_element_type=f32)
    out_ref[0] = jnp.maximum(acc2 + shift2_ref[...], 0.0)


# ----------------------------- JAX wrapper -------------------------------------
def _conv_bn_fold(w, b, gamma, beta, mean, var):
    """Fold eval-mode BN into a 3x3 conv: returns (weights as [9, Cin, Cout], shift [1, Cout])."""
    scale = gamma / jnp.sqrt(var + BN_EPS)
    w_t = jnp.transpose(w, (2, 3, 1, 0))                       # [kh, kw, Cin, Cout]
    kh, kw, cin, cout = w_t.shape
    w_t = (w_t * scale[None, None, None, :]).reshape(kh * kw, cin, cout)
    shift = (beta + (b - mean) * scale).reshape(1, cout)
    return w_t, shift


@jax.jit
def decoder_block_forward(x, skip, params):
    """x: [B, Cin, H, W], skip: [B, Cout, 2H, 2W]  (NCHW, like the PyTorch module)."""
    (wd, bd, w1, b1, g1, be1, m1, v1, w2, b2, g2, be2, m2, v2) = params
    B, cin, H, W = x.shape
    cout = wd.shape[1]
    H2, W2 = 2 * H, 2 * W
    Wp = W2 + 2                      # padded row pitch
    HpT = H2 + 1 + PAD_BOTTOM        # 1 top pad row + PAD_BOTTOM bottom pad rows
    N = HpT * Wp                     # flat padded rows
    M = H2 * Wp                      # flat output rows (junk columns trimmed below)

    # ---- channels-last + layout prep (pure XLA glue) ----------------------------------------
    x_nhwc = jnp.transpose(x, (0, 2, 3, 1))
    skip_nhwc = jnp.transpose(skip, (0, 2, 3, 1))
    # nearest-neighbour 2x upsample; the kernel selects the right 2x2 deconv phase per pixel.
    x_nn = jnp.repeat(jnp.repeat(x_nhwc, 2, axis=1), 2, axis=2)
    x_pad = jnp.pad(x_nn, ((0, 0), (1, PAD_BOTTOM), (1, 1), (0, 0)))
    skip_pad = jnp.pad(skip_nhwc, ((0, 0), (1, PAD_BOTTOM), (1, 1), (0, 0)))
    x_flat = x_pad.reshape(B, N, cin).astype(jnp.bfloat16)
    skip_flat = skip_pad.reshape(B, N, cout).astype(jnp.bfloat16)

    # ---- parity / interior masks over padded flat coordinates -------------------------------
    r = jnp.arange(HpT, dtype=jnp.int32)[:, None]
    q = jnp.arange(Wp, dtype=jnp.int32)[None, :]
    interior = (((r >= 1) & (r <= H2) & (q >= 1) & (q <= W2))
                .astype(jnp.float32).reshape(N, 1))
    sel_r0 = jnp.broadcast_to((r + 1) % 2 == 0, (HpT, Wp)).astype(jnp.float32).reshape(N, 1)
    sel_c0 = jnp.broadcast_to((q + 1) % 2 == 0, (HpT, Wp)).astype(jnp.float32).reshape(N, 1)

    # ---- parameters: per-phase deconv weights, BN folded into conv weights ------------------
    wd4 = jnp.transpose(wd, (2, 3, 0, 1)).reshape(4, cin, cout).astype(jnp.bfloat16)
    b_up = bd.reshape(1, cout).astype(jnp.float32)
    w1_t, shift1 = _conv_bn_fold(w1, b1, g1, be1, m1, v1)      # [9, 2*Cout, Cout]
    w1u = w1_t[:, :cout, :].astype(jnp.bfloat16)               # taps hitting the upsampled half
    w1s = w1_t[:, cout:, :].astype(jnp.bfloat16)               # taps hitting the skip half
    w2_t, shift2 = _conv_bn_fold(w2, b2, g2, be2, m2, v2)
    w2_t = w2_t.astype(jnp.bfloat16)

    kernel = functools.partial(_decoder_block_kernel, Wp=Wp, M=M)

    flops = B * (2 * 4 * N * cin * cout + 2 * 9 * M * cout * cout * 3)
    bytes_accessed = ((x_flat.size + skip_flat.size) * 2 + B * M * cout * 4 + 3 * N * 4
                      + (wd4.size + w1u.size + w1s.size + w2_t.size) * 2)

    out_flat = pl.pallas_call(
        kernel,
        out_shape=jax.ShapeDtypeStruct((B, M, cout), jnp.float32),
        grid_spec=pltpu.PrefetchScalarGridSpec(
            num_scalar_prefetch=0,
            grid=(B,),
            in_specs=[
                pl.BlockSpec((1, N, cin), lambda b: (b, 0, 0)),        # x_flat
                pl.BlockSpec((1, N, cout), lambda b: (b, 0, 0)),       # skip_flat
                pl.BlockSpec((N, 1), lambda b: (0, 0)),                # interior mask
                pl.BlockSpec((N, 1), lambda b: (0, 0)),                # row-phase select
                pl.BlockSpec((N, 1), lambda b: (0, 0)),                # col-phase select
                pl.BlockSpec((4, cin, cout), lambda b: (0, 0, 0)),     # deconv phase weights
                pl.BlockSpec((1, cout), lambda b: (0, 0)),             # deconv bias
                pl.BlockSpec((9, cout, cout), lambda b: (0, 0, 0)),    # conv1 weights (up group)
                pl.BlockSpec((9, cout, cout), lambda b: (0, 0, 0)),    # conv1 weights (skip group)
                pl.BlockSpec((1, cout), lambda b: (0, 0)),             # conv1 folded BN shift
                pl.BlockSpec((9, cout, cout), lambda b: (0, 0, 0)),    # conv2 weights
                pl.BlockSpec((1, cout), lambda b: (0, 0)),             # conv2 folded BN shift
            ],
            out_specs=pl.BlockSpec((1, M, cout), lambda b: (b, 0, 0)),
            scratch_shapes=[pltpu.VMEM((N, cout), jnp.bfloat16)],      # zero-padded h1
        ),
        compiler_params=pltpu.CompilerParams(dimension_semantics=("parallel",)),
        cost_estimate=pl.CostEstimate(flops=flops, transcendentals=0,
                                      bytes_accessed=bytes_accessed),
    )(x_flat, skip_flat, interior, sel_r0, sel_c0,
      wd4, b_up, w1u, w1s, shift1, w2_t, shift2)

    out = out_flat.reshape(B, H2, Wp, cout)[:, :, :W2, :]      # drop the junk pad columns
    return jnp.transpose(out, (0, 3, 1, 2))                    # back to NCHW


# ----------------------------- pure-JAX reference ------------------------------
def decoder_block_reference(x, skip, params):
    (wd, bd, w1, b1, g1, be1, m1, v1, w2, b2, g2, be2, m2, v2) = params
    # ConvTranspose2d(k=2, s=2, p=0): out[n,oc,2i+ki,2j+kj] = sum_ic x[n,ic,i,j]*wd[ic,oc,ki,kj]+bd
    up6 = jnp.einsum("ncij,cokl->noikjl", x, wd)
    B, cout, H, _, W, _ = up6.shape
    up = up6.reshape(B, cout, 2 * H, 2 * W) + bd[None, :, None, None]
    cat = jnp.concatenate([up, skip], axis=1)

    def conv_bn_relu(z, w, b, gamma, beta, mean, var):
        y = lax.conv_general_dilated(z, w, window_strides=(1, 1),
                                     padding=((1, 1), (1, 1)),
                                     dimension_numbers=("NCHW", "OIHW", "NCHW"))
        y = y + b[None, :, None, None]
        scale = gamma / jnp.sqrt(var + BN_EPS)
        y = (y - mean[None, :, None, None]) * scale[None, :, None, None] + beta[None, :, None, None]
        return jnp.maximum(y, 0.0)

    h = conv_bn_relu(cat, w1, b1, g1, be1, m1, v1)
    return conv_bn_relu(h, w2, b2, g2, be2, m2, v2)


def init_params(key, in_c, out_c):
    ks = jax.random.split(key, 14)
    wd = jax.random.normal(ks[0], (in_c, out_c, 2, 2), jnp.float32) / (4.0 * in_c) ** 0.5
    bd = 0.1 * jax.random.normal(ks[1], (out_c,), jnp.float32)
    w1 = jax.random.normal(ks[2], (out_c, 2 * out_c, 3, 3), jnp.float32) / (18.0 * out_c) ** 0.5
    b1 = 0.1 * jax.random.normal(ks[3], (out_c,), jnp.float32)
    g1 = 1.0 + 0.1 * jax.random.normal(ks[4], (out_c,), jnp.float32)
    be1 = 0.1 * jax.random.normal(ks[5], (out_c,), jnp.float32)
    m1 = 0.1 * jax.random.normal(ks[6], (out_c,), jnp.float32)
    v1 = jax.random.uniform(ks[7], (out_c,), jnp.float32, 0.5, 1.5)
    w2 = jax.random.normal(ks[8], (out_c, out_c, 3, 3), jnp.float32) / (9.0 * out_c) ** 0.5
    b2 = 0.1 * jax.random.normal(ks[9], (out_c,), jnp.float32)
    g2 = 1.0 + 0.1 * jax.random.normal(ks[10], (out_c,), jnp.float32)
    be2 = 0.1 * jax.random.normal(ks[11], (out_c,), jnp.float32)
    m2 = 0.1 * jax.random.normal(ks[12], (out_c,), jnp.float32)
    v2 = jax.random.uniform(ks[13], (out_c,), jnp.float32, 0.5, 1.5)
    return (wd, bd, w1, b1, g1, be1, m1, v1, w2, b2, g2, be2, m2, v2)


# ----------------------------- main --------------------------------------------
if __name__ == "__main__":
    key = jax.random.PRNGKey(0)
    B, IN_C, OUT_C, H, W = 2, 32, 16, 8, 8

    kx, ksk, kp = jax.random.split(key, 3)
    x = jax.random.normal(kx, (B, IN_C, H, W), jnp.float32)
    skip = jax.random.normal(ksk, (B, OUT_C, 2 * H, 2 * W), jnp.float32)
    params = init_params(kp, IN_C, OUT_C)

    out = decoder_block_forward(x, skip, params)
    out = jax.block_until_ready(out)

    ref = decoder_block_reference(x, skip, params)
    assert out.shape == (B, OUT_C, 2 * H, 2 * W), out.shape
    err = float(jnp.max(jnp.abs(out - ref)))
    ref_max = float(jnp.max(jnp.abs(ref)))
    # bf16 MXU inputs (f32 accumulation) across three stacked layers -> relaxed tolerance.
    assert err <= 5e-2 * max(1.0, ref_max), f"mismatch vs reference: max_err={err}, ref_max={ref_max}"
    print("KERNEL_OK")
</pallas_src>

<mosaic_0001>
module attributes {stable_mosaic.version = 11 : i64} {
  func.func @_decoder_block_kernel(%arg0: i32, %arg1: memref<1x360x32xbf16, #tpu.memory_space<vmem>>, %arg2: memref<1x360x16xbf16, #tpu.memory_space<vmem>>, %arg3: memref<360x1xf32, #tpu.memory_space<vmem>>, %arg4: memref<360x1xf32, #tpu.memory_space<vmem>>, %arg5: memref<360x1xf32, #tpu.memory_space<vmem>>, %arg6: memref<4x32x16xbf16, #tpu.memory_space<vmem>>, %arg7: memref<1x16xf32, #tpu.memory_space<vmem>>, %arg8: memref<9x16x16xbf16, #tpu.memory_space<vmem>>, %arg9: memref<9x16x16xbf16, #tpu.memory_space<vmem>>, %arg10: memref<1x16xf32, #tpu.memory_space<vmem>>, %arg11: memref<9x16x16xbf16, #tpu.memory_space<vmem>>, %arg12: memref<1x16xf32, #tpu.memory_space<vmem>>, %arg13: memref<1x288x16xf32, #tpu.memory_space<vmem>>, %arg14: memref<360x16xbf16, #tpu.memory_space<vmem>>) attributes {dimension_semantics = [#tpu.dimension_semantics<parallel>], iteration_bounds = array<i64: 2>, scalar_prefetch = 0 : i64, scratch_operands = 1 : i64, tpu.core_type = #tpu.core_type<tc>, window_params = [{transform_indices = @transform_0, window_bounds = array<i64: 1, 360, 32>}, {transform_indices = @transform_1, window_bounds = array<i64: 1, 360, 16>}, {pipeline_mode = #tpu.pipeline_mode<synchronous>, transform_indices = @transform_2, window_bounds = array<i64: 360, 1>}, {pipeline_mode = #tpu.pipeline_mode<synchronous>, transform_indices = @transform_3, window_bounds = array<i64: 360, 1>}, {pipeline_mode = #tpu.pipeline_mode<synchronous>, transform_indices = @transform_4, window_bounds = array<i64: 360, 1>}, {pipeline_mode = #tpu.pipeline_mode<synchronous>, transform_indices = @transform_5, window_bounds = array<i64: 4, 32, 16>}, {pipeline_mode = #tpu.pipeline_mode<synchronous>, transform_indices = @transform_6, window_bounds = array<i64: 1, 16>}, {pipeline_mode = #tpu.pipeline_mode<synchronous>, transform_indices = @transform_7, window_bounds = array<i64: 9, 16, 16>}, {pipeline_mode = #tpu.pipeline_mode<synchronous>, transform_indices = @transform_8, window_bounds = array<i64: 9, 16, 16>}, {pipeline_mode = #tpu.pipeline_mode<synchronous>, transform_indices = @transform_9, window_bounds = array<i64: 1, 16>}, {pipeline_mode = #tpu.pipeline_mode<synchronous>, transform_indices = @transform_10, window_bounds = array<i64: 9, 16, 16>}, {pipeline_mode = #tpu.pipeline_mode<synchronous>, transform_indices = @transform_11, window_bounds = array<i64: 1, 16>}, {transform_indices = @transform_12, window_bounds = array<i64: 1, 288, 16>}]} {
    %c0 = arith.constant 0 : index
    %c0_0 = arith.constant 0 : index
    %c0_1 = arith.constant 0 : index
    %0 = vector.load %arg1[%c0, %c0_0, %c0_1] : memref<1x360x32xbf16, #tpu.memory_space<vmem>>, vector<1x360x32xbf16>
    %1 = vector.shape_cast %0 : vector<1x360x32xbf16> to vector<360x32xbf16>
    %c0_2 = arith.constant 0 : index
    %c0_3 = arith.constant 0 : index
    %c0_4 = arith.constant 0 : index
    %2 = vector.load %arg2[%c0_2, %c0_3, %c0_4] : memref<1x360x16xbf16, #tpu.memory_space<vmem>>, vector<1x360x16xbf16>
    %3 = vector.shape_cast %2 : vector<1x360x16xbf16> to vector<360x16xbf16>
    %c0_5 = arith.constant 0 : index
    %c0_6 = arith.constant 0 : index
    %4 = vector.load %arg3[%c0_5, %c0_6] : memref<360x1xf32, #tpu.memory_space<vmem>>, vector<360x1xf32>
    %c0_7 = arith.constant 0 : index
    %c0_8 = arith.constant 0 : index
    %5 = vector.load %arg4[%c0_7, %c0_8] : memref<360x1xf32, #tpu.memory_space<vmem>>, vector<360x1xf32>
    %c0_9 = arith.constant 0 : index
    %c0_10 = arith.constant 0 : index
    %6 = vector.load %arg5[%c0_9, %c0_10] : memref<360x1xf32, #tpu.memory_space<vmem>>, vector<360x1xf32>
    %c0_11 = arith.constant 0 : index
    %c0_12 = arith.constant 0 : index
    %c0_13 = arith.constant 0 : index
    %7 = vector.load %arg6[%c0_11, %c0_12, %c0_13] : memref<4x32x16xbf16, #tpu.memory_space<vmem>>, vector<1x32x16xbf16>
    %8 = vector.shape_cast %7 : vector<1x32x16xbf16> to vector<32x16xbf16>
    %cst = arith.constant dense<0.000000e+00> : vector<360x16xf32>
    %9 = tpu.matmul %1, %8, %cst {dimension_numbers = #tpu.dot_dimension_numbers<[1], [0], [0], [1], [0, 0, 1, 1], [], []>} : vector<360x32xbf16>, vector<32x16xbf16>, vector<360x16xf32> -> vector<360x16xf32>
    %c1 = arith.constant 1 : index
    %c0_14 = arith.constant 0 : index
    %c0_15 = arith.constant 0 : index
    %10 = vector.load %arg6[%c1, %c0_14, %c0_15] : memref<4x32x16xbf16, #tpu.memory_space<vmem>>, vector<1x32x16xbf16>
    %11 = vector.shape_cast %10 : vector<1x32x16xbf16> to vector<32x16xbf16>
    %cst_16 = arith.constant dense<0.000000e+00> : vector<360x16xf32>
    %12 = tpu.matmul %1, %11, %cst_16 {dimension_numbers = #tpu.dot_dimension_numbers<[1], [0], [0], [1], [0, 0, 1, 1], [], []>} : vector<360x32xbf16>, vector<32x16xbf16>, vector<360x16xf32> -> vector<360x16xf32>
    %c2 = arith.constant 2 : index
    %c0_17 = arith.constant 0 : index
    %c0_18 = arith.constant 0 : index
    %13 = vector.load %arg6[%c2, %c0_17, %c0_18] : memref<4x32x16xbf16, #tpu.memory_space<vmem>>, vector<1x32x16xbf16>
    %14 = vector.shape_cast %13 : vector<1x32x16xbf16> to vector<32x16xbf16>
    %cst_19 = arith.constant dense<0.000000e+00> : vector<360x16xf32>
    %15 = tpu.matmul %1, %14, %cst_19 {dimension_numbers = #tpu.dot_dimension_numbers<[1], [0], [0], [1], [0, 0, 1, 1], [], []>} : vector<360x32xbf16>, vector<32x16xbf16>, vector<360x16xf32> -> vector<360x16xf32>
    %c3 = arith.constant 3 : index
    %c0_20 = arith.constant 0 : index
    %c0_21 = arith.constant 0 : index
    %16 = vector.load %arg6[%c3, %c0_20, %c0_21] : memref<4x32x16xbf16, #tpu.memory_space<vmem>>, vector<1x32x16xbf16>
    %17 = vector.shape_cast %16 : vector<1x32x16xbf16> to vector<32x16xbf16>
    %cst_22 = arith.constant dense<0.000000e+00> : vector<360x16xf32>
    %18 = tpu.matmul %1, %17, %cst_22 {dimension_numbers = #tpu.dot_dimension_numbers<[1], [0], [0], [1], [0, 0, 1, 1], [], []>} : vector<360x32xbf16>, vector<32x16xbf16>, vector<360x16xf32> -> vector<360x16xf32>
    %19 = vector.broadcast %6 : vector<360x1xf32> to vector<360x16xf32>
    %20 = arith.mulf %19, %9 : vector<360x16xf32>
    %cst_23 = arith.constant 1.000000e+00 : f32
    %21 = vector.broadcast %cst_23 : f32 to vector<360x1xf32>
    %22 = arith.subf %21, %6 : vector<360x1xf32>
    %23 = vector.broadcast %22 : vector<360x1xf32> to vector<360x16xf32>
    %24 = arith.mulf %23, %12 : vector<360x16xf32>
    %25 = arith.addf %20, %24 : vector<360x16xf32>
    %26 = vector.broadcast %5 : vector<360x1xf32> to vector<360x16xf32>
    %27 = arith.mulf %26, %25 : vector<360x16xf32>
    %cst_24 = arith.constant 1.000000e+00 : f32
    %28 = vector.broadcast %cst_24 : f32 to vector<360x1xf32>
    %29 = arith.subf %28, %5 : vector<360x1xf32>
    %30 = vector.broadcast %6 : vector<360x1xf32> to vector<360x16xf32>
    %31 = arith.mulf %30, %15 : vector<360x16xf32>
    %cst_25 = arith.constant 1.000000e+00 : f32
    %32 = vector.broadcast %cst_25 : f32 to vector<360x1xf32>
    %33 = arith.subf %32, %6 : vector<360x1xf32>
    %34 = vector.broadcast %33 : vector<360x1xf32> to vector<360x16xf32>
    %35 = arith.mulf %34, %18 : vector<360x16xf32>
    %36 = arith.addf %31, %35 : vector<360x16xf32>
    %37 = vector.broadcast %29 : vector<360x1xf32> to vector<360x16xf32>
    %38 = arith.mulf %37, %36 : vector<360x16xf32>
    %39 = arith.addf %27, %38 : vector<360x16xf32>
    %c0_26 = arith.constant 0 : index
    %c0_27 = arith.constant 0 : index
    %40 = vector.load %arg7[%c0_26, %c0_27] : memref<1x16xf32, #tpu.memory_space<vmem>>, vector<1x16xf32>
    %41 = vector.broadcast %40 : vector<1x16xf32> to vector<360x16xf32>
    %42 = arith.addf %39, %41 : vector<360x16xf32>
    %43 = vector.broadcast %4 : vector<360x1xf32> to vector<360x16xf32>
    %44 = arith.mulf %42, %43 : vector<360x16xf32>
    %45 = arith.truncf %44 : vector<360x16xf32> to vector<360x16xbf16>
    %cst_28 = arith.constant 0.000000e+00 : f32
    %46 = vector.broadcast %cst_28 : f32 to vector<288x16xf32>
    %47 = vector.extract_strided_slice %45 {offsets = [0, 0], sizes = [288, 16], strides = [1, 1]} : vector<360x16xbf16> to vector<288x16xbf16>
    %c0_29 = arith.constant 0 : index
    %c0_30 = arith.constant 0 : index
    %c0_31 = arith.constant 0 : index
    %48 = vector.load %arg8[%c0_29, %c0_30, %c0_31] : memref<9x16x16xbf16, #tpu.memory_space<vmem>>, vector<1x16x16xbf16>
    %49 = vector.shape_cast %48 : vector<1x16x16xbf16> to vector<16x16xbf16>
    %cst_32 = arith.constant dense<0.000000e+00> : vector<288x16xf32>
    %50 = tpu.matmul %47, %49, %cst_32 {dimension_numbers = #tpu.dot_dimension_numbers<[1], [0], [0], [1], [0, 0, 1, 1], [], []>} : vector<288x16xbf16>, vector<16x16xbf16>, vector<288x16xf32> -> vector<288x16xf32>
    %51 = arith.addf %46, %50 : vector<288x16xf32>
    %52 = vector.extract_strided_slice %3 {offsets = [0, 0], sizes = [288, 16], strides = [1, 1]} : vector<360x16xbf16> to vector<288x16xbf16>
    %c0_33 = arith.constant 0 : index
    %c0_34 = arith.constant 0 : index
    %c0_35 = arith.constant 0 : index
    %53 = vector.load %arg9[%c0_33, %c0_34, %c0_35] : memref<9x16x16xbf16, #tpu.memory_space<vmem>>, vector<1x16x16xbf16>
    %54 = vector.shape_cast %53 : vector<1x16x16xbf16> to vector<16x16xbf16>
    %cst_36 = arith.constant dense<0.000000e+00> : vector<288x16xf32>
    %55 = tpu.matmul %52, %54, %cst_36 {dimension_numbers = #tpu.dot_dimension_numbers<[1], [0], [0], [1], [0, 0, 1, 1], [], []>} : vector<288x16xbf16>, vector<16x16xbf16>, vector<288x16xf32> -> vector<288x16xf32>
    %56 = arith.addf %51, %55 : vector<288x16xf32>
    %57 = vector.extract_strided_slice %45 {offsets = [1, 0], sizes = [288, 16], strides = [1, 1]} : vector<360x16xbf16> to vector<288x16xbf16>
    %c1_37 = arith.constant 1 : index
    %c0_38 = arith.constant 0 : index
    %c0_39 = arith.constant 0 : index
    %58 = vector.load %arg8[%c1_37, %c0_38, %c0_39] : memref<9x16x16xbf16, #tpu.memory_space<vmem>>, vector<1x16x16xbf16>
    %59 = vector.shape_cast %58 : vector<1x16x16xbf16> to vector<16x16xbf16>
    %cst_40 = arith.constant dense<0.000000e+00> : vector<288x16xf32>
    %60 = tpu.matmul %57, %59, %cst_40 {dimension_numbers = #tpu.dot_dimension_numbers<[1], [0], [0], [1], [0, 0, 1, 1], [], []>} : vector<288x16xbf16>, vector<16x16xbf16>, vector<288x16xf32> -> vector<288x16xf32>
    %61 = arith.addf %56, %60 : vector<288x16xf32>
    %62 = vector.extract_strided_slice %3 {offsets = [1, 0], sizes = [288, 16], strides = [1, 1]} : vector<360x16xbf16> to vector<288x16xbf16>
    %c1_41 = arith.constant 1 : index
    %c0_42 = arith.constant 0 : index
    %c0_43 = arith.constant 0 : index
    %63 = vector.load %arg9[%c1_41, %c0_42, %c0_43] : memref<9x16x16xbf16, #tpu.memory_space<vmem>>, vector<1x16x16xbf16>
    %64 = vector.shape_cast %63 : vector<1x16x16xbf16> to vector<16x16xbf16>
    %cst_44 = arith.constant dense<0.000000e+00> : vector<288x16xf32>
    %65 = tpu.matmul %62, %64, %cst_44 {dimension_numbers = #tpu.dot_dimension_numbers<[1], [0], [0], [1], [0, 0, 1, 1], [], []>} : vector<288x16xbf16>, vector<16x16xbf16>, vector<288x16xf32> -> vector<288x16xf32>
    %66 = arith.addf %61, %65 : vector<288x16xf32>
    %67 = vector.extract_strided_slice %45 {offsets = [2, 0], sizes = [288, 16], strides = [1, 1]} : vector<360x16xbf16> to vector<288x16xbf16>
    %c2_45 = arith.constant 2 : index
    %c0_46 = arith.constant 0 : index
    %c0_47 = arith.constant 0 : index
    %68 = vector.load %arg8[%c2_45, %c0_46, %c0_47] : memref<9x16x16xbf16, #tpu.memory_space<vmem>>, vector<1x16x16xbf16>
    %69 = vector.shape_cast %68 : vector<1x16x16xbf16> to vector<16x16xbf16>
    %cst_48 = arith.constant dense<0.000000e+00> : vector<288x16xf32>
    %70 = tpu.matmul %67, %69, %cst_48 {dimension_numbers = #tpu.dot_dimension_numbers<[1], [0], [0], [1], [0, 0, 1, 1], [], []>} : vector<288x16xbf16>, vector<16x16xbf16>, vector<288x16xf32> -> vector<288x16xf32>
    %71 = arith.addf %66, %70 : vector<288x16xf32>
    %72 = vector.extract_strided_slice %3 {offsets = [2, 0], sizes = [288, 16], strides = [1, 1]} : vector<360x16xbf16> to vector<288x16xbf16>
    %c2_49 = arith.constant 2 : index
    %c0_50 = arith.constant 0 : index
    %c0_51 = arith.constant 0 : index
    %73 = vector.load %arg9[%c2_49, %c0_50, %c0_51] : memref<9x16x16xbf16, #tpu.memory_space<vmem>>, vector<1x16x16xbf16>
    %74 = vector.shape_cast %73 : vector<1x16x16xbf16> to vector<16x16xbf16>
    %cst_52 = arith.constant dense<0.000000e+00> : vector<288x16xf32>
    %75 = tpu.matmul %72, %74, %cst_52 {dimension_numbers = #tpu.dot_dimension_numbers<[1], [0], [0], [1], [0, 0, 1, 1], [], []>} : vector<288x16xbf16>, vector<16x16xbf16>, vector<288x16xf32> -> vector<288x16xf32>
    %76 = arith.addf %71, %75 : vector<288x16xf32>
    %77 = vector.extract_strided_slice %45 {offsets = [18, 0], sizes = [288, 16], strides = [1, 1]} : vector<360x16xbf16> to vector<288x16xbf16>
    %c3_53 = arith.constant 3 : index
    %c0_54 = arith.constant 0 : index
    %c0_55 = arith.constant 0 : index
    %78 = vector.load %arg8[%c3_53, %c0_54, %c0_55] : memref<9x16x16xbf16, #tpu.memory_space<vmem>>, vector<1x16x16xbf16>
    %79 = vector.shape_cast %78 : vector<1x16x16xbf16> to vector<16x16xbf16>
    %cst_56 = arith.constant dense<0.000000e+00> : vector<288x16xf32>
    %80 = tpu.matmul %77, %79, %cst_56 {dimension_numbers = #tpu.dot_dimension_numbers<[1], [0], [0], [1], [0, 0, 1, 1], [], []>} : vector<288x16xbf16>, vector<16x16xbf16>, vector<288x16xf32> -> vector<288x16xf32>
    %81 = arith.addf %76, %80 : vector<288x16xf32>
    %82 = vector.extract_strided_slice %3 {offsets = [18, 0], sizes = [288, 16], strides = [1, 1]} : vector<360x16xbf16> to vector<288x16xbf16>
    %c3_57 = arith.constant 3 : index
    %c0_58 = arith.constant 0 : index
    %c0_59 = arith.constant 0 : index
    %83 = vector.load %arg9[%c3_57, %c0_58, %c0_59] : memref<9x16x16xbf16, #tpu.memory_space<vmem>>, vector<1x16x16xbf16>
    %84 = vector.shape_cast %83 : vector<1x16x16xbf16> to vector<16x16xbf16>
    %cst_60 = arith.constant dense<0.000000e+00> : vector<288x16xf32>
    %85 = tpu.matmul %82, %84, %cst_60 {dimension_numbers = #tpu.dot_dimension_numbers<[1], [0], [0], [1], [0, 0, 1, 1], [], []>} : vector<288x16xbf16>, vector<16x16xbf16>, vector<288x16xf32> -> vector<288x16xf32>
    %86 = arith.addf %81, %85 : vector<288x16xf32>
    %87 = vector.extract_strided_slice %45 {offsets = [19, 0], sizes = [288, 16], strides = [1, 1]} : vector<360x16xbf16> to vector<288x16xbf16>
    %c4 = arith.constant 4 : index
    %c0_61 = arith.constant 0 : index
    %c0_62 = arith.constant 0 : index
    %88 = vector.load %arg8[%c4, %c0_61, %c0_62] : memref<9x16x16xbf16, #tpu.memory_space<vmem>>, vector<1x16x16xbf16>
    %89 = vector.shape_cast %88 : vector<1x16x16xbf16> to vector<16x16xbf16>
    %cst_63 = arith.constant dense<0.000000e+00> : vector<288x16xf32>
    %90 = tpu.matmul %87, %89, %cst_63 {dimension_numbers = #tpu.dot_dimension_numbers<[1], [0], [0], [1], [0, 0, 1, 1], [], []>} : vector<288x16xbf16>, vector<16x16xbf16>, vector<288x16xf32> -> vector<288x16xf32>
    %91 = arith.addf %86, %90 : vector<288x16xf32>
    %92 = vector.extract_strided_slice %3 {offsets = [19, 0], sizes = [288, 16], strides = [1, 1]} : vector<360x16xbf16> to vector<288x16xbf16>
    %c4_64 = arith.constant 4 : index
    %c0_65 = arith.constant 0 : index
    %c0_66 = arith.constant 0 : index
    %93 = vector.load %arg9[%c4_64, %c0_65, %c0_66] : memref<9x16x16xbf16, #tpu.memory_space<vmem>>, vector<1x16x16xbf16>
    %94 = vector.shape_cast %93 : vector<1x16x16xbf16> to vector<16x16xbf16>
    %cst_67 = arith.constant dense<0.000000e+00> : vector<288x16xf32>
    %95 = tpu.matmul %92, %94, %cst_67 {dimension_numbers = #tpu.dot_dimension_numbers<[1], [0], [0], [1], [0, 0, 1, 1], [], []>} : vector<288x16xbf16>, vector<16x16xbf16>, vector<288x16xf32> -> vector<288x16xf32>
    %96 = arith.addf %91, %95 : vector<288x16xf32>
    %97 = vector.extract_strided_slice %45 {offsets = [20, 0], sizes = [288, 16], strides = [1, 1]} : vector<360x16xbf16> to vector<288x16xbf16>
    %c5 = arith.constant 5 : index
    %c0_68 = arith.constant 0 : index
    %c0_69 = arith.constant 0 : index
    %98 = vector.load %arg8[%c5, %c0_68, %c0_69] : memref<9x16x16xbf16, #tpu.memory_space<vmem>>, vector<1x16x16xbf16>
    %99 = vector.shape_cast %98 : vector<1x16x16xbf16> to vector<16x16xbf16>
    %cst_70 = arith.constant dense<0.000000e+00> : vector<288x16xf32>
    %100 = tpu.matmul %97, %99, %cst_70 {dimension_numbers = #tpu.dot_dimension_numbers<[1], [0], [0], [1], [0, 0, 1, 1], [], []>} : vector<288x16xbf16>, vector<16x16xbf16>, vector<288x16xf32> -> vector<288x16xf32>
    %101 = arith.addf %96, %100 : vector<288x16xf32>
    %102 = vector.extract_strided_slice %3 {offsets = [20, 0], sizes = [288, 16], strides = [1, 1]} : vector<360x16xbf16> to vector<288x16xbf16>
    %c5_71 = arith.constant 5 : index
    %c0_72 = arith.constant 0 : index
    %c0_73 = arith.constant 0 : index
    %103 = vector.load %arg9[%c5_71, %c0_72, %c0_73] : memref<9x16x16xbf16, #tpu.memory_space<vmem>>, vector<1x16x16xbf16>
    %104 = vector.shape_cast %103 : vector<1x16x16xbf16> to vector<16x16xbf16>
    %cst_74 = arith.constant dense<0.000000e+00> : vector<288x16xf32>
    %105 = tpu.matmul %102, %104, %cst_74 {dimension_numbers = #tpu.dot_dimension_numbers<[1], [0], [0], [1], [0, 0, 1, 1], [], []>} : vector<288x16xbf16>, vector<16x16xbf16>, vector<288x16xf32> -> vector<288x16xf32>
    %106 = arith.addf %101, %105 : vector<288x16xf32>
    %107 = vector.extract_strided_slice %45 {offsets = [36, 0], sizes = [288, 16], strides = [1, 1]} : vector<360x16xbf16> to vector<288x16xbf16>
    %c6 = arith.constant 6 : index
    %c0_75 = arith.constant 0 : index
    %c0_76 = arith.constant 0 : index
    %108 = vector.load %arg8[%c6, %c0_75, %c0_76] : memref<9x16x16xbf16, #tpu.memory_space<vmem>>, vector<1x16x16xbf16>
    %109 = vector.shape_cast %108 : vector<1x16x16xbf16> to vector<16x16xbf16>
    %cst_77 = arith.constant dense<0.000000e+00> : vector<288x16xf32>
    %110 = tpu.matmul %107, %109, %cst_77 {dimension_numbers = #tpu.dot_dimension_numbers<[1], [0], [0], [1], [0, 0, 1, 1], [], []>} : vector<288x16xbf16>, vector<16x16xbf16>, vector<288x16xf32> -> vector<288x16xf32>
    %111 = arith.addf %106, %110 : vector<288x16xf32>
    %112 = vector.extract_strided_slice %3 {offsets = [36, 0], sizes = [288, 16], strides = [1, 1]} : vector<360x16xbf16> to vector<288x16xbf16>
    %c6_78 = arith.constant 6 : index
    %c0_79 = arith.constant 0 : index
    %c0_80 = arith.constant 0 : index
    %113 = vector.load %arg9[%c6_78, %c0_79, %c0_80] : memref<9x16x16xbf16, #tpu.memory_space<vmem>>, vector<1x16x16xbf16>
    %114 = vector.shape_cast %113 : vector<1x16x16xbf16> to vector<16x16xbf16>
    %cst_81 = arith.constant dense<0.000000e+00> : vector<288x16xf32>
    %115 = tpu.matmul %112, %114, %cst_81 {dimension_numbers = #tpu.dot_dimension_numbers<[1], [0], [0], [1], [0, 0, 1, 1], [], []>} : vector<288x16xbf16>, vector<16x16xbf16>, vector<288x16xf32> -> vector<288x16xf32>
    %116 = arith.addf %111, %115 : vector<288x16xf32>
    %117 = vector.extract_strided_slice %45 {offsets = [37, 0], sizes = [288, 16], strides = [1, 1]} : vector<360x16xbf16> to vector<288x16xbf16>
    %c7 = arith.constant 7 : index
    %c0_82 = arith.constant 0 : index
    %c0_83 = arith.constant 0 : index
    %118 = vector.load %arg8[%c7, %c0_82, %c0_83] : memref<9x16x16xbf16, #tpu.memory_space<vmem>>, vector<1x16x16xbf16>
    %119 = vector.shape_cast %118 : vector<1x16x16xbf16> to vector<16x16xbf16>
    %cst_84 = arith.constant dense<0.000000e+00> : vector<288x16xf32>
    %120 = tpu.matmul %117, %119, %cst_84 {dimension_numbers = #tpu.dot_dimension_numbers<[1], [0], [0], [1], [0, 0, 1, 1], [], []>} : vector<288x16xbf16>, vector<16x16xbf16>, vector<288x16xf32> -> vector<288x16xf32>
    %121 = arith.addf %116, %120 : vector<288x16xf32>
    %122 = vector.extract_strided_slice %3 {offsets = [37, 0], sizes = [288, 16], strides = [1, 1]} : vector<360x16xbf16> to vector<288x16xbf16>
    %c7_85 = arith.constant 7 : index
    %c0_86 = arith.constant 0 : index
    %c0_87 = arith.constant 0 : index
    %123 = vector.load %arg9[%c7_85, %c0_86, %c0_87] : memref<9x16x16xbf16, #tpu.memory_space<vmem>>, vector<1x16x16xbf16>
    %124 = vector.shape_cast %123 : vector<1x16x16xbf16> to vector<16x16xbf16>
    %cst_88 = arith.constant dense<0.000000e+00> : vector<288x16xf32>
    %125 = tpu.matmul %122, %124, %cst_88 {dimension_numbers = #tpu.dot_dimension_numbers<[1], [0], [0], [1], [0, 0, 1, 1], [], []>} : vector<288x16xbf16>, vector<16x16xbf16>, vector<288x16xf32> -> vector<288x16xf32>
    %126 = arith.addf %121, %125 : vector<288x16xf32>
    %127 = vector.extract_strided_slice %45 {offsets = [38, 0], sizes = [288, 16], strides = [1, 1]} : vector<360x16xbf16> to vector<288x16xbf16>
    %c8 = arith.constant 8 : index
    %c0_89 = arith.constant 0 : index
    %c0_90 = arith.constant 0 : index
    %128 = vector.load %arg8[%c8, %c0_89, %c0_90] : memref<9x16x16xbf16, #tpu.memory_space<vmem>>, vector<1x16x16xbf16>
    %129 = vector.shape_cast %128 : vector<1x16x16xbf16> to vector<16x16xbf16>
    %cst_91 = arith.constant dense<0.000000e+00> : vector<288x16xf32>
    %130 = tpu.matmul %127, %129, %cst_91 {dimension_numbers = #tpu.dot_dimension_numbers<[1], [0], [0], [1], [0, 0, 1, 1], [], []>} : vector<288x16xbf16>, vector<16x16xbf16>, vector<288x16xf32> -> vector<288x16xf32>
    %131 = arith.addf %126, %130 : vector<288x16xf32>
    %132 = vector.extract_strided_slice %3 {offsets = [38, 0], sizes = [288, 16], strides = [1, 1]} : vector<360x16xbf16> to vector<288x16xbf16>
    %c8_92 = arith.constant 8 : index
    %c0_93 = arith.constant 0 : index
    %c0_94 = arith.constant 0 : index
    %133 = vector.load %arg9[%c8_92, %c0_93, %c0_94] : memref<9x16x16xbf16, #tpu.memory_space<vmem>>, vector<1x16x16xbf16>
    %134 = vector.shape_cast %133 : vector<1x16x16xbf16> to vector<16x16xbf16>
    %cst_95 = arith.constant dense<0.000000e+00> : vector<288x16xf32>
    %135 = tpu.matmul %132, %134, %cst_95 {dimension_numbers = #tpu.dot_dimension_numbers<[1], [0], [0], [1], [0, 0, 1, 1], [], []>} : vector<288x16xbf16>, vector<16x16xbf16>, vector<288x16xf32> -> vector<288x16xf32>
    %136 = arith.addf %131, %135 : vector<288x16xf32>
    %c0_96 = arith.constant 0 : index
    %c0_97 = arith.constant 0 : index
    %137 = vector.load %arg10[%c0_96, %c0_97] : memref<1x16xf32, #tpu.memory_space<vmem>>, vector<1x16xf32>
    %138 = vector.broadcast %137 : vector<1x16xf32> to vector<288x16xf32>
    %139 = arith.addf %136, %138 : vector<288x16xf32>
    %cst_98 = arith.constant 0.000000e+00 : f32
    %140 = vector.broadcast %cst_98 : f32 to vector<288x16xf32>
    %141 = arith.maximumf %139, %140 : vector<288x16xf32>
    %cst_99 = arith.constant 0.000000e+00 : bf16
    %142 = vector.broadcast %cst_99 : bf16 to vector<360x16xbf16>
    %c0_100 = arith.constant 0 : index
    %c0_101 = arith.constant 0 : index
    %143 = vector.load %arg14[%c0_100, %c0_101] : memref<360x16xbf16, #tpu.memory_space<vmem>>, vector<360x16xbf16>
    tpu.vector_store %arg14[%c0_100, %c0_101], %142 {strides = array<i32>} : memref<360x16xbf16, #tpu.memory_space<vmem>>, vector<360x16xbf16>,
    %144 = vector.extract_strided_slice %4 {offsets = [19, 0], sizes = [288, 1], strides = [1, 1]} : vector<360x1xf32> to vector<288x1xf32>
    %145 = vector.broadcast %144 : vector<288x1xf32> to vector<288x16xf32>
    %146 = arith.mulf %141, %145 : vector<288x16xf32>
    %147 = arith.truncf %146 : vector<288x16xf32> to vector<288x16xbf16>
    %c19 = arith.constant 19 : index
    %c0_102 = arith.constant 0 : index
    %148 = vector.load %arg14[%c19, %c0_102] : memref<360x16xbf16, #tpu.memory_space<vmem>>, vector<288x16xbf16>
    tpu.vector_store %arg14[%c19, %c0_102], %147 {strides = array<i32>} : memref<360x16xbf16, #tpu.memory_space<vmem>>, vector<288x16xbf16>,
    %cst_103 = arith.constant 0.000000e+00 : f32
    %149 = vector.broadcast %cst_103 : f32 to vector<288x16xf32>
    %c0_104 = arith.constant 0 : index
    %c0_105 = arith.constant 0 : index
    %150 = vector.load %arg14[%c0_104, %c0_105] : memref<360x16xbf16, #tpu.memory_space<vmem>>, vector<288x16xbf16>
    %c0_106 = arith.constant 0 : index
    %c0_107 = arith.constant 0 : index
    %c0_108 = arith.constant 0 : index
    %151 = vector.load %arg11[%c0_106, %c0_107, %c0_108] : memref<9x16x16xbf16, #tpu.memory_space<vmem>>, vector<1x16x16xbf16>
    %152 = vector.shape_cast %151 : vector<1x16x16xbf16> to vector<16x16xbf16>
    %cst_109 = arith.constant dense<0.000000e+00> : vector<288x16xf32>
    %153 = tpu.matmul %150, %152, %cst_109 {dimension_numbers = #tpu.dot_dimension_numbers<[1], [0], [0], [1], [0, 0, 1, 1], [], []>} : vector<288x16xbf16>, vector<16x16xbf16>, vector<288x16xf32> -> vector<288x16xf32>
    %154 = arith.addf %149, %153 : vector<288x16xf32>
    %c1_110 = arith.constant 1 : index
    %c0_111 = arith.constant 0 : index
    %155 = vector.load %arg14[%c1_110, %c0_111] : memref<360x16xbf16, #tpu.memory_space<vmem>>, vector<288x16xbf16>
    %c1_112 = arith.constant 1 : index
    %c0_113 = arith.constant 0 : index
    %c0_114 = arith.constant 0 : index
    %156 = vector.load %arg11[%c1_112, %c0_113, %c0_114] : memref<9x16x16xbf16, #tpu.memory_space<vmem>>, vector<1x16x16xbf16>
    %157 = vector.shape_cast %156 : vector<1x16x16xbf16> to vector<16x16xbf16>
    %cst_115 = arith.constant dense<0.000000e+00> : vector<288x16xf32>
    %158 = tpu.matmul %155, %157, %cst_115 {dimension_numbers = #tpu.dot_dimension_numbers<[1], [0], [0], [1], [0, 0, 1, 1], [], []>} : vector<288x16xbf16>, vector<16x16xbf16>, vector<288x16xf32> -> vector<288x16xf32>
    %159 = arith.addf %154, %158 : vector<288x16xf32>
    %c2_116 = arith.constant 2 : index
    %c0_117 = arith.constant 0 : index
    %160 = vector.load %arg14[%c2_116, %c0_117] : memref<360x16xbf16, #tpu.memory_space<vmem>>, vector<288x16xbf16>
    %c2_118 = arith.constant 2 : index
    %c0_119 = arith.constant 0 : index
    %c0_120 = arith.constant 0 : index
    %161 = vector.load %arg11[%c2_118, %c0_119, %c0_120] : memref<9x16x16xbf16, #tpu.memory_space<vmem>>, vector<1x16x16xbf16>
    %162 = vector.shape_cast %161 : vector<1x16x16xbf16> to vector<16x16xbf16>
    %cst_121 = arith.constant dense<0.000000e+00> : vector<288x16xf32>
    %163 = tpu.matmul %160, %162, %cst_121 {dimension_numbers = #tpu.dot_dimension_numbers<[1], [0], [0], [1], [0, 0, 1, 1], [], []>} : vector<288x16xbf16>, vector<16x16xbf16>, vector<288x16xf32> -> vector<288x16xf32>
    %164 = arith.addf %159, %163 : vector<288x16xf32>
    %c18 = arith.constant 18 : index
    %c0_122 = arith.constant 0 : index
    %165 = vector.load %arg14[%c18, %c0_122] : memref<360x16xbf16, #tpu.memory_space<vmem>>, vector<288x16xbf16>
    %c3_123 = arith.constant 3 : index
    %c0_124 = arith.constant 0 : index
    %c0_125 = arith.constant 0 : index
    %166 = vector.load %arg11[%c3_123, %c0_124, %c0_125] : memref<9x16x16xbf16, #tpu.memory_space<vmem>>, vector<1x16x16xbf16>
    %167 = vector.shape_cast %166 : vector<1x16x16xbf16> to vector<16x16xbf16>
    %cst_126 = arith.constant dense<0.000000e+00> : vector<288x16xf32>
    %168 = tpu.matmul %165, %167, %cst_126 {dimension_numbers = #tpu.dot_dimension_numbers<[1], [0], [0], [1], [0, 0, 1, 1], [], []>} : vector<288x16xbf16>, vector<16x16xbf16>, vector<288x16xf32> -> vector<288x16xf32>
    %169 = arith.addf %164, %168 : vector<288x16xf32>
    %c19_127 = arith.constant 19 : index
    %c0_128 = arith.constant 0 : index
    %170 = vector.load %arg14[%c19_127, %c0_128] : memref<360x16xbf16, #tpu.memory_space<vmem>>, vector<288x16xbf16>
    %c4_129 = arith.constant 4 : index
    %c0_130 = arith.constant 0 : index
    %c0_131 = arith.constant 0 : index
    %171 = vector.load %arg11[%c4_129, %c0_130, %c0_131] : memref<9x16x16xbf16, #tpu.memory_space<vmem>>, vector<1x16x16xbf16>
    %172 = vector.shape_cast %171 : vector<1x16x16xbf16> to vector<16x16xbf16>
    %cst_132 = arith.constant dense<0.000000e+00> : vector<288x16xf32>
    %173 = tpu.matmul %170, %172, %cst_132 {dimension_numbers = #tpu.dot_dimension_numbers<[1], [0], [0], [1], [0, 0, 1, 1], [], []>} : vector<288x16xbf16>, vector<16x16xbf16>, vector<288x16xf32> -> vector<288x16xf32>
    %174 = arith.addf %169, %173 : vector<288x16xf32>
    %c20 = arith.constant 20 : index
    %c0_133 = arith.constant 0 : index
    %175 = vector.load %arg14[%c20, %c0_133] : memref<360x16xbf16, #tpu.memory_space<vmem>>, vector<288x16xbf16>
    %c5_134 = arith.constant 5 : index
    %c0_135 = arith.constant 0 : index
    %c0_136 = arith.constant 0 : index
    %176 = vector.load %arg11[%c5_134, %c0_135, %c0_136] : memref<9x16x16xbf16, #tpu.memory_space<vmem>>, vector<1x16x16xbf16>
    %177 = vector.shape_cast %176 : vector<1x16x16xbf16> to vector<16x16xbf16>
    %cst_137 = arith.constant dense<0.000000e+00> : vector<288x16xf32>
    %178 = tpu.matmul %175, %177, %cst_137 {dimension_numbers = #tpu.dot_dimension_numbers<[1], [0], [0], [1], [0, 0, 1, 1], [], []>} : vector<288x16xbf16>, vector<16x16xbf16>, vector<288x16xf32> -> vector<288x16xf32>
    %179 = arith.addf %174, %178 : vector<288x16xf32>
    %c36 = arith.constant 36 : index
    %c0_138 = arith.constant 0 : index
    %180 = vector.load %arg14[%c36, %c0_138] : memref<360x16xbf16, #tpu.memory_space<vmem>>, vector<288x16xbf16>
    %c6_139 = arith.constant 6 : index
    %c0_140 = arith.constant 0 : index
    %c0_141 = arith.constant 0 : index
    %181 = vector.load %arg11[%c6_139, %c0_140, %c0_141] : memref<9x16x16xbf16, #tpu.memory_space<vmem>>, vector<1x16x16xbf16>
    %182 = vector.shape_cast %181 : vector<1x16x16xbf16> to vector<16x16xbf16>
    %cst_142 = arith.constant dense<0.000000e+00> : vector<288x16xf32>
    %183 = tpu.matmul %180, %182, %cst_142 {dimension_numbers = #tpu.dot_dimension_numbers<[1], [0], [0], [1], [0, 0, 1, 1], [], []>} : vector<288x16xbf16>, vector<16x16xbf16>, vector<288x16xf32> -> vector<288x16xf32>
    %184 = arith.addf %179, %183 : vector<288x16xf32>
    %c37 = arith.constant 37 : index
    %c0_143 = arith.constant 0 : index
    %185 = vector.load %arg14[%c37, %c0_143] : memref<360x16xbf16, #tpu.memory_space<vmem>>, vector<288x16xbf16>
    %c7_144 = arith.constant 7 : index
    %c0_145 = arith.constant 0 : index
    %c0_146 = arith.constant 0 : index
    %186 = vector.load %arg11[%c7_144, %c0_145, %c0_146] : memref<9x16x16xbf16, #tpu.memory_space<vmem>>, vector<1x16x16xbf16>
    %187 = vector.shape_cast %186 : vector<1x16x16xbf16> to vector<16x16xbf16>
    %cst_147 = arith.constant dense<0.000000e+00> : vector<288x16xf32>
    %188 = tpu.matmul %185, %187, %cst_147 {dimension_numbers = #tpu.dot_dimension_numbers<[1], [0], [0], [1], [0, 0, 1, 1], [], []>} : vector<288x16xbf16>, vector<16x16xbf16>, vector<288x16xf32> -> vector<288x16xf32>
    %189 = arith.addf %184, %188 : vector<288x16xf32>
    %c38 = arith.constant 38 : index
    %c0_148 = arith.constant 0 : index
    %190 = vector.load %arg14[%c38, %c0_148] : memref<360x16xbf16, #tpu.memory_space<vmem>>, vector<288x16xbf16>
    %c8_149 = arith.constant 8 : index
    %c0_150 = arith.constant 0 : index
    %c0_151 = arith.constant 0 : index
    %191 = vector.load %arg11[%c8_149, %c0_150, %c0_151] : memref<9x16x16xbf16, #tpu.memory_space<vmem>>, vector<1x16x16xbf16>
    %192 = vector.shape_cast %191 : vector<1x16x16xbf16> to vector<16x16xbf16>
    %cst_152 = arith.constant dense<0.000000e+00> : vector<288x16xf32>
    %193 = tpu.matmul %190, %192, %cst_152 {dimension_numbers = #tpu.dot_dimension_numbers<[1], [0], [0], [1], [0, 0, 1, 1], [], []>} : vector<288x16xbf16>, vector<16x16xbf16>, vector<288x16xf32> -> vector<288x16xf32>
    %194 = arith.addf %189, %193 : vector<288x16xf32>
    %c0_153 = arith.constant 0 : index
    %c0_154 = arith.constant 0 : index
    %195 = vector.load %arg12[%c0_153, %c0_154] : memref<1x16xf32, #tpu.memory_space<vmem>>, vector<1x16xf32>
    %196 = vector.broadcast %195 : vector<1x16xf32> to vector<288x16xf32>
    %197 = arith.addf %194, %196 : vector<288x16xf32>
    %cst_155 = arith.constant 0.000000e+00 : f32
    %198 = vector.broadcast %cst_155 : f32 to vector<288x16xf32>
    %199 = arith.maximumf %197, %198 : vector<288x16xf32>
    %c0_156 = arith.constant 0 : index
    %c0_157 = arith.constant 0 : index
    %c0_158 = arith.constant 0 : index
    %200 = vector.load %arg13[%c0_156, %c0_157, %c0_158] : memref<1x288x16xf32, #tpu.memory_space<vmem>>, vector<1x288x16xf32>
    %201 = vector.shape_cast %200 : vector<1x288x16xf32> to vector<288x16xf32>
    %202 = vector.shape_cast %199 : vector<288x16xf32> to vector<1x288x16xf32>
    tpu.vector_store %arg13[%c0_156, %c0_157, %c0_158], %202 {strides = array<i32>} : memref<1x288x16xf32, #tpu.memory_space<vmem>>, vector<1x288x16xf32>,
    return
  }
  func.func @transform_0(%arg0: i32) -> (i32, i32, i32) {
    %c0_i32 = arith.constant 0 : i32
    %c0_i32_0 = arith.constant 0 : i32
    %c0_i32_1 = arith.constant 0 : i32
    return %arg0, %c0_i32, %c0_i32_0 : i32, i32, i32
  }
  func.func @transform_1(%arg0: i32) -> (i32, i32, i32) {
    %c0_i32 = arith.constant 0 : i32
    %c0_i32_0 = arith.constant 0 : i32
    %c0_i32_1 = arith.constant 0 : i32
    return %arg0, %c0_i32, %c0_i32_0 : i32, i32, i32
  }
  func.func @transform_2(%arg0: i32) -> (i32, i32) {
    %c0_i32 = arith.constant 0 : i32
    %c0_i32_0 = arith.constant 0 : i32
    %c0_i32_1 = arith.constant 0 : i32
    return %c0_i32, %c0_i32_0 : i32, i32
  }
  func.func @transform_3(%arg0: i32) -> (i32, i32) {
    %c0_i32 = arith.constant 0 : i32
    %c0_i32_0 = arith.constant 0 : i32
    %c0_i32_1 = arith.constant 0 : i32
    return %c0_i32, %c0_i32_0 : i32, i32
  }
  func.func @transform_4(%arg0: i32) -> (i32, i32) {
    %c0_i32 = arith.constant 0 : i32
    %c0_i32_0 = arith.constant 0 : i32
    %c0_i32_1 = arith.constant 0 : i32
    return %c0_i32, %c0_i32_0 : i32, i32
  }
  func.func @transform_5(%arg0: i32) -> (i32, i32, i32) {
    %c0_i32 = arith.constant 0 : i32
    %c0_i32_0 = arith.constant 0 : i32
    %c0_i32_1 = arith.constant 0 : i32
    %c0_i32_2 = arith.constant 0 : i32
    return %c0_i32, %c0_i32_0, %c0_i32_1 : i32, i32, i32
  }
  func.func @transform_6(%arg0: i32) -> (i32, i32) {
    %c0_i32 = arith.constant 0 : i32
    %c0_i32_0 = arith.constant 0 : i32
    %c0_i32_1 = arith.constant 0 : i32
    return %c0_i32, %c0_i32_0 : i32, i32
  }
  func.func @transform_7(%arg0: i32) -> (i32, i32, i32) {
    %c0_i32 = arith.constant 0 : i32
    %c0_i32_0 = arith.constant 0 : i32
    %c0_i32_1 = arith.constant 0 : i32
    %c0_i32_2 = arith.constant 0 : i32
    return %c0_i32, %c0_i32_0, %c0_i32_1 : i32, i32, i32
  }
  func.func @transform_8(%arg0: i32) -> (i32, i32, i32) {
    %c0_i32 = arith.constant 0 : i32
    %c0_i32_0 = arith.constant 0 : i32
    %c0_i32_1 = arith.constant 0 : i32
    %c0_i32_2 = arith.constant 0 : i32
    return %c0_i32, %c0_i32_0, %c0_i32_1 : i32, i32, i32
  }
  func.func @transform_9(%arg0: i32) -> (i32, i32) {
    %c0_i32 = arith.constant 0 : i32
    %c0_i32_0 = arith.constant 0 : i32
    %c0_i32_1 = arith.constant 0 : i32
    return %c0_i32, %c0_i32_0 : i32, i32
  }
  func.func @transform_10(%arg0: i32) -> (i32, i32, i32) {
    %c0_i32 = arith.constant 0 : i32
    %c0_i32_0 = arith.constant 0 : i32
    %c0_i32_1 = arith.constant 0 : i32
    %c0_i32_2 = arith.constant 0 : i32
    return %c0_i32, %c0_i32_0, %c0_i32_1 : i32, i32, i32
  }
  func.func @transform_11(%arg0: i32) -> (i32, i32) {
    %c0_i32 = arith.constant 0 : i32
    %c0_i32_0 = arith.constant 0 : i32
    %c0_i32_1 = arith.constant 0 : i32
    return %c0_i32, %c0_i32_0 : i32, i32
  }
  func.func @transform_12(%arg0: i32) -> (i32, i32, i32) {
    %c0_i32 = arith.constant 0 : i32
    %c0_i32_0 = arith.constant 0 : i32
    %c0_i32_1 = arith.constant 0 : i32
    return %arg0, %c0_i32, %c0_i32_0 : i32, i32, i32
  }
}

</mosaic_0001>

<llo_original>
// kernel: decoder_block_forward.1
$region0: #{decoder_block_forward.1}
  #allocation0 [shape = 'u32[]', space=smem, size = 0x4, offset = 0x4, fixed_abs, tag = 'smem constant byte address 0x4 - core index']
  #allocation1 [shape = 'u32[72,128]{1,0:T(1,128)}', space=vmem, size = 0x9000, scoped, tag = 'internal scratch']
  #allocation2 [shape = 'bf16[360,16]{1,0:T(8,128)(2,1)}', space=vmem, size = 0x16800, scoped, tag = 'scratch operand']
  %s0 = inlined_call_operand.vmem [shape: bf16[2,360,32], index: 0, kind: input, shape index: {}]
  %s1 = inlined_call_operand.vmem [shape: bf16[2,360,16], index: 1, kind: input, shape index: {}]
  %s2 = inlined_call_operand.vmem [shape: f32[360,1], index: 2, kind: input, shape index: {}]
  %s3 = inlined_call_operand.vmem [shape: f32[360,1], index: 3, kind: input, shape index: {}]
  %s4 = inlined_call_operand.vmem [shape: f32[360,1], index: 4, kind: input, shape index: {}]
  %s5 = inlined_call_operand.vmem [shape: bf16[4,32,16], index: 5, kind: input, shape index: {}]
  %s6 = inlined_call_operand.vmem [shape: f32[1,16], index: 6, kind: input, shape index: {}]
  %s7 = inlined_call_operand.vmem [shape: bf16[9,16,16], index: 7, kind: input, shape index: {}]
  %s8 = inlined_call_operand.vmem [shape: bf16[9,16,16], index: 8, kind: input, shape index: {}]
  %s9 = inlined_call_operand.vmem [shape: f32[1,16], index: 9, kind: input, shape index: {}]
  %s10 = inlined_call_operand.vmem [shape: bf16[9,16,16], index: 10, kind: input, shape index: {}]
  %s11 = inlined_call_operand.vmem [shape: f32[1,16], index: 11, kind: input, shape index: {}]
  %s12 = inlined_call_operand.vmem [shape: f32[2,288,16], index: 12, kind: output, shape index: {}]
  %s13 = sld [smem:[#allocation0]]
  $region81: #{decoder_block_forward.1} parent=0
    _
  %s15 = ssub.s32 1, %s13
  %s16 = scalar_select 0, %s15, %s13
  loop: start=0, step=1, limit=4
  $region2: #{decoder_block_forward.1} parent=0 // loop_pre_header
    _
  $region3: #{decoder_block_forward.1} parent=0 // loop_header
    %s18 = sphi 0, %s22
    %p19 = scmp.ge.s32.totalorder %s18, 4
    %s28 = sphi 0, %s30
    %s31 = sphi 0, %s28
    %s32 = sphi 0, %s31
    %s48 = sphi 0, %s32
    %s54 = sphi 0, %s56
    %s57 = sphi 0, %s54
    %s58 = sphi 0, %s57
    %s74 = sphi 0, %s58
    %s78 = sphi 0, %s78
    %s80 = sphi 0, %s78
    %s81 = sphi 0, %s80
    %s95 = sphi 0, %s81
    %s99 = sphi 0, %s99
    %s101 = sphi 0, %s99
    %s102 = sphi 0, %s101
    %s116 = sphi 0, %s102
    %s120 = sphi 0, %s120
    %s122 = sphi 0, %s120
    %s123 = sphi 0, %s122
    %s137 = sphi 0, %s123
    %s141 = sphi 0, %s141
    %s143 = sphi 0, %s141
    %s144 = sphi 0, %s143
    %s158 = sphi 0, %s144
    %s162 = sphi 0, %s162
    %s164 = sphi 0, %s162
    %s165 = sphi 0, %s164
    %s179 = sphi 0, %s165
    %s183 = sphi 0, %s183
    %s185 = sphi 0, %s183
    %s186 = sphi 0, %s185
    %s200 = sphi 0, %s186
    %s204 = sphi 0, %s204
    %s206 = sphi 0, %s204
    %s207 = sphi 0, %s206
    %s221 = sphi 0, %s207
    %s225 = sphi 0, %s225
    %s227 = sphi 0, %s225
    %s228 = sphi 0, %s227
    %s242 = sphi 0, %s228
    %s246 = sphi 0, %s246
    %s248 = sphi 0, %s246
    %s249 = sphi 0, %s248
    %s263 = sphi 0, %s249
    %s267 = sphi 0, %s267
    %s269 = sphi 0, %s267
    %s270 = sphi 0, %s269
    %s284 = sphi 0, %s270
    %s290 = sphi 0, %s292
    %s293 = sphi 0, %s290
    %s294 = sphi 0, %s293
    %s310 = sphi 0, %s294
  $region4: #{decoder_block_forward.1} parent=0 // loop_header_branch
    %21 = sbr.rel (%p19) target = $region8
  $region5: #{decoder_block_forward.1} parent=0 // loop_body
    %s23 = ssub.s32 %s18, 1
    %s24 = ssub.s32 %s18, 2
    %s25 = sadd.s32 %s18, 1
    %s26 = ssub.s32 %s18, %s25
    %p27 = scmp.eq.s32.totalorder %s26, 0
    %s29 = sadd.s32 %s28, 1
    %s30 = scalar_select %p27, %s28, %s29
    %p33 = pneg %p27
    %p34 = scmp.eq.s32.totalorder %s18, 1
    %p35 = por %p33, %p34
    %p36 = scmp.ne.s32.totalorder %s28, %s31
    %p37 = scmp.eq.s32.totalorder %s18, 0
    %p38 = por %p36, %p37
    %p39 = scmp.ne.s32.totalorder %s28, %s31
    %p40 = scmp.eq.s32.totalorder %s23, 1
    %p41 = por %p39, %p40
    %p42 = scmp.ne.s32.totalorder %s31, %s32
    %p43 = scmp.eq.s32.totalorder %s23, 0
    %p44 = por %p42, %p43
    %p45 = scmp.ne.s32.totalorder %s31, %s32
    %p46 = scmp.eq.s32.totalorder %s24, 1
    %p47 = por %p45, %p46
    %p49 = scmp.ne.s32.totalorder %s32, %s48
    %p50 = scmp.eq.s32.totalorder %s24, 0
    %p51 = por %p49, %p50
    %s52 = ssub.s32 %s18, %s25
    %p53 = scmp.eq.s32.totalorder %s52, 0
    %s55 = sadd.s32 %s54, 1
    %s56 = scalar_select %p53, %s54, %s55
    %p59 = pneg %p53
    %p60 = scmp.eq.s32.totalorder %s18, 1
    %p61 = por %p59, %p60
    %p62 = scmp.ne.s32.totalorder %s54, %s57
    %p63 = scmp.eq.s32.totalorder %s18, 0
    %p64 = por %p62, %p63
    %p65 = scmp.ne.s32.totalorder %s54, %s57
    %p66 = scmp.eq.s32.totalorder %s23, 1
    %p67 = por %p65, %p66
    %p68 = scmp.ne.s32.totalorder %s57, %s58
    %p69 = scmp.eq.s32.totalorder %s23, 0
    %p70 = por %p68, %p69
    %p71 = scmp.ne.s32.totalorder %s57, %s58
    %p72 = scmp.eq.s32.totalorder %s24, 1
    %p73 = por %p71, %p72
    %p75 = scmp.ne.s32.totalorder %s58, %s74
    %p76 = scmp.eq.s32.totalorder %s24, 0
    %p77 = por %p75, %p76
    %s79 = sadd.s32 %s78, 1
    %p82 = scmp.eq.s32.totalorder %s18, 1
    %p83 = scmp.ne.s32.totalorder %s78, %s80
    %p84 = scmp.eq.s32.totalorder %s18, 0
    %p85 = por %p83, %p84
    %p86 = scmp.ne.s32.totalorder %s78, %s80
    %p87 = scmp.eq.s32.totalorder %s23, 1
    %p88 = por %p86, %p87
    %p89 = scmp.ne.s32.totalorder %s80, %s81
    %p90 = scmp.eq.s32.totalorder %s23, 0
    %p91 = por %p89, %p90
    %p92 = scmp.ne.s32.totalorder %s80, %s81
    %p93 = scmp.eq.s32.totalorder %s24, 1
    %p94 = por %p92, %p93
    %p96 = scmp.ne.s32.totalorder %s81, %s95
    %p97 = scmp.eq.s32.totalorder %s24, 0
    %p98 = por %p96, %p97
    %s100 = sadd.s32 %s99, 1
    %p103 = scmp.eq.s32.totalorder %s18, 1
    %p104 = scmp.ne.s32.totalorder %s99, %s101
    %p105 = scmp.eq.s32.totalorder %s18, 0
    %p106 = por %p104, %p105
    %p107 = scmp.ne.s32.totalorder %s99, %s101
    %p108 = scmp.eq.s32.totalorder %s23, 1
    %p109 = por %p107, %p108
    %p110 = scmp.ne.s32.totalorder %s101, %s102
    %p111 = scmp.eq.s32.totalorder %s23, 0
    %p112 = por %p110, %p111
    %p113 = scmp.ne.s32.totalorder %s101, %s102
    %p114 = scmp.eq.s32.totalorder %s24, 1
    %p115 = por %p113, %p114
    %p117 = scmp.ne.s32.totalorder %s102, %s116
    %p118 = scmp.eq.s32.totalorder %s24, 0
    %p119 = por %p117, %p118
    %s121 = sadd.s32 %s120, 1
    %p124 = scmp.eq.s32.totalorder %s18, 1
    %p125 = scmp.ne.s32.totalorder %s120, %s122
    %p126 = scmp.eq.s32.totalorder %s18, 0
    %p127 = por %p125, %p126
    %p128 = scmp.ne.s32.totalorder %s120, %s122
    %p129 = scmp.eq.s32.totalorder %s23, 1
    %p130 = por %p128, %p129
    %p131 = scmp.ne.s32.totalorder %s122, %s123
    %p132 = scmp.eq.s32.totalorder %s23, 0
    %p133 = por %p131, %p132
    %p134 = scmp.ne.s32.totalorder %s122, %s123
    %p135 = scmp.eq.s32.totalorder %s24, 1
    %p136 = por %p134, %p135
    %p138 = scmp.ne.s32.totalorder %s123, %s137
    %p139 = scmp.eq.s32.totalorder %s24, 0
    %p140 = por %p138, %p139
    %s142 = sadd.s32 %s141, 1
    %p145 = scmp.eq.s32.totalorder %s18, 1
    %p146 = scmp.ne.s32.totalorder %s141, %s143
    %p147 = scmp.eq.s32.totalorder %s18, 0
    %p148 = por %p146, %p147
    %p149 = scmp.ne.s32.totalorder %s141, %s143
    %p150 = scmp.eq.s32.totalorder %s23, 1
    %p151 = por %p149, %p150
    %p152 = scmp.ne.s32.totalorder %s143, %s144
    %p153 = scmp.eq.s32.totalorder %s23, 0
    %p154 = por %p152, %p153
    %p155 = scmp.ne.s32.totalorder %s143, %s144
    %p156 = scmp.eq.s32.totalorder %s24, 1
    %p157 = por %p155, %p156
    %p159 = scmp.ne.s32.totalorder %s144, %s158
    %p160 = scmp.eq.s32.totalorder %s24, 0
    %p161 = por %p159, %p160
    %s163 = sadd.s32 %s162, 1
    %p166 = scmp.eq.s32.totalorder %s18, 1
    %p167 = scmp.ne.s32.totalorder %s162, %s164
    %p168 = scmp.eq.s32.totalorder %s18, 0
    %p169 = por %p167, %p168
    %p170 = scmp.ne.s32.totalorder %s162, %s164
    %p171 = scmp.eq.s32.totalorder %s23, 1
    %p172 = por %p170, %p171
    %p173 = scmp.ne.s32.totalorder %s164, %s165
    %p174 = scmp.eq.s32.totalorder %s23, 0
    %p175 = por %p173, %p174
    %p176 = scmp.ne.s32.totalorder %s164, %s165
    %p177 = scmp.eq.s32.totalorder %s24, 1
    %p178 = por %p176, %p177
    %p180 = scmp.ne.s32.totalorder %s165, %s179
    %p181 = scmp.eq.s32.totalorder %s24, 0
    %p182 = por %p180, %p181
    %s184 = sadd.s32 %s183, 1
    %p187 = scmp.eq.s32.totalorder %s18, 1
    %p188 = scmp.ne.s32.totalorder %s183, %s185
    %p189 = scmp.eq.s32.totalorder %s18, 0
    %p190 = por %p188, %p189
    %p191 = scmp.ne.s32.totalorder %s183, %s185
    %p192 = scmp.eq.s32.totalorder %s23, 1
    %p193 = por %p191, %p192
    %p194 = scmp.ne.s32.totalorder %s185, %s186
    %p195 = scmp.eq.s32.totalorder %s23, 0
    %p196 = por %p194, %p195
    %p197 = scmp.ne.s32.totalorder %s185, %s186
    %p198 = scmp.eq.s32.totalorder %s24, 1
    %p199 = por %p197, %p198
    %p201 = scmp.ne.s32.totalorder %s186, %s200
    %p202 = scmp.eq.s32.totalorder %s24, 0
    %p203 = por %p201, %p202
    %s205 = sadd.s32 %s204, 1
    %p208 = scmp.eq.s32.totalorder %s18, 1
    %p209 = scmp.ne.s32.totalorder %s204, %s206
    %p210 = scmp.eq.s32.totalorder %s18, 0
    %p211 = por %p209, %p210
    %p212 = scmp.ne.s32.totalorder %s204, %s206
    %p213 = scmp.eq.s32.totalorder %s23, 1
    %p214 = por %p212, %p213
    %p215 = scmp.ne.s32.totalorder %s206, %s207
    %p216 = scmp.eq.s32.totalorder %s23, 0
    %p217 = por %p215, %p216
    %p218 = scmp.ne.s32.totalorder %s206, %s207
    %p219 = scmp.eq.s32.totalorder %s24, 1
    %p220 = por %p218, %p219
    %p222 = scmp.ne.s32.totalorder %s207, %s221
    %p223 = scmp.eq.s32.totalorder %s24, 0
    %p224 = por %p222, %p223
    %s226 = sadd.s32 %s225, 1
    %p229 = scmp.eq.s32.totalorder %s18, 1
    %p230 = scmp.ne.s32.totalorder %s225, %s227
    %p231 = scmp.eq.s32.totalorder %s18, 0
    %p232 = por %p230, %p231
    %p233 = scmp.ne.s32.totalorder %s225, %s227
    %p234 = scmp.eq.s32.totalorder %s23, 1
    %p235 = por %p233, %p234
    %p236 = scmp.ne.s32.totalorder %s227, %s228
    %p237 = scmp.eq.s32.totalorder %s23, 0
    %p238 = por %p236, %p237
    %p239 = scmp.ne.s32.totalorder %s227, %s228
    %p240 = scmp.eq.s32.totalorder %s24, 1
    %p241 = por %p239, %p240
    %p243 = scmp.ne.s32.totalorder %s228, %s242
    %p244 = scmp.eq.s32.totalorder %s24, 0
    %p245 = por %p243, %p244
    %s247 = sadd.s32 %s246, 1
    %p250 = scmp.eq.s32.totalorder %s18, 1
    %p251 = scmp.ne.s32.totalorder %s246, %s248
    %p252 = scmp.eq.s32.totalorder %s18, 0
    %p253 = por %p251, %p252
    %p254 = scmp.ne.s32.totalorder %s246, %s248
    %p255 = scmp.eq.s32.totalorder %s23, 1
    %p256 = por %p254, %p255
    %p257 = scmp.ne.s32.totalorder %s248, %s249
    %p258 = scmp.eq.s32.totalorder %s23, 0
    %p259 = por %p257, %p258
    %p260 = scmp.ne.s32.totalorder %s248, %s249
    %p261 = scmp.eq.s32.totalorder %s24, 1
    %p262 = por %p260, %p261
    %p264 = scmp.ne.s32.totalorder %s249, %s263
    %p265 = scmp.eq.s32.totalorder %s24, 0
    %p266 = por %p264, %p265
    %s268 = sadd.s32 %s267, 1
    %p271 = scmp.eq.s32.totalorder %s18, 1
    %p272 = scmp.ne.s32.totalorder %s267, %s269
    %p273 = scmp.eq.s32.totalorder %s18, 0
    %p274 = por %p272, %p273
    %p275 = scmp.ne.s32.totalorder %s267, %s269
    %p276 = scmp.eq.s32.totalorder %s23, 1
    %p277 = por %p275, %p276
    %p278 = scmp.ne.s32.totalorder %s269, %s270
    %p279 = scmp.eq.s32.totalorder %s23, 0
    %p280 = por %p278, %p279
    %p281 = scmp.ne.s32.totalorder %s269, %s270
    %p282 = scmp.eq.s32.totalorder %s24, 1
    %p283 = por %p281, %p282
    %p285 = scmp.ne.s32.totalorder %s270, %s284
    %p286 = scmp.eq.s32.totalorder %s24, 0
    %p287 = por %p285, %p286
    %s288 = ssub.s32 %s18, %s25
    %p289 = scmp.eq.s32.totalorder %s288, 0
    %s291 = sadd.s32 %s290, 1
    %s292 = scalar_select %p289, %s290, %s291
    %p295 = pneg %p289
    %p296 = scmp.eq.s32.totalorder %s18, 1
    %p297 = por %p295, %p296
    %p298 = scmp.ne.s32.totalorder %s290, %s293
    %p299 = scmp.eq.s32.totalorder %s18, 0
    %p300 = por %p298, %p299
    %p301 = scmp.ne.s32.totalorder %s290, %s293
    %p302 = scmp.eq.s32.totalorder %s23, 1
    %p303 = por %p301, %p302
    %p304 = scmp.ne.s32.totalorder %s293, %s294
    %p305 = scmp.eq.s32.totalorder %s23, 0
    %p306 = por %p304, %p305
    %p307 = scmp.ne.s32.totalorder %s293, %s294
    %p308 = scmp.eq.s32.totalorder %s24, 1
    %p309 = por %p307, %p308
    %p311 = scmp.ne.s32.totalorder %s294, %s310
    %p312 = scmp.eq.s32.totalorder %s24, 0
    %p313 = por %p311, %p312
    %p314 = scmp.le.s32.totalorder 1, %s18
    %p315 = scmp.lt.s32.totalorder %s18, 3
    %p316 = pnand %p314, %p315
    %p317 = pneg %p316
    // Predicated region
    $region9: #{decoder_block_forward.1} parent=5 // pred_check
      _
    $region10: #{decoder_block_forward.1} parent=5 // pred_check_branch
      %319 = sbr.rel (%p316) target = $region12
    $region11: #{decoder_block_forward.1} parent=5 // pred_region
      %s320 = ssub.s32 %s18, 1
      // Predicated region
      $region13: #{decoder_block_forward.1} parent=11 // pred_check
        %p321 = pneg %p91
      $region14: #{decoder_block_forward.1} parent=11 // pred_check_branch
        %323 = sbr.rel (%p321) target = $region16
      $region15: #{decoder_block_forward.1} parent=11 // pred_region
        _
      $region16: #{decoder_block_forward.1} parent=11 // pred_fallthru
        _
      // Predicated region
      $region17: #{decoder_block_forward.1} parent=11 // pred_check
        %p324 = pneg %p112
      $region18: #{decoder_block_forward.1} parent=11 // pred_check_branch
        %326 = sbr.rel (%p324) target = $region20
      $region19: #{decoder_block_forward.1} parent=11 // pred_region
        _
      $region20: #{decoder_block_forward.1} parent=11 // pred_fallthru
        _
      // Predicated region
      $region21: #{decoder_block_forward.1} parent=11 // pred_check
        %p327 = pneg %p133
      $region22: #{decoder_block_forward.1} parent=11 // pred_check_branch
        %329 = sbr.rel (%p327) target = $region24
      $region23: #{decoder_block_forward.1} parent=11 // pred_region
        _
      $region24: #{decoder_block_forward.1} parent=11 // pred_fallthru
        _
      // Predicated region
      $region25: #{decoder_block_forward.1} parent=11 // pred_check
        %p330 = pneg %p154
      $region26: #{decoder_block_forward.1} parent=11 // pred_check_branch
        %332 = sbr.rel (%p330) target = $region28
      $region27: #{decoder_block_forward.1} parent=11 // pred_region
        _
      $region28: #{decoder_block_forward.1} parent=11 // pred_fallthru
        _
      // Predicated region
      $region29: #{decoder_block_forward.1} parent=11 // pred_check
        %p333 = pneg %p175
      $region30: #{decoder_block_forward.1} parent=11 // pred_check_branch
        %335 = sbr.rel (%p333) target = $region32
      $region31: #{decoder_block_forward.1} parent=11 // pred_region
        _
      $region32: #{decoder_block_forward.1} parent=11 // pred_fallthru
        _
      // Predicated region
      $region33: #{decoder_block_forward.1} parent=11 // pred_check
        %p336 = pneg %p196
      $region34: #{decoder_block_forward.1} parent=11 // pred_check_branch
        %338 = sbr.rel (%p336) target = $region36
      $region35: #{decoder_block_forward.1} parent=11 // pred_region
        _
      $region36: #{decoder_block_forward.1} parent=11 // pred_fallthru
        _
      // Predicated region
      $region37: #{decoder_block_forward.1} parent=11 // pred_check
        %p339 = pneg %p217
      $region38: #{decoder_block_forward.1} parent=11 // pred_check_branch
        %341 = sbr.rel (%p339) target = $region40
      $region39: #{decoder_block_forward.1} parent=11 // pred_region
        _
      $region40: #{decoder_block_forward.1} parent=11 // pred_fallthru
        _
      // Predicated region
      $region41: #{decoder_block_forward.1} parent=11 // pred_check
        %p342 = pneg %p238
      $region42: #{decoder_block_forward.1} parent=11 // pred_check_branch
        %344 = sbr.rel (%p342) target = $region44
      $region43: #{decoder_block_forward.1} parent=11 // pred_region
        _
      $region44: #{decoder_block_forward.1} parent=11 // pred_fallthru
        _
      // Predicated region
      $region45: #{decoder_block_forward.1} parent=11 // pred_check
        %p345 = pneg %p259
      $region46: #{decoder_block_forward.1} parent=11 // pred_check_branch
        %347 = sbr.rel (%p345) target = $region48
      $region47: #{decoder_block_forward.1} parent=11 // pred_region
        _
      $region48: #{decoder_block_forward.1} parent=11 // pred_fallthru
        _
      // Predicated region
      $region49: #{decoder_block_forward.1} parent=11 // pred_check
        %p348 = pneg %p280
      $region50: #{decoder_block_forward.1} parent=11 // pred_check_branch
        %350 = sbr.rel (%p348) target = $region52
      $region51: #{decoder_block_forward.1} parent=11 // pred_region
        _
      $region52: #{decoder_block_forward.1} parent=11 // pred_fallthru
        _
    $region12: #{decoder_block_forward.1} parent=5 // pred_fallthru
      _
    %p351 = scmp.lt.s32.totalorder %s18, 2
    // Predicated region
    $region53: #{decoder_block_forward.1} parent=5 // pred_check
      %p352 = pneg %p351
    $region54: #{decoder_block_forward.1} parent=5 // pred_check_branch
      %354 = sbr.rel (%p352) target = $region56
    $region55: #{decoder_block_forward.1} parent=5 // pred_region
      // Predicated region
      $region57: #{decoder_block_forward.1} parent=55 // pred_check
        %p355 = pneg %p38
      $region58: #{decoder_block_forward.1} parent=55 // pred_check_branch
        %357 = sbr.rel (%p355) target = $region60
      $region59: #{decoder_block_forward.1} parent=55 // pred_region
        %p358 = scmp.lt.s32.totalorder %s18, 1
        %s359 = scalar_select %p358, %s18, 1
        %s360 = smul.addr %s359, 45
        %s361 = smul.addr %s360, 4
        %s362 = scalar_lea.vmem %s0, %s361
      $region60: #{decoder_block_forward.1} parent=55 // pred_fallthru
        _
      // Predicated region
      $region61: #{decoder_block_forward.1} parent=55 // pred_check
        %p363 = pneg %p64
      $region62: #{decoder_block_forward.1} parent=55 // pred_check_branch
        %365 = sbr.rel (%p363) target = $region64
      $region63: #{decoder_block_forward.1} parent=55 // pred_region
        %p366 = scmp.lt.s32.totalorder %s18, 1
        %s367 = scalar_select %p366, %s18, 1
        %s368 = smul.addr %s367, 45
        %s369 = smul.addr %s368, 4
        %s370 = scalar_lea.vmem %s1, %s369
      $region64: #{decoder_block_forward.1} parent=55 // pred_fallthru
        _
    $region56: #{decoder_block_forward.1} parent=5 // pred_fallthru
      _
    %p371 = scmp.le.s32.totalorder 1, %s18
    %p372 = scmp.lt.s32.totalorder %s18, 3
    %p373 = pnand %p371, %p372
    %p374 = pneg %p373
    // Predicated region
    $region65: #{decoder_block_forward.1} parent=5 // pred_check
      _
    $region66: #{decoder_block_forward.1} parent=5 // pred_check_branch
      %376 = sbr.rel (%p373) target = $region68
    $region67: #{decoder_block_forward.1} parent=5 // pred_region
      %s377 = ssub.s32 %s18, 1
      %p378 = scmp.lt.s32.totalorder %s23, 1
      %s379 = scalar_select %p378, %s23, 1
      %s380 = smul.addr %s379, 45
      %s381 = smul.addr %s380, 4
      %s382 = scalar_lea.vmem %s0, %s381
      %p383 = pneg %p44
      %p384 = pneg %p41
      %p385 = scmp.lt.s32.totalorder %s23, 1
      %s386 = scalar_select %p385, %s23, 1
      %s387 = smul.addr %s386, 45
      %s388 = smul.addr %s387, 4
      %s389 = scalar_lea.vmem %s1, %s388
      %p390 = pneg %p70
      %p391 = pneg %p67
      %p392 = pneg %p91
      %p393 = pneg %p88
      %p394 = pneg %p112
      %p395 = pneg %p109
      %p396 = pneg %p133
      %p397 = pneg %p130
      %p398 = pneg %p154
      %p399 = pneg %p151
      %p400 = pneg %p175
      %p401 = pneg %p172
      %p402 = pneg %p196
      %p403 = pneg %p193
      %p404 = pneg %p217
      %p405 = pneg %p214
      %p406 = pneg %p238
      %p407 = pneg %p235
      %p408 = pneg %p259
      %p409 = pneg %p256
      %p410 = pneg %p280
      %p411 = pneg %p277
      %p412 = pneg %p306
      %p413 = pneg %p303
      %p414 = scmp.lt.s32.totalorder %s23, 1
      %s415 = scalar_select %p414, %s23, 1
      %s416 = smul.addr %s415, 36
      %s417 = smul.addr %s416, 8
      %s418 = scalar_lea.vmem %s12, %s417
      %p419 = scmp.lt.s32.totalorder %s23, 1
      %s420 = scalar_select %p419, %s23, 1
      %s421 = smul.addr %s420, 45
      %s422 = smul.addr %s421, 4
      %s423 = scalar_lea.vmem %s0, %s422
      %p424 = scmp.lt.s32.totalorder %s23, 1
      %s425 = scalar_select %p424, %s23, 1
      %s426 = smul.addr %s425, 45
      %s427 = smul.addr %s426, 4
      %s428 = scalar_lea.vmem %s1, %s427
      %p429 = scmp.lt.s32.totalorder %s23, 1
      %s430 = scalar_select %p429, %s23, 1
      %s431 = smul.addr %s430, 36
      %s432 = smul.addr %s431, 8
      %s433 = scalar_lea.vmem %s12, %s432
      %v435 = vld [vmem:[%s423] sm:$0xf]
      %v436 = vld [vmem:[%s423 + $0x4] sm:$0xf]
      %v437 = vld [vmem:[%s423 + $0x8] sm:$0xf]
      %v438 = vld [vmem:[%s423 + $0xc] sm:$0xf]
      %v439 = vld [vmem:[%s423 + $0x10] sm:$0xf]
      %v440 = vld [vmem:[%s423 + $0x14] sm:$0xf]
      %v441 = vld [vmem:[%s423 + $0x18] sm:$0xf]
      %v442 = vld [vmem:[%s423 + $0x1c] sm:$0xf]
      %v443 = vld [vmem:[%s423 + $0x20] sm:$0xf]
      %v444 = vld [vmem:[%s423 + $0x24] sm:$0xf]
      %v445 = vld [vmem:[%s423 + $0x28] sm:$0xf]
      %v446 = vld [vmem:[%s423 + $0x2c] sm:$0xf]
      %v447 = vld [vmem:[%s423 + $0x30] sm:$0xf]
      %v448 = vld [vmem:[%s423 + $0x34] sm:$0xf]
      %v449 = vld [vmem:[%s423 + $0x38] sm:$0xf]
      %v450 = vld [vmem:[%s423 + $0x3c] sm:$0xf]
      %v451 = vld [vmem:[%s423 + $0x40] sm:$0xf]
      %v452 = vld [vmem:[%s423 + $0x44] sm:$0xf]
      %v453 = vld [vmem:[%s423 + $0x48] sm:$0xf]
      %v454 = vld [vmem:[%s423 + $0x4c] sm:$0xf]
      %v455 = vld [vmem:[%s423 + $0x50] sm:$0xf]
      %v456 = vld [vmem:[%s423 + $0x54] sm:$0xf]
      %v457 = vld [vmem:[%s423 + $0x58] sm:$0xf]
      %v458 = vld [vmem:[%s423 + $0x5c] sm:$0xf]
      %v459 = vld [vmem:[%s423 + $0x60] sm:$0xf]
      %v460 = vld [vmem:[%s423 + $0x64] sm:$0xf]
      %v461 = vld [vmem:[%s423 + $0x68] sm:$0xf]
      %v462 = vld [vmem:[%s423 + $0x6c] sm:$0xf]
      %v463 = vld [vmem:[%s423 + $0x70] sm:$0xf]
      %v464 = vld [vmem:[%s423 + $0x74] sm:$0xf]
      %v465 = vld [vmem:[%s423 + $0x78] sm:$0xf]
      %v466 = vld [vmem:[%s423 + $0x7c] sm:$0xf]
      %v467 = vld [vmem:[%s423 + $0x80] sm:$0xf]
      %v468 = vld [vmem:[%s423 + $0x84] sm:$0xf]
      %v469 = vld [vmem:[%s423 + $0x88] sm:$0xf]
      %v470 = vld [vmem:[%s423 + $0x8c] sm:$0xf]
      %v471 = vld [vmem:[%s423 + $0x90] sm:$0xf]
      %v472 = vld [vmem:[%s423 + $0x94] sm:$0xf]
      %v473 = vld [vmem:[%s423 + $0x98] sm:$0xf]
      %v474 = vld [vmem:[%s423 + $0x9c] sm:$0xf]
      %v475 = vld [vmem:[%s423 + $0xa0] sm:$0xf]
      %v476 = vld [vmem:[%s423 + $0xa4] sm:$0xf]
      %v477 = vld [vmem:[%s423 + $0xa8] sm:$0xf]
      %v478 = vld [vmem:[%s423 + $0xac] sm:$0xf]
      %v479 = vld [vmem:[%s423 + $0xb0] sm:$0xf]
      %v480 = vld [vmem:[%s428] sm:$0xf]
      %v481 = vld [vmem:[%s428 + $0x4] sm:$0xf]
      %v482 = vld [vmem:[%s428 + $0x8] sm:$0xf]
      %v483 = vld [vmem:[%s428 + $0xc] sm:$0xf]
      %v484 = vld [vmem:[%s428 + $0x10] sm:$0xf]
      %v485 = vld [vmem:[%s428 + $0x14] sm:$0xf]
      %v486 = vld [vmem:[%s428 + $0x18] sm:$0xf]
      %v487 = vld [vmem:[%s428 + $0x1c] sm:$0xf]
      %v488 = vld [vmem:[%s428 + $0x20] sm:$0xf]
      %v489 = vld [vmem:[%s428 + $0x24] sm:$0xf]
      %v490 = vld [vmem:[%s428 + $0x28] sm:$0xf]
      %v491 = vld [vmem:[%s428 + $0x2c] sm:$0xf]
      %v492 = vld [vmem:[%s428 + $0x30] sm:$0xf]
      %v493 = vld [vmem:[%s428 + $0x34] sm:$0xf]
      %v494 = vld [vmem:[%s428 + $0x38] sm:$0xf]
      %v495 = vld [vmem:[%s428 + $0x3c] sm:$0xf]
      %v496 = vld [vmem:[%s428 + $0x40] sm:$0xf]
      %v497 = vld [vmem:[%s428 + $0x44] sm:$0xf]
      %v498 = vld [vmem:[%s428 + $0x48] sm:$0xf]
      %v499 = vld [vmem:[%s428 + $0x4c] sm:$0xf]
      %v500 = vld [vmem:[%s428 + $0x50] sm:$0xf]
      %v501 = vld [vmem:[%s428 + $0x54] sm:$0xf]
      %v502 = vld [vmem:[%s428 + $0x58] sm:$0xf]
      %v503 = vld [vmem:[%s428 + $0x5c] sm:$0xf]
      %v504 = vld [vmem:[%s428 + $0x60] sm:$0xf]
      %v505 = vld [vmem:[%s428 + $0x64] sm:$0xf]
      %v506 = vld [vmem:[%s428 + $0x68] sm:$0xf]
      %v507 = vld [vmem:[%s428 + $0x6c] sm:$0xf]
      %v508 = vld [vmem:[%s428 + $0x70] sm:$0xf]
      %v509 = vld [vmem:[%s428 + $0x74] sm:$0xf]
      %v510 = vld [vmem:[%s428 + $0x78] sm:$0xf]
      %v511 = vld [vmem:[%s428 + $0x7c] sm:$0xf]
      %v512 = vld [vmem:[%s428 + $0x80] sm:$0xf]
      %v513 = vld [vmem:[%s428 + $0x84] sm:$0xf]
      %v514 = vld [vmem:[%s428 + $0x88] sm:$0xf]
      %v515 = vld [vmem:[%s428 + $0x8c] sm:$0xf]
      %v516 = vld [vmem:[%s428 + $0x90] sm:$0xf]
      %v517 = vld [vmem:[%s428 + $0x94] sm:$0xf]
      %v518 = vld [vmem:[%s428 + $0x98] sm:$0xf]
      %v519 = vld [vmem:[%s428 + $0x9c] sm:$0xf]
      %v520 = vld [vmem:[%s428 + $0xa0] sm:$0xf]
      %v521 = vld [vmem:[%s2] sm:$0xff]
      %v522 = vld [vmem:[%s2 + $0x8] sm:$0xff]
      %v523 = vld [vmem:[%s2 + $0x10] sm:$0xff]
      %v524 = vld [vmem:[%s2 + $0x18] sm:$0xff]
      %v525 = vld [vmem:[%s2 + $0x20] sm:$0xff]
      %v526 = vld [vmem:[%s2 + $0x28] sm:$0xff]
      %v527 = vld [vmem:[%s2 + $0x30] sm:$0xff]
      %v528 = vld [vmem:[%s2 + $0x38] sm:$0xff]
      %v529 = vld [vmem:[%s2 + $0x40] sm:$0xff]
      %v530 = vld [vmem:[%s2 + $0x48] sm:$0xff]
      %v531 = vld [vmem:[%s2 + $0x50] sm:$0xff]
      %v532 = vld [vmem:[%s2 + $0x58] sm:$0xff]
      %v533 = vld [vmem:[%s2 + $0x60] sm:$0xff]
      %v534 = vld [vmem:[%s2 + $0x68] sm:$0xff]
      %v535 = vld [vmem:[%s2 + $0x70] sm:$0xff]
      %v536 = vld [vmem:[%s2 + $0x78] sm:$0xff]
      %v537 = vld [vmem:[%s2 + $0x80] sm:$0xff]
      %v538 = vld [vmem:[%s2 + $0x88] sm:$0xff]
      %v539 = vld [vmem:[%s2 + $0x90] sm:$0xff]
      %v540 = vld [vmem:[%s2 + $0x98] sm:$0xff]
      %v541 = vld [vmem:[%s2 + $0xa0] sm:$0xff]
      %v542 = vld [vmem:[%s2 + $0xa8] sm:$0xff]
      %v543 = vld [vmem:[%s2 + $0xb0] sm:$0xff]
      %v544 = vld [vmem:[%s2 + $0xb8] sm:$0xff]
      %v545 = vld [vmem:[%s2 + $0xc0] sm:$0xff]
      %v546 = vld [vmem:[%s2 + $0xc8] sm:$0xff]
      %v547 = vld [vmem:[%s2 + $0xd0] sm:$0xff]
      %v548 = vld [vmem:[%s2 + $0xd8] sm:$0xff]
      %v549 = vld [vmem:[%s2 + $0xe0] sm:$0xff]
      %v550 = vld [vmem:[%s2 + $0xe8] sm:$0xff]
      %v551 = vld [vmem:[%s2 + $0xf0] sm:$0xff]
      %v552 = vld [vmem:[%s2 + $0xf8] sm:$0xff]
      %v553 = vld [vmem:[%s2 + $0x100] sm:$0xff]
      %v554 = vld [vmem:[%s2 + $0x108] sm:$0xff]
      %v555 = vld [vmem:[%s2 + $0x110] sm:$0xff]
      %v556 = vld [vmem:[%s2 + $0x118] sm:$0xff]
      %v557 = vld [vmem:[%s2 + $0x120] sm:$0xff]
      %v558 = vld [vmem:[%s2 + $0x128] sm:$0xff]
      %v559 = vld [vmem:[%s2 + $0x130] sm:$0xff]
      %v560 = vld [vmem:[%s2 + $0x138] sm:$0xff]
      %v561 = vld [vmem:[%s2 + $0x140] sm:$0xff]
      %v562 = vld [vmem:[%s3] sm:$0xff]
      %v563 = vld [vmem:[%s3 + $0x8] sm:$0xff]
      %v564 = vld [vmem:[%s3 + $0x10] sm:$0xff]
      %v565 = vld [vmem:[%s3 + $0x18] sm:$0xff]
      %v566 = vld [vmem:[%s3 + $0x20] sm:$0xff]
      %v567 = vld [vmem:[%s3 + $0x28] sm:$0xff]
      %v568 = vld [vmem:[%s3 + $0x30] sm:$0xff]
      %v569 = vld [vmem:[%s3 + $0x38] sm:$0xff]
      %v570 = vld [vmem:[%s3 + $0x40] sm:$0xff]
      %v571 = vld [vmem:[%s3 + $0x48] sm:$0xff]
      %v572 = vld [vmem:[%s3 + $0x50] sm:$0xff]
      %v573 = vld [vmem:[%s3 + $0x58] sm:$0xff]
      %v574 = vld [vmem:[%s3 + $0x60] sm:$0xff]
      %v575 = vld [vmem:[%s3 + $0x68] sm:$0xff]
      %v576 = vld [vmem:[%s3 + $0x70] sm:$0xff]
      %v577 = vld [vmem:[%s3 + $0x78] sm:$0xff]
      %v578 = vld [vmem:[%s3 + $0x80] sm:$0xff]
      %v579 = vld [vmem:[%s3 + $0x88] sm:$0xff]
      %v580 = vld [vmem:[%s3 + $0x90] sm:$0xff]
      %v581 = vld [vmem:[%s3 + $0x98] sm:$0xff]
      %v582 = vld [vmem:[%s3 + $0xa0] sm:$0xff]
      %v583 = vld [vmem:[%s3 + $0xa8] sm:$0xff]
      %v584 = vld [vmem:[%s3 + $0xb0] sm:$0xff]
      %v585 = vld [vmem:[%s3 + $0xb8] sm:$0xff]
      %v586 = vld [vmem:[%s3 + $0xc0] sm:$0xff]
      %v587 = vld [vmem:[%s3 + $0xc8] sm:$0xff]
      %v588 = vld [vmem:[%s3 + $0xd0] sm:$0xff]
      %v589 = vld [vmem:[%s3 + $0xd8] sm:$0xff]
      %v590 = vld [vmem:[%s3 + $0xe0] sm:$0xff]
      %v591 = vld [vmem:[%s3 + $0xe8] sm:$0xff]
      %v592 = vld [vmem:[%s3 + $0xf0] sm:$0xff]
      %v593 = vld [vmem:[%s3 + $0xf8] sm:$0xff]
      %v594 = vld [vmem:[%s3 + $0x100] sm:$0xff]
      %v595 = vld [vmem:[%s3 + $0x108] sm:$0xff]
      %v596 = vld [vmem:[%s3 + $0x110] sm:$0xff]
      %v597 = vld [vmem:[%s3 + $0x118] sm:$0xff]
      %v598 = vld [vmem:[%s3 + $0x120] sm:$0xff]
      %v599 = vld [vmem:[%s3 + $0x128] sm:$0xff]
      %v600 = vld [vmem:[%s3 + $0x130] sm:$0xff]
      %v601 = vld [vmem:[%s3 + $0x138] sm:$0xff]
      %v602 = vld [vmem:[%s3 + $0x140] sm:$0xff]
      %v603 = vld [vmem:[%s4] sm:$0xff]
      %v604 = vld [vmem:[%s4 + $0x8] sm:$0xff]
      %v605 = vld [vmem:[%s4 + $0x10] sm:$0xff]
      %v606 = vld [vmem:[%s4 + $0x18] sm:$0xff]
      %v607 = vld [vmem:[%s4 + $0x20] sm:$0xff]
      %v608 = vld [vmem:[%s4 + $0x28] sm:$0xff]
      %v609 = vld [vmem:[%s4 + $0x30] sm:$0xff]
      %v610 = vld [vmem:[%s4 + $0x38] sm:$0xff]
      %v611 = vld [vmem:[%s4 + $0x40] sm:$0xff]
      %v612 = vld [vmem:[%s4 + $0x48] sm:$0xff]
      %v613 = vld [vmem:[%s4 + $0x50] sm:$0xff]
      %v614 = vld [vmem:[%s4 + $0x58] sm:$0xff]
      %v615 = vld [vmem:[%s4 + $0x60] sm:$0xff]
      %v616 = vld [vmem:[%s4 + $0x68] sm:$0xff]
      %v617 = vld [vmem:[%s4 + $0x70] sm:$0xff]
      %v618 = vld [vmem:[%s4 + $0x78] sm:$0xff]
      %v619 = vld [vmem:[%s4 + $0x80] sm:$0xff]
      %v620 = vld [vmem:[%s4 + $0x88] sm:$0xff]
      %v621 = vld [vmem:[%s4 + $0x90] sm:$0xff]
      %v622 = vld [vmem:[%s4 + $0x98] sm:$0xff]
      %v623 = vld [vmem:[%s4 + $0xa0] sm:$0xff]
      %v624 = vld [vmem:[%s4 + $0xa8] sm:$0xff]
      %v625 = vld [vmem:[%s4 + $0xb0] sm:$0xff]
      %v626 = vld [vmem:[%s4 + $0xb8] sm:$0xff]
      %v627 = vld [vmem:[%s4 + $0xc0] sm:$0xff]
      %v628 = vld [vmem:[%s4 + $0xc8] sm:$0xff]
      %v629 = vld [vmem:[%s4 + $0xd0] sm:$0xff]
      %v630 = vld [vmem:[%s4 + $0xd8] sm:$0xff]
      %v631 = vld [vmem:[%s4 + $0xe0] sm:$0xff]
      %v632 = vld [vmem:[%s4 + $0xe8] sm:$0xff]
      %v633 = vld [vmem:[%s4 + $0xf0] sm:$0xff]
      %v634 = vld [vmem:[%s4 + $0xf8] sm:$0xff]
      %v635 = vld [vmem:[%s4 + $0x100] sm:$0xff]
      %v636 = vld [vmem:[%s4 + $0x108] sm:$0xff]
      %v637 = vld [vmem:[%s4 + $0x110] sm:$0xff]
      %v638 = vld [vmem:[%s4 + $0x118] sm:$0xff]
      %v639 = vld [vmem:[%s4 + $0x120] sm:$0xff]
      %v640 = vld [vmem:[%s4 + $0x128] sm:$0xff]
      %v641 = vld [vmem:[%s4 + $0x130] sm:$0xff]
      %v642 = vld [vmem:[%s4 + $0x138] sm:$0xff]
      %v643 = vld [vmem:[%s4 + $0x140] sm:$0xff]
      %v644 = vld [vmem:[%s5] sm:$0xf]
      %v645 = vld [vmem:[%s5 + $0x4] sm:$0xf]
      %v646 = vld [vmem:[%s5 + $0x8] sm:$0xf]
      %v647 = vld [vmem:[%s5 + $0xc] sm:$0xf]
      %v693 = vunpack.c.l.b16 %v435
      %v694 = vunpack.c.l.b16 %v436
      %v695 = vunpack.c.l.b16 %v437
      %v696 = vunpack.c.l.b16 %v438
      %v697 = vunpack.c.l.b16 %v439
      %v698 = vunpack.c.l.b16 %v440
      %v699 = vunpack.c.l.b16 %v441
      %v700 = vunpack.c.l.b16 %v442
      %v701 = vunpack.c.l.b16 %v443
      %v702 = vunpack.c.l.b16 %v444
      %v703 = vunpack.c.l.b16 %v445
      %v704 = vunpack.c.l.b16 %v446
      %v705 = vunpack.c.l.b16 %v447
      %v706 = vunpack.c.l.b16 %v448
      %v707 = vunpack.c.l.b16 %v449
      %v708 = vunpack.c.l.b16 %v450
      %v709 = vunpack.c.l.b16 %v451
      %v710 = vunpack.c.l.b16 %v452
      %v711 = vunpack.c.l.b16 %v453
      %v712 = vunpack.c.l.b16 %v454
      %v713 = vunpack.c.l.b16 %v455
      %v714 = vunpack.c.l.b16 %v456
      %v715 = vunpack.c.l.b16 %v457
      %v716 = vunpack.c.l.b16 %v458
      %v717 = vunpack.c.l.b16 %v459
      %v718 = vunpack.c.l.b16 %v460
      %v719 = vunpack.c.l.b16 %v461
      %v720 = vunpack.c.l.b16 %v462
      %v721 = vunpack.c.l.b16 %v463
      %v722 = vunpack.c.l.b16 %v464
      %v723 = vunpack.c.l.b16 %v465
      %v724 = vunpack.c.l.b16 %v466
      %v725 = vunpack.c.l.b16 %v467
      %v726 = vunpack.c.l.b16 %v468
      %v727 = vunpack.c.l.b16 %v469
      %v728 = vunpack.c.l.b16 %v470
      %v729 = vunpack.c.l.b16 %v471
      %v730 = vunpack.c.l.b16 %v472
      %v731 = vunpack.c.l.b16 %v473
      %v732 = vunpack.c.l.b16 %v474
      %v733 = vunpack.c.l.b16 %v475
      %v734 = vunpack.c.l.b16 %v476
      %v735 = vunpack.c.l.b16 %v477
      %v736 = vunpack.c.l.b16 %v478
      %v737 = vunpack.c.l.b16 %v479
      %v738 = vpack.c.b16 %v694, %v693
      %v739 = vpack.c.b16 %v696, %v695
      %v740 = vpack.c.b16 %v698, %v697
      %v741 = vpack.c.b16 %v700, %v699
      %v742 = vpack.c.b16 %v702, %v701
      %v743 = vpack.c.b16 %v704, %v703
      %v744 = vpack.c.b16 %v706, %v705
      %v745 = vpack.c.b16 %v708, %v707
      %v746 = vpack.c.b16 %v710, %v709
      %v747 = vpack.c.b16 %v712, %v711
      %v748 = vpack.c.b16 %v714, %v713
      %v749 = vpack.c.b16 %v716, %v715
      %v750 = vpack.c.b16 %v718, %v717
      %v751 = vpack.c.b16 %v720, %v719
      %v752 = vpack.c.b16 %v722, %v721
      %v753 = vpack.c.b16 %v724, %v723
      %v754 = vpack.c.b16 %v726, %v725
      %v755 = vpack.c.b16 %v728, %v727
      %v756 = vpack.c.b16 %v730, %v729
      %v757 = vpack.c.b16 %v732, %v731
      %v758 = vpack.c.b16 %v734, %v733
      %v759 = vpack.c.b16 %v736, %v735
      %v760 = vpack.c.b16 %v737, %v737
      %v765 = vunpack.c.l.b16 %v644
      %v766 = vunpack.c.l.b16 %v645
      %v767 = vunpack.c.l.b16 %v646
      %v768 = vunpack.c.l.b16 %v647
      %v769 = vpack.c.b16 %v766, %v765
      %v770 = vpack.c.b16 %v768, %v767
      %vm773 = vcmask 261120
      %v775 = vsel %vm773, %v738, 0
      %v778 = vsel %vm773, %v739, 0
      %v781 = vsel %vm773, %v740, 0
      %v784 = vsel %vm773, %v741, 0
      %v787 = vsel %vm773, %v742, 0
      %v790 = vsel %vm773, %v743, 0
      %v793 = vsel %vm773, %v744, 0
      %v796 = vsel %vm773, %v745, 0
      %v799 = vsel %vm773, %v746, 0
      %v802 = vsel %vm773, %v747, 0
      %v805 = vsel %vm773, %v748, 0
      %v808 = vsel %vm773, %v749, 0
      %v811 = vsel %vm773, %v750, 0
      %v814 = vsel %vm773, %v751, 0
      %v817 = vsel %vm773, %v752, 0
      %v820 = vsel %vm773, %v753, 0
      %v823 = vsel %vm773, %v754, 0
      %v826 = vsel %vm773, %v755, 0
      %v829 = vsel %vm773, %v756, 0
      %v832 = vsel %vm773, %v757, 0
      %v835 = vsel %vm773, %v758, 0
      %v838 = vsel %vm773, %v759, 0
      %v841 = vsel %vm773, %v760, 0
      %843 = vmatpush.bf16.msra.mxu0 0
      %844 = vmatpush.bf16.msra.mxu0 0
      %845 = vmatpush.bf16.msra.mxu0 0
      %846 = vmatpush.bf16.msra.mxu0 0
      %847 = vmatpush.bf16.msra.mxu0 0
      %848 = vmatpush.bf16.msra.mxu0 0
      %849 = vmatpush.bf16.msra.mxu0 %v770
      %850 = vmatpush.bf16.msra.mxu0 %v769
      %851 = vmatmul.bf16.gmra.mxu0 %v775
      %v852 = vpop.f32.mrf.mxu0
      %v853 = vadd.f32 0.0, %v852
      %v854 = vpop.f32.mrf.mxu0
      %v855 = vadd.f32 0.0, %v854
      %856 = vmatmul.bf16.gmra.mxu0 %v778
      %v857 = vpop.f32.mrf.mxu0
      %v858 = vadd.f32 0.0, %v857
      %v859 = vpop.f32.mrf.mxu0
      %v860 = vadd.f32 0.0, %v859
      %861 = vmatmul.bf16.gmra.mxu0 %v781
      %v862 = vpop.f32.mrf.mxu0
      %v863 = vadd.f32 0.0, %v862
      %v864 = vpop.f32.mrf.mxu0
      %v865 = vadd.f32 0.0, %v864
      %866 = vmatmul.bf16.gmra.mxu0 %v784
      %v867 = vpop.f32.mrf.mxu0
      %v868 = vadd.f32 0.0, %v867
      %v869 = vpop.f32.mrf.mxu0
      %v870 = vadd.f32 0.0, %v869
      %871 = vmatmul.bf16.gmra.mxu0 %v787
      %v872 = vpop.f32.mrf.mxu0
      %v873 = vadd.f32 0.0, %v872
      %v874 = vpop.f32.mrf.mxu0
      %v875 = vadd.f32 0.0, %v874
      %876 = vmatmul.bf16.gmra.mxu0 %v790
      %v877 = vpop.f32.mrf.mxu0
      %v878 = vadd.f32 0.0, %v877
      %v879 = vpop.f32.mrf.mxu0
      %v880 = vadd.f32 0.0, %v879
      %881 = vmatmul.bf16.gmra.mxu0 %v793
      %v882 = vpop.f32.mrf.mxu0
      %v883 = vadd.f32 0.0, %v882
      %v884 = vpop.f32.mrf.mxu0
      %v885 = vadd.f32 0.0, %v884
      %886 = vmatmul.bf16.gmra.mxu0 %v796
      %v887 = vpop.f32.mrf.mxu0
      %v888 = vadd.f32 0.0, %v887
      %v889 = vpop.f32.mrf.mxu0
      %v890 = vadd.f32 0.0, %v889
      %891 = vmatmul.bf16.gmra.mxu0 %v799
      %v892 = vpop.f32.mrf.mxu0
      %v893 = vadd.f32 0.0, %v892
      %v894 = vpop.f32.mrf.mxu0
      %v895 = vadd.f32 0.0, %v894
      %896 = vmatmul.bf16.gmra.mxu0 %v802
      %v897 = vpop.f32.mrf.mxu0
      %v898 = vadd.f32 0.0, %v897
      %v899 = vpop.f32.mrf.mxu0
      %v900 = vadd.f32 0.0, %v899
      %901 = vmatmul.bf16.gmra.mxu0 %v805
      %v902 = vpop.f32.mrf.mxu0
      %v903 = vadd.f32 0.0, %v902
      %v904 = vpop.f32.mrf.mxu0
      %v905 = vadd.f32 0.0, %v904
      %906 = vmatmul.bf16.gmra.mxu0 %v808
      %v907 = vpop.f32.mrf.mxu0
      %v908 = vadd.f32 0.0, %v907
      %v909 = vpop.f32.mrf.mxu0
      %v910 = vadd.f32 0.0, %v909
      %911 = vmatmul.bf16.gmra.mxu0 %v811
      %v912 = vpop.f32.mrf.mxu0
      %v913 = vadd.f32 0.0, %v912
      %v914 = vpop.f32.mrf.mxu0
      %v915 = vadd.f32 0.0, %v914
      %916 = vmatmul.bf16.gmra.mxu0 %v814
      %v917 = vpop.f32.mrf.mxu0
      %v918 = vadd.f32 0.0, %v917
      %v919 = vpop.f32.mrf.mxu0
      %v920 = vadd.f32 0.0, %v919
      %921 = vmatmul.bf16.gmra.mxu0 %v817
      %v922 = vpop.f32.mrf.mxu0
      %v923 = vadd.f32 0.0, %v922
      %v924 = vpop.f32.mrf.mxu0
      %v925 = vadd.f32 0.0, %v924
      %926 = vmatmul.bf16.gmra.mxu0 %v820
      %v927 = vpop.f32.mrf.mxu0
      %v928 = vadd.f32 0.0, %v927
      %v929 = vpop.f32.mrf.mxu0
      %v930 = vadd.f32 0.0, %v929
      %931 = vmatmul.bf16.gmra.mxu0 %v823
      %v932 = vpop.f32.mrf.mxu0
      %v933 = vadd.f32 0.0, %v932
      %v934 = vpop.f32.mrf.mxu0
      %v935 = vadd.f32 0.0, %v934
      %936 = vmatmul.bf16.gmra.mxu0 %v826
      %v937 = vpop.f32.mrf.mxu0
      %v938 = vadd.f32 0.0, %v937
      %v939 = vpop.f32.mrf.mxu0
      %v940 = vadd.f32 0.0, %v939
      %941 = vmatmul.bf16.gmra.mxu0 %v829
      %v942 = vpop.f32.mrf.mxu0
      %v943 = vadd.f32 0.0, %v942
      %v944 = vpop.f32.mrf.mxu0
      %v945 = vadd.f32 0.0, %v944
      %946 = vmatmul.bf16.gmra.mxu0 %v832
      %v947 = vpop.f32.mrf.mxu0
      %v948 = vadd.f32 0.0, %v947
      %v949 = vpop.f32.mrf.mxu0
      %v950 = vadd.f32 0.0, %v949
      %951 = vmatmul.bf16.gmra.mxu0 %v835
      %v952 = vpop.f32.mrf.mxu0
      %v953 = vadd.f32 0.0, %v952
      %v954 = vpop.f32.mrf.mxu0
      %955 = vmatmul.bf16.gmra.mxu0 %v838
      %v956 = vpop.f32.mrf.mxu0
      %v957 = vpop.f32.mrf.mxu0
      %958 = vmatmul.bf16.gmra.mxu0 %v841
      %v959 = vpop.f32.mrf.mxu0
      %v960 = vpop.f32.mrf.mxu0
      %961 = vdwg.mxu0
      %s962 = scalar_lea.vmem %s5, 16
      %v963 = vld [vmem:[%s962] sm:$0xf]
      %v964 = vld [vmem:[%s962 + $0x4] sm:$0xf]
      %v965 = vld [vmem:[%s962 + $0x8] sm:$0xf]
      %v966 = vld [vmem:[%s962 + $0xc] sm:$0xf]
      %v971 = vunpack.c.l.b16 %v963
      %v972 = vunpack.c.l.b16 %v964
      %v973 = vunpack.c.l.b16 %v965
      %v974 = vunpack.c.l.b16 %v966
      %v975 = vpack.c.b16 %v972, %v971
      %v976 = vpack.c.b16 %v974, %v973
      %979 = vmatpush.bf16.msra.mxu0 0
      %980 = vmatpush.bf16.msra.mxu0 0
      %981 = vmatpush.bf16.msra.mxu0 0
      %982 = vmatpush.bf16.msra.mxu0 0
      %983 = vmatpush.bf16.msra.mxu0 0
      %984 = vmatpush.bf16.msra.mxu0 0
      %985 = vmatpush.bf16.msra.mxu0 %v976
      %986 = vmatpush.bf16.msra.mxu0 %v975
      %987 = vmatmul.bf16.gmra.mxu0 %v775
      %v988 = vpop.f32.mrf.mxu0
      %v989 = vadd.f32 0.0, %v988
      %v990 = vpop.f32.mrf.mxu0
      %v991 = vadd.f32 0.0, %v990
      %992 = vmatmul.bf16.gmra.mxu0 %v778
      %v993 = vpop.f32.mrf.mxu0
      %v994 = vadd.f32 0.0, %v993
      %v995 = vpop.f32.mrf.mxu0
      %v996 = vadd.f32 0.0, %v995
      %997 = vmatmul.bf16.gmra.mxu0 %v781
      %v998 = vpop.f32.mrf.mxu0
      %v999 = vadd.f32 0.0, %v998
      %v1000 = vpop.f32.mrf.mxu0
      %v1001 = vadd.f32 0.0, %v1000
      %1002 = vmatmul.bf16.gmra.mxu0 %v784
      %v1003 = vpop.f32.mrf.mxu0
      %v1004 = vadd.f32 0.0, %v1003
      %v1005 = vpop.f32.mrf.mxu0
      %v1006 = vadd.f32 0.0, %v1005
      %1007 = vmatmul.bf16.gmra.mxu0 %v787
      %v1008 = vpop.f32.mrf.mxu0
      %v1009 = vadd.f32 0.0, %v1008
      %v1010 = vpop.f32.mrf.mxu0
      %v1011 = vadd.f32 0.0, %v1010
      %1012 = vmatmul.bf16.gmra.mxu0 %v790
      %v1013 = vpop.f32.mrf.mxu0
      %v1014 = vadd.f32 0.0, %v1013
      %v1015 = vpop.f32.mrf.mxu0
      %v1016 = vadd.f32 0.0, %v1015
      %1017 = vmatmul.bf16.gmra.mxu0 %v793
      %v1018 = vpop.f32.mrf.mxu0
      %v1019 = vadd.f32 0.0, %v1018
      %v1020 = vpop.f32.mrf.mxu0
      %v1021 = vadd.f32 0.0, %v1020
      %1022 = vmatmul.bf16.gmra.mxu0 %v796
      %v1023 = vpop.f32.mrf.mxu0
      %v1024 = vadd.f32 0.0, %v1023
      %v1025 = vpop.f32.mrf.mxu0
      %v1026 = vadd.f32 0.0, %v1025
      %1027 = vmatmul.bf16.gmra.mxu0 %v799
      %v1028 = vpop.f32.mrf.mxu0
      %v1029 = vadd.f32 0.0, %v1028
      %v1030 = vpop.f32.mrf.mxu0
      %v1031 = vadd.f32 0.0, %v1030
      %1032 = vmatmul.bf16.gmra.mxu0 %v802
      %v1033 = vpop.f32.mrf.mxu0
      %v1034 = vadd.f32 0.0, %v1033
      %v1035 = vpop.f32.mrf.mxu0
      %v1036 = vadd.f32 0.0, %v1035
      %1037 = vmatmul.bf16.gmra.mxu0 %v805
      %v1038 = vpop.f32.mrf.mxu0
      %v1039 = vadd.f32 0.0, %v1038
      %v1040 = vpop.f32.mrf.mxu0
      %v1041 = vadd.f32 0.0, %v1040
      %1042 = vmatmul.bf16.gmra.mxu0 %v808
      %v1043 = vpop.f32.mrf.mxu0
      %v1044 = vadd.f32 0.0, %v1043
      %v1045 = vpop.f32.mrf.mxu0
      %v1046 = vadd.f32 0.0, %v1045
      %1047 = vmatmul.bf16.gmra.mxu0 %v811
      %v1048 = vpop.f32.mrf.mxu0
      %v1049 = vadd.f32 0.0, %v1048
      %v1050 = vpop.f32.mrf.mxu0
      %v1051 = vadd.f32 0.0, %v1050
      %1052 = vmatmul.bf16.gmra.mxu0 %v814
      %v1053 = vpop.f32.mrf.mxu0
      %v1054 = vadd.f32 0.0, %v1053
      %v1055 = vpop.f32.mrf.mxu0
      %v1056 = vadd.f32 0.0, %v1055
      %1057 = vmatmul.bf16.gmra.mxu0 %v817
      %v1058 = vpop.f32.mrf.mxu0
      %v1059 = vadd.f32 0.0, %v1058
      %v1060 = vpop.f32.mrf.mxu0
      %v1061 = vadd.f32 0.0, %v1060
      %1062 = vmatmul.bf16.gmra.mxu0 %v820
      %v1063 = vpop.f32.mrf.mxu0
      %v1064 = vadd.f32 0.0, %v1063
      %v1065 = vpop.f32.mrf.mxu0
      %v1066 = vadd.f32 0.0, %v1065
      %1067 = vmatmul.bf16.gmra.mxu0 %v823
      %v1068 = vpop.f32.mrf.mxu0
      %v1069 = vadd.f32 0.0, %v1068
      %v1070 = vpop.f32.mrf.mxu0
      %v1071 = vadd.f32 0.0, %v1070
      %1072 = vmatmul.bf16.gmra.mxu0 %v826
      %v1073 = vpop.f32.mrf.mxu0
      %v1074 = vadd.f32 0.0, %v1073
      %v1075 = vpop.f32.mrf.mxu0
      %v1076 = vadd.f32 0.0, %v1075
      %1077 = vmatmul.bf16.gmra.mxu0 %v829
      %v1078 = vpop.f32.mrf.mxu0
      %v1079 = vadd.f32 0.0, %v1078
      %v1080 = vpop.f32.mrf.mxu0
      %v1081 = vadd.f32 0.0, %v1080
      %1082 = vmatmul.bf16.gmra.mxu0 %v832
      %v1083 = vpop.f32.mrf.mxu0
      %v1084 = vadd.f32 0.0, %v1083
      %v1085 = vpop.f32.mrf.mxu0
      %v1086 = vadd.f32 0.0, %v1085
      %1087 = vmatmul.bf16.gmra.mxu0 %v835
      %v1088 = vpop.f32.mrf.mxu0
      %v1089 = vadd.f32 0.0, %v1088
      %v1090 = vpop.f32.mrf.mxu0
      %1091 = vmatmul.bf16.gmra.mxu0 %v838
      %v1092 = vpop.f32.mrf.mxu0
      %v1093 = vpop.f32.mrf.mxu0
      %1094 = vmatmul.bf16.gmra.mxu0 %v841
      %v1095 = vpop.f32.mrf.mxu0
      %v1096 = vpop.f32.mrf.mxu0
      %1097 = vdwg.mxu0
      %s1098 = scalar_lea.vmem %s5, 32
      %v1099 = vld [vmem:[%s1098] sm:$0xf]
      %v1100 = vld [vmem:[%s1098 + $0x4] sm:$0xf]
      %v1101 = vld [vmem:[%s1098 + $0x8] sm:$0xf]
      %v1102 = vld [vmem:[%s1098 + $0xc] sm:$0xf]
      %v1107 = vunpack.c.l.b16 %v1099
      %v1108 = vunpack.c.l.b16 %v1100
      %v1109 = vunpack.c.l.b16 %v1101
      %v1110 = vunpack.c.l.b16 %v1102
      %v1111 = vpack.c.b16 %v1108, %v1107
      %v1112 = vpack.c.b16 %v1110, %v1109
      %1115 = vmatpush.bf16.msra.mxu0 0
      %1116 = vmatpush.bf16.msra.mxu0 0
      %1117 = vmatpush.bf16.msra.mxu0 0
      %1118 = vmatpush.bf16.msra.mxu0 0
      %1119 = vmatpush.bf16.msra.mxu0 0
      %1120 = vmatpush.bf16.msra.mxu0 0
      %1121 = vmatpush.bf16.msra.mxu0 %v1112
      %1122 = vmatpush.bf16.msra.mxu0 %v1111
      %1123 = vmatmul.bf16.gmra.mxu0 %v775
      %v1124 = vpop.f32.mrf.mxu0
      %v1125 = vadd.f32 0.0, %v1124
      %v1126 = vpop.f32.mrf.mxu0
      %v1127 = vadd.f32 0.0, %v1126
      %1128 = vmatmul.bf16.gmra.mxu0 %v778
      %v1129 = vpop.f32.mrf.mxu0
      %v1130 = vadd.f32 0.0, %v1129
      %v1131 = vpop.f32.mrf.mxu0
      %v1132 = vadd.f32 0.0, %v1131
      %1133 = vmatmul.bf16.gmra.mxu0 %v781
      %v1134 = vpop.f32.mrf.mxu0
      %v1135 = vadd.f32 0.0, %v1134
      %v1136 = vpop.f32.mrf.mxu0
      %v1137 = vadd.f32 0.0, %v1136
      %1138 = vmatmul.bf16.gmra.mxu0 %v784
      %v1139 = vpop.f32.mrf.mxu0
      %v1140 = vadd.f32 0.0, %v1139
      %v1141 = vpop.f32.mrf.mxu0
      %v1142 = vadd.f32 0.0, %v1141
      %1143 = vmatmul.bf16.gmra.mxu0 %v787
      %v1144 = vpop.f32.mrf.mxu0
      %v1145 = vadd.f32 0.0, %v1144
      %v1146 = vpop.f32.mrf.mxu0
      %v1147 = vadd.f32 0.0, %v1146
      %1148 = vmatmul.bf16.gmra.mxu0 %v790
      %v1149 = vpop.f32.mrf.mxu0
      %v1150 = vadd.f32 0.0, %v1149
      %v1151 = vpop.f32.mrf.mxu0
      %v1152 = vadd.f32 0.0, %v1151
      %1153 = vmatmul.bf16.gmra.mxu0 %v793
      %v1154 = vpop.f32.mrf.mxu0
      %v1155 = vadd.f32 0.0, %v1154
      %v1156 = vpop.f32.mrf.mxu0
      %v1157 = vadd.f32 0.0, %v1156
      %1158 = vmatmul.bf16.gmra.mxu0 %v796
      %v1159 = vpop.f32.mrf.mxu0
      %v1160 = vadd.f32 0.0, %v1159
      %v1161 = vpop.f32.mrf.mxu0
      %v1162 = vadd.f32 0.0, %v1161
      %1163 = vmatmul.bf16.gmra.mxu0 %v799
      %v1164 = vpop.f32.mrf.mxu0
      %v1165 = vadd.f32 0.0, %v1164
      %v1166 = vpop.f32.mrf.mxu0
      %v1167 = vadd.f32 0.0, %v1166
      %1168 = vmatmul.bf16.gmra.mxu0 %v802
      %v1169 = vpop.f32.mrf.mxu0
      %v1170 = vadd.f32 0.0, %v1169
      %v1171 = vpop.f32.mrf.mxu0
      %v1172 = vadd.f32 0.0, %v1171
      %1173 = vmatmul.bf16.gmra.mxu0 %v805
      %v1174 = vpop.f32.mrf.mxu0
      %v1175 = vadd.f32 0.0, %v1174
      %v1176 = vpop.f32.mrf.mxu0
      %v1177 = vadd.f32 0.0, %v1176
      %1178 = vmatmul.bf16.gmra.mxu0 %v808
      %v1179 = vpop.f32.mrf.mxu0
      %v1180 = vadd.f32 0.0, %v1179
      %v1181 = vpop.f32.mrf.mxu0
      %v1182 = vadd.f32 0.0, %v1181
      %1183 = vmatmul.bf16.gmra.mxu0 %v811
      %v1184 = vpop.f32.mrf.mxu0
      %v1185 = vadd.f32 0.0, %v1184
      %v1186 = vpop.f32.mrf.mxu0
      %v1187 = vadd.f32 0.0, %v1186
      %1188 = vmatmul.bf16.gmra.mxu0 %v814
      %v1189 = vpop.f32.mrf.mxu0
      %v1190 = vadd.f32 0.0, %v1189
      %v1191 = vpop.f32.mrf.mxu0
      %v1192 = vadd.f32 0.0, %v1191
      %1193 = vmatmul.bf16.gmra.mxu0 %v817
      %v1194 = vpop.f32.mrf.mxu0
      %v1195 = vadd.f32 0.0, %v1194
      %v1196 = vpop.f32.mrf.mxu0
      %v1197 = vadd.f32 0.0, %v1196
      %1198 = vmatmul.bf16.gmra.mxu0 %v820
      %v1199 = vpop.f32.mrf.mxu0
      %v1200 = vadd.f32 0.0, %v1199
      %v1201 = vpop.f32.mrf.mxu0
      %v1202 = vadd.f32 0.0, %v1201
      %1203 = vmatmul.bf16.gmra.mxu0 %v823
      %v1204 = vpop.f32.mrf.mxu0
      %v1205 = vadd.f32 0.0, %v1204
      %v1206 = vpop.f32.mrf.mxu0
      %v1207 = vadd.f32 0.0, %v1206
      %1208 = vmatmul.bf16.gmra.mxu0 %v826
      %v1209 = vpop.f32.mrf.mxu0
      %v1210 = vadd.f32 0.0, %v1209
      %v1211 = vpop.f32.mrf.mxu0
      %v1212 = vadd.f32 0.0, %v1211
      %1213 = vmatmul.bf16.gmra.mxu0 %v829
      %v1214 = vpop.f32.mrf.mxu0
      %v1215 = vadd.f32 0.0, %v1214
      %v1216 = vpop.f32.mrf.mxu0
      %v1217 = vadd.f32 0.0, %v1216
      %1218 = vmatmul.bf16.gmra.mxu0 %v832
      %v1219 = vpop.f32.mrf.mxu0
      %v1220 = vadd.f32 0.0, %v1219
      %v1221 = vpop.f32.mrf.mxu0
      %v1222 = vadd.f32 0.0, %v1221
      %1223 = vmatmul.bf16.gmra.mxu0 %v835
      %v1224 = vpop.f32.mrf.mxu0
      %v1225 = vadd.f32 0.0, %v1224
      %v1226 = vpop.f32.mrf.mxu0
      %1227 = vmatmul.bf16.gmra.mxu0 %v838
      %v1228 = vpop.f32.mrf.mxu0
      %v1229 = vpop.f32.mrf.mxu0
      %1230 = vmatmul.bf16.gmra.mxu0 %v841
      %v1231 = vpop.f32.mrf.mxu0
      %v1232 = vpop.f32.mrf.mxu0
      %1233 = vdwg.mxu0
      %s1234 = scalar_lea.vmem %s5, 48
      %v1235 = vld [vmem:[%s1234] sm:$0xf]
      %v1236 = vld [vmem:[%s1234 + $0x4] sm:$0xf]
      %v1237 = vld [vmem:[%s1234 + $0x8] sm:$0xf]
      %v1238 = vld [vmem:[%s1234 + $0xc] sm:$0xf]
      %v1243 = vunpack.c.l.b16 %v1235
      %v1244 = vunpack.c.l.b16 %v1236
      %v1245 = vunpack.c.l.b16 %v1237
      %v1246 = vunpack.c.l.b16 %v1238
      %v1247 = vpack.c.b16 %v1244, %v1243
      %v1248 = vpack.c.b16 %v1246, %v1245
      %1251 = vmatpush.bf16.msra.mxu0 0
      %1252 = vmatpush.bf16.msra.mxu0 0
      %1253 = vmatpush.bf16.msra.mxu0 0
      %1254 = vmatpush.bf16.msra.mxu0 0
      %1255 = vmatpush.bf16.msra.mxu0 0
      %1256 = vmatpush.bf16.msra.mxu0 0
      %1257 = vmatpush.bf16.msra.mxu0 %v1248
      %1258 = vmatpush.bf16.msra.mxu0 %v1247
      %1259 = vmatmul.bf16.gmra.mxu0 %v775
      %v1260 = vpop.f32.mrf.mxu0
      %v1261 = vadd.f32 0.0, %v1260
      %v1262 = vpop.f32.mrf.mxu0
      %v1263 = vadd.f32 0.0, %v1262
      %1264 = vmatmul.bf16.gmra.mxu0 %v778
      %v1265 = vpop.f32.mrf.mxu0
      %v1266 = vadd.f32 0.0, %v1265
      %v1267 = vpop.f32.mrf.mxu0
      %v1268 = vadd.f32 0.0, %v1267
      %1269 = vmatmul.bf16.gmra.mxu0 %v781
      %v1270 = vpop.f32.mrf.mxu0
      %v1271 = vadd.f32 0.0, %v1270
      %v1272 = vpop.f32.mrf.mxu0
      %v1273 = vadd.f32 0.0, %v1272
      %1274 = vmatmul.bf16.gmra.mxu0 %v784
      %v1275 = vpop.f32.mrf.mxu0
      %v1276 = vadd.f32 0.0, %v1275
      %v1277 = vpop.f32.mrf.mxu0
      %v1278 = vadd.f32 0.0, %v1277
      %1279 = vmatmul.bf16.gmra.mxu0 %v787
      %v1280 = vpop.f32.mrf.mxu0
      %v1281 = vadd.f32 0.0, %v1280
      %v1282 = vpop.f32.mrf.mxu0
      %v1283 = vadd.f32 0.0, %v1282
      %1284 = vmatmul.bf16.gmra.mxu0 %v790
      %v1285 = vpop.f32.mrf.mxu0
      %v1286 = vadd.f32 0.0, %v1285
      %v1287 = vpop.f32.mrf.mxu0
      %v1288 = vadd.f32 0.0, %v1287
      %1289 = vmatmul.bf16.gmra.mxu0 %v793
      %v1290 = vpop.f32.mrf.mxu0
      %v1291 = vadd.f32 0.0, %v1290
      %v1292 = vpop.f32.mrf.mxu0
      %v1293 = vadd.f32 0.0, %v1292
      %1294 = vmatmul.bf16.gmra.mxu0 %v796
      %v1295 = vpop.f32.mrf.mxu0
      %v1296 = vadd.f32 0.0, %v1295
      %v1297 = vpop.f32.mrf.mxu0
      %v1298 = vadd.f32 0.0, %v1297
      %1299 = vmatmul.bf16.gmra.mxu0 %v799
      %v1300 = vpop.f32.mrf.mxu0
      %v1301 = vadd.f32 0.0, %v1300
      %v1302 = vpop.f32.mrf.mxu0
      %v1303 = vadd.f32 0.0, %v1302
      %1304 = vmatmul.bf16.gmra.mxu0 %v802
      %v1305 = vpop.f32.mrf.mxu0
      %v1306 = vadd.f32 0.0, %v1305
      %v1307 = vpop.f32.mrf.mxu0
      %v1308 = vadd.f32 0.0, %v1307
      %1309 = vmatmul.bf16.gmra.mxu0 %v805
      %v1310 = vpop.f32.mrf.mxu0
      %v1311 = vadd.f32 0.0, %v1310
      %v1312 = vpop.f32.mrf.mxu0
      %v1313 = vadd.f32 0.0, %v1312
      %1314 = vmatmul.bf16.gmra.mxu0 %v808
      %v1315 = vpop.f32.mrf.mxu0
      %v1316 = vadd.f32 0.0, %v1315
      %v1317 = vpop.f32.mrf.mxu0
      %v1318 = vadd.f32 0.0, %v1317
      %1319 = vmatmul.bf16.gmra.mxu0 %v811
      %v1320 = vpop.f32.mrf.mxu0
      %v1321 = vadd.f32 0.0, %v1320
      %v1322 = vpop.f32.mrf.mxu0
      %v1323 = vadd.f32 0.0, %v1322
      %1324 = vmatmul.bf16.gmra.mxu0 %v814
      %v1325 = vpop.f32.mrf.mxu0
      %v1326 = vadd.f32 0.0, %v1325
      %v1327 = vpop.f32.mrf.mxu0
      %v1328 = vadd.f32 0.0, %v1327
      %1329 = vmatmul.bf16.gmra.mxu0 %v817
      %v1330 = vpop.f32.mrf.mxu0
      %v1331 = vadd.f32 0.0, %v1330
      %v1332 = vpop.f32.mrf.mxu0
      %v1333 = vadd.f32 0.0, %v1332
      %1334 = vmatmul.bf16.gmra.mxu0 %v820
      %v1335 = vpop.f32.mrf.mxu0
      %v1336 = vadd.f32 0.0, %v1335
      %v1337 = vpop.f32.mrf.mxu0
      %v1338 = vadd.f32 0.0, %v1337
      %1339 = vmatmul.bf16.gmra.mxu0 %v823
      %v1340 = vpop.f32.mrf.mxu0
      %v1341 = vadd.f32 0.0, %v1340
      %v1342 = vpop.f32.mrf.mxu0
      %v1343 = vadd.f32 0.0, %v1342
      %1344 = vmatmul.bf16.gmra.mxu0 %v826
      %v1345 = vpop.f32.mrf.mxu0
      %v1346 = vadd.f32 0.0, %v1345
      %v1347 = vpop.f32.mrf.mxu0
      %v1348 = vadd.f32 0.0, %v1347
      %1349 = vmatmul.bf16.gmra.mxu0 %v829
      %v1350 = vpop.f32.mrf.mxu0
      %v1351 = vadd.f32 0.0, %v1350
      %v1352 = vpop.f32.mrf.mxu0
      %v1353 = vadd.f32 0.0, %v1352
      %1354 = vmatmul.bf16.gmra.mxu0 %v832
      %v1355 = vpop.f32.mrf.mxu0
      %v1356 = vadd.f32 0.0, %v1355
      %v1357 = vpop.f32.mrf.mxu0
      %v1358 = vadd.f32 0.0, %v1357
      %1359 = vmatmul.bf16.gmra.mxu0 %v835
      %v1360 = vpop.f32.mrf.mxu0
      %v1361 = vadd.f32 0.0, %v1360
      %v1362 = vpop.f32.mrf.mxu0
      %1363 = vmatmul.bf16.gmra.mxu0 %v838
      %v1364 = vpop.f32.mrf.mxu0
      %v1365 = vpop.f32.mrf.mxu0
      %1366 = vmatmul.bf16.gmra.mxu0 %v841
      %v1367 = vpop.f32.mrf.mxu0
      %v1368 = vpop.f32.mrf.mxu0
      %1369 = vdwg.mxu0
      %1371 = vset.pattern.permute.xlu0 0
      %1372 = vperm.xlu0 %1371, %v603
      %v1373 = vpop.permute.xlu0 %1372
      %1376 = vset.pattern.permute.xlu0 0
      %1377 = vperm.xlu0 %1376, %v604
      %v1378 = vpop.permute.xlu0 %1377
      %1381 = vset.pattern.permute.xlu0 0
      %1382 = vperm.xlu0 %1381, %v605
      %v1383 = vpop.permute.xlu0 %1382
      %1386 = vset.pattern.permute.xlu0 0
      %1387 = vperm.xlu0 %1386, %v606
      %v1388 = vpop.permute.xlu0 %1387
      %1391 = vset.pattern.permute.xlu0 0
      %1392 = vperm.xlu0 %1391, %v607
      %v1393 = vpop.permute.xlu0 %1392
      %1396 = vset.pattern.permute.xlu0 0
      %1397 = vperm.xlu0 %1396, %v608
      %v1398 = vpop.permute.xlu0 %1397
      %1401 = vset.pattern.permute.xlu0 0
      %1402 = vperm.xlu0 %1401, %v609
      %v1403 = vpop.permute.xlu0 %1402
      %1406 = vset.pattern.permute.xlu0 0
      %1407 = vperm.xlu0 %1406, %v610
      %v1408 = vpop.permute.xlu0 %1407
      %1411 = vset.pattern.permute.xlu0 0
      %1412 = vperm.xlu0 %1411, %v611
      %v1413 = vpop.permute.xlu0 %1412
      %1416 = vset.pattern.permute.xlu0 0
      %1417 = vperm.xlu0 %1416, %v612
      %v1418 = vpop.permute.xlu0 %1417
      %1421 = vset.pattern.permute.xlu0 0
      %1422 = vperm.xlu0 %1421, %v613
      %v1423 = vpop.permute.xlu0 %1422
      %1426 = vset.pattern.permute.xlu0 0
      %1427 = vperm.xlu0 %1426, %v614
      %v1428 = vpop.permute.xlu0 %1427
      %1431 = vset.pattern.permute.xlu0 0
      %1432 = vperm.xlu0 %1431, %v615
      %v1433 = vpop.permute.xlu0 %1432
      %1436 = vset.pattern.permute.xlu0 0
      %1437 = vperm.xlu0 %1436, %v616
      %v1438 = vpop.permute.xlu0 %1437
      %1441 = vset.pattern.permute.xlu0 0
      %1442 = vperm.xlu0 %1441, %v617
      %v1443 = vpop.permute.xlu0 %1442
      %1446 = vset.pattern.permute.xlu0 0
      %1447 = vperm.xlu0 %1446, %v618
      %v1448 = vpop.permute.xlu0 %1447
      %1451 = vset.pattern.permute.xlu0 0
      %1452 = vperm.xlu0 %1451, %v619
      %v1453 = vpop.permute.xlu0 %1452
      %1456 = vset.pattern.permute.xlu0 0
      %1457 = vperm.xlu0 %1456, %v620
      %v1458 = vpop.permute.xlu0 %1457
      %1461 = vset.pattern.permute.xlu0 0
      %1462 = vperm.xlu0 %1461, %v621
      %v1463 = vpop.permute.xlu0 %1462
      %1466 = vset.pattern.permute.xlu0 0
      %1467 = vperm.xlu0 %1466, %v622
      %v1468 = vpop.permute.xlu0 %1467
      %1471 = vset.pattern.permute.xlu0 0
      %1472 = vperm.xlu0 %1471, %v623
      %v1473 = vpop.permute.xlu0 %1472
      %1476 = vset.pattern.permute.xlu0 0
      %1477 = vperm.xlu0 %1476, %v624
      %v1478 = vpop.permute.xlu0 %1477
      %1481 = vset.pattern.permute.xlu0 0
      %1482 = vperm.xlu0 %1481, %v625
      %v1483 = vpop.permute.xlu0 %1482
      %1486 = vset.pattern.permute.xlu0 0
      %1487 = vperm.xlu0 %1486, %v626
      %v1488 = vpop.permute.xlu0 %1487
      %1491 = vset.pattern.permute.xlu0 0
      %1492 = vperm.xlu0 %1491, %v627
      %v1493 = vpop.permute.xlu0 %1492
      %1496 = vset.pattern.permute.xlu0 0
      %1497 = vperm.xlu0 %1496, %v628
      %v1498 = vpop.permute.xlu0 %1497
      %1501 = vset.pattern.permute.xlu0 0
      %1502 = vperm.xlu0 %1501, %v629
      %v1503 = vpop.permute.xlu0 %1502
      %1506 = vset.pattern.permute.xlu0 0
      %1507 = vperm.xlu0 %1506, %v630
      %v1508 = vpop.permute.xlu0 %1507
      %1511 = vset.pattern.permute.xlu0 0
      %1512 = vperm.xlu0 %1511, %v631
      %v1513 = vpop.permute.xlu0 %1512
      %1516 = vset.pattern.permute.xlu0 0
      %1517 = vperm.xlu0 %1516, %v632
      %v1518 = vpop.permute.xlu0 %1517
      %1521 = vset.pattern.permute.xlu0 0
      %1522 = vperm.xlu0 %1521, %v633
      %v1523 = vpop.permute.xlu0 %1522
      %1526 = vset.pattern.permute.xlu0 0
      %1527 = vperm.xlu0 %1526, %v634
      %v1528 = vpop.permute.xlu0 %1527
      %1531 = vset.pattern.permute.xlu0 0
      %1532 = vperm.xlu0 %1531, %v635
      %v1533 = vpop.permute.xlu0 %1532
      %1536 = vset.pattern.permute.xlu0 0
      %1537 = vperm.xlu0 %1536, %v636
      %v1538 = vpop.permute.xlu0 %1537
      %1541 = vset.pattern.permute.xlu0 0
      %1542 = vperm.xlu0 %1541, %v637
      %v1543 = vpop.permute.xlu0 %1542
      %1546 = vset.pattern.permute.xlu0 0
      %1547 = vperm.xlu0 %1546, %v638
      %v1548 = vpop.permute.xlu0 %1547
      %1551 = vset.pattern.permute.xlu0 0
      %1552 = vperm.xlu0 %1551, %v639
      %v1553 = vpop.permute.xlu0 %1552
      %1556 = vset.pattern.permute.xlu0 0
      %1557 = vperm.xlu0 %1556, %v640
      %v1558 = vpop.permute.xlu0 %1557
      %1561 = vset.pattern.permute.xlu0 0
      %1562 = vperm.xlu0 %1561, %v641
      %v1563 = vpop.permute.xlu0 %1562
      %1566 = vset.pattern.permute.xlu0 0
      %1567 = vperm.xlu0 %1566, %v642
      %v1568 = vpop.permute.xlu0 %1567
      %1571 = vset.pattern.permute.xlu0 0
      %1572 = vperm.xlu0 %1571, %v643
      %v1573 = vpop.permute.xlu0 %1572
      %v1575 = vmul.f32 %v1373, %v853
      %v1576 = vmul.f32 %v1378, %v855
      %v1577 = vmul.f32 %v1383, %v858
      %v1578 = vmul.f32 %v1388, %v860
      %v1579 = vmul.f32 %v1393, %v863
      %v1580 = vmul.f32 %v1398, %v865
      %v1581 = vmul.f32 %v1403, %v868
      %v1582 = vmul.f32 %v1408, %v870
      %v1583 = vmul.f32 %v1413, %v873
      %v1584 = vmul.f32 %v1418, %v875
      %v1585 = vmul.f32 %v1423, %v878
      %v1586 = vmul.f32 %v1428, %v880
      %v1587 = vmul.f32 %v1433, %v883
      %v1588 = vmul.f32 %v1438, %v885
      %v1589 = vmul.f32 %v1443, %v888
      %v1590 = vmul.f32 %v1448, %v890
      %v1591 = vmul.f32 %v1453, %v893
      %v1592 = vmul.f32 %v1458, %v895
      %v1593 = vmul.f32 %v1463, %v898
      %v1594 = vmul.f32 %v1468, %v900
      %v1595 = vmul.f32 %v1473, %v903
      %v1596 = vmul.f32 %v1478, %v905
      %v1597 = vmul.f32 %v1483, %v908
      %v1598 = vmul.f32 %v1488, %v910
      %v1599 = vmul.f32 %v1493, %v913
      %v1600 = vmul.f32 %v1498, %v915
      %v1601 = vmul.f32 %v1503, %v918
      %v1602 = vmul.f32 %v1508, %v920
      %v1603 = vmul.f32 %v1513, %v923
      %v1604 = vmul.f32 %v1518, %v925
      %v1605 = vmul.f32 %v1523, %v928
      %v1606 = vmul.f32 %v1528, %v930
      %v1607 = vmul.f32 %v1533, %v933
      %v1608 = vmul.f32 %v1538, %v935
      %v1609 = vmul.f32 %v1543, %v938
      %v1610 = vmul.f32 %v1548, %v940
      %v1611 = vmul.f32 %v1553, %v943
      %v1612 = vmul.f32 %v1558, %v945
      %v1613 = vmul.f32 %v1563, %v948
      %v1614 = vmul.f32 %v1568, %v950
      %v1615 = vmul.f32 %v1573, %v953
      %v1616 = vsub.f32 1.0, %v603
      %v1617 = vsub.f32 1.0, %v604
      %v1618 = vsub.f32 1.0, %v605
      %v1619 = vsub.f32 1.0, %v606
      %v1620 = vsub.f32 1.0, %v607
      %v1621 = vsub.f32 1.0, %v608
      %v1622 = vsub.f32 1.0, %v609
      %v1623 = vsub.f32 1.0, %v610
      %v1624 = vsub.f32 1.0, %v611
      %v1625 = vsub.f32 1.0, %v612
      %v1626 = vsub.f32 1.0, %v613
      %v1627 = vsub.f32 1.0, %v614
      %v1628 = vsub.f32 1.0, %v615
      %v1629 = vsub.f32 1.0, %v616
      %v1630 = vsub.f32 1.0, %v617
      %v1631 = vsub.f32 1.0, %v618
      %v1632 = vsub.f32 1.0, %v619
      %v1633 = vsub.f32 1.0, %v620
      %v1634 = vsub.f32 1.0, %v621
      %v1635 = vsub.f32 1.0, %v622
      %v1636 = vsub.f32 1.0, %v623
      %v1637 = vsub.f32 1.0, %v624
      %v1638 = vsub.f32 1.0, %v625
      %v1639 = vsub.f32 1.0, %v626
      %v1640 = vsub.f32 1.0, %v627
      %v1641 = vsub.f32 1.0, %v628
      %v1642 = vsub.f32 1.0, %v629
      %v1643 = vsub.f32 1.0, %v630
      %v1644 = vsub.f32 1.0, %v631
      %v1645 = vsub.f32 1.0, %v632
      %v1646 = vsub.f32 1.0, %v633
      %v1647 = vsub.f32 1.0, %v634
      %v1648 = vsub.f32 1.0, %v635
      %v1649 = vsub.f32 1.0, %v636
      %v1650 = vsub.f32 1.0, %v637
      %v1651 = vsub.f32 1.0, %v638
      %v1652 = vsub.f32 1.0, %v639
      %v1653 = vsub.f32 1.0, %v640
      %v1654 = vsub.f32 1.0, %v641
      %v1655 = vsub.f32 1.0, %v642
      %v1656 = vsub.f32 1.0, %v643
      %1658 = vset.pattern.permute.xlu0 0
      %1659 = vperm.xlu0 %1658, %v1616
      %v1660 = vpop.permute.xlu0 %1659
      %1663 = vset.pattern.permute.xlu0 0
      %1664 = vperm.xlu0 %1663, %v1617
      %v1665 = vpop.permute.xlu0 %1664
      %1668 = vset.pattern.permute.xlu0 0
      %1669 = vperm.xlu0 %1668, %v1618
      %v1670 = vpop.permute.xlu0 %1669
      %1673 = vset.pattern.permute.xlu0 0
      %1674 = vperm.xlu0 %1673, %v1619
      %v1675 = vpop.permute.xlu0 %1674
      %1678 = vset.pattern.permute.xlu0 0
      %1679 = vperm.xlu0 %1678, %v1620
      %v1680 = vpop.permute.xlu0 %1679
      %1683 = vset.pattern.permute.xlu0 0
      %1684 = vperm.xlu0 %1683, %v1621
      %v1685 = vpop.permute.xlu0 %1684
      %1688 = vset.pattern.permute.xlu0 0
      %1689 = vperm.xlu0 %1688, %v1622
      %v1690 = vpop.permute.xlu0 %1689
      %1693 = vset.pattern.permute.xlu0 0
      %1694 = vperm.xlu0 %1693, %v1623
      %v1695 = vpop.permute.xlu0 %1694
      %1698 = vset.pattern.permute.xlu0 0
      %1699 = vperm.xlu0 %1698, %v1624
      %v1700 = vpop.permute.xlu0 %1699
      %1703 = vset.pattern.permute.xlu0 0
      %1704 = vperm.xlu0 %1703, %v1625
      %v1705 = vpop.permute.xlu0 %1704
      %1708 = vset.pattern.permute.xlu0 0
      %1709 = vperm.xlu0 %1708, %v1626
      %v1710 = vpop.permute.xlu0 %1709
      %1713 = vset.pattern.permute.xlu0 0
      %1714 = vperm.xlu0 %1713, %v1627
      %v1715 = vpop.permute.xlu0 %1714
      %1718 = vset.pattern.permute.xlu0 0
      %1719 = vperm.xlu0 %1718, %v1628
      %v1720 = vpop.permute.xlu0 %1719
      %1723 = vset.pattern.permute.xlu0 0
      %1724 = vperm.xlu0 %1723, %v1629
      %v1725 = vpop.permute.xlu0 %1724
      %1728 = vset.pattern.permute.xlu0 0
      %1729 = vperm.xlu0 %1728, %v1630
      %v1730 = vpop.permute.xlu0 %1729
      %1733 = vset.pattern.permute.xlu0 0
      %1734 = vperm.xlu0 %1733, %v1631
      %v1735 = vpop.permute.xlu0 %1734
      %1738 = vset.pattern.permute.xlu0 0
      %1739 = vperm.xlu0 %1738, %v1632
      %v1740 = vpop.permute.xlu0 %1739
      %1743 = vset.pattern.permute.xlu0 0
      %1744 = vperm.xlu0 %1743, %v1633
      %v1745 = vpop.permute.xlu0 %1744
      %1748 = vset.pattern.permute.xlu0 0
      %1749 = vperm.xlu0 %1748, %v1634
      %v1750 = vpop.permute.xlu0 %1749
      %1753 = vset.pattern.permute.xlu0 0
      %1754 = vperm.xlu0 %1753, %v1635
      %v1755 = vpop.permute.xlu0 %1754
      %1758 = vset.pattern.permute.xlu0 0
      %1759 = vperm.xlu0 %1758, %v1636
      %v1760 = vpop.permute.xlu0 %1759
      %1763 = vset.pattern.permute.xlu0 0
      %1764 = vperm.xlu0 %1763, %v1637
      %v1765 = vpop.permute.xlu0 %1764
      %1768 = vset.pattern.permute.xlu0 0
      %1769 = vperm.xlu0 %1768, %v1638
      %v1770 = vpop.permute.xlu0 %1769
      %1773 = vset.pattern.permute.xlu0 0
      %1774 = vperm.xlu0 %1773, %v1639
      %v1775 = vpop.permute.xlu0 %1774
      %1778 = vset.pattern.permute.xlu0 0
      %1779 = vperm.xlu0 %1778, %v1640
      %v1780 = vpop.permute.xlu0 %1779
      %1783 = vset.pattern.permute.xlu0 0
      %1784 = vperm.xlu0 %1783, %v1641
      %v1785 = vpop.permute.xlu0 %1784
      %1788 = vset.pattern.permute.xlu0 0
      %1789 = vperm.xlu0 %1788, %v1642
      %v1790 = vpop.permute.xlu0 %1789
      %1793 = vset.pattern.permute.xlu0 0
      %1794 = vperm.xlu0 %1793, %v1643
      %v1795 = vpop.permute.xlu0 %1794
      %1798 = vset.pattern.permute.xlu0 0
      %1799 = vperm.xlu0 %1798, %v1644
      %v1800 = vpop.permute.xlu0 %1799
      %1803 = vset.pattern.permute.xlu0 0
      %1804 = vperm.xlu0 %1803, %v1645
      %v1805 = vpop.permute.xlu0 %1804
      %1808 = vset.pattern.permute.xlu0 0
      %1809 = vperm.xlu0 %1808, %v1646
      %v1810 = vpop.permute.xlu0 %1809
      %1813 = vset.pattern.permute.xlu0 0
      %1814 = vperm.xlu0 %1813, %v1647
      %v1815 = vpop.permute.xlu0 %1814
      %1818 = vset.pattern.permute.xlu0 0
      %1819 = vperm.xlu0 %1818, %v1648
      %v1820 = vpop.permute.xlu0 %1819
      %1823 = vset.pattern.permute.xlu0 0
      %1824 = vperm.xlu0 %1823, %v1649
      %v1825 = vpop.permute.xlu0 %1824
      %1828 = vset.pattern.permute.xlu0 0
      %1829 = vperm.xlu0 %1828, %v1650
      %v1830 = vpop.permute.xlu0 %1829
      %1833 = vset.pattern.permute.xlu0 0
      %1834 = vperm.xlu0 %1833, %v1651
      %v1835 = vpop.permute.xlu0 %1834
      %1838 = vset.pattern.permute.xlu0 0
      %1839 = vperm.xlu0 %1838, %v1652
      %v1840 = vpop.permute.xlu0 %1839
      %1843 = vset.pattern.permute.xlu0 0
      %1844 = vperm.xlu0 %1843, %v1653
      %v1845 = vpop.permute.xlu0 %1844
      %1848 = vset.pattern.permute.xlu0 0
      %1849 = vperm.xlu0 %1848, %v1654
      %v1850 = vpop.permute.xlu0 %1849
      %1853 = vset.pattern.permute.xlu0 0
      %1854 = vperm.xlu0 %1853, %v1655
      %v1855 = vpop.permute.xlu0 %1854
      %1858 = vset.pattern.permute.xlu0 0
      %1859 = vperm.xlu0 %1858, %v1656
      %v1860 = vpop.permute.xlu0 %1859
      %v1862 = vmul.f32 %v1660, %v989
      %v1863 = vmul.f32 %v1665, %v991
      %v1864 = vmul.f32 %v1670, %v994
      %v1865 = vmul.f32 %v1675, %v996
      %v1866 = vmul.f32 %v1680, %v999
      %v1867 = vmul.f32 %v1685, %v1001
      %v1868 = vmul.f32 %v1690, %v1004
      %v1869 = vmul.f32 %v1695, %v1006
      %v1870 = vmul.f32 %v1700, %v1009
      %v1871 = vmul.f32 %v1705, %v1011
      %v1872 = vmul.f32 %v1710, %v1014
      %v1873 = vmul.f32 %v1715, %v1016
      %v1874 = vmul.f32 %v1720, %v1019
      %v1875 = vmul.f32 %v1725, %v1021
      %v1876 = vmul.f32 %v1730, %v1024
      %v1877 = vmul.f32 %v1735, %v1026
      %v1878 = vmul.f32 %v1740, %v1029
      %v1879 = vmul.f32 %v1745, %v1031
      %v1880 = vmul.f32 %v1750, %v1034
      %v1881 = vmul.f32 %v1755, %v1036
      %v1882 = vmul.f32 %v1760, %v1039
      %v1883 = vmul.f32 %v1765, %v1041
      %v1884 = vmul.f32 %v1770, %v1044
      %v1885 = vmul.f32 %v1775, %v1046
      %v1886 = vmul.f32 %v1780, %v1049
      %v1887 = vmul.f32 %v1785, %v1051
      %v1888 = vmul.f32 %v1790, %v1054
      %v1889 = vmul.f32 %v1795, %v1056
      %v1890 = vmul.f32 %v1800, %v1059
      %v1891 = vmul.f32 %v1805, %v1061
      %v1892 = vmul.f32 %v1810, %v1064
      %v1893 = vmul.f32 %v1815, %v1066
      %v1894 = vmul.f32 %v1820, %v1069
      %v1895 = vmul.f32 %v1825, %v1071
      %v1896 = vmul.f32 %v1830, %v1074
      %v1897 = vmul.f32 %v1835, %v1076
      %v1898 = vmul.f32 %v1840, %v1079
      %v1899 = vmul.f32 %v1845, %v1081
      %v1900 = vmul.f32 %v1850, %v1084
      %v1901 = vmul.f32 %v1855, %v1086
      %v1902 = vmul.f32 %v1860, %v1089
      %v1903 = vadd.f32 %v1575, %v1862
      %v1904 = vadd.f32 %v1576, %v1863
      %v1905 = vadd.f32 %v1577, %v1864
      %v1906 = vadd.f32 %v1578, %v1865
      %v1907 = vadd.f32 %v1579, %v1866
      %v1908 = vadd.f32 %v1580, %v1867
      %v1909 = vadd.f32 %v1581, %v1868
      %v1910 = vadd.f32 %v1582, %v1869
      %v1911 = vadd.f32 %v1583, %v1870
      %v1912 = vadd.f32 %v1584, %v1871
      %v1913 = vadd.f32 %v1585, %v1872
      %v1914 = vadd.f32 %v1586, %v1873
      %v1915 = vadd.f32 %v1587, %v1874
      %v1916 = vadd.f32 %v1588, %v1875
      %v1917 = vadd.f32 %v1589, %v1876
      %v1918 = vadd.f32 %v1590, %v1877
      %v1919 = vadd.f32 %v1591, %v1878
      %v1920 = vadd.f32 %v1592, %v1879
      %v1921 = vadd.f32 %v1593, %v1880
      %v1922 = vadd.f32 %v1594, %v1881
      %v1923 = vadd.f32 %v1595, %v1882
      %v1924 = vadd.f32 %v1596, %v1883
      %v1925 = vadd.f32 %v1597, %v1884
      %v1926 = vadd.f32 %v1598, %v1885
      %v1927 = vadd.f32 %v1599, %v1886
      %v1928 = vadd.f32 %v1600, %v1887
      %v1929 = vadd.f32 %v1601, %v1888
      %v1930 = vadd.f32 %v1602, %v1889
      %v1931 = vadd.f32 %v1603, %v1890
      %v1932 = vadd.f32 %v1604, %v1891
      %v1933 = vadd.f32 %v1605, %v1892
      %v1934 = vadd.f32 %v1606, %v1893
      %v1935 = vadd.f32 %v1607, %v1894
      %v1936 = vadd.f32 %v1608, %v1895
      %v1937 = vadd.f32 %v1609, %v1896
      %v1938 = vadd.f32 %v1610, %v1897
      %v1939 = vadd.f32 %v1611, %v1898
      %v1940 = vadd.f32 %v1612, %v1899
      %v1941 = vadd.f32 %v1613, %v1900
      %v1942 = vadd.f32 %v1614, %v1901
      %v1943 = vadd.f32 %v1615, %v1902
      %1945 = vset.pattern.permute.xlu0 0
      %1946 = vperm.xlu0 %1945, %v562
      %v1947 = vpop.permute.xlu0 %1946
      %1950 = vset.pattern.permute.xlu0 0
      %1951 = vperm.xlu0 %1950, %v563
      %v1952 = vpop.permute.xlu0 %1951
      %1955 = vset.pattern.permute.xlu0 0
      %1956 = vperm.xlu0 %1955, %v564
      %v1957 = vpop.permute.xlu0 %1956
      %1960 = vset.pattern.permute.xlu0 0
      %1961 = vperm.xlu0 %1960, %v565
      %v1962 = vpop.permute.xlu0 %1961
      %1965 = vset.pattern.permute.xlu0 0
      %1966 = vperm.xlu0 %1965, %v566
      %v1967 = vpop.permute.xlu0 %1966
      %1970 = vset.pattern.permute.xlu0 0
      %1971 = vperm.xlu0 %1970, %v567
      %v1972 = vpop.permute.xlu0 %1971
      %1975 = vset.pattern.permute.xlu0 0
      %1976 = vperm.xlu0 %1975, %v568
      %v1977 = vpop.permute.xlu0 %1976
      %1980 = vset.pattern.permute.xlu0 0
      %1981 = vperm.xlu0 %1980, %v569
      %v1982 = vpop.permute.xlu0 %1981
      %1985 = vset.pattern.permute.xlu0 0
      %1986 = vperm.xlu0 %1985, %v570
      %v1987 = vpop.permute.xlu0 %1986
      %1990 = vset.pattern.permute.xlu0 0
      %1991 = vperm.xlu0 %1990, %v571
      %v1992 = vpop.permute.xlu0 %1991
      %1995 = vset.pattern.permute.xlu0 0
      %1996 = vperm.xlu0 %1995, %v572
      %v1997 = vpop.permute.xlu0 %1996
      %2000 = vset.pattern.permute.xlu0 0
      %2001 = vperm.xlu0 %2000, %v573
      %v2002 = vpop.permute.xlu0 %2001
      %2005 = vset.pattern.permute.xlu0 0
      %2006 = vperm.xlu0 %2005, %v574
      %v2007 = vpop.permute.xlu0 %2006
      %2010 = vset.pattern.permute.xlu0 0
      %2011 = vperm.xlu0 %2010, %v575
      %v2012 = vpop.permute.xlu0 %2011
      %2015 = vset.pattern.permute.xlu0 0
      %2016 = vperm.xlu0 %2015, %v576
      %v2017 = vpop.permute.xlu0 %2016
      %2020 = vset.pattern.permute.xlu0 0
      %2021 = vperm.xlu0 %2020, %v577
      %v2022 = vpop.permute.xlu0 %2021
      %2025 = vset.pattern.permute.xlu0 0
      %2026 = vperm.xlu0 %2025, %v578
      %v2027 = vpop.permute.xlu0 %2026
      %2030 = vset.pattern.permute.xlu0 0
      %2031 = vperm.xlu0 %2030, %v579
      %v2032 = vpop.permute.xlu0 %2031
      %2035 = vset.pattern.permute.xlu0 0
      %2036 = vperm.xlu0 %2035, %v580
      %v2037 = vpop.permute.xlu0 %2036
      %2040 = vset.pattern.permute.xlu0 0
      %2041 = vperm.xlu0 %2040, %v581
      %v2042 = vpop.permute.xlu0 %2041
      %2045 = vset.pattern.permute.xlu0 0
      %2046 = vperm.xlu0 %2045, %v582
      %v2047 = vpop.permute.xlu0 %2046
      %2050 = vset.pattern.permute.xlu0 0
      %2051 = vperm.xlu0 %2050, %v583
      %v2052 = vpop.permute.xlu0 %2051
      %2055 = vset.pattern.permute.xlu0 0
      %2056 = vperm.xlu0 %2055, %v584
      %v2057 = vpop.permute.xlu0 %2056
      %2060 = vset.pattern.permute.xlu0 0
      %2061 = vperm.xlu0 %2060, %v585
      %v2062 = vpop.permute.xlu0 %2061
      %2065 = vset.pattern.permute.xlu0 0
      %2066 = vperm.xlu0 %2065, %v586
      %v2067 = vpop.permute.xlu0 %2066
      %2070 = vset.pattern.permute.xlu0 0
      %2071 = vperm.xlu0 %2070, %v587
      %v2072 = vpop.permute.xlu0 %2071
      %2075 = vset.pattern.permute.xlu0 0
      %2076 = vperm.xlu0 %2075, %v588
      %v2077 = vpop.permute.xlu0 %2076
      %2080 = vset.pattern.permute.xlu0 0
      %2081 = vperm.xlu0 %2080, %v589
      %v2082 = vpop.permute.xlu0 %2081
      %2085 = vset.pattern.permute.xlu0 0
      %2086 = vperm.xlu0 %2085, %v590
      %v2087 = vpop.permute.xlu0 %2086
      %2090 = vset.pattern.permute.xlu0 0
      %2091 = vperm.xlu0 %2090, %v591
      %v2092 = vpop.permute.xlu0 %2091
      %2095 = vset.pattern.permute.xlu0 0
      %2096 = vperm.xlu0 %2095, %v592
      %v2097 = vpop.permute.xlu0 %2096
      %2100 = vset.pattern.permute.xlu0 0
      %2101 = vperm.xlu0 %2100, %v593
      %v2102 = vpop.permute.xlu0 %2101
      %2105 = vset.pattern.permute.xlu0 0
      %2106 = vperm.xlu0 %2105, %v594
      %v2107 = vpop.permute.xlu0 %2106
      %2110 = vset.pattern.permute.xlu0 0
      %2111 = vperm.xlu0 %2110, %v595
      %v2112 = vpop.permute.xlu0 %2111
      %2115 = vset.pattern.permute.xlu0 0
      %2116 = vperm.xlu0 %2115, %v596
      %v2117 = vpop.permute.xlu0 %2116
      %2120 = vset.pattern.permute.xlu0 0
      %2121 = vperm.xlu0 %2120, %v597
      %v2122 = vpop.permute.xlu0 %2121
      %2125 = vset.pattern.permute.xlu0 0
      %2126 = vperm.xlu0 %2125, %v598
      %v2127 = vpop.permute.xlu0 %2126
      %2130 = vset.pattern.permute.xlu0 0
      %2131 = vperm.xlu0 %2130, %v599
      %v2132 = vpop.permute.xlu0 %2131
      %2135 = vset.pattern.permute.xlu0 0
      %2136 = vperm.xlu0 %2135, %v600
      %v2137 = vpop.permute.xlu0 %2136
      %2140 = vset.pattern.permute.xlu0 0
      %2141 = vperm.xlu0 %2140, %v601
      %v2142 = vpop.permute.xlu0 %2141
      %2145 = vset.pattern.permute.xlu0 0
      %2146 = vperm.xlu0 %2145, %v602
      %v2147 = vpop.permute.xlu0 %2146
      %v2149 = vmul.f32 %v1947, %v1903
      %v2150 = vmul.f32 %v1952, %v1904
      %v2151 = vmul.f32 %v1957, %v1905
      %v2152 = vmul.f32 %v1962, %v1906
      %v2153 = vmul.f32 %v1967, %v1907
      %v2154 = vmul.f32 %v1972, %v1908
      %v2155 = vmul.f32 %v1977, %v1909
      %v2156 = vmul.f32 %v1982, %v1910
      %v2157 = vmul.f32 %v1987, %v1911
      %v2158 = vmul.f32 %v1992, %v1912
      %v2159 = vmul.f32 %v1997, %v1913
      %v2160 = vmul.f32 %v2002, %v1914
      %v2161 = vmul.f32 %v2007, %v1915
      %v2162 = vmul.f32 %v2012, %v1916
      %v2163 = vmul.f32 %v2017, %v1917
      %v2164 = vmul.f32 %v2022, %v1918
      %v2165 = vmul.f32 %v2027, %v1919
      %v2166 = vmul.f32 %v2032, %v1920
      %v2167 = vmul.f32 %v2037, %v1921
      %v2168 = vmul.f32 %v2042, %v1922
      %v2169 = vmul.f32 %v2047, %v1923
      %v2170 = vmul.f32 %v2052, %v1924
      %v2171 = vmul.f32 %v2057, %v1925
      %v2172 = vmul.f32 %v2062, %v1926
      %v2173 = vmul.f32 %v2067, %v1927
      %v2174 = vmul.f32 %v2072, %v1928
      %v2175 = vmul.f32 %v2077, %v1929
      %v2176 = vmul.f32 %v2082, %v1930
      %v2177 = vmul.f32 %v2087, %v1931
      %v2178 = vmul.f32 %v2092, %v1932
      %v2179 = vmul.f32 %v2097, %v1933
      %v2180 = vmul.f32 %v2102, %v1934
      %v2181 = vmul.f32 %v2107, %v1935
      %v2182 = vmul.f32 %v2112, %v1936
      %v2183 = vmul.f32 %v2117, %v1937
      %v2184 = vmul.f32 %v2122, %v1938
      %v2185 = vmul.f32 %v2127, %v1939
      %v2186 = vmul.f32 %v2132, %v1940
      %v2187 = vmul.f32 %v2137, %v1941
      %v2188 = vmul.f32 %v2142, %v1942
      %v2189 = vmul.f32 %v2147, %v1943
      %v2190 = vsub.f32 1.0, %v562
      %v2191 = vsub.f32 1.0, %v563
      %v2192 = vsub.f32 1.0, %v564
      %v2193 = vsub.f32 1.0, %v565
      %v2194 = vsub.f32 1.0, %v566
      %v2195 = vsub.f32 1.0, %v567
      %v2196 = vsub.f32 1.0, %v568
      %v2197 = vsub.f32 1.0, %v569
      %v2198 = vsub.f32 1.0, %v570
      %v2199 = vsub.f32 1.0, %v571
      %v2200 = vsub.f32 1.0, %v572
      %v2201 = vsub.f32 1.0, %v573
      %v2202 = vsub.f32 1.0, %v574
      %v2203 = vsub.f32 1.0, %v575
      %v2204 = vsub.f32 1.0, %v576
      %v2205 = vsub.f32 1.0, %v577
      %v2206 = vsub.f32 1.0, %v578
      %v2207 = vsub.f32 1.0, %v579
      %v2208 = vsub.f32 1.0, %v580
      %v2209 = vsub.f32 1.0, %v581
      %v2210 = vsub.f32 1.0, %v582
      %v2211 = vsub.f32 1.0, %v583
      %v2212 = vsub.f32 1.0, %v584
      %v2213 = vsub.f32 1.0, %v585
      %v2214 = vsub.f32 1.0, %v586
      %v2215 = vsub.f32 1.0, %v587
      %v2216 = vsub.f32 1.0, %v588
      %v2217 = vsub.f32 1.0, %v589
      %v2218 = vsub.f32 1.0, %v590
      %v2219 = vsub.f32 1.0, %v591
      %v2220 = vsub.f32 1.0, %v592
      %v2221 = vsub.f32 1.0, %v593
      %v2222 = vsub.f32 1.0, %v594
      %v2223 = vsub.f32 1.0, %v595
      %v2224 = vsub.f32 1.0, %v596
      %v2225 = vsub.f32 1.0, %v597
      %v2226 = vsub.f32 1.0, %v598
      %v2227 = vsub.f32 1.0, %v599
      %v2228 = vsub.f32 1.0, %v600
      %v2229 = vsub.f32 1.0, %v601
      %v2230 = vsub.f32 1.0, %v602
      %v2231 = vmul.f32 %v1373, %v1125
      %v2232 = vmul.f32 %v1378, %v1127
      %v2233 = vmul.f32 %v1383, %v1130
      %v2234 = vmul.f32 %v1388, %v1132
      %v2235 = vmul.f32 %v1393, %v1135
      %v2236 = vmul.f32 %v1398, %v1137
      %v2237 = vmul.f32 %v1403, %v1140
      %v2238 = vmul.f32 %v1408, %v1142
      %v2239 = vmul.f32 %v1413, %v1145
      %v2240 = vmul.f32 %v1418, %v1147
      %v2241 = vmul.f32 %v1423, %v1150
      %v2242 = vmul.f32 %v1428, %v1152
      %v2243 = vmul.f32 %v1433, %v1155
      %v2244 = vmul.f32 %v1438, %v1157
      %v2245 = vmul.f32 %v1443, %v1160
      %v2246 = vmul.f32 %v1448, %v1162
      %v2247 = vmul.f32 %v1453, %v1165
      %v2248 = vmul.f32 %v1458, %v1167
      %v2249 = vmul.f32 %v1463, %v1170
      %v2250 = vmul.f32 %v1468, %v1172
      %v2251 = vmul.f32 %v1473, %v1175
      %v2252 = vmul.f32 %v1478, %v1177
      %v2253 = vmul.f32 %v1483, %v1180
      %v2254 = vmul.f32 %v1488, %v1182
      %v2255 = vmul.f32 %v1493, %v1185
      %v2256 = vmul.f32 %v1498, %v1187
      %v2257 = vmul.f32 %v1503, %v1190
      %v2258 = vmul.f32 %v1508, %v1192
      %v2259 = vmul.f32 %v1513, %v1195
      %v2260 = vmul.f32 %v1518, %v1197
      %v2261 = vmul.f32 %v1523, %v1200
      %v2262 = vmul.f32 %v1528, %v1202
      %v2263 = vmul.f32 %v1533, %v1205
      %v2264 = vmul.f32 %v1538, %v1207
      %v2265 = vmul.f32 %v1543, %v1210
      %v2266 = vmul.f32 %v1548, %v1212
      %v2267 = vmul.f32 %v1553, %v1215
      %v2268 = vmul.f32 %v1558, %v1217
      %v2269 = vmul.f32 %v1563, %v1220
      %v2270 = vmul.f32 %v1568, %v1222
      %v2271 = vmul.f32 %v1573, %v1225
      %v2272 = vmul.f32 %v1660, %v1261
      %v2273 = vmul.f32 %v1665, %v1263
      %v2274 = vmul.f32 %v1670, %v1266
      %v2275 = vmul.f32 %v1675, %v1268
      %v2276 = vmul.f32 %v1680, %v1271
      %v2277 = vmul.f32 %v1685, %v1273
      %v2278 = vmul.f32 %v1690, %v1276
      %v2279 = vmul.f32 %v1695, %v1278
      %v2280 = vmul.f32 %v1700, %v1281
      %v2281 = vmul.f32 %v1705, %v1283
      %v2282 = vmul.f32 %v1710, %v1286
      %v2283 = vmul.f32 %v1715, %v1288
      %v2284 = vmul.f32 %v1720, %v1291
      %v2285 = vmul.f32 %v1725, %v1293
      %v2286 = vmul.f32 %v1730, %v1296
      %v2287 = vmul.f32 %v1735, %v1298
      %v2288 = vmul.f32 %v1740, %v1301
      %v2289 = vmul.f32 %v1745, %v1303
      %v2290 = vmul.f32 %v1750, %v1306
      %v2291 = vmul.f32 %v1755, %v1308
      %v2292 = vmul.f32 %v1760, %v1311
      %v2293 = vmul.f32 %v1765, %v1313
      %v2294 = vmul.f32 %v1770, %v1316
      %v2295 = vmul.f32 %v1775, %v1318
      %v2296 = vmul.f32 %v1780, %v1321
      %v2297 = vmul.f32 %v1785, %v1323
      %v2298 = vmul.f32 %v1790, %v1326
      %v2299 = vmul.f32 %v1795, %v1328
      %v2300 = vmul.f32 %v1800, %v1331
      %v2301 = vmul.f32 %v1805, %v1333
      %v2302 = vmul.f32 %v1810, %v1336
      %v2303 = vmul.f32 %v1815, %v1338
      %v2304 = vmul.f32 %v1820, %v1341
      %v2305 = vmul.f32 %v1825, %v1343
      %v2306 = vmul.f32 %v1830, %v1346
      %v2307 = vmul.f32 %v1835, %v1348
      %v2308 = vmul.f32 %v1840, %v1351
      %v2309 = vmul.f32 %v1845, %v1353
      %v2310 = vmul.f32 %v1850, %v1356
      %v2311 = vmul.f32 %v1855, %v1358
      %v2312 = vmul.f32 %v1860, %v1361
      %v2313 = vadd.f32 %v2231, %v2272
      %v2314 = vadd.f32 %v2232, %v2273
      %v2315 = vadd.f32 %v2233, %v2274
      %v2316 = vadd.f32 %v2234, %v2275
      %v2317 = vadd.f32 %v2235, %v2276
      %v2318 = vadd.f32 %v2236, %v2277
      %v2319 = vadd.f32 %v2237, %v2278
      %v2320 = vadd.f32 %v2238, %v2279
      %v2321 = vadd.f32 %v2239, %v2280
      %v2322 = vadd.f32 %v2240, %v2281
      %v2323 = vadd.f32 %v2241, %v2282
      %v2324 = vadd.f32 %v2242, %v2283
      %v2325 = vadd.f32 %v2243, %v2284
      %v2326 = vadd.f32 %v2244, %v2285
      %v2327 = vadd.f32 %v2245, %v2286
      %v2328 = vadd.f32 %v2246, %v2287
      %v2329 = vadd.f32 %v2247, %v2288
      %v2330 = vadd.f32 %v2248, %v2289
      %v2331 = vadd.f32 %v2249, %v2290
      %v2332 = vadd.f32 %v2250, %v2291
      %v2333 = vadd.f32 %v2251, %v2292
      %v2334 = vadd.f32 %v2252, %v2293
      %v2335 = vadd.f32 %v2253, %v2294
      %v2336 = vadd.f32 %v2254, %v2295
      %v2337 = vadd.f32 %v2255, %v2296
      %v2338 = vadd.f32 %v2256, %v2297
      %v2339 = vadd.f32 %v2257, %v2298
      %v2340 = vadd.f32 %v2258, %v2299
      %v2341 = vadd.f32 %v2259, %v2300
      %v2342 = vadd.f32 %v2260, %v2301
      %v2343 = vadd.f32 %v2261, %v2302
      %v2344 = vadd.f32 %v2262, %v2303
      %v2345 = vadd.f32 %v2263, %v2304
      %v2346 = vadd.f32 %v2264, %v2305
      %v2347 = vadd.f32 %v2265, %v2306
      %v2348 = vadd.f32 %v2266, %v2307
      %v2349 = vadd.f32 %v2267, %v2308
      %v2350 = vadd.f32 %v2268, %v2309
      %v2351 = vadd.f32 %v2269, %v2310
      %v2352 = vadd.f32 %v2270, %v2311
      %v2353 = vadd.f32 %v2271, %v2312
      %2355 = vset.pattern.permute.xlu0 0
      %2356 = vperm.xlu0 %2355, %v2190
      %v2357 = vpop.permute.xlu0 %2356
      %2360 = vset.pattern.permute.xlu0 0
      %2361 = vperm.xlu0 %2360, %v2191
      %v2362 = vpop.permute.xlu0 %2361
      %2365 = vset.pattern.permute.xlu0 0
      %2366 = vperm.xlu0 %2365, %v2192
      %v2367 = vpop.permute.xlu0 %2366
      %2370 = vset.pattern.permute.xlu0 0
      %2371 = vperm.xlu0 %2370, %v2193
      %v2372 = vpop.permute.xlu0 %2371
      %2375 = vset.pattern.permute.xlu0 0
      %2376 = vperm.xlu0 %2375, %v2194
      %v2377 = vpop.permute.xlu0 %2376
      %2380 = vset.pattern.permute.xlu0 0
      %2381 = vperm.xlu0 %2380, %v2195
      %v2382 = vpop.permute.xlu0 %2381
      %2385 = vset.pattern.permute.xlu0 0
      %2386 = vperm.xlu0 %2385, %v2196
      %v2387 = vpop.permute.xlu0 %2386
      %2390 = vset.pattern.permute.xlu0 0
      %2391 = vperm.xlu0 %2390, %v2197
      %v2392 = vpop.permute.xlu0 %2391
      %2395 = vset.pattern.permute.xlu0 0
      %2396 = vperm.xlu0 %2395, %v2198
      %v2397 = vpop.permute.xlu0 %2396
      %2400 = vset.pattern.permute.xlu0 0
      %2401 = vperm.xlu0 %2400, %v2199
      %v2402 = vpop.permute.xlu0 %2401
      %2405 = vset.pattern.permute.xlu0 0
      %2406 = vperm.xlu0 %2405, %v2200
      %v2407 = vpop.permute.xlu0 %2406
      %2410 = vset.pattern.permute.xlu0 0
      %2411 = vperm.xlu0 %2410, %v2201
      %v2412 = vpop.permute.xlu0 %2411
      %2415 = vset.pattern.permute.xlu0 0
      %2416 = vperm.xlu0 %2415, %v2202
      %v2417 = vpop.permute.xlu0 %2416
      %2420 = vset.pattern.permute.xlu0 0
      %2421 = vperm.xlu0 %2420, %v2203
      %v2422 = vpop.permute.xlu0 %2421
      %2425 = vset.pattern.permute.xlu0 0
      %2426 = vperm.xlu0 %2425, %v2204
      %v2427 = vpop.permute.xlu0 %2426
      %2430 = vset.pattern.permute.xlu0 0
      %2431 = vperm.xlu0 %2430, %v2205
      %v2432 = vpop.permute.xlu0 %2431
      %2435 = vset.pattern.permute.xlu0 0
      %2436 = vperm.xlu0 %2435, %v2206
      %v2437 = vpop.permute.xlu0 %2436
      %2440 = vset.pattern.permute.xlu0 0
      %2441 = vperm.xlu0 %2440, %v2207
      %v2442 = vpop.permute.xlu0 %2441
      %2445 = vset.pattern.permute.xlu0 0
      %2446 = vperm.xlu0 %2445, %v2208
      %v2447 = vpop.permute.xlu0 %2446
      %2450 = vset.pattern.permute.xlu0 0
      %2451 = vperm.xlu0 %2450, %v2209
      %v2452 = vpop.permute.xlu0 %2451
      %2455 = vset.pattern.permute.xlu0 0
      %2456 = vperm.xlu0 %2455, %v2210
      %v2457 = vpop.permute.xlu0 %2456
      %2460 = vset.pattern.permute.xlu0 0
      %2461 = vperm.xlu0 %2460, %v2211
      %v2462 = vpop.permute.xlu0 %2461
      %2465 = vset.pattern.permute.xlu0 0
      %2466 = vperm.xlu0 %2465, %v2212
      %v2467 = vpop.permute.xlu0 %2466
      %2470 = vset.pattern.permute.xlu0 0
      %2471 = vperm.xlu0 %2470, %v2213
      %v2472 = vpop.permute.xlu0 %2471
      %2475 = vset.pattern.permute.xlu0 0
      %2476 = vperm.xlu0 %2475, %v2214
      %v2477 = vpop.permute.xlu0 %2476
      %2480 = vset.pattern.permute.xlu0 0
      %2481 = vperm.xlu0 %2480, %v2215
      %v2482 = vpop.permute.xlu0 %2481
      %2485 = vset.pattern.permute.xlu0 0
      %2486 = vperm.xlu0 %2485, %v2216
      %v2487 = vpop.permute.xlu0 %2486
      %2490 = vset.pattern.permute.xlu0 0
      %2491 = vperm.xlu0 %2490, %v2217
      %v2492 = vpop.permute.xlu0 %2491
      %2495 = vset.pattern.permute.xlu0 0
      %2496 = vperm.xlu0 %2495, %v2218
      %v2497 = vpop.permute.xlu0 %2496
      %2500 = vset.pattern.permute.xlu0 0
      %2501 = vperm.xlu0 %2500, %v2219
      %v2502 = vpop.permute.xlu0 %2501
      %2505 = vset.pattern.permute.xlu0 0
      %2506 = vperm.xlu0 %2505, %v2220
      %v2507 = vpop.permute.xlu0 %2506
      %2510 = vset.pattern.permute.xlu0 0
      %2511 = vperm.xlu0 %2510, %v2221
      %v2512 = vpop.permute.xlu0 %2511
      %2515 = vset.pattern.permute.xlu0 0
      %2516 = vperm.xlu0 %2515, %v2222
      %v2517 = vpop.permute.xlu0 %2516
      %2520 = vset.pattern.permute.xlu0 0
      %2521 = vperm.xlu0 %2520, %v2223
      %v2522 = vpop.permute.xlu0 %2521
      %2525 = vset.pattern.permute.xlu0 0
      %2526 = vperm.xlu0 %2525, %v2224
      %v2527 = vpop.permute.xlu0 %2526
      %2530 = vset.pattern.permute.xlu0 0
      %2531 = vperm.xlu0 %2530, %v2225
      %v2532 = vpop.permute.xlu0 %2531
      %2535 = vset.pattern.permute.xlu0 0
      %2536 = vperm.xlu0 %2535, %v2226
      %v2537 = vpop.permute.xlu0 %2536
      %2540 = vset.pattern.permute.xlu0 0
      %2541 = vperm.xlu0 %2540, %v2227
      %v2542 = vpop.permute.xlu0 %2541
      %2545 = vset.pattern.permute.xlu0 0
      %2546 = vperm.xlu0 %2545, %v2228
      %v2547 = vpop.permute.xlu0 %2546
      %2550 = vset.pattern.permute.xlu0 0
      %2551 = vperm.xlu0 %2550, %v2229
      %v2552 = vpop.permute.xlu0 %2551
      %2555 = vset.pattern.permute.xlu0 0
      %2556 = vperm.xlu0 %2555, %v2230
      %v2557 = vpop.permute.xlu0 %2556
      %v2559 = vmul.f32 %v2357, %v2313
      %v2560 = vmul.f32 %v2362, %v2314
      %v2561 = vmul.f32 %v2367, %v2315
      %v2562 = vmul.f32 %v2372, %v2316
      %v2563 = vmul.f32 %v2377, %v2317
      %v2564 = vmul.f32 %v2382, %v2318
      %v2565 = vmul.f32 %v2387, %v2319
      %v2566 = vmul.f32 %v2392, %v2320
      %v2567 = vmul.f32 %v2397, %v2321
      %v2568 = vmul.f32 %v2402, %v2322
      %v2569 = vmul.f32 %v2407, %v2323
      %v2570 = vmul.f32 %v2412, %v2324
      %v2571 = vmul.f32 %v2417, %v2325
      %v2572 = vmul.f32 %v2422, %v2326
      %v2573 = vmul.f32 %v2427, %v2327
      %v2574 = vmul.f32 %v2432, %v2328
      %v2575 = vmul.f32 %v2437, %v2329
      %v2576 = vmul.f32 %v2442, %v2330
      %v2577 = vmul.f32 %v2447, %v2331
      %v2578 = vmul.f32 %v2452, %v2332
      %v2579 = vmul.f32 %v2457, %v2333
      %v2580 = vmul.f32 %v2462, %v2334
      %v2581 = vmul.f32 %v2467, %v2335
      %v2582 = vmul.f32 %v2472, %v2336
      %v2583 = vmul.f32 %v2477, %v2337
      %v2584 = vmul.f32 %v2482, %v2338
      %v2585 = vmul.f32 %v2487, %v2339
      %v2586 = vmul.f32 %v2492, %v2340
      %v2587 = vmul.f32 %v2497, %v2341
      %v2588 = vmul.f32 %v2502, %v2342
      %v2589 = vmul.f32 %v2507, %v2343
      %v2590 = vmul.f32 %v2512, %v2344
      %v2591 = vmul.f32 %v2517, %v2345
      %v2592 = vmul.f32 %v2522, %v2346
      %v2593 = vmul.f32 %v2527, %v2347
      %v2594 = vmul.f32 %v2532, %v2348
      %v2595 = vmul.f32 %v2537, %v2349
      %v2596 = vmul.f32 %v2542, %v2350
      %v2597 = vmul.f32 %v2547, %v2351
      %v2598 = vmul.f32 %v2552, %v2352
      %v2599 = vmul.f32 %v2557, %v2353
      %v2600 = vadd.f32 %v2149, %v2559
      %v2601 = vadd.f32 %v2150, %v2560
      %v2602 = vadd.f32 %v2151, %v2561
      %v2603 = vadd.f32 %v2152, %v2562
      %v2604 = vadd.f32 %v2153, %v2563
      %v2605 = vadd.f32 %v2154, %v2564
      %v2606 = vadd.f32 %v2155, %v2565
      %v2607 = vadd.f32 %v2156, %v2566
      %v2608 = vadd.f32 %v2157, %v2567
      %v2609 = vadd.f32 %v2158, %v2568
      %v2610 = vadd.f32 %v2159, %v2569
      %v2611 = vadd.f32 %v2160, %v2570
      %v2612 = vadd.f32 %v2161, %v2571
      %v2613 = vadd.f32 %v2162, %v2572
      %v2614 = vadd.f32 %v2163, %v2573
      %v2615 = vadd.f32 %v2164, %v2574
      %v2616 = vadd.f32 %v2165, %v2575
      %v2617 = vadd.f32 %v2166, %v2576
      %v2618 = vadd.f32 %v2167, %v2577
      %v2619 = vadd.f32 %v2168, %v2578
      %v2620 = vadd.f32 %v2169, %v2579
      %v2621 = vadd.f32 %v2170, %v2580
      %v2622 = vadd.f32 %v2171, %v2581
      %v2623 = vadd.f32 %v2172, %v2582
      %v2624 = vadd.f32 %v2173, %v2583
      %v2625 = vadd.f32 %v2174, %v2584
      %v2626 = vadd.f32 %v2175, %v2585
      %v2627 = vadd.f32 %v2176, %v2586
      %v2628 = vadd.f32 %v2177, %v2587
      %v2629 = vadd.f32 %v2178, %v2588
      %v2630 = vadd.f32 %v2179, %v2589
      %v2631 = vadd.f32 %v2180, %v2590
      %v2632 = vadd.f32 %v2181, %v2591
      %v2633 = vadd.f32 %v2182, %v2592
      %v2634 = vadd.f32 %v2183, %v2593
      %v2635 = vadd.f32 %v2184, %v2594
      %v2636 = vadd.f32 %v2185, %v2595
      %v2637 = vadd.f32 %v2186, %v2596
      %v2638 = vadd.f32 %v2187, %v2597
      %v2639 = vadd.f32 %v2188, %v2598
      %v2640 = vadd.f32 %v2189, %v2599
      %v2641 = vld [vmem:[%s6] sm:$0x1]
      %v2643 = vperm.slane %v2641, 0
      %v2645 = vadd.f32 %v2600, %v2643
      %v2646 = vadd.f32 %v2601, %v2643
      %v2647 = vadd.f32 %v2602, %v2643
      %v2648 = vadd.f32 %v2603, %v2643
      %v2649 = vadd.f32 %v2604, %v2643
      %v2650 = vadd.f32 %v2605, %v2643
      %v2651 = vadd.f32 %v2606, %v2643
      %v2652 = vadd.f32 %v2607, %v2643
      %v2653 = vadd.f32 %v2608, %v2643
      %v2654 = vadd.f32 %v2609, %v2643
      %v2655 = vadd.f32 %v2610, %v2643
      %v2656 = vadd.f32 %v2611, %v2643
      %v2657 = vadd.f32 %v2612, %v2643
      %v2658 = vadd.f32 %v2613, %v2643
      %v2659 = vadd.f32 %v2614, %v2643
      %v2660 = vadd.f32 %v2615, %v2643
      %v2661 = vadd.f32 %v2616, %v2643
      %v2662 = vadd.f32 %v2617, %v2643
      %v2663 = vadd.f32 %v2618, %v2643
      %v2664 = vadd.f32 %v2619, %v2643
      %v2665 = vadd.f32 %v2620, %v2643
      %v2666 = vadd.f32 %v2621, %v2643
      %v2667 = vadd.f32 %v2622, %v2643
      %v2668 = vadd.f32 %v2623, %v2643
      %v2669 = vadd.f32 %v2624, %v2643
      %v2670 = vadd.f32 %v2625, %v2643
      %v2671 = vadd.f32 %v2626, %v2643
      %v2672 = vadd.f32 %v2627, %v2643
      %v2673 = vadd.f32 %v2628, %v2643
      %v2674 = vadd.f32 %v2629, %v2643
      %v2675 = vadd.f32 %v2630, %v2643
      %v2676 = vadd.f32 %v2631, %v2643
      %v2677 = vadd.f32 %v2632, %v2643
      %v2678 = vadd.f32 %v2633, %v2643
      %v2679 = vadd.f32 %v2634, %v2643
      %v2680 = vadd.f32 %v2635, %v2643
      %v2681 = vadd.f32 %v2636, %v2643
      %v2682 = vadd.f32 %v2637, %v2643
      %v2683 = vadd.f32 %v2638, %v2643
      %v2684 = vadd.f32 %v2639, %v2643
      %v2685 = vadd.f32 %v2640, %v2643
      %2687 = vset.pattern.permute.xlu0 0
      %2688 = vperm.xlu0 %2687, %v521
      %v2689 = vpop.permute.xlu0 %2688
      %2692 = vset.pattern.permute.xlu0 0
      %2693 = vperm.xlu0 %2692, %v522
      %v2694 = vpop.permute.xlu0 %2693
      %2697 = vset.pattern.permute.xlu0 0
      %2698 = vperm.xlu0 %2697, %v523
      %v2699 = vpop.permute.xlu0 %2698
      %2702 = vset.pattern.permute.xlu0 0
      %2703 = vperm.xlu0 %2702, %v524
      %v2704 = vpop.permute.xlu0 %2703
      %2707 = vset.pattern.permute.xlu0 0
      %2708 = vperm.xlu0 %2707, %v525
      %v2709 = vpop.permute.xlu0 %2708
      %2712 = vset.pattern.permute.xlu0 0
      %2713 = vperm.xlu0 %2712, %v526
      %v2714 = vpop.permute.xlu0 %2713
      %2717 = vset.pattern.permute.xlu0 0
      %2718 = vperm.xlu0 %2717, %v527
      %v2719 = vpop.permute.xlu0 %2718
      %2722 = vset.pattern.permute.xlu0 0
      %2723 = vperm.xlu0 %2722, %v528
      %v2724 = vpop.permute.xlu0 %2723
      %2727 = vset.pattern.permute.xlu0 0
      %2728 = vperm.xlu0 %2727, %v529
      %v2729 = vpop.permute.xlu0 %2728
      %2732 = vset.pattern.permute.xlu0 0
      %2733 = vperm.xlu0 %2732, %v530
      %v2734 = vpop.permute.xlu0 %2733
      %2737 = vset.pattern.permute.xlu0 0
      %2738 = vperm.xlu0 %2737, %v531
      %v2739 = vpop.permute.xlu0 %2738
      %2742 = vset.pattern.permute.xlu0 0
      %2743 = vperm.xlu0 %2742, %v532
      %v2744 = vpop.permute.xlu0 %2743
      %2747 = vset.pattern.permute.xlu0 0
      %2748 = vperm.xlu0 %2747, %v533
      %v2749 = vpop.permute.xlu0 %2748
      %2752 = vset.pattern.permute.xlu0 0
      %2753 = vperm.xlu0 %2752, %v534
      %v2754 = vpop.permute.xlu0 %2753
      %2757 = vset.pattern.permute.xlu0 0
      %2758 = vperm.xlu0 %2757, %v535
      %v2759 = vpop.permute.xlu0 %2758
      %2762 = vset.pattern.permute.xlu0 0
      %2763 = vperm.xlu0 %2762, %v536
      %v2764 = vpop.permute.xlu0 %2763
      %2767 = vset.pattern.permute.xlu0 0
      %2768 = vperm.xlu0 %2767, %v537
      %v2769 = vpop.permute.xlu0 %2768
      %2772 = vset.pattern.permute.xlu0 0
      %2773 = vperm.xlu0 %2772, %v538
      %v2774 = vpop.permute.xlu0 %2773
      %2777 = vset.pattern.permute.xlu0 0
      %2778 = vperm.xlu0 %2777, %v539
      %v2779 = vpop.permute.xlu0 %2778
      %2782 = vset.pattern.permute.xlu0 0
      %2783 = vperm.xlu0 %2782, %v540
      %v2784 = vpop.permute.xlu0 %2783
      %2787 = vset.pattern.permute.xlu0 0
      %2788 = vperm.xlu0 %2787, %v541
      %v2789 = vpop.permute.xlu0 %2788
      %2792 = vset.pattern.permute.xlu0 0
      %2793 = vperm.xlu0 %2792, %v542
      %v2794 = vpop.permute.xlu0 %2793
      %2797 = vset.pattern.permute.xlu0 0
      %2798 = vperm.xlu0 %2797, %v543
      %v2799 = vpop.permute.xlu0 %2798
      %2802 = vset.pattern.permute.xlu0 0
      %2803 = vperm.xlu0 %2802, %v544
      %v2804 = vpop.permute.xlu0 %2803
      %2807 = vset.pattern.permute.xlu0 0
      %2808 = vperm.xlu0 %2807, %v545
      %v2809 = vpop.permute.xlu0 %2808
      %2812 = vset.pattern.permute.xlu0 0
      %2813 = vperm.xlu0 %2812, %v546
      %v2814 = vpop.permute.xlu0 %2813
      %2817 = vset.pattern.permute.xlu0 0
      %2818 = vperm.xlu0 %2817, %v547
      %v2819 = vpop.permute.xlu0 %2818
      %2822 = vset.pattern.permute.xlu0 0
      %2823 = vperm.xlu0 %2822, %v548
      %v2824 = vpop.permute.xlu0 %2823
      %2827 = vset.pattern.permute.xlu0 0
      %2828 = vperm.xlu0 %2827, %v549
      %v2829 = vpop.permute.xlu0 %2828
      %2832 = vset.pattern.permute.xlu0 0
      %2833 = vperm.xlu0 %2832, %v550
      %v2834 = vpop.permute.xlu0 %2833
      %2837 = vset.pattern.permute.xlu0 0
      %2838 = vperm.xlu0 %2837, %v551
      %v2839 = vpop.permute.xlu0 %2838
      %2842 = vset.pattern.permute.xlu0 0
      %2843 = vperm.xlu0 %2842, %v552
      %v2844 = vpop.permute.xlu0 %2843
      %2847 = vset.pattern.permute.xlu0 0
      %2848 = vperm.xlu0 %2847, %v553
      %v2849 = vpop.permute.xlu0 %2848
      %2852 = vset.pattern.permute.xlu0 0
      %2853 = vperm.xlu0 %2852, %v554
      %v2854 = vpop.permute.xlu0 %2853
      %2857 = vset.pattern.permute.xlu0 0
      %2858 = vperm.xlu0 %2857, %v555
      %v2859 = vpop.permute.xlu0 %2858
      %2862 = vset.pattern.permute.xlu0 0
      %2863 = vperm.xlu0 %2862, %v556
      %v2864 = vpop.permute.xlu0 %2863
      %2867 = vset.pattern.permute.xlu0 0
      %2868 = vperm.xlu0 %2867, %v557
      %v2869 = vpop.permute.xlu0 %2868
      %2872 = vset.pattern.permute.xlu0 0
      %2873 = vperm.xlu0 %2872, %v558
      %v2874 = vpop.permute.xlu0 %2873
      %2877 = vset.pattern.permute.xlu0 0
      %2878 = vperm.xlu0 %2877, %v559
      %v2879 = vpop.permute.xlu0 %2878
      %2882 = vset.pattern.permute.xlu0 0
      %2883 = vperm.xlu0 %2882, %v560
      %v2884 = vpop.permute.xlu0 %2883
      %2887 = vset.pattern.permute.xlu0 0
      %2888 = vperm.xlu0 %2887, %v561
      %v2889 = vpop.permute.xlu0 %2888
      %v2891 = vmul.f32 %v2645, %v2689
      %v2892 = vmul.f32 %v2646, %v2694
      %v2893 = vmul.f32 %v2647, %v2699
      %v2894 = vmul.f32 %v2648, %v2704
      %v2895 = vmul.f32 %v2649, %v2709
      %v2896 = vmul.f32 %v2650, %v2714
      %v2897 = vmul.f32 %v2651, %v2719
      %v2898 = vmul.f32 %v2652, %v2724
      %v2899 = vmul.f32 %v2653, %v2729
      %v2900 = vmul.f32 %v2654, %v2734
      %v2901 = vmul.f32 %v2655, %v2739
      %v2902 = vmul.f32 %v2656, %v2744
      %v2903 = vmul.f32 %v2657, %v2749
      %v2904 = vmul.f32 %v2658, %v2754
      %v2905 = vmul.f32 %v2659, %v2759
      %v2906 = vmul.f32 %v2660, %v2764
      %v2907 = vmul.f32 %v2661, %v2769
      %v2908 = vmul.f32 %v2662, %v2774
      %v2909 = vmul.f32 %v2663, %v2779
      %v2910 = vmul.f32 %v2664, %v2784
      %v2911 = vmul.f32 %v2665, %v2789
      %v2912 = vmul.f32 %v2666, %v2794
      %v2913 = vmul.f32 %v2667, %v2799
      %v2914 = vmul.f32 %v2668, %v2804
      %v2915 = vmul.f32 %v2669, %v2809
      %v2916 = vmul.f32 %v2670, %v2814
      %v2917 = vmul.f32 %v2671, %v2819
      %v2918 = vmul.f32 %v2672, %v2824
      %v2919 = vmul.f32 %v2673, %v2829
      %v2920 = vmul.f32 %v2674, %v2834
      %v2921 = vmul.f32 %v2675, %v2839
      %v2922 = vmul.f32 %v2676, %v2844
      %v2923 = vmul.f32 %v2677, %v2849
      %v2924 = vmul.f32 %v2678, %v2854
      %v2925 = vmul.f32 %v2679, %v2859
      %v2926 = vmul.f32 %v2680, %v2864
      %v2927 = vmul.f32 %v2681, %v2869
      %v2928 = vmul.f32 %v2682, %v2874
      %v2929 = vmul.f32 %v2683, %v2879
      %v2930 = vmul.f32 %v2684, %v2884
      %v2931 = vmul.f32 %v2685, %v2889
      %v2932 = vpack.c.bf16 %v2891, %v2891
      %v2933 = vpack.c.bf16 %v2892, %v2892
      %v2934 = vpack.c.bf16 %v2893, %v2893
      %v2935 = vpack.c.bf16 %v2894, %v2894
      %v2936 = vpack.c.bf16 %v2895, %v2895
      %v2937 = vpack.c.bf16 %v2896, %v2896
      %v2938 = vpack.c.bf16 %v2897, %v2897
      %v2939 = vpack.c.bf16 %v2898, %v2898
      %v2940 = vpack.c.bf16 %v2899, %v2899
      %v2941 = vpack.c.bf16 %v2900, %v2900
      %v2942 = vpack.c.bf16 %v2901, %v2901
      %v2943 = vpack.c.bf16 %v2902, %v2902
      %v2944 = vpack.c.bf16 %v2903, %v2903
      %v2945 = vpack.c.bf16 %v2904, %v2904
      %v2946 = vpack.c.bf16 %v2905, %v2905
      %v2947 = vpack.c.bf16 %v2906, %v2906
      %v2948 = vpack.c.bf16 %v2907, %v2907
      %v2949 = vpack.c.bf16 %v2908, %v2908
      %v2950 = vpack.c.bf16 %v2909, %v2909
      %v2951 = vpack.c.bf16 %v2910, %v2910
      %v2952 = vpack.c.bf16 %v2911, %v2911
      %v2953 = vpack.c.bf16 %v2912, %v2912
      %v2954 = vpack.c.bf16 %v2913, %v2913
      %v2955 = vpack.c.bf16 %v2914, %v2914
      %v2956 = vpack.c.bf16 %v2915, %v2915
      %v2957 = vpack.c.bf16 %v2916, %v2916
      %v2958 = vpack.c.bf16 %v2917, %v2917
      %v2959 = vpack.c.bf16 %v2918, %v2918
      %v2960 = vpack.c.bf16 %v2919, %v2919
      %v2961 = vpack.c.bf16 %v2920, %v2920
      %v2962 = vpack.c.bf16 %v2921, %v2921
      %v2963 = vpack.c.bf16 %v2922, %v2922
      %v2964 = vpack.c.bf16 %v2923, %v2923
      %v2965 = vpack.c.bf16 %v2924, %v2924
      %v2966 = vpack.c.bf16 %v2925, %v2925
      %v2967 = vpack.c.bf16 %v2926, %v2926
      %v2968 = vpack.c.bf16 %v2927, %v2927
      %v2969 = vpack.c.bf16 %v2928, %v2928
      %v2970 = vpack.c.bf16 %v2929, %v2929
      %v2971 = vpack.c.bf16 %v2930, %v2930
      %v2972 = vpack.c.bf16 %v2931, %v2931
      %v2973 = vld [vmem:[%s7] sm:$0xf]
      %v2974 = vld [vmem:[%s7 + $0x4] sm:$0xf]
      %v2975 = vld [vmem:[%s8] sm:$0xf]
      %v2976 = vld [vmem:[%s8 + $0x4] sm:$0xf]
      %v3013 = vunpack.c.l.b16 %v480
      %v3014 = vunpack.c.l.b16 %v481
      %v3015 = vunpack.c.l.b16 %v482
      %v3016 = vunpack.c.l.b16 %v483
      %v3017 = vunpack.c.l.b16 %v484
      %v3018 = vunpack.c.l.b16 %v485
      %v3019 = vunpack.c.l.b16 %v486
      %v3020 = vunpack.c.l.b16 %v487
      %v3021 = vunpack.c.l.b16 %v488
      %v3022 = vunpack.c.l.b16 %v489
      %v3023 = vunpack.c.l.b16 %v490
      %v3024 = vunpack.c.l.b16 %v491
      %v3025 = vunpack.c.l.b16 %v492
      %v3026 = vunpack.c.l.b16 %v493
      %v3027 = vunpack.c.l.b16 %v494
      %v3028 = vunpack.c.l.b16 %v495
      %v3029 = vunpack.c.l.b16 %v496
      %v3030 = vunpack.c.l.b16 %v497
      %v3031 = vunpack.c.l.b16 %v498
      %v3032 = vunpack.c.l.b16 %v499
      %v3033 = vunpack.c.l.b16 %v500
      %v3034 = vunpack.c.l.b16 %v501
      %v3035 = vunpack.c.l.b16 %v502
      %v3036 = vunpack.c.l.b16 %v503
      %v3037 = vunpack.c.l.b16 %v504
      %v3038 = vunpack.c.l.b16 %v505
      %v3039 = vunpack.c.l.b16 %v506
      %v3040 = vunpack.c.l.b16 %v507
      %v3041 = vunpack.c.l.b16 %v508
      %v3042 = vunpack.c.l.b16 %v509
      %v3043 = vunpack.c.l.b16 %v510
      %v3044 = vunpack.c.l.b16 %v511
      %v3045 = vunpack.c.l.b16 %v512
      %v3046 = vunpack.c.l.b16 %v513
      %v3047 = vunpack.c.l.b16 %v514
      %v3048 = vunpack.c.l.b16 %v515
      %v3049 = vpack.c.b16 %v3014, %v3013
      %v3050 = vpack.c.b16 %v3016, %v3015
      %v3051 = vpack.c.b16 %v3018, %v3017
      %v3052 = vpack.c.b16 %v3020, %v3019
      %v3053 = vpack.c.b16 %v3022, %v3021
      %v3054 = vpack.c.b16 %v3024, %v3023
      %v3055 = vpack.c.b16 %v3026, %v3025
      %v3056 = vpack.c.b16 %v3028, %v3027
      %v3057 = vpack.c.b16 %v3030, %v3029
      %v3058 = vpack.c.b16 %v3032, %v3031
      %v3059 = vpack.c.b16 %v3034, %v3033
      %v3060 = vpack.c.b16 %v3036, %v3035
      %v3061 = vpack.c.b16 %v3038, %v3037
      %v3062 = vpack.c.b16 %v3040, %v3039
      %v3063 = vpack.c.b16 %v3042, %v3041
      %v3064 = vpack.c.b16 %v3044, %v3043
      %v3065 = vpack.c.b16 %v3046, %v3045
      %v3066 = vpack.c.b16 %v3048, %v3047
      %v3069 = vunpack.c.l.b16 %v2975
      %v3070 = vunpack.c.l.b16 %v2976
      %v3071 = vpack.c.b16 %v3070, %v3069
      %vm3073 = vcmask 130048
      %v3075 = vsel %vm3073, %v3049, 0
      %v3078 = vsel %vm3073, %v3050, 0
      %v3081 = vsel %vm3073, %v3051, 0
      %v3084 = vsel %vm3073, %v3052, 0
      %v3087 = vsel %vm3073, %v3053, 0
      %v3090 = vsel %vm3073, %v3054, 0
      %v3093 = vsel %vm3073, %v3055, 0
      %v3096 = vsel %vm3073, %v3056, 0
      %v3099 = vsel %vm3073, %v3057, 0
      %v3102 = vsel %vm3073, %v3058, 0
      %v3105 = vsel %vm3073, %v3059, 0
      %v3108 = vsel %vm3073, %v3060, 0
      %v3111 = vsel %vm3073, %v3061, 0
      %v3114 = vsel %vm3073, %v3062, 0
      %v3117 = vsel %vm3073, %v3063, 0
      %v3120 = vsel %vm3073, %v3064, 0
      %v3123 = vsel %vm3073, %v3065, 0
      %v3126 = vsel %vm3073, %v3066, 0
      %3128 = vmatpush.bf16.msra.mxu0 0
      %3129 = vmatpush.bf16.msra.mxu0 0
      %3130 = vmatpush.bf16.msra.mxu0 0
      %3131 = vmatpush.bf16.msra.mxu0 0
      %3132 = vmatpush.bf16.msra.mxu0 0
      %3133 = vmatpush.bf16.msra.mxu0 0
      %3134 = vmatpush.bf16.msra.mxu0 0
      %3135 = vmatpush.bf16.msra.mxu0 %v3071
      %3136 = vmatmul.bf16.gmra.mxu0 %v3075
      %v3137 = vpop.f32.mrf.mxu0
      %v3138 = vadd.f32 0.0, %v3137
      %v3139 = vpop.f32.mrf.mxu0
      %v3140 = vadd.f32 0.0, %v3139
      %3141 = vmatmul.bf16.gmra.mxu0 %v3078
      %v3142 = vpop.f32.mrf.mxu0
      %v3143 = vadd.f32 0.0, %v3142
      %v3144 = vpop.f32.mrf.mxu0
      %v3145 = vadd.f32 0.0, %v3144
      %3146 = vmatmul.bf16.gmra.mxu0 %v3081
      %v3147 = vpop.f32.mrf.mxu0
      %v3148 = vadd.f32 0.0, %v3147
      %v3149 = vpop.f32.mrf.mxu0
      %v3150 = vadd.f32 0.0, %v3149
      %3151 = vmatmul.bf16.gmra.mxu0 %v3084
      %v3152 = vpop.f32.mrf.mxu0
      %v3153 = vadd.f32 0.0, %v3152
      %v3154 = vpop.f32.mrf.mxu0
      %v3155 = vadd.f32 0.0, %v3154
      %3156 = vmatmul.bf16.gmra.mxu0 %v3087
      %v3157 = vpop.f32.mrf.mxu0
      %v3158 = vadd.f32 0.0, %v3157
      %v3159 = vpop.f32.mrf.mxu0
      %v3160 = vadd.f32 0.0, %v3159
      %3161 = vmatmul.bf16.gmra.mxu0 %v3090
      %v3162 = vpop.f32.mrf.mxu0
      %v3163 = vadd.f32 0.0, %v3162
      %v3164 = vpop.f32.mrf.mxu0
      %v3165 = vadd.f32 0.0, %v3164
      %3166 = vmatmul.bf16.gmra.mxu0 %v3093
      %v3167 = vpop.f32.mrf.mxu0
      %v3168 = vadd.f32 0.0, %v3167
      %v3169 = vpop.f32.mrf.mxu0
      %v3170 = vadd.f32 0.0, %v3169
      %3171 = vmatmul.bf16.gmra.mxu0 %v3096
      %v3172 = vpop.f32.mrf.mxu0
      %v3173 = vadd.f32 0.0, %v3172
      %v3174 = vpop.f32.mrf.mxu0
      %v3175 = vadd.f32 0.0, %v3174
      %3176 = vmatmul.bf16.gmra.mxu0 %v3099
      %v3177 = vpop.f32.mrf.mxu0
      %v3178 = vadd.f32 0.0, %v3177
      %v3179 = vpop.f32.mrf.mxu0
      %v3180 = vadd.f32 0.0, %v3179
      %3181 = vmatmul.bf16.gmra.mxu0 %v3102
      %v3182 = vpop.f32.mrf.mxu0
      %v3183 = vadd.f32 0.0, %v3182
      %v3184 = vpop.f32.mrf.mxu0
      %v3185 = vadd.f32 0.0, %v3184
      %3186 = vmatmul.bf16.gmra.mxu0 %v3105
      %v3187 = vpop.f32.mrf.mxu0
      %v3188 = vadd.f32 0.0, %v3187
      %v3189 = vpop.f32.mrf.mxu0
      %v3190 = vadd.f32 0.0, %v3189
      %3191 = vmatmul.bf16.gmra.mxu0 %v3108
      %v3192 = vpop.f32.mrf.mxu0
      %v3193 = vadd.f32 0.0, %v3192
      %v3194 = vpop.f32.mrf.mxu0
      %v3195 = vadd.f32 0.0, %v3194
      %3196 = vmatmul.bf16.gmra.mxu0 %v3111
      %v3197 = vpop.f32.mrf.mxu0
      %v3198 = vadd.f32 0.0, %v3197
      %v3199 = vpop.f32.mrf.mxu0
      %v3200 = vadd.f32 0.0, %v3199
      %3201 = vmatmul.bf16.gmra.mxu0 %v3114
      %v3202 = vpop.f32.mrf.mxu0
      %v3203 = vadd.f32 0.0, %v3202
      %v3204 = vpop.f32.mrf.mxu0
      %v3205 = vadd.f32 0.0, %v3204
      %3206 = vmatmul.bf16.gmra.mxu0 %v3117
      %v3207 = vpop.f32.mrf.mxu0
      %v3208 = vadd.f32 0.0, %v3207
      %v3209 = vpop.f32.mrf.mxu0
      %v3210 = vadd.f32 0.0, %v3209
      %3211 = vmatmul.bf16.gmra.mxu0 %v3120
      %v3212 = vpop.f32.mrf.mxu0
      %v3213 = vadd.f32 0.0, %v3212
      %v3214 = vpop.f32.mrf.mxu0
      %v3215 = vadd.f32 0.0, %v3214
      %3216 = vmatmul.bf16.gmra.mxu0 %v3123
      %v3217 = vpop.f32.mrf.mxu0
      %v3218 = vadd.f32 0.0, %v3217
      %v3219 = vpop.f32.mrf.mxu0
      %v3220 = vadd.f32 0.0, %v3219
      %3221 = vmatmul.bf16.gmra.mxu0 %v3126
      %v3222 = vpop.f32.mrf.mxu0
      %v3223 = vadd.f32 0.0, %v3222
      %v3224 = vpop.f32.mrf.mxu0
      %v3225 = vadd.f32 0.0, %v3224
      %3226 = vdwg.mxu0
      %v3263 = vunpack.c.l.b16 %v2932
      %v3264 = vunpack.c.l.b16 %v2933
      %v3265 = vunpack.c.l.b16 %v2934
      %v3266 = vunpack.c.l.b16 %v2935
      %v3267 = vunpack.c.l.b16 %v2936
      %v3268 = vunpack.c.l.b16 %v2937
      %v3269 = vunpack.c.l.b16 %v2938
      %v3270 = vunpack.c.l.b16 %v2939
      %v3271 = vunpack.c.l.b16 %v2940
      %v3272 = vunpack.c.l.b16 %v2941
      %v3273 = vunpack.c.l.b16 %v2942
      %v3274 = vunpack.c.l.b16 %v2943
      %v3275 = vunpack.c.l.b16 %v2944
      %v3276 = vunpack.c.l.b16 %v2945
      %v3277 = vunpack.c.l.b16 %v2946
      %v3278 = vunpack.c.l.b16 %v2947
      %v3279 = vunpack.c.l.b16 %v2948
      %v3280 = vunpack.c.l.b16 %v2949
      %v3281 = vunpack.c.l.b16 %v2950
      %v3282 = vunpack.c.l.b16 %v2951
      %v3283 = vunpack.c.l.b16 %v2952
      %v3284 = vunpack.c.l.b16 %v2953
      %v3285 = vunpack.c.l.b16 %v2954
      %v3286 = vunpack.c.l.b16 %v2955
      %v3287 = vunpack.c.l.b16 %v2956
      %v3288 = vunpack.c.l.b16 %v2957
      %v3289 = vunpack.c.l.b16 %v2958
      %v3290 = vunpack.c.l.b16 %v2959
      %v3291 = vunpack.c.l.b16 %v2960
      %v3292 = vunpack.c.l.b16 %v2961
      %v3293 = vunpack.c.l.b16 %v2962
      %v3294 = vunpack.c.l.b16 %v2963
      %v3295 = vunpack.c.l.b16 %v2964
      %v3296 = vunpack.c.l.b16 %v2965
      %v3297 = vunpack.c.l.b16 %v2966
      %v3298 = vunpack.c.l.b16 %v2967
      %v3299 = vpack.c.b16 %v3264, %v3263
      %v3300 = vpack.c.b16 %v3266, %v3265
      %v3301 = vpack.c.b16 %v3268, %v3267
      %v3302 = vpack.c.b16 %v3270, %v3269
      %v3303 = vpack.c.b16 %v3272, %v3271
      %v3304 = vpack.c.b16 %v3274, %v3273
      %v3305 = vpack.c.b16 %v3276, %v3275
      %v3306 = vpack.c.b16 %v3278, %v3277
      %v3307 = vpack.c.b16 %v3280, %v3279
      %v3308 = vpack.c.b16 %v3282, %v3281
      %v3309 = vpack.c.b16 %v3284, %v3283
      %v3310 = vpack.c.b16 %v3286, %v3285
      %v3311 = vpack.c.b16 %v3288, %v3287
      %v3312 = vpack.c.b16 %v3290, %v3289
      %v3313 = vpack.c.b16 %v3292, %v3291
      %v3314 = vpack.c.b16 %v3294, %v3293
      %v3315 = vpack.c.b16 %v3296, %v3295
      %v3316 = vpack.c.b16 %v3298, %v3297
      %v3319 = vunpack.c.l.b16 %v2973
      %v3320 = vunpack.c.l.b16 %v2974
      %v3321 = vpack.c.b16 %v3320, %v3319
      %v3324 = vsel %vm3073, %v3299, 0
      %v3327 = vsel %vm3073, %v3300, 0
      %v3330 = vsel %vm3073, %v3301, 0
      %v3333 = vsel %vm3073, %v3302, 0
      %v3336 = vsel %vm3073, %v3303, 0
      %v3339 = vsel %vm3073, %v3304, 0
      %v3342 = vsel %vm3073, %v3305, 0
      %v3345 = vsel %vm3073, %v3306, 0
      %v3348 = vsel %vm3073, %v3307, 0
      %v3351 = vsel %vm3073, %v3308, 0
      %v3354 = vsel %vm3073, %v3309, 0
      %v3357 = vsel %vm3073, %v3310, 0
      %v3360 = vsel %vm3073, %v3311, 0
      %v3363 = vsel %vm3073, %v3312, 0
      %v3366 = vsel %vm3073, %v3313, 0
      %v3369 = vsel %vm3073, %v3314, 0
      %v3372 = vsel %vm3073, %v3315, 0
      %v3375 = vsel %vm3073, %v3316, 0
      %3377 = vmatpush.bf16.msra.mxu0 0
      %3378 = vmatpush.bf16.msra.mxu0 0
      %3379 = vmatpush.bf16.msra.mxu0 0
      %3380 = vmatpush.bf16.msra.mxu0 0
      %3381 = vmatpush.bf16.msra.mxu0 0
      %3382 = vmatpush.bf16.msra.mxu0 0
      %3383 = vmatpush.bf16.msra.mxu0 0
      %3384 = vmatpush.bf16.msra.mxu0 %v3321
      %3385 = vmatmul.bf16.gmra.mxu0 %v3324
      %v3386 = vpop.f32.mrf.mxu0
      %v3387 = vadd.f32 %v3138, %v3386
      %v3388 = vpop.f32.mrf.mxu0
      %v3389 = vadd.f32 %v3140, %v3388
      %3390 = vmatmul.bf16.gmra.mxu0 %v3327
      %v3391 = vpop.f32.mrf.mxu0
      %v3392 = vadd.f32 %v3143, %v3391
      %v3393 = vpop.f32.mrf.mxu0
      %v3394 = vadd.f32 %v3145, %v3393
      %3395 = vmatmul.bf16.gmra.mxu0 %v3330
      %v3396 = vpop.f32.mrf.mxu0
      %v3397 = vadd.f32 %v3148, %v3396
      %v3398 = vpop.f32.mrf.mxu0
      %v3399 = vadd.f32 %v3150, %v3398
      %3400 = vmatmul.bf16.gmra.mxu0 %v3333
      %v3401 = vpop.f32.mrf.mxu0
      %v3402 = vadd.f32 %v3153, %v3401
      %v3403 = vpop.f32.mrf.mxu0
      %v3404 = vadd.f32 %v3155, %v3403
      %3405 = vmatmul.bf16.gmra.mxu0 %v3336
      %v3406 = vpop.f32.mrf.mxu0
      %v3407 = vadd.f32 %v3158, %v3406
      %v3408 = vpop.f32.mrf.mxu0
      %v3409 = vadd.f32 %v3160, %v3408
      %3410 = vmatmul.bf16.gmra.mxu0 %v3339
      %v3411 = vpop.f32.mrf.mxu0
      %v3412 = vadd.f32 %v3163, %v3411
      %v3413 = vpop.f32.mrf.mxu0
      %v3414 = vadd.f32 %v3165, %v3413
      %3415 = vmatmul.bf16.gmra.mxu0 %v3342
      %v3416 = vpop.f32.mrf.mxu0
      %v3417 = vadd.f32 %v3168, %v3416
      %v3418 = vpop.f32.mrf.mxu0
      %v3419 = vadd.f32 %v3170, %v3418
      %3420 = vmatmul.bf16.gmra.mxu0 %v3345
      %v3421 = vpop.f32.mrf.mxu0
      %v3422 = vadd.f32 %v3173, %v3421
      %v3423 = vpop.f32.mrf.mxu0
      %v3424 = vadd.f32 %v3175, %v3423
      %3425 = vmatmul.bf16.gmra.mxu0 %v3348
      %v3426 = vpop.f32.mrf.mxu0
      %v3427 = vadd.f32 %v3178, %v3426
      %v3428 = vpop.f32.mrf.mxu0
      %v3429 = vadd.f32 %v3180, %v3428
      %3430 = vmatmul.bf16.gmra.mxu0 %v3351
      %v3431 = vpop.f32.mrf.mxu0
      %v3432 = vadd.f32 %v3183, %v3431
      %v3433 = vpop.f32.mrf.mxu0
      %v3434 = vadd.f32 %v3185, %v3433
      %3435 = vmatmul.bf16.gmra.mxu0 %v3354
      %v3436 = vpop.f32.mrf.mxu0
      %v3437 = vadd.f32 %v3188, %v3436
      %v3438 = vpop.f32.mrf.mxu0
      %v3439 = vadd.f32 %v3190, %v3438
      %3440 = vmatmul.bf16.gmra.mxu0 %v3357
      %v3441 = vpop.f32.mrf.mxu0
      %v3442 = vadd.f32 %v3193, %v3441
      %v3443 = vpop.f32.mrf.mxu0
      %v3444 = vadd.f32 %v3195, %v3443
      %3445 = vmatmul.bf16.gmra.mxu0 %v3360
      %v3446 = vpop.f32.mrf.mxu0
      %v3447 = vadd.f32 %v3198, %v3446
      %v3448 = vpop.f32.mrf.mxu0
      %v3449 = vadd.f32 %v3200, %v3448
      %3450 = vmatmul.bf16.gmra.mxu0 %v3363
      %v3451 = vpop.f32.mrf.mxu0
      %v3452 = vadd.f32 %v3203, %v3451
      %v3453 = vpop.f32.mrf.mxu0
      %v3454 = vadd.f32 %v3205, %v3453
      %3455 = vmatmul.bf16.gmra.mxu0 %v3366
      %v3456 = vpop.f32.mrf.mxu0
      %v3457 = vadd.f32 %v3208, %v3456
      %v3458 = vpop.f32.mrf.mxu0
      %v3459 = vadd.f32 %v3210, %v3458
      %3460 = vmatmul.bf16.gmra.mxu0 %v3369
      %v3461 = vpop.f32.mrf.mxu0
      %v3462 = vadd.f32 %v3213, %v3461
      %v3463 = vpop.f32.mrf.mxu0
      %v3464 = vadd.f32 %v3215, %v3463
      %3465 = vmatmul.bf16.gmra.mxu0 %v3372
      %v3466 = vpop.f32.mrf.mxu0
      %v3467 = vadd.f32 %v3218, %v3466
      %v3468 = vpop.f32.mrf.mxu0
      %v3469 = vadd.f32 %v3220, %v3468
      %3470 = vmatmul.bf16.gmra.mxu0 %v3375
      %v3471 = vpop.f32.mrf.mxu0
      %v3472 = vadd.f32 %v3223, %v3471
      %v3473 = vpop.f32.mrf.mxu0
      %v3474 = vadd.f32 %v3225, %v3473
      %3475 = vdwg.mxu0
      %s3476 = scalar_lea.vmem %s7, 8
      %v3477 = vld [vmem:[%s3476] sm:$0xf]
      %v3478 = vld [vmem:[%s3476 + $0x4] sm:$0xf]
      %v3480 = vunpack.c.l.b16 %v2968
      %v3481 = vpack.c.b16 %v3480, %v3480
      %vm3482 = vsmask.f32 7424
      %v3483 = vshrl.u32 %v3299, 16
      %v3485 = vshll.u32 %v3299, 16
      %v3487 = vrot.slane %v3485, 1
      %v3488 = vor.u32 %v3483, %v3487
      %v3489 = vshll.u32 %v3300, 16
      %v3491 = vrot.slane %v3489, 1
      %v3492 = vsel %vm3482, %v3488, %v3491
      %v3493 = vshrl.u32 %v3300, 16
      %v3495 = vor.u32 %v3493, %v3491
      %v3496 = vshll.u32 %v3301, 16
      %v3498 = vrot.slane %v3496, 1
      %v3499 = vsel %vm3482, %v3495, %v3498
      %v3500 = vshrl.u32 %v3301, 16
      %v3502 = vor.u32 %v3500, %v3498
      %v3503 = vshll.u32 %v3302, 16
      %v3505 = vrot.slane %v3503, 1
      %v3506 = vsel %vm3482, %v3502, %v3505
      %v3507 = vshrl.u32 %v3302, 16
      %v3509 = vor.u32 %v3507, %v3505
      %v3510 = vshll.u32 %v3303, 16
      %v3512 = vrot.slane %v3510, 1
      %v3513 = vsel %vm3482, %v3509, %v3512
      %v3514 = vshrl.u32 %v3303, 16
      %v3516 = vor.u32 %v3514, %v3512
      %v3517 = vshll.u32 %v3304, 16
      %v3519 = vrot.slane %v3517, 1
      %v3520 = vsel %vm3482, %v3516, %v3519
      %v3521 = vshrl.u32 %v3304, 16
      %v3523 = vor.u32 %v3521, %v3519
      %v3524 = vshll.u32 %v3305, 16
      %v3526 = vrot.slane %v3524, 1
      %v3527 = vsel %vm3482, %v3523, %v3526
      %v3528 = vshrl.u32 %v3305, 16
      %v3530 = vor.u32 %v3528, %v3526
      %v3531 = vshll.u32 %v3306, 16
      %v3533 = vrot.slane %v3531, 1
      %v3534 = vsel %vm3482, %v3530, %v3533
      %v3535 = vshrl.u32 %v3306, 16
      %v3537 = vor.u32 %v3535, %v3533
      %v3538 = vshll.u32 %v3307, 16
      %v3540 = vrot.slane %v3538, 1
      %v3541 = vsel %vm3482, %v3537, %v3540
      %v3542 = vshrl.u32 %v3307, 16
      %v3544 = vor.u32 %v3542, %v3540
      %v3545 = vshll.u32 %v3308, 16
      %v3547 = vrot.slane %v3545, 1
      %v3548 = vsel %vm3482, %v3544, %v3547
      %v3549 = vshrl.u32 %v3308, 16
      %v3551 = vor.u32 %v3549, %v3547
      %v3552 = vshll.u32 %v3309, 16
      %v3554 = vrot.slane %v3552, 1
      %v3555 = vsel %vm3482, %v3551, %v3554
      %v3556 = vshrl.u32 %v3309, 16
      %v3558 = vor.u32 %v3556, %v3554
      %v3559 = vshll.u32 %v3310, 16
      %v3561 = vrot.slane %v3559, 1
      %v3562 = vsel %vm3482, %v3558, %v3561
      %v3563 = vshrl.u32 %v3310, 16
      %v3565 = vor.u32 %v3563, %v3561
      %v3566 = vshll.u32 %v3311, 16
      %v3568 = vrot.slane %v3566, 1
      %v3569 = vsel %vm3482, %v3565, %v3568
      %v3570 = vshrl.u32 %v3311, 16
      %v3572 = vor.u32 %v3570, %v3568
      %v3573 = vshll.u32 %v3312, 16
      %v3575 = vrot.slane %v3573, 1
      %v3576 = vsel %vm3482, %v3572, %v3575
      %v3577 = vshrl.u32 %v3312, 16
      %v3579 = vor.u32 %v3577, %v3575
      %v3580 = vshll.u32 %v3313, 16
      %v3582 = vrot.slane %v3580, 1
      %v3583 = vsel %vm3482, %v3579, %v3582
      %v3584 = vshrl.u32 %v3313, 16
      %v3586 = vor.u32 %v3584, %v3582
      %v3587 = vshll.u32 %v3314, 16
      %v3589 = vrot.slane %v3587, 1
      %v3590 = vsel %vm3482, %v3586, %v3589
      %v3591 = vshrl.u32 %v3314, 16
      %v3593 = vor.u32 %v3591, %v3589
      %v3594 = vshll.u32 %v3315, 16
      %v3596 = vrot.slane %v3594, 1
      %v3597 = vsel %vm3482, %v3593, %v3596
      %v3598 = vshrl.u32 %v3315, 16
      %v3600 = vor.u32 %v3598, %v3596
      %v3601 = vshll.u32 %v3316, 16
      %v3603 = vrot.slane %v3601, 1
      %v3604 = vsel %vm3482, %v3600, %v3603
      %v3605 = vshrl.u32 %v3316, 16
      %v3607 = vor.u32 %v3605, %v3603
      %v3609 = vshll.u32 %v3481, 16
      %v3611 = vrot.slane %v3609, 1
      %v3612 = vsel %vm3482, %v3607, %v3611
      %v3615 = vunpack.c.l.b16 %v3477
      %v3616 = vunpack.c.l.b16 %v3478
      %v3617 = vpack.c.b16 %v3616, %v3615
      %v3620 = vsel %vm3073, %v3492, 0
      %v3623 = vsel %vm3073, %v3499, 0
      %v3626 = vsel %vm3073, %v3506, 0
      %v3629 = vsel %vm3073, %v3513, 0
      %v3632 = vsel %vm3073, %v3520, 0
      %v3635 = vsel %vm3073, %v3527, 0
      %v3638 = vsel %vm3073, %v3534, 0
      %v3641 = vsel %vm3073, %v3541, 0
      %v3644 = vsel %vm3073, %v3548, 0
      %v3647 = vsel %vm3073, %v3555, 0
      %v3650 = vsel %vm3073, %v3562, 0
      %v3653 = vsel %vm3073, %v3569, 0
      %v3656 = vsel %vm3073, %v3576, 0
      %v3659 = vsel %vm3073, %v3583, 0
      %v3662 = vsel %vm3073, %v3590, 0
      %v3665 = vsel %vm3073, %v3597, 0
      %v3668 = vsel %vm3073, %v3604, 0
      %v3671 = vsel %vm3073, %v3612, 0
      %3673 = vmatpush.bf16.msra.mxu0 0
      %3674 = vmatpush.bf16.msra.mxu0 0
      %3675 = vmatpush.bf16.msra.mxu0 0
      %3676 = vmatpush.bf16.msra.mxu0 0
      %3677 = vmatpush.bf16.msra.mxu0 0
      %3678 = vmatpush.bf16.msra.mxu0 0
      %3679 = vmatpush.bf16.msra.mxu0 0
      %3680 = vmatpush.bf16.msra.mxu0 %v3617
      %3681 = vmatmul.bf16.gmra.mxu0 %v3620
      %v3682 = vpop.f32.mrf.mxu0
      %v3683 = vadd.f32 0.0, %v3682
      %v3684 = vpop.f32.mrf.mxu0
      %v3685 = vadd.f32 0.0, %v3684
      %3686 = vmatmul.bf16.gmra.mxu0 %v3623
      %v3687 = vpop.f32.mrf.mxu0
      %v3688 = vadd.f32 0.0, %v3687
      %v3689 = vpop.f32.mrf.mxu0
      %v3690 = vadd.f32 0.0, %v3689
      %3691 = vmatmul.bf16.gmra.mxu0 %v3626
      %v3692 = vpop.f32.mrf.mxu0
      %v3693 = vadd.f32 0.0, %v3692
      %v3694 = vpop.f32.mrf.mxu0
      %v3695 = vadd.f32 0.0, %v3694
      %3696 = vmatmul.bf16.gmra.mxu0 %v3629
      %v3697 = vpop.f32.mrf.mxu0
      %v3698 = vadd.f32 0.0, %v3697
      %v3699 = vpop.f32.mrf.mxu0
      %v3700 = vadd.f32 0.0, %v3699
      %3701 = vmatmul.bf16.gmra.mxu0 %v3632
      %v3702 = vpop.f32.mrf.mxu0
      %v3703 = vadd.f32 0.0, %v3702
      %v3704 = vpop.f32.mrf.mxu0
      %v3705 = vadd.f32 0.0, %v3704
      %3706 = vmatmul.bf16.gmra.mxu0 %v3635
      %v3707 = vpop.f32.mrf.mxu0
      %v3708 = vadd.f32 0.0, %v3707
      %v3709 = vpop.f32.mrf.mxu0
      %v3710 = vadd.f32 0.0, %v3709
      %3711 = vmatmul.bf16.gmra.mxu0 %v3638
      %v3712 = vpop.f32.mrf.mxu0
      %v3713 = vadd.f32 0.0, %v3712
      %v3714 = vpop.f32.mrf.mxu0
      %v3715 = vadd.f32 0.0, %v3714
      %3716 = vmatmul.bf16.gmra.mxu0 %v3641
      %v3717 = vpop.f32.mrf.mxu0
      %v3718 = vadd.f32 0.0, %v3717
      %v3719 = vpop.f32.mrf.mxu0
      %v3720 = vadd.f32 0.0, %v3719
      %3721 = vmatmul.bf16.gmra.mxu0 %v3644
      %v3722 = vpop.f32.mrf.mxu0
      %v3723 = vadd.f32 0.0, %v3722
      %v3724 = vpop.f32.mrf.mxu0
      %v3725 = vadd.f32 0.0, %v3724
      %3726 = vmatmul.bf16.gmra.mxu0 %v3647
      %v3727 = vpop.f32.mrf.mxu0
      %v3728 = vadd.f32 0.0, %v3727
      %v3729 = vpop.f32.mrf.mxu0
      %v3730 = vadd.f32 0.0, %v3729
      %3731 = vmatmul.bf16.gmra.mxu0 %v3650
      %v3732 = vpop.f32.mrf.mxu0
      %v3733 = vadd.f32 0.0, %v3732
      %v3734 = vpop.f32.mrf.mxu0
      %v3735 = vadd.f32 0.0, %v3734
      %3736 = vmatmul.bf16.gmra.mxu0 %v3653
      %v3737 = vpop.f32.mrf.mxu0
      %v3738 = vadd.f32 0.0, %v3737
      %v3739 = vpop.f32.mrf.mxu0
      %v3740 = vadd.f32 0.0, %v3739
      %3741 = vmatmul.bf16.gmra.mxu0 %v3656
      %v3742 = vpop.f32.mrf.mxu0
      %v3743 = vadd.f32 0.0, %v3742
      %v3744 = vpop.f32.mrf.mxu0
      %v3745 = vadd.f32 0.0, %v3744
      %3746 = vmatmul.bf16.gmra.mxu0 %v3659
      %v3747 = vpop.f32.mrf.mxu0
      %v3748 = vadd.f32 0.0, %v3747
      %v3749 = vpop.f32.mrf.mxu0
      %v3750 = vadd.f32 0.0, %v3749
      %3751 = vmatmul.bf16.gmra.mxu0 %v3662
      %v3752 = vpop.f32.mrf.mxu0
      %v3753 = vadd.f32 0.0, %v3752
      %v3754 = vpop.f32.mrf.mxu0
      %v3755 = vadd.f32 0.0, %v3754
      %3756 = vmatmul.bf16.gmra.mxu0 %v3665
      %v3757 = vpop.f32.mrf.mxu0
      %v3758 = vadd.f32 0.0, %v3757
      %v3759 = vpop.f32.mrf.mxu0
      %v3760 = vadd.f32 0.0, %v3759
      %3761 = vmatmul.bf16.gmra.mxu0 %v3668
      %v3762 = vpop.f32.mrf.mxu0
      %v3763 = vadd.f32 0.0, %v3762
      %v3764 = vpop.f32.mrf.mxu0
      %v3765 = vadd.f32 0.0, %v3764
      %3766 = vmatmul.bf16.gmra.mxu0 %v3671
      %v3767 = vpop.f32.mrf.mxu0
      %v3768 = vadd.f32 0.0, %v3767
      %v3769 = vpop.f32.mrf.mxu0
      %v3770 = vadd.f32 0.0, %v3769
      %3771 = vdwg.mxu0
      %v3772 = vadd.f32 %v3387, %v3683
      %v3773 = vadd.f32 %v3389, %v3685
      %v3774 = vadd.f32 %v3392, %v3688
      %v3775 = vadd.f32 %v3394, %v3690
      %v3776 = vadd.f32 %v3397, %v3693
      %v3777 = vadd.f32 %v3399, %v3695
      %v3778 = vadd.f32 %v3402, %v3698
      %v3779 = vadd.f32 %v3404, %v3700
      %v3780 = vadd.f32 %v3407, %v3703
      %v3781 = vadd.f32 %v3409, %v3705
      %v3782 = vadd.f32 %v3412, %v3708
      %v3783 = vadd.f32 %v3414, %v3710
      %v3784 = vadd.f32 %v3417, %v3713
      %v3785 = vadd.f32 %v3419, %v3715
      %v3786 = vadd.f32 %v3422, %v3718
      %v3787 = vadd.f32 %v3424, %v3720
      %v3788 = vadd.f32 %v3427, %v3723
      %v3789 = vadd.f32 %v3429, %v3725
      %v3790 = vadd.f32 %v3432, %v3728
      %v3791 = vadd.f32 %v3434, %v3730
      %v3792 = vadd.f32 %v3437, %v3733
      %v3793 = vadd.f32 %v3439, %v3735
      %v3794 = vadd.f32 %v3442, %v3738
      %v3795 = vadd.f32 %v3444, %v3740
      %v3796 = vadd.f32 %v3447, %v3743
      %v3797 = vadd.f32 %v3449, %v3745
      %v3798 = vadd.f32 %v3452, %v3748
      %v3799 = vadd.f32 %v3454, %v3750
      %v3800 = vadd.f32 %v3457, %v3753
      %v3801 = vadd.f32 %v3459, %v3755
      %v3802 = vadd.f32 %v3462, %v3758
      %v3803 = vadd.f32 %v3464, %v3760
      %v3804 = vadd.f32 %v3467, %v3763
      %v3805 = vadd.f32 %v3469, %v3765
      %v3806 = vadd.f32 %v3472, %v3768
      %v3807 = vadd.f32 %v3474, %v3770
      %s3808 = scalar_lea.vmem %s8, 8
      %v3809 = vld [vmem:[%s3808] sm:$0xf]
      %v3810 = vld [vmem:[%s3808 + $0x4] sm:$0xf]
      %v3812 = vunpack.c.l.b16 %v516
      %v3813 = vpack.c.b16 %v3812, %v3812
      %v3814 = vshrl.u32 %v3049, 16
      %v3816 = vshll.u32 %v3049, 16
      %v3818 = vrot.slane %v3816, 1
      %v3819 = vor.u32 %v3814, %v3818
      %v3820 = vshll.u32 %v3050, 16
      %v3822 = vrot.slane %v3820, 1
      %v3823 = vsel %vm3482, %v3819, %v3822
      %v3824 = vshrl.u32 %v3050, 16
      %v3826 = vor.u32 %v3824, %v3822
      %v3827 = vshll.u32 %v3051, 16
      %v3829 = vrot.slane %v3827, 1
      %v3830 = vsel %vm3482, %v3826, %v3829
      %v3831 = vshrl.u32 %v3051, 16
      %v3833 = vor.u32 %v3831, %v3829
      %v3834 = vshll.u32 %v3052, 16
      %v3836 = vrot.slane %v3834, 1
      %v3837 = vsel %vm3482, %v3833, %v3836
      %v3838 = vshrl.u32 %v3052, 16
      %v3840 = vor.u32 %v3838, %v3836
      %v3841 = vshll.u32 %v3053, 16
      %v3843 = vrot.slane %v3841, 1
      %v3844 = vsel %vm3482, %v3840, %v3843
      %v3845 = vshrl.u32 %v3053, 16
      %v3847 = vor.u32 %v3845, %v3843
      %v3848 = vshll.u32 %v3054, 16
      %v3850 = vrot.slane %v3848, 1
      %v3851 = vsel %vm3482, %v3847, %v3850
      %v3852 = vshrl.u32 %v3054, 16
      %v3854 = vor.u32 %v3852, %v3850
      %v3855 = vshll.u32 %v3055, 16
      %v3857 = vrot.slane %v3855, 1
      %v3858 = vsel %vm3482, %v3854, %v3857
      %v3859 = vshrl.u32 %v3055, 16
      %v3861 = vor.u32 %v3859, %v3857
      %v3862 = vshll.u32 %v3056, 16
      %v3864 = vrot.slane %v3862, 1
      %v3865 = vsel %vm3482, %v3861, %v3864
      %v3866 = vshrl.u32 %v3056, 16
      %v3868 = vor.u32 %v3866, %v3864
      %v3869 = vshll.u32 %v3057, 16
      %v3871 = vrot.slane %v3869, 1
      %v3872 = vsel %vm3482, %v3868, %v3871
      %v3873 = vshrl.u32 %v3057, 16
      %v3875 = vor.u32 %v3873, %v3871
      %v3876 = vshll.u32 %v3058, 16
      %v3878 = vrot.slane %v3876, 1
      %v3879 = vsel %vm3482, %v3875, %v3878
      %v3880 = vshrl.u32 %v3058, 16
      %v3882 = vor.u32 %v3880, %v3878
      %v3883 = vshll.u32 %v3059, 16
      %v3885 = vrot.slane %v3883, 1
      %v3886 = vsel %vm3482, %v3882, %v3885
      %v3887 = vshrl.u32 %v3059, 16
      %v3889 = vor.u32 %v3887, %v3885
      %v3890 = vshll.u32 %v3060, 16
      %v3892 = vrot.slane %v3890, 1
      %v3893 = vsel %vm3482, %v3889, %v3892
      %v3894 = vshrl.u32 %v3060, 16
      %v3896 = vor.u32 %v3894, %v3892
      %v3897 = vshll.u32 %v3061, 16
      %v3899 = vrot.slane %v3897, 1
      %v3900 = vsel %vm3482, %v3896, %v3899
      %v3901 = vshrl.u32 %v3061, 16
      %v3903 = vor.u32 %v3901, %v3899
      %v3904 = vshll.u32 %v3062, 16
      %v3906 = vrot.slane %v3904, 1
      %v3907 = vsel %vm3482, %v3903, %v3906
      %v3908 = vshrl.u32 %v3062, 16
      %v3910 = vor.u32 %v3908, %v3906
      %v3911 = vshll.u32 %v3063, 16
      %v3913 = vrot.slane %v3911, 1
      %v3914 = vsel %vm3482, %v3910, %v3913
      %v3915 = vshrl.u32 %v3063, 16
      %v3917 = vor.u32 %v3915, %v3913
      %v3918 = vshll.u32 %v3064, 16
      %v3920 = vrot.slane %v3918, 1
      %v3921 = vsel %vm3482, %v3917, %v3920
      %v3922 = vshrl.u32 %v3064, 16
      %v3924 = vor.u32 %v3922, %v3920
      %v3925 = vshll.u32 %v3065, 16
      %v3927 = vrot.slane %v3925, 1
      %v3928 = vsel %vm3482, %v3924, %v3927
      %v3929 = vshrl.u32 %v3065, 16
      %v3931 = vor.u32 %v3929, %v3927
      %v3932 = vshll.u32 %v3066, 16
      %v3934 = vrot.slane %v3932, 1
      %v3935 = vsel %vm3482, %v3931, %v3934
      %v3936 = vshrl.u32 %v3066, 16
      %v3938 = vor.u32 %v3936, %v3934
      %v3940 = vshll.u32 %v3813, 16
      %v3942 = vrot.slane %v3940, 1
      %v3943 = vsel %vm3482, %v3938, %v3942
      %v3946 = vunpack.c.l.b16 %v3809
      %v3947 = vunpack.c.l.b16 %v3810
      %v3948 = vpack.c.b16 %v3947, %v3946
      %v3951 = vsel %vm3073, %v3823, 0
      %v3954 = vsel %vm3073, %v3830, 0
      %v3957 = vsel %vm3073, %v3837, 0
      %v3960 = vsel %vm3073, %v3844, 0
      %v3963 = vsel %vm3073, %v3851, 0
      %v3966 = vsel %vm3073, %v3858, 0
      %v3969 = vsel %vm3073, %v3865, 0
      %v3972 = vsel %vm3073, %v3872, 0
      %v3975 = vsel %vm3073, %v3879, 0
      %v3978 = vsel %vm3073, %v3886, 0
      %v3981 = vsel %vm3073, %v3893, 0
      %v3984 = vsel %vm3073, %v3900, 0
      %v3987 = vsel %vm3073, %v3907, 0
      %v3990 = vsel %vm3073, %v3914, 0
      %v3993 = vsel %vm3073, %v3921, 0
      %v3996 = vsel %vm3073, %v3928, 0
      %v3999 = vsel %vm3073, %v3935, 0
      %v4002 = vsel %vm3073, %v3943, 0
      %4004 = vmatpush.bf16.msra.mxu0 0
      %4005 = vmatpush.bf16.msra.mxu0 0
      %4006 = vmatpush.bf16.msra.mxu0 0
      %4007 = vmatpush.bf16.msra.mxu0 0
      %4008 = vmatpush.bf16.msra.mxu0 0
      %4009 = vmatpush.bf16.msra.mxu0 0
      %4010 = vmatpush.bf16.msra.mxu0 0
      %4011 = vmatpush.bf16.msra.mxu0 %v3948
      %4012 = vmatmul.bf16.gmra.mxu0 %v3951
      %v4013 = vpop.f32.mrf.mxu0
      %v4014 = vadd.f32 0.0, %v4013
      %v4015 = vpop.f32.mrf.mxu0
      %v4016 = vadd.f32 0.0, %v4015
      %4017 = vmatmul.bf16.gmra.mxu0 %v3954
      %v4018 = vpop.f32.mrf.mxu0
      %v4019 = vadd.f32 0.0, %v4018
      %v4020 = vpop.f32.mrf.mxu0
      %v4021 = vadd.f32 0.0, %v4020
      %4022 = vmatmul.bf16.gmra.mxu0 %v3957
      %v4023 = vpop.f32.mrf.mxu0
      %v4024 = vadd.f32 0.0, %v4023
      %v4025 = vpop.f32.mrf.mxu0
      %v4026 = vadd.f32 0.0, %v4025
      %4027 = vmatmul.bf16.gmra.mxu0 %v3960
      %v4028 = vpop.f32.mrf.mxu0
      %v4029 = vadd.f32 0.0, %v4028
      %v4030 = vpop.f32.mrf.mxu0
      %v4031 = vadd.f32 0.0, %v4030
      %4032 = vmatmul.bf16.gmra.mxu0 %v3963
      %v4033 = vpop.f32.mrf.mxu0
      %v4034 = vadd.f32 0.0, %v4033
      %v4035 = vpop.f32.mrf.mxu0
      %v4036 = vadd.f32 0.0, %v4035
      %4037 = vmatmul.bf16.gmra.mxu0 %v3966
      %v4038 = vpop.f32.mrf.mxu0
      %v4039 = vadd.f32 0.0, %v4038
      %v4040 = vpop.f32.mrf.mxu0
      %v4041 = vadd.f32 0.0, %v4040
      %4042 = vmatmul.bf16.gmra.mxu0 %v3969
      %v4043 = vpop.f32.mrf.mxu0
      %v4044 = vadd.f32 0.0, %v4043
      %v4045 = vpop.f32.mrf.mxu0
      %v4046 = vadd.f32 0.0, %v4045
      %4047 = vmatmul.bf16.gmra.mxu0 %v3972
      %v4048 = vpop.f32.mrf.mxu0
      %v4049 = vadd.f32 0.0, %v4048
      %v4050 = vpop.f32.mrf.mxu0
      %v4051 = vadd.f32 0.0, %v4050
      %4052 = vmatmul.bf16.gmra.mxu0 %v3975
      %v4053 = vpop.f32.mrf.mxu0
      %v4054 = vadd.f32 0.0, %v4053
      %v4055 = vpop.f32.mrf.mxu0
      %v4056 = vadd.f32 0.0, %v4055
      %4057 = vmatmul.bf16.gmra.mxu0 %v3978
      %v4058 = vpop.f32.mrf.mxu0
      %v4059 = vadd.f32 0.0, %v4058
      %v4060 = vpop.f32.mrf.mxu0
      %v4061 = vadd.f32 0.0, %v4060
      %4062 = vmatmul.bf16.gmra.mxu0 %v3981
      %v4063 = vpop.f32.mrf.mxu0
      %v4064 = vadd.f32 0.0, %v4063
      %v4065 = vpop.f32.mrf.mxu0
      %v4066 = vadd.f32 0.0, %v4065
      %4067 = vmatmul.bf16.gmra.mxu0 %v3984
      %v4068 = vpop.f32.mrf.mxu0
      %v4069 = vadd.f32 0.0, %v4068
      %v4070 = vpop.f32.mrf.mxu0
      %v4071 = vadd.f32 0.0, %v4070
      %4072 = vmatmul.bf16.gmra.mxu0 %v3987
      %v4073 = vpop.f32.mrf.mxu0
      %v4074 = vadd.f32 0.0, %v4073
      %v4075 = vpop.f32.mrf.mxu0
      %v4076 = vadd.f32 0.0, %v4075
      %4077 = vmatmul.bf16.gmra.mxu0 %v3990
      %v4078 = vpop.f32.mrf.mxu0
      %v4079 = vadd.f32 0.0, %v4078
      %v4080 = vpop.f32.mrf.mxu0
      %v4081 = vadd.f32 0.0, %v4080
      %4082 = vmatmul.bf16.gmra.mxu0 %v3993
      %v4083 = vpop.f32.mrf.mxu0
      %v4084 = vadd.f32 0.0, %v4083
      %v4085 = vpop.f32.mrf.mxu0
      %v4086 = vadd.f32 0.0, %v4085
      %4087 = vmatmul.bf16.gmra.mxu0 %v3996
      %v4088 = vpop.f32.mrf.mxu0
      %v4089 = vadd.f32 0.0, %v4088
      %v4090 = vpop.f32.mrf.mxu0
      %v4091 = vadd.f32 0.0, %v4090
      %4092 = vmatmul.bf16.gmra.mxu0 %v3999
      %v4093 = vpop.f32.mrf.mxu0
      %v4094 = vadd.f32 0.0, %v4093
      %v4095 = vpop.f32.mrf.mxu0
      %v4096 = vadd.f32 0.0, %v4095
      %4097 = vmatmul.bf16.gmra.mxu0 %v4002
      %v4098 = vpop.f32.mrf.mxu0
      %v4099 = vadd.f32 0.0, %v4098
      %v4100 = vpop.f32.mrf.mxu0
      %v4101 = vadd.f32 0.0, %v4100
      %4102 = vdwg.mxu0
      %v4103 = vadd.f32 %v3772, %v4014
      %v4104 = vadd.f32 %v3773, %v4016
      %v4105 = vadd.f32 %v3774, %v4019
      %v4106 = vadd.f32 %v3775, %v4021
      %v4107 = vadd.f32 %v3776, %v4024
      %v4108 = vadd.f32 %v3777, %v4026
      %v4109 = vadd.f32 %v3778, %v4029
      %v4110 = vadd.f32 %v3779, %v4031
      %v4111 = vadd.f32 %v3780, %v4034
      %v4112 = vadd.f32 %v3781, %v4036
      %v4113 = vadd.f32 %v3782, %v4039
      %v4114 = vadd.f32 %v3783, %v4041
      %v4115 = vadd.f32 %v3784, %v4044
      %v4116 = vadd.f32 %v3785, %v4046
      %v4117 = vadd.f32 %v3786, %v4049
      %v4118 = vadd.f32 %v3787, %v4051
      %v4119 = vadd.f32 %v3788, %v4054
      %v4120 = vadd.f32 %v3789, %v4056
      %v4121 = vadd.f32 %v3790, %v4059
      %v4122 = vadd.f32 %v3791, %v4061
      %v4123 = vadd.f32 %v3792, %v4064
      %v4124 = vadd.f32 %v3793, %v4066
      %v4125 = vadd.f32 %v3794, %v4069
      %v4126 = vadd.f32 %v3795, %v4071
      %v4127 = vadd.f32 %v3796, %v4074
      %v4128 = vadd.f32 %v3797, %v4076
      %v4129 = vadd.f32 %v3798, %v4079
      %v4130 = vadd.f32 %v3799, %v4081
      %v4131 = vadd.f32 %v3800, %v4084
      %v4132 = vadd.f32 %v3801, %v4086
      %v4133 = vadd.f32 %v3802, %v4089
      %v4134 = vadd.f32 %v3803, %v4091
      %v4135 = vadd.f32 %v3804, %v4094
      %v4136 = vadd.f32 %v3805, %v4096
      %v4137 = vadd.f32 %v3806, %v4099
      %v4138 = vadd.f32 %v3807, %v4101
      %s4139 = scalar_lea.vmem %s7, 16
      %v4140 = vld [vmem:[%s4139] sm:$0xf]
      %v4141 = vld [vmem:[%s4139 + $0x4] sm:$0xf]
      %vm4142 = vcmask 1046528
      %v4143 = vrot.slane %v3299, 1
      %v4144 = vrot.slane %v3300, 1
      %v4145 = vsel %vm4142, %v4143, %v4144
      %v4146 = vrot.slane %v3301, 1
      %v4147 = vsel %vm4142, %v4144, %v4146
      %v4148 = vrot.slane %v3302, 1
      %v4149 = vsel %vm4142, %v4146, %v4148
      %v4150 = vrot.slane %v3303, 1
      %v4151 = vsel %vm4142, %v4148, %v4150
      %v4152 = vrot.slane %v3304, 1
      %v4153 = vsel %vm4142, %v4150, %v4152
      %v4154 = vrot.slane %v3305, 1
      %v4155 = vsel %vm4142, %v4152, %v4154
      %v4156 = vrot.slane %v3306, 1
      %v4157 = vsel %vm4142, %v4154, %v4156
      %v4158 = vrot.slane %v3307, 1
      %v4159 = vsel %vm4142, %v4156, %v4158
      %v4160 = vrot.slane %v3308, 1
      %v4161 = vsel %vm4142, %v4158, %v4160
      %v4162 = vrot.slane %v3309, 1
      %v4163 = vsel %vm4142, %v4160, %v4162
      %v4164 = vrot.slane %v3310, 1
      %v4165 = vsel %vm4142, %v4162, %v4164
      %v4166 = vrot.slane %v3311, 1
      %v4167 = vsel %vm4142, %v4164, %v4166
      %v4168 = vrot.slane %v3312, 1
      %v4169 = vsel %vm4142, %v4166, %v4168
      %v4170 = vrot.slane %v3313, 1
      %v4171 = vsel %vm4142, %v4168, %v4170
      %v4172 = vrot.slane %v3314, 1
      %v4173 = vsel %vm4142, %v4170, %v4172
      %v4174 = vrot.slane %v3315, 1
      %v4175 = vsel %vm4142, %v4172, %v4174
      %v4176 = vrot.slane %v3316, 1
      %v4177 = vsel %vm4142, %v4174, %v4176
      %v4178 = vrot.slane %v3481, 1
      %v4179 = vsel %vm4142, %v4176, %v4178
      %v4182 = vunpack.c.l.b16 %v4140
      %v4183 = vunpack.c.l.b16 %v4141
      %v4184 = vpack.c.b16 %v4183, %v4182
      %v4187 = vsel %vm3073, %v4145, 0
      %v4190 = vsel %vm3073, %v4147, 0
      %v4193 = vsel %vm3073, %v4149, 0
      %v4196 = vsel %vm3073, %v4151, 0
      %v4199 = vsel %vm3073, %v4153, 0
      %v4202 = vsel %vm3073, %v4155, 0
      %v4205 = vsel %vm3073, %v4157, 0
      %v4208 = vsel %vm3073, %v4159, 0
      %v4211 = vsel %vm3073, %v4161, 0
      %v4214 = vsel %vm3073, %v4163, 0
      %v4217 = vsel %vm3073, %v4165, 0
      %v4220 = vsel %vm3073, %v4167, 0
      %v4223 = vsel %vm3073, %v4169, 0
      %v4226 = vsel %vm3073, %v4171, 0
      %v4229 = vsel %vm3073, %v4173, 0
      %v4232 = vsel %vm3073, %v4175, 0
      %v4235 = vsel %vm3073, %v4177, 0
      %v4238 = vsel %vm3073, %v4179, 0
      %4240 = vmatpush.bf16.msra.mxu0 0
      %4241 = vmatpush.bf16.msra.mxu0 0
      %4242 = vmatpush.bf16.msra.mxu0 0
      %4243 = vmatpush.bf16.msra.mxu0 0
      %4244 = vmatpush.bf16.msra.mxu0 0
      %4245 = vmatpush.bf16.msra.mxu0 0
      %4246 = vmatpush.bf16.msra.mxu0 0
      %4247 = vmatpush.bf16.msra.mxu0 %v4184
      %4248 = vmatmul.bf16.gmra.mxu0 %v4187
      %v4249 = vpop.f32.mrf.mxu0
      %v4250 = vadd.f32 0.0, %v4249
      %v4251 = vpop.f32.mrf.mxu0
      %v4252 = vadd.f32 0.0, %v4251
      %4253 = vmatmul.bf16.gmra.mxu0 %v4190
      %v4254 = vpop.f32.mrf.mxu0
      %v4255 = vadd.f32 0.0, %v4254
      %v4256 = vpop.f32.mrf.mxu0
      %v4257 = vadd.f32 0.0, %v4256
      %4258 = vmatmul.bf16.gmra.mxu0 %v4193
      %v4259 = vpop.f32.mrf.mxu0
      %v4260 = vadd.f32 0.0, %v4259
      %v4261 = vpop.f32.mrf.mxu0
      %v4262 = vadd.f32 0.0, %v4261
      %4263 = vmatmul.bf16.gmra.mxu0 %v4196
      %v4264 = vpop.f32.mrf.mxu0
      %v4265 = vadd.f32 0.0, %v4264
      %v4266 = vpop.f32.mrf.mxu0
      %v4267 = vadd.f32 0.0, %v4266
      %4268 = vmatmul.bf16.gmra.mxu0 %v4199
      %v4269 = vpop.f32.mrf.mxu0
      %v4270 = vadd.f32 0.0, %v4269
      %v4271 = vpop.f32.mrf.mxu0
      %v4272 = vadd.f32 0.0, %v4271
      %4273 = vmatmul.bf16.gmra.mxu0 %v4202
      %v4274 = vpop.f32.mrf.mxu0
      %v4275 = vadd.f32 0.0, %v4274
      %v4276 = vpop.f32.mrf.mxu0
      %v4277 = vadd.f32 0.0, %v4276
      %4278 = vmatmul.bf16.gmra.mxu0 %v4205
      %v4279 = vpop.f32.mrf.mxu0
      %v4280 = vadd.f32 0.0, %v4279
      %v4281 = vpop.f32.mrf.mxu0
      %v4282 = vadd.f32 0.0, %v4281
      %4283 = vmatmul.bf16.gmra.mxu0 %v4208
      %v4284 = vpop.f32.mrf.mxu0
      %v4285 = vadd.f32 0.0, %v4284
      %v4286 = vpop.f32.mrf.mxu0
      %v4287 = vadd.f32 0.0, %v4286
      %4288 = vmatmul.bf16.gmra.mxu0 %v4211
      %v4289 = vpop.f32.mrf.mxu0
      %v4290 = vadd.f32 0.0, %v4289
      %v4291 = vpop.f32.mrf.mxu0
      %v4292 = vadd.f32 0.0, %v4291
      %4293 = vmatmul.bf16.gmra.mxu0 %v4214
      %v4294 = vpop.f32.mrf.mxu0
      %v4295 = vadd.f32 0.0, %v4294
      %v4296 = vpop.f32.mrf.mxu0
      %v4297 = vadd.f32 0.0, %v4296
      %4298 = vmatmul.bf16.gmra.mxu0 %v4217
      %v4299 = vpop.f32.mrf.mxu0
      %v4300 = vadd.f32 0.0, %v4299
      %v4301 = vpop.f32.mrf.mxu0
      %v4302 = vadd.f32 0.0, %v4301
      %4303 = vmatmul.bf16.gmra.mxu0 %v4220
      %v4304 = vpop.f32.mrf.mxu0
      %v4305 = vadd.f32 0.0, %v4304
      %v4306 = vpop.f32.mrf.mxu0
      %v4307 = vadd.f32 0.0, %v4306
      %4308 = vmatmul.bf16.gmra.mxu0 %v4223
      %v4309 = vpop.f32.mrf.mxu0
      %v4310 = vadd.f32 0.0, %v4309
      %v4311 = vpop.f32.mrf.mxu0
      %v4312 = vadd.f32 0.0, %v4311
      %4313 = vmatmul.bf16.gmra.mxu0 %v4226
      %v4314 = vpop.f32.mrf.mxu0
      %v4315 = vadd.f32 0.0, %v4314
      %v4316 = vpop.f32.mrf.mxu0
      %v4317 = vadd.f32 0.0, %v4316
      %4318 = vmatmul.bf16.gmra.mxu0 %v4229
      %v4319 = vpop.f32.mrf.mxu0
      %v4320 = vadd.f32 0.0, %v4319
      %v4321 = vpop.f32.mrf.mxu0
      %v4322 = vadd.f32 0.0, %v4321
      %4323 = vmatmul.bf16.gmra.mxu0 %v4232
      %v4324 = vpop.f32.mrf.mxu0
      %v4325 = vadd.f32 0.0, %v4324
      %v4326 = vpop.f32.mrf.mxu0
      %v4327 = vadd.f32 0.0, %v4326
      %4328 = vmatmul.bf16.gmra.mxu0 %v4235
      %v4329 = vpop.f32.mrf.mxu0
      %v4330 = vadd.f32 0.0, %v4329
      %v4331 = vpop.f32.mrf.mxu0
      %v4332 = vadd.f32 0.0, %v4331
      %4333 = vmatmul.bf16.gmra.mxu0 %v4238
      %v4334 = vpop.f32.mrf.mxu0
      %v4335 = vadd.f32 0.0, %v4334
      %v4336 = vpop.f32.mrf.mxu0
      %v4337 = vadd.f32 0.0, %v4336
      %4338 = vdwg.mxu0
      %v4339 = vadd.f32 %v4103, %v4250
      %v4340 = vadd.f32 %v4104, %v4252
      %v4341 = vadd.f32 %v4105, %v4255
      %v4342 = vadd.f32 %v4106, %v4257
      %v4343 = vadd.f32 %v4107, %v4260
      %v4344 = vadd.f32 %v4108, %v4262
      %v4345 = vadd.f32 %v4109, %v4265
      %v4346 = vadd.f32 %v4110, %v4267
      %v4347 = vadd.f32 %v4111, %v4270
      %v4348 = vadd.f32 %v4112, %v4272
      %v4349 = vadd.f32 %v4113, %v4275
      %v4350 = vadd.f32 %v4114, %v4277
      %v4351 = vadd.f32 %v4115, %v4280
      %v4352 = vadd.f32 %v4116, %v4282
      %v4353 = vadd.f32 %v4117, %v4285
      %v4354 = vadd.f32 %v4118, %v4287
      %v4355 = vadd.f32 %v4119, %v4290
      %v4356 = vadd.f32 %v4120, %v4292
      %v4357 = vadd.f32 %v4121, %v4295
      %v4358 = vadd.f32 %v4122, %v4297
      %v4359 = vadd.f32 %v4123, %v4300
      %v4360 = vadd.f32 %v4124, %v4302
      %v4361 = vadd.f32 %v4125, %v4305
      %v4362 = vadd.f32 %v4126, %v4307
      %v4363 = vadd.f32 %v4127, %v4310
      %v4364 = vadd.f32 %v4128, %v4312
      %v4365 = vadd.f32 %v4129, %v4315
      %v4366 = vadd.f32 %v4130, %v4317
      %v4367 = vadd.f32 %v4131, %v4320
      %v4368 = vadd.f32 %v4132, %v4322
      %v4369 = vadd.f32 %v4133, %v4325
      %v4370 = vadd.f32 %v4134, %v4327
      %v4371 = vadd.f32 %v4135, %v4330
      %v4372 = vadd.f32 %v4136, %v4332
      %v4373 = vadd.f32 %v4137, %v4335
      %v4374 = vadd.f32 %v4138, %v4337
      %s4375 = scalar_lea.vmem %s8, 16
      %v4376 = vld [vmem:[%s4375] sm:$0xf]
      %v4377 = vld [vmem:[%s4375 + $0x4] sm:$0xf]
      %v4378 = vrot.slane %v3049, 1
      %v4379 = vrot.slane %v3050, 1
      %v4380 = vsel %vm4142, %v4378, %v4379
      %v4381 = vrot.slane %v3051, 1
      %v4382 = vsel %vm4142, %v4379, %v4381
      %v4383 = vrot.slane %v3052, 1
      %v4384 = vsel %vm4142, %v4381, %v4383
      %v4385 = vrot.slane %v3053, 1
      %v4386 = vsel %vm4142, %v4383, %v4385
      %v4387 = vrot.slane %v3054, 1
      %v4388 = vsel %vm4142, %v4385, %v4387
      %v4389 = vrot.slane %v3055, 1
      %v4390 = vsel %vm4142, %v4387, %v4389
      %v4391 = vrot.slane %v3056, 1
      %v4392 = vsel %vm4142, %v4389, %v4391
      %v4393 = vrot.slane %v3057, 1
      %v4394 = vsel %vm4142, %v4391, %v4393
      %v4395 = vrot.slane %v3058, 1
      %v4396 = vsel %vm4142, %v4393, %v4395
      %v4397 = vrot.slane %v3059, 1
      %v4398 = vsel %vm4142, %v4395, %v4397
      %v4399 = vrot.slane %v3060, 1
      %v4400 = vsel %vm4142, %v4397, %v4399
      %v4401 = vrot.slane %v3061, 1
      %v4402 = vsel %vm4142, %v4399, %v4401
      %v4403 = vrot.slane %v3062, 1
      %v4404 = vsel %vm4142, %v4401, %v4403
      %v4405 = vrot.slane %v3063, 1
      %v4406 = vsel %vm4142, %v4403, %v4405
      %v4407 = vrot.slane %v3064, 1
      %v4408 = vsel %vm4142, %v4405, %v4407
      %v4409 = vrot.slane %v3065, 1
      %v4410 = vsel %vm4142, %v4407, %v4409
      %v4411 = vrot.slane %v3066, 1
      %v4412 = vsel %vm4142, %v4409, %v4411
      %v4413 = vrot.slane %v3813, 1
      %v4414 = vsel %vm4142, %v4411, %v4413
      %v4417 = vunpack.c.l.b16 %v4376
      %v4418 = vunpack.c.l.b16 %v4377
      %v4419 = vpack.c.b16 %v4418, %v4417
      %v4422 = vsel %vm3073, %v4380, 0
      %v4425 = vsel %vm3073, %v4382, 0
      %v4428 = vsel %vm3073, %v4384, 0
      %v4431 = vsel %vm3073, %v4386, 0
      %v4434 = vsel %vm3073, %v4388, 0
      %v4437 = vsel %vm3073, %v4390, 0
      %v4440 = vsel %vm3073, %v4392, 0
      %v4443 = vsel %vm3073, %v4394, 0
      %v4446 = vsel %vm3073, %v4396, 0
      %v4449 = vsel %vm3073, %v4398, 0
      %v4452 = vsel %vm3073, %v4400, 0
      %v4455 = vsel %vm3073, %v4402, 0
      %v4458 = vsel %vm3073, %v4404, 0
      %v4461 = vsel %vm3073, %v4406, 0
      %v4464 = vsel %vm3073, %v4408, 0
      %v4467 = vsel %vm3073, %v4410, 0
      %v4470 = vsel %vm3073, %v4412, 0
      %v4473 = vsel %vm3073, %v4414, 0
      %4475 = vmatpush.bf16.msra.mxu0 0
      %4476 = vmatpush.bf16.msra.mxu0 0
      %4477 = vmatpush.bf16.msra.mxu0 0
      %4478 = vmatpush.bf16.msra.mxu0 0
      %4479 = vmatpush.bf16.msra.mxu0 0
      %4480 = vmatpush.bf16.msra.mxu0 0
      %4481 = vmatpush.bf16.msra.mxu0 0
      %4482 = vmatpush.bf16.msra.mxu0 %v4419
      %4483 = vmatmul.bf16.gmra.mxu0 %v4422
      %v4484 = vpop.f32.mrf.mxu0
      %v4485 = vadd.f32 0.0, %v4484
      %v4486 = vpop.f32.mrf.mxu0
      %v4487 = vadd.f32 0.0, %v4486
      %4488 = vmatmul.bf16.gmra.mxu0 %v4425
      %v4489 = vpop.f32.mrf.mxu0
      %v4490 = vadd.f32 0.0, %v4489
      %v4491 = vpop.f32.mrf.mxu0
      %v4492 = vadd.f32 0.0, %v4491
      %4493 = vmatmul.bf16.gmra.mxu0 %v4428
      %v4494 = vpop.f32.mrf.mxu0
      %v4495 = vadd.f32 0.0, %v4494
      %v4496 = vpop.f32.mrf.mxu0
      %v4497 = vadd.f32 0.0, %v4496
      %4498 = vmatmul.bf16.gmra.mxu0 %v4431
      %v4499 = vpop.f32.mrf.mxu0
      %v4500 = vadd.f32 0.0, %v4499
      %v4501 = vpop.f32.mrf.mxu0
      %v4502 = vadd.f32 0.0, %v4501
      %4503 = vmatmul.bf16.gmra.mxu0 %v4434
      %v4504 = vpop.f32.mrf.mxu0
      %v4505 = vadd.f32 0.0, %v4504
      %v4506 = vpop.f32.mrf.mxu0
      %v4507 = vadd.f32 0.0, %v4506
      %4508 = vmatmul.bf16.gmra.mxu0 %v4437
      %v4509 = vpop.f32.mrf.mxu0
      %v4510 = vadd.f32 0.0, %v4509
      %v4511 = vpop.f32.mrf.mxu0
      %v4512 = vadd.f32 0.0, %v4511
      %4513 = vmatmul.bf16.gmra.mxu0 %v4440
      %v4514 = vpop.f32.mrf.mxu0
      %v4515 = vadd.f32 0.0, %v4514
      %v4516 = vpop.f32.mrf.mxu0
      %v4517 = vadd.f32 0.0, %v4516
      %4518 = vmatmul.bf16.gmra.mxu0 %v4443
      %v4519 = vpop.f32.mrf.mxu0
      %v4520 = vadd.f32 0.0, %v4519
      %v4521 = vpop.f32.mrf.mxu0
      %v4522 = vadd.f32 0.0, %v4521
      %4523 = vmatmul.bf16.gmra.mxu0 %v4446
      %v4524 = vpop.f32.mrf.mxu0
      %v4525 = vadd.f32 0.0, %v4524
      %v4526 = vpop.f32.mrf.mxu0
      %v4527 = vadd.f32 0.0, %v4526
      %4528 = vmatmul.bf16.gmra.mxu0 %v4449
      %v4529 = vpop.f32.mrf.mxu0
      %v4530 = vadd.f32 0.0, %v4529
      %v4531 = vpop.f32.mrf.mxu0
      %v4532 = vadd.f32 0.0, %v4531
      %4533 = vmatmul.bf16.gmra.mxu0 %v4452
      %v4534 = vpop.f32.mrf.mxu0
      %v4535 = vadd.f32 0.0, %v4534
      %v4536 = vpop.f32.mrf.mxu0
      %v4537 = vadd.f32 0.0, %v4536
      %4538 = vmatmul.bf16.gmra.mxu0 %v4455
      %v4539 = vpop.f32.mrf.mxu0
      %v4540 = vadd.f32 0.0, %v4539
      %v4541 = vpop.f32.mrf.mxu0
      %v4542 = vadd.f32 0.0, %v4541
      %4543 = vmatmul.bf16.gmra.mxu0 %v4458
      %v4544 = vpop.f32.mrf.mxu0
      %v4545 = vadd.f32 0.0, %v4544
      %v4546 = vpop.f32.mrf.mxu0
      %v4547 = vadd.f32 0.0, %v4546
      %4548 = vmatmul.bf16.gmra.mxu0 %v4461
      %v4549 = vpop.f32.mrf.mxu0
      %v4550 = vadd.f32 0.0, %v4549
      %v4551 = vpop.f32.mrf.mxu0
      %v4552 = vadd.f32 0.0, %v4551
      %4553 = vmatmul.bf16.gmra.mxu0 %v4464
      %v4554 = vpop.f32.mrf.mxu0
      %v4555 = vadd.f32 0.0, %v4554
      %v4556 = vpop.f32.mrf.mxu0
      %v4557 = vadd.f32 0.0, %v4556
      %4558 = vmatmul.bf16.gmra.mxu0 %v4467
      %v4559 = vpop.f32.mrf.mxu0
      %v4560 = vadd.f32 0.0, %v4559
      %v4561 = vpop.f32.mrf.mxu0
      %v4562 = vadd.f32 0.0, %v4561
      %4563 = vmatmul.bf16.gmra.mxu0 %v4470
      %v4564 = vpop.f32.mrf.mxu0
      %v4565 = vadd.f32 0.0, %v4564
      %v4566 = vpop.f32.mrf.mxu0
      %v4567 = vadd.f32 0.0, %v4566
      %4568 = vmatmul.bf16.gmra.mxu0 %v4473
      %v4569 = vpop.f32.mrf.mxu0
      %v4570 = vadd.f32 0.0, %v4569
      %v4571 = vpop.f32.mrf.mxu0
      %v4572 = vadd.f32 0.0, %v4571
      %4573 = vdwg.mxu0
      %v4574 = vadd.f32 %v4339, %v4485
      %v4575 = vadd.f32 %v4340, %v4487
      %v4576 = vadd.f32 %v4341, %v4490
      %v4577 = vadd.f32 %v4342, %v4492
      %v4578 = vadd.f32 %v4343, %v4495
      %v4579 = vadd.f32 %v4344, %v4497
      %v4580 = vadd.f32 %v4345, %v4500
      %v4581 = vadd.f32 %v4346, %v4502
      %v4582 = vadd.f32 %v4347, %v4505
      %v4583 = vadd.f32 %v4348, %v4507
      %v4584 = vadd.f32 %v4349, %v4510
      %v4585 = vadd.f32 %v4350, %v4512
      %v4586 = vadd.f32 %v4351, %v4515
      %v4587 = vadd.f32 %v4352, %v4517
      %v4588 = vadd.f32 %v4353, %v4520
      %v4589 = vadd.f32 %v4354, %v4522
      %v4590 = vadd.f32 %v4355, %v4525
      %v4591 = vadd.f32 %v4356, %v4527
      %v4592 = vadd.f32 %v4357, %v4530
      %v4593 = vadd.f32 %v4358, %v4532
      %v4594 = vadd.f32 %v4359, %v4535
      %v4595 = vadd.f32 %v4360, %v4537
      %v4596 = vadd.f32 %v4361, %v4540
      %v4597 = vadd.f32 %v4362, %v4542
      %v4598 = vadd.f32 %v4363, %v4545
      %v4599 = vadd.f32 %v4364, %v4547
      %v4600 = vadd.f32 %v4365, %v4550
      %v4601 = vadd.f32 %v4366, %v4552
      %v4602 = vadd.f32 %v4367, %v4555
      %v4603 = vadd.f32 %v4368, %v4557
      %v4604 = vadd.f32 %v4369, %v4560
      %v4605 = vadd.f32 %v4370, %v4562
      %v4606 = vadd.f32 %v4371, %v4565
      %v4607 = vadd.f32 %v4372, %v4567
      %v4608 = vadd.f32 %v4373, %v4570
      %v4609 = vadd.f32 %v4374, %v4572
      %s4610 = scalar_lea.vmem %s7, 24
      %v4611 = vld [vmem:[%s4610] sm:$0xf]
      %v4612 = vld [vmem:[%s4610 + $0x4] sm:$0xf]
      %v4615 = vunpack.c.l.b16 %v2969
      %v4616 = vunpack.c.l.b16 %v2970
      %v4617 = vpack.c.b16 %v4615, %v3480
      %v4618 = vpack.c.b16 %v4616, %v4616
      %v4619 = vrot.slane %v4617, 1
      %v4620 = vsel %vm4142, %v4176, %v4619
      %v4621 = vrot.slane %v4618, 1
      %v4622 = vsel %vm4142, %v4619, %v4621
      %v4625 = vunpack.c.l.b16 %v4611
      %v4626 = vunpack.c.l.b16 %v4612
      %v4627 = vpack.c.b16 %v4626, %v4625
      %v4630 = vsel %vm3073, %v4620, 0
      %v4633 = vsel %vm3073, %v4622, 0
      %4635 = vmatpush.bf16.msra.mxu0 0
      %4636 = vmatpush.bf16.msra.mxu0 0
      %4637 = vmatpush.bf16.msra.mxu0 0
      %4638 = vmatpush.bf16.msra.mxu0 0
      %4639 = vmatpush.bf16.msra.mxu0 0
      %4640 = vmatpush.bf16.msra.mxu0 0
      %4641 = vmatpush.bf16.msra.mxu0 0
      %4642 = vmatpush.bf16.msra.mxu0 %v4627
      %4643 = vmatmul.bf16.gmra.mxu0 %v4190
      %v4644 = vpop.f32.mrf.mxu0
      %v4645 = vadd.f32 0.0, %v4644
      %v4646 = vpop.f32.mrf.mxu0
      %v4647 = vadd.f32 0.0, %v4646
      %4648 = vmatmul.bf16.gmra.mxu0 %v4193
      %v4649 = vpop.f32.mrf.mxu0
      %v4650 = vadd.f32 0.0, %v4649
      %v4651 = vpop.f32.mrf.mxu0
      %v4652 = vadd.f32 0.0, %v4651
      %4653 = vmatmul.bf16.gmra.mxu0 %v4196
      %v4654 = vpop.f32.mrf.mxu0
      %v4655 = vadd.f32 0.0, %v4654
      %v4656 = vpop.f32.mrf.mxu0
      %v4657 = vadd.f32 0.0, %v4656
      %4658 = vmatmul.bf16.gmra.mxu0 %v4199
      %v4659 = vpop.f32.mrf.mxu0
      %v4660 = vadd.f32 0.0, %v4659
      %v4661 = vpop.f32.mrf.mxu0
      %v4662 = vadd.f32 0.0, %v4661
      %4663 = vmatmul.bf16.gmra.mxu0 %v4202
      %v4664 = vpop.f32.mrf.mxu0
      %v4665 = vadd.f32 0.0, %v4664
      %v4666 = vpop.f32.mrf.mxu0
      %v4667 = vadd.f32 0.0, %v4666
      %4668 = vmatmul.bf16.gmra.mxu0 %v4205
      %v4669 = vpop.f32.mrf.mxu0
      %v4670 = vadd.f32 0.0, %v4669
      %v4671 = vpop.f32.mrf.mxu0
      %v4672 = vadd.f32 0.0, %v4671
      %4673 = vmatmul.bf16.gmra.mxu0 %v4208
      %v4674 = vpop.f32.mrf.mxu0
      %v4675 = vadd.f32 0.0, %v4674
      %v4676 = vpop.f32.mrf.mxu0
      %v4677 = vadd.f32 0.0, %v4676
      %4678 = vmatmul.bf16.gmra.mxu0 %v4211
      %v4679 = vpop.f32.mrf.mxu0
      %v4680 = vadd.f32 0.0, %v4679
      %v4681 = vpop.f32.mrf.mxu0
      %v4682 = vadd.f32 0.0, %v4681
      %4683 = vmatmul.bf16.gmra.mxu0 %v4214
      %v4684 = vpop.f32.mrf.mxu0
      %v4685 = vadd.f32 0.0, %v4684
      %v4686 = vpop.f32.mrf.mxu0
      %v4687 = vadd.f32 0.0, %v4686
      %4688 = vmatmul.bf16.gmra.mxu0 %v4217
      %v4689 = vpop.f32.mrf.mxu0
      %v4690 = vadd.f32 0.0, %v4689
      %v4691 = vpop.f32.mrf.mxu0
      %v4692 = vadd.f32 0.0, %v4691
      %4693 = vmatmul.bf16.gmra.mxu0 %v4220
      %v4694 = vpop.f32.mrf.mxu0
      %v4695 = vadd.f32 0.0, %v4694
      %v4696 = vpop.f32.mrf.mxu0
      %v4697 = vadd.f32 0.0, %v4696
      %4698 = vmatmul.bf16.gmra.mxu0 %v4223
      %v4699 = vpop.f32.mrf.mxu0
      %v4700 = vadd.f32 0.0, %v4699
      %v4701 = vpop.f32.mrf.mxu0
      %v4702 = vadd.f32 0.0, %v4701
      %4703 = vmatmul.bf16.gmra.mxu0 %v4226
      %v4704 = vpop.f32.mrf.mxu0
      %v4705 = vadd.f32 0.0, %v4704
      %v4706 = vpop.f32.mrf.mxu0
      %v4707 = vadd.f32 0.0, %v4706
      %4708 = vmatmul.bf16.gmra.mxu0 %v4229
      %v4709 = vpop.f32.mrf.mxu0
      %v4710 = vadd.f32 0.0, %v4709
      %v4711 = vpop.f32.mrf.mxu0
      %v4712 = vadd.f32 0.0, %v4711
      %4713 = vmatmul.bf16.gmra.mxu0 %v4232
      %v4714 = vpop.f32.mrf.mxu0
      %v4715 = vadd.f32 0.0, %v4714
      %v4716 = vpop.f32.mrf.mxu0
      %v4717 = vadd.f32 0.0, %v4716
      %4718 = vmatmul.bf16.gmra.mxu0 %v4235
      %v4719 = vpop.f32.mrf.mxu0
      %v4720 = vadd.f32 0.0, %v4719
      %v4721 = vpop.f32.mrf.mxu0
      %v4722 = vadd.f32 0.0, %v4721
      %4723 = vmatmul.bf16.gmra.mxu0 %v4630
      %v4724 = vpop.f32.mrf.mxu0
      %v4725 = vadd.f32 0.0, %v4724
      %v4726 = vpop.f32.mrf.mxu0
      %v4727 = vadd.f32 0.0, %v4726
      %4728 = vmatmul.bf16.gmra.mxu0 %v4633
      %v4729 = vpop.f32.mrf.mxu0
      %v4730 = vadd.f32 0.0, %v4729
      %v4731 = vpop.f32.mrf.mxu0
      %v4732 = vadd.f32 0.0, %v4731
      %4733 = vdwg.mxu0
      %v4734 = vadd.f32 %v4574, %v4645
      %v4735 = vadd.f32 %v4575, %v4647
      %v4736 = vadd.f32 %v4576, %v4650
      %v4737 = vadd.f32 %v4577, %v4652
      %v4738 = vadd.f32 %v4578, %v4655
      %v4739 = vadd.f32 %v4579, %v4657
      %v4740 = vadd.f32 %v4580, %v4660
      %v4741 = vadd.f32 %v4581, %v4662
      %v4742 = vadd.f32 %v4582, %v4665
      %v4743 = vadd.f32 %v4583, %v4667
      %v4744 = vadd.f32 %v4584, %v4670
      %v4745 = vadd.f32 %v4585, %v4672
      %v4746 = vadd.f32 %v4586, %v4675
      %v4747 = vadd.f32 %v4587, %v4677
      %v4748 = vadd.f32 %v4588, %v4680
      %v4749 = vadd.f32 %v4589, %v4682
      %v4750 = vadd.f32 %v4590, %v4685
      %v4751 = vadd.f32 %v4591, %v4687
      %v4752 = vadd.f32 %v4592, %v4690
      %v4753 = vadd.f32 %v4593, %v4692
      %v4754 = vadd.f32 %v4594, %v4695
      %v4755 = vadd.f32 %v4595, %v4697
      %v4756 = vadd.f32 %v4596, %v4700
      %v4757 = vadd.f32 %v4597, %v4702
      %v4758 = vadd.f32 %v4598, %v4705
      %v4759 = vadd.f32 %v4599, %v4707
      %v4760 = vadd.f32 %v4600, %v4710
      %v4761 = vadd.f32 %v4601, %v4712
      %v4762 = vadd.f32 %v4602, %v4715
      %v4763 = vadd.f32 %v4603, %v4717
      %v4764 = vadd.f32 %v4604, %v4720
      %v4765 = vadd.f32 %v4605, %v4722
      %v4766 = vadd.f32 %v4606, %v4725
      %v4767 = vadd.f32 %v4607, %v4727
      %v4768 = vadd.f32 %v4608, %v4730
      %v4769 = vadd.f32 %v4609, %v4732
      %s4770 = scalar_lea.vmem %s8, 24
      %v4771 = vld [vmem:[%s4770] sm:$0xf]
      %v4772 = vld [vmem:[%s4770 + $0x4] sm:$0xf]
      %v4775 = vunpack.c.l.b16 %v517
      %v4776 = vunpack.c.l.b16 %v518
      %v4777 = vpack.c.b16 %v4775, %v3812
      %v4778 = vpack.c.b16 %v4776, %v4776
      %v4779 = vrot.slane %v4777, 1
      %v4780 = vsel %vm4142, %v4411, %v4779
      %v4781 = vrot.slane %v4778, 1
      %v4782 = vsel %vm4142, %v4779, %v4781
      %v4785 = vunpack.c.l.b16 %v4771
      %v4786 = vunpack.c.l.b16 %v4772
      %v4787 = vpack.c.b16 %v4786, %v4785
      %v4790 = vsel %vm3073, %v4780, 0
      %v4793 = vsel %vm3073, %v4782, 0
      %4795 = vmatpush.bf16.msra.mxu0 0
      %4796 = vmatpush.bf16.msra.mxu0 0
      %4797 = vmatpush.bf16.msra.mxu0 0
      %4798 = vmatpush.bf16.msra.mxu0 0
      %4799 = vmatpush.bf16.msra.mxu0 0
      %4800 = vmatpush.bf16.msra.mxu0 0
      %4801 = vmatpush.bf16.msra.mxu0 0
      %4802 = vmatpush.bf16.msra.mxu0 %v4787
      %4803 = vmatmul.bf16.gmra.mxu0 %v4425
      %v4804 = vpop.f32.mrf.mxu0
      %v4805 = vadd.f32 0.0, %v4804
      %v4806 = vpop.f32.mrf.mxu0
      %v4807 = vadd.f32 0.0, %v4806
      %4808 = vmatmul.bf16.gmra.mxu0 %v4428
      %v4809 = vpop.f32.mrf.mxu0
      %v4810 = vadd.f32 0.0, %v4809
      %v4811 = vpop.f32.mrf.mxu0
      %v4812 = vadd.f32 0.0, %v4811
      %4813 = vmatmul.bf16.gmra.mxu0 %v4431
      %v4814 = vpop.f32.mrf.mxu0
      %v4815 = vadd.f32 0.0, %v4814
      %v4816 = vpop.f32.mrf.mxu0
      %v4817 = vadd.f32 0.0, %v4816
      %4818 = vmatmul.bf16.gmra.mxu0 %v4434
      %v4819 = vpop.f32.mrf.mxu0
      %v4820 = vadd.f32 0.0, %v4819
      %v4821 = vpop.f32.mrf.mxu0
      %v4822 = vadd.f32 0.0, %v4821
      %4823 = vmatmul.bf16.gmra.mxu0 %v4437
      %v4824 = vpop.f32.mrf.mxu0
      %v4825 = vadd.f32 0.0, %v4824
      %v4826 = vpop.f32.mrf.mxu0
      %v4827 = vadd.f32 0.0, %v4826
      %4828 = vmatmul.bf16.gmra.mxu0 %v4440
      %v4829 = vpop.f32.mrf.mxu0
      %v4830 = vadd.f32 0.0, %v4829
      %v4831 = vpop.f32.mrf.mxu0
      %v4832 = vadd.f32 0.0, %v4831
      %4833 = vmatmul.bf16.gmra.mxu0 %v4443
      %v4834 = vpop.f32.mrf.mxu0
      %v4835 = vadd.f32 0.0, %v4834
      %v4836 = vpop.f32.mrf.mxu0
      %v4837 = vadd.f32 0.0, %v4836
      %4838 = vmatmul.bf16.gmra.mxu0 %v4446
      %v4839 = vpop.f32.mrf.mxu0
      %v4840 = vadd.f32 0.0, %v4839
      %v4841 = vpop.f32.mrf.mxu0
      %v4842 = vadd.f32 0.0, %v4841
      %4843 = vmatmul.bf16.gmra.mxu0 %v4449
      %v4844 = vpop.f32.mrf.mxu0
      %v4845 = vadd.f32 0.0, %v4844
      %v4846 = vpop.f32.mrf.mxu0
      %v4847 = vadd.f32 0.0, %v4846
      %4848 = vmatmul.bf16.gmra.mxu0 %v4452
      %v4849 = vpop.f32.mrf.mxu0
      %v4850 = vadd.f32 0.0, %v4849
      %v4851 = vpop.f32.mrf.mxu0
      %v4852 = vadd.f32 0.0, %v4851
      %4853 = vmatmul.bf16.gmra.mxu0 %v4455
      %v4854 = vpop.f32.mrf.mxu0
      %v4855 = vadd.f32 0.0, %v4854
      %v4856 = vpop.f32.mrf.mxu0
      %v4857 = vadd.f32 0.0, %v4856
      %4858 = vmatmul.bf16.gmra.mxu0 %v4458
      %v4859 = vpop.f32.mrf.mxu0
      %v4860 = vadd.f32 0.0, %v4859
      %v4861 = vpop.f32.mrf.mxu0
      %v4862 = vadd.f32 0.0, %v4861
      %4863 = vmatmul.bf16.gmra.mxu0 %v4461
      %v4864 = vpop.f32.mrf.mxu0
      %v4865 = vadd.f32 0.0, %v4864
      %v4866 = vpop.f32.mrf.mxu0
      %v4867 = vadd.f32 0.0, %v4866
      %4868 = vmatmul.bf16.gmra.mxu0 %v4464
      %v4869 = vpop.f32.mrf.mxu0
      %v4870 = vadd.f32 0.0, %v4869
      %v4871 = vpop.f32.mrf.mxu0
      %v4872 = vadd.f32 0.0, %v4871
      %4873 = vmatmul.bf16.gmra.mxu0 %v4467
      %v4874 = vpop.f32.mrf.mxu0
      %v4875 = vadd.f32 0.0, %v4874
      %v4876 = vpop.f32.mrf.mxu0
      %v4877 = vadd.f32 0.0, %v4876
      %4878 = vmatmul.bf16.gmra.mxu0 %v4470
      %v4879 = vpop.f32.mrf.mxu0
      %v4880 = vadd.f32 0.0, %v4879
      %v4881 = vpop.f32.mrf.mxu0
      %v4882 = vadd.f32 0.0, %v4881
      %4883 = vmatmul.bf16.gmra.mxu0 %v4790
      %v4884 = vpop.f32.mrf.mxu0
      %v4885 = vadd.f32 0.0, %v4884
      %v4886 = vpop.f32.mrf.mxu0
      %v4887 = vadd.f32 0.0, %v4886
      %4888 = vmatmul.bf16.gmra.mxu0 %v4793
      %v4889 = vpop.f32.mrf.mxu0
      %v4890 = vadd.f32 0.0, %v4889
      %v4891 = vpop.f32.mrf.mxu0
      %v4892 = vadd.f32 0.0, %v4891
      %4893 = vdwg.mxu0
      %v4894 = vadd.f32 %v4734, %v4805
      %v4895 = vadd.f32 %v4735, %v4807
      %v4896 = vadd.f32 %v4736, %v4810
      %v4897 = vadd.f32 %v4737, %v4812
      %v4898 = vadd.f32 %v4738, %v4815
      %v4899 = vadd.f32 %v4739, %v4817
      %v4900 = vadd.f32 %v4740, %v4820
      %v4901 = vadd.f32 %v4741, %v4822
      %v4902 = vadd.f32 %v4742, %v4825
      %v4903 = vadd.f32 %v4743, %v4827
      %v4904 = vadd.f32 %v4744, %v4830
      %v4905 = vadd.f32 %v4745, %v4832
      %v4906 = vadd.f32 %v4746, %v4835
      %v4907 = vadd.f32 %v4747, %v4837
      %v4908 = vadd.f32 %v4748, %v4840
      %v4909 = vadd.f32 %v4749, %v4842
      %v4910 = vadd.f32 %v4750, %v4845
      %v4911 = vadd.f32 %v4751, %v4847
      %v4912 = vadd.f32 %v4752, %v4850
      %v4913 = vadd.f32 %v4753, %v4852
      %v4914 = vadd.f32 %v4754, %v4855
      %v4915 = vadd.f32 %v4755, %v4857
      %v4916 = vadd.f32 %v4756, %v4860
      %v4917 = vadd.f32 %v4757, %v4862
      %v4918 = vadd.f32 %v4758, %v4865
      %v4919 = vadd.f32 %v4759, %v4867
      %v4920 = vadd.f32 %v4760, %v4870
      %v4921 = vadd.f32 %v4761, %v4872
      %v4922 = vadd.f32 %v4762, %v4875
      %v4923 = vadd.f32 %v4763, %v4877
      %v4924 = vadd.f32 %v4764, %v4880
      %v4925 = vadd.f32 %v4765, %v4882
      %v4926 = vadd.f32 %v4766, %v4885
      %v4927 = vadd.f32 %v4767, %v4887
      %v4928 = vadd.f32 %v4768, %v4890
      %v4929 = vadd.f32 %v4769, %v4892
      %s4930 = scalar_lea.vmem %s7, 32
      %v4931 = vld [vmem:[%s4930] sm:$0xf]
      %v4932 = vld [vmem:[%s4930 + $0x4] sm:$0xf]
      %vm4933 = vsmask.f32 6400
      %v4934 = vrot.slane %v3493, 1
      %v4935 = vrot.slane %v3489, 2
      %v4936 = vor.u32 %v4934, %v4935
      %v4937 = vrot.slane %v3500, 1
      %v4938 = vrot.slane %v3496, 2
      %v4939 = vor.u32 %v4937, %v4938
      %v4940 = vsel %vm4933, %v4936, %v4939
      %v4941 = vrot.slane %v3507, 1
      %v4942 = vrot.slane %v3503, 2
      %v4943 = vor.u32 %v4941, %v4942
      %v4944 = vsel %vm4933, %v4939, %v4943
      %v4945 = vrot.slane %v3514, 1
      %v4946 = vrot.slane %v3510, 2
      %v4947 = vor.u32 %v4945, %v4946
      %v4948 = vsel %vm4933, %v4943, %v4947
      %v4949 = vrot.slane %v3521, 1
      %v4950 = vrot.slane %v3517, 2
      %v4951 = vor.u32 %v4949, %v4950
      %v4952 = vsel %vm4933, %v4947, %v4951
      %v4953 = vrot.slane %v3528, 1
      %v4954 = vrot.slane %v3524, 2
      %v4955 = vor.u32 %v4953, %v4954
      %v4956 = vsel %vm4933, %v4951, %v4955
      %v4957 = vrot.slane %v3535, 1
      %v4958 = vrot.slane %v3531, 2
      %v4959 = vor.u32 %v4957, %v4958
      %v4960 = vsel %vm4933, %v4955, %v4959
      %v4961 = vrot.slane %v3542, 1
      %v4962 = vrot.slane %v3538, 2
      %v4963 = vor.u32 %v4961, %v4962
      %v4964 = vsel %vm4933, %v4959, %v4963
      %v4965 = vrot.slane %v3549, 1
      %v4966 = vrot.slane %v3545, 2
      %v4967 = vor.u32 %v4965, %v4966
      %v4968 = vsel %vm4933, %v4963, %v4967
      %v4969 = vrot.slane %v3556, 1
      %v4970 = vrot.slane %v3552, 2
      %v4971 = vor.u32 %v4969, %v4970
      %v4972 = vsel %vm4933, %v4967, %v4971
      %v4973 = vrot.slane %v3563, 1
      %v4974 = vrot.slane %v3559, 2
      %v4975 = vor.u32 %v4973, %v4974
      %v4976 = vsel %vm4933, %v4971, %v4975
      %v4977 = vrot.slane %v3570, 1
      %v4978 = vrot.slane %v3566, 2
      %v4979 = vor.u32 %v4977, %v4978
      %v4980 = vsel %vm4933, %v4975, %v4979
      %v4981 = vrot.slane %v3577, 1
      %v4982 = vrot.slane %v3573, 2
      %v4983 = vor.u32 %v4981, %v4982
      %v4984 = vsel %vm4933, %v4979, %v4983
      %v4985 = vrot.slane %v3584, 1
      %v4986 = vrot.slane %v3580, 2
      %v4987 = vor.u32 %v4985, %v4986
      %v4988 = vsel %vm4933, %v4983, %v4987
      %v4989 = vrot.slane %v3591, 1
      %v4990 = vrot.slane %v3587, 2
      %v4991 = vor.u32 %v4989, %v4990
      %v4992 = vsel %vm4933, %v4987, %v4991
      %v4993 = vrot.slane %v3598, 1
      %v4994 = vrot.slane %v3594, 2
      %v4995 = vor.u32 %v4993, %v4994
      %v4996 = vsel %vm4933, %v4991, %v4995
      %v4997 = vrot.slane %v3605, 1
      %v4998 = vrot.slane %v3601, 2
      %v4999 = vor.u32 %v4997, %v4998
      %v5000 = vsel %vm4933, %v4995, %v4999
      %v5002 = vshrl.u32 %v4617, 16
      %v5004 = vrot.slane %v5002, 1
      %v5005 = vshll.u32 %v4617, 16
      %v5007 = vrot.slane %v5005, 2
      %v5008 = vor.u32 %v5004, %v5007
      %v5009 = vsel %vm4933, %v4999, %v5008
      %v5011 = vshrl.u32 %v4618, 16
      %v5013 = vrot.slane %v5011, 1
      %v5014 = vshll.u32 %v4618, 16
      %v5016 = vrot.slane %v5014, 2
      %v5017 = vor.u32 %v5013, %v5016
      %v5018 = vsel %vm4933, %v5008, %v5017
      %v5021 = vunpack.c.l.b16 %v4931
      %v5022 = vunpack.c.l.b16 %v4932
      %v5023 = vpack.c.b16 %v5022, %v5021
      %v5026 = vsel %vm3073, %v4940, 0
      %v5029 = vsel %vm3073, %v4944, 0
      %v5032 = vsel %vm3073, %v4948, 0
      %v5035 = vsel %vm3073, %v4952, 0
      %v5038 = vsel %vm3073, %v4956, 0
      %v5041 = vsel %vm3073, %v4960, 0
      %v5044 = vsel %vm3073, %v4964, 0
      %v5047 = vsel %vm3073, %v4968, 0
      %v5050 = vsel %vm3073, %v4972, 0
      %v5053 = vsel %vm3073, %v4976, 0
      %v5056 = vsel %vm3073, %v4980, 0
      %v5059 = vsel %vm3073, %v4984, 0
      %v5062 = vsel %vm3073, %v4988, 0
      %v5065 = vsel %vm3073, %v4992, 0
      %v5068 = vsel %vm3073, %v4996, 0
      %v5071 = vsel %vm3073, %v5000, 0
      %v5074 = vsel %vm3073, %v5009, 0
      %v5077 = vsel %vm3073, %v5018, 0
      %5079 = vmatpush.bf16.msra.mxu0 0
      %5080 = vmatpush.bf16.msra.mxu0 0
      %5081 = vmatpush.bf16.msra.mxu0 0
      %5082 = vmatpush.bf16.msra.mxu0 0
      %5083 = vmatpush.bf16.msra.mxu0 0
      %5084 = vmatpush.bf16.msra.mxu0 0
      %5085 = vmatpush.bf16.msra.mxu0 0
      %5086 = vmatpush.bf16.msra.mxu0 %v5023
      %5087 = vmatmul.bf16.gmra.mxu0 %v5026
      %v5088 = vpop.f32.mrf.mxu0
      %v5089 = vadd.f32 0.0, %v5088
      %v5090 = vpop.f32.mrf.mxu0
      %v5091 = vadd.f32 0.0, %v5090
      %5092 = vmatmul.bf16.gmra.mxu0 %v5029
      %v5093 = vpop.f32.mrf.mxu0
      %v5094 = vadd.f32 0.0, %v5093
      %v5095 = vpop.f32.mrf.mxu0
      %v5096 = vadd.f32 0.0, %v5095
      %5097 = vmatmul.bf16.gmra.mxu0 %v5032
      %v5098 = vpop.f32.mrf.mxu0
      %v5099 = vadd.f32 0.0, %v5098
      %v5100 = vpop.f32.mrf.mxu0
      %v5101 = vadd.f32 0.0, %v5100
      %5102 = vmatmul.bf16.gmra.mxu0 %v5035
      %v5103 = vpop.f32.mrf.mxu0
      %v5104 = vadd.f32 0.0, %v5103
      %v5105 = vpop.f32.mrf.mxu0
      %v5106 = vadd.f32 0.0, %v5105
      %5107 = vmatmul.bf16.gmra.mxu0 %v5038
      %v5108 = vpop.f32.mrf.mxu0
      %v5109 = vadd.f32 0.0, %v5108
      %v5110 = vpop.f32.mrf.mxu0
      %v5111 = vadd.f32 0.0, %v5110
      %5112 = vmatmul.bf16.gmra.mxu0 %v5041
      %v5113 = vpop.f32.mrf.mxu0
      %v5114 = vadd.f32 0.0, %v5113
      %v5115 = vpop.f32.mrf.mxu0
      %v5116 = vadd.f32 0.0, %v5115
      %5117 = vmatmul.bf16.gmra.mxu0 %v5044
      %v5118 = vpop.f32.mrf.mxu0
      %v5119 = vadd.f32 0.0, %v5118
      %v5120 = vpop.f32.mrf.mxu0
      %v5121 = vadd.f32 0.0, %v5120
      %5122 = vmatmul.bf16.gmra.mxu0 %v5047
      %v5123 = vpop.f32.mrf.mxu0
      %v5124 = vadd.f32 0.0, %v5123
      %v5125 = vpop.f32.mrf.mxu0
      %v5126 = vadd.f32 0.0, %v5125
      %5127 = vmatmul.bf16.gmra.mxu0 %v5050
      %v5128 = vpop.f32.mrf.mxu0
      %v5129 = vadd.f32 0.0, %v5128
      %v5130 = vpop.f32.mrf.mxu0
      %v5131 = vadd.f32 0.0, %v5130
      %5132 = vmatmul.bf16.gmra.mxu0 %v5053
      %v5133 = vpop.f32.mrf.mxu0
      %v5134 = vadd.f32 0.0, %v5133
      %v5135 = vpop.f32.mrf.mxu0
      %v5136 = vadd.f32 0.0, %v5135
      %5137 = vmatmul.bf16.gmra.mxu0 %v5056
      %v5138 = vpop.f32.mrf.mxu0
      %v5139 = vadd.f32 0.0, %v5138
      %v5140 = vpop.f32.mrf.mxu0
      %v5141 = vadd.f32 0.0, %v5140
      %5142 = vmatmul.bf16.gmra.mxu0 %v5059
      %v5143 = vpop.f32.mrf.mxu0
      %v5144 = vadd.f32 0.0, %v5143
      %v5145 = vpop.f32.mrf.mxu0
      %v5146 = vadd.f32 0.0, %v5145
      %5147 = vmatmul.bf16.gmra.mxu0 %v5062
      %v5148 = vpop.f32.mrf.mxu0
      %v5149 = vadd.f32 0.0, %v5148
      %v5150 = vpop.f32.mrf.mxu0
      %v5151 = vadd.f32 0.0, %v5150
      %5152 = vmatmul.bf16.gmra.mxu0 %v5065
      %v5153 = vpop.f32.mrf.mxu0
      %v5154 = vadd.f32 0.0, %v5153
      %v5155 = vpop.f32.mrf.mxu0
      %v5156 = vadd.f32 0.0, %v5155
      %5157 = vmatmul.bf16.gmra.mxu0 %v5068
      %v5158 = vpop.f32.mrf.mxu0
      %v5159 = vadd.f32 0.0, %v5158
      %v5160 = vpop.f32.mrf.mxu0
      %v5161 = vadd.f32 0.0, %v5160
      %5162 = vmatmul.bf16.gmra.mxu0 %v5071
      %v5163 = vpop.f32.mrf.mxu0
      %v5164 = vadd.f32 0.0, %v5163
      %v5165 = vpop.f32.mrf.mxu0
      %v5166 = vadd.f32 0.0, %v5165
      %5167 = vmatmul.bf16.gmra.mxu0 %v5074
      %v5168 = vpop.f32.mrf.mxu0
      %v5169 = vadd.f32 0.0, %v5168
      %v5170 = vpop.f32.mrf.mxu0
      %v5171 = vadd.f32 0.0, %v5170
      %5172 = vmatmul.bf16.gmra.mxu0 %v5077
      %v5173 = vpop.f32.mrf.mxu0
      %v5174 = vadd.f32 0.0, %v5173
      %v5175 = vpop.f32.mrf.mxu0
      %v5176 = vadd.f32 0.0, %v5175
      %5177 = vdwg.mxu0
      %v5178 = vadd.f32 %v4894, %v5089
      %v5179 = vadd.f32 %v4895, %v5091
      %v5180 = vadd.f32 %v4896, %v5094
      %v5181 = vadd.f32 %v4897, %v5096
      %v5182 = vadd.f32 %v4898, %v5099
      %v5183 = vadd.f32 %v4899, %v5101
      %v5184 = vadd.f32 %v4900, %v5104
      %v5185 = vadd.f32 %v4901, %v5106
      %v5186 = vadd.f32 %v4902, %v5109
      %v5187 = vadd.f32 %v4903, %v5111
      %v5188 = vadd.f32 %v4904, %v5114
      %v5189 = vadd.f32 %v4905, %v5116
      %v5190 = vadd.f32 %v4906, %v5119
      %v5191 = vadd.f32 %v4907, %v5121
      %v5192 = vadd.f32 %v4908, %v5124
      %v5193 = vadd.f32 %v4909, %v5126
      %v5194 = vadd.f32 %v4910, %v5129
      %v5195 = vadd.f32 %v4911, %v5131
      %v5196 = vadd.f32 %v4912, %v5134
      %v5197 = vadd.f32 %v4913, %v5136
      %v5198 = vadd.f32 %v4914, %v5139
      %v5199 = vadd.f32 %v4915, %v5141
      %v5200 = vadd.f32 %v4916, %v5144
      %v5201 = vadd.f32 %v4917, %v5146
      %v5202 = vadd.f32 %v4918, %v5149
      %v5203 = vadd.f32 %v4919, %v5151
      %v5204 = vadd.f32 %v4920, %v5154
      %v5205 = vadd.f32 %v4921, %v5156
      %v5206 = vadd.f32 %v4922, %v5159
      %v5207 = vadd.f32 %v4923, %v5161
      %v5208 = vadd.f32 %v4924, %v5164
      %v5209 = vadd.f32 %v4925, %v5166
      %v5210 = vadd.f32 %v4926, %v5169
      %v5211 = vadd.f32 %v4927, %v5171
      %v5212 = vadd.f32 %v4928, %v5174
      %v5213 = vadd.f32 %v4929, %v5176
      %s5214 = scalar_lea.vmem %s8, 32
      %v5215 = vld [vmem:[%s5214] sm:$0xf]
      %v5216 = vld [vmem:[%s5214 + $0x4] sm:$0xf]
      %v5217 = vrot.slane %v3824, 1
      %v5218 = vrot.slane %v3820, 2
      %v5219 = vor.u32 %v5217, %v5218
      %v5220 = vrot.slane %v3831, 1
      %v5221 = vrot.slane %v3827, 2
      %v5222 = vor.u32 %v5220, %v5221
      %v5223 = vsel %vm4933, %v5219, %v5222
      %v5224 = vrot.slane %v3838, 1
      %v5225 = vrot.slane %v3834, 2
      %v5226 = vor.u32 %v5224, %v5225
      %v5227 = vsel %vm4933, %v5222, %v5226
      %v5228 = vrot.slane %v3845, 1
      %v5229 = vrot.slane %v3841, 2
      %v5230 = vor.u32 %v5228, %v5229
      %v5231 = vsel %vm4933, %v5226, %v5230
      %v5232 = vrot.slane %v3852, 1
      %v5233 = vrot.slane %v3848, 2
      %v5234 = vor.u32 %v5232, %v5233
      %v5235 = vsel %vm4933, %v5230, %v5234
      %v5236 = vrot.slane %v3859, 1
      %v5237 = vrot.slane %v3855, 2
      %v5238 = vor.u32 %v5236, %v5237
      %v5239 = vsel %vm4933, %v5234, %v5238
      %v5240 = vrot.slane %v3866, 1
      %v5241 = vrot.slane %v3862, 2
      %v5242 = vor.u32 %v5240, %v5241
      %v5243 = vsel %vm4933, %v5238, %v5242
      %v5244 = vrot.slane %v3873, 1
      %v5245 = vrot.slane %v3869, 2
      %v5246 = vor.u32 %v5244, %v5245
      %v5247 = vsel %vm4933, %v5242, %v5246
      %v5248 = vrot.slane %v3880, 1
      %v5249 = vrot.slane %v3876, 2
      %v5250 = vor.u32 %v5248, %v5249
      %v5251 = vsel %vm4933, %v5246, %v5250
      %v5252 = vrot.slane %v3887, 1
      %v5253 = vrot.slane %v3883, 2
      %v5254 = vor.u32 %v5252, %v5253
      %v5255 = vsel %vm4933, %v5250, %v5254
      %v5256 = vrot.slane %v3894, 1
      %v5257 = vrot.slane %v3890, 2
      %v5258 = vor.u32 %v5256, %v5257
      %v5259 = vsel %vm4933, %v5254, %v5258
      %v5260 = vrot.slane %v3901, 1
      %v5261 = vrot.slane %v3897, 2
      %v5262 = vor.u32 %v5260, %v5261
      %v5263 = vsel %vm4933, %v5258, %v5262
      %v5264 = vrot.slane %v3908, 1
      %v5265 = vrot.slane %v3904, 2
      %v5266 = vor.u32 %v5264, %v5265
      %v5267 = vsel %vm4933, %v5262, %v5266
      %v5268 = vrot.slane %v3915, 1
      %v5269 = vrot.slane %v3911, 2
      %v5270 = vor.u32 %v5268, %v5269
      %v5271 = vsel %vm4933, %v5266, %v5270
      %v5272 = vrot.slane %v3922, 1
      %v5273 = vrot.slane %v3918, 2
      %v5274 = vor.u32 %v5272, %v5273
      %v5275 = vsel %vm4933, %v5270, %v5274
      %v5276 = vrot.slane %v3929, 1
      %v5277 = vrot.slane %v3925, 2
      %v5278 = vor.u32 %v5276, %v5277
      %v5279 = vsel %vm4933, %v5274, %v5278
      %v5280 = vrot.slane %v3936, 1
      %v5281 = vrot.slane %v3932, 2
      %v5282 = vor.u32 %v5280, %v5281
      %v5283 = vsel %vm4933, %v5278, %v5282
      %v5285 = vshrl.u32 %v4777, 16
      %v5287 = vrot.slane %v5285, 1
      %v5288 = vshll.u32 %v4777, 16
      %v5290 = vrot.slane %v5288, 2
      %v5291 = vor.u32 %v5287, %v5290
      %v5292 = vsel %vm4933, %v5282, %v5291
      %v5294 = vshrl.u32 %v4778, 16
      %v5296 = vrot.slane %v5294, 1
      %v5297 = vshll.u32 %v4778, 16
      %v5299 = vrot.slane %v5297, 2
      %v5300 = vor.u32 %v5296, %v5299
      %v5301 = vsel %vm4933, %v5291, %v5300
      %v5304 = vunpack.c.l.b16 %v5215
      %v5305 = vunpack.c.l.b16 %v5216
      %v5306 = vpack.c.b16 %v5305, %v5304
      %v5309 = vsel %vm3073, %v5223, 0
      %v5312 = vsel %vm3073, %v5227, 0
      %v5315 = vsel %vm3073, %v5231, 0
      %v5318 = vsel %vm3073, %v5235, 0
      %v5321 = vsel %vm3073, %v5239, 0
      %v5324 = vsel %vm3073, %v5243, 0
      %v5327 = vsel %vm3073, %v5247, 0
      %v5330 = vsel %vm3073, %v5251, 0
      %v5333 = vsel %vm3073, %v5255, 0
      %v5336 = vsel %vm3073, %v5259, 0
      %v5339 = vsel %vm3073, %v5263, 0
      %v5342 = vsel %vm3073, %v5267, 0
      %v5345 = vsel %vm3073, %v5271, 0
      %v5348 = vsel %vm3073, %v5275, 0
      %v5351 = vsel %vm3073, %v5279, 0
      %v5354 = vsel %vm3073, %v5283, 0
      %v5357 = vsel %vm3073, %v5292, 0
      %v5360 = vsel %vm3073, %v5301, 0
      %5362 = vmatpush.bf16.msra.mxu0 0
      %5363 = vmatpush.bf16.msra.mxu0 0
      %5364 = vmatpush.bf16.msra.mxu0 0
      %5365 = vmatpush.bf16.msra.mxu0 0
      %5366 = vmatpush.bf16.msra.mxu0 0
      %5367 = vmatpush.bf16.msra.mxu0 0
      %5368 = vmatpush.bf16.msra.mxu0 0
      %5369 = vmatpush.bf16.msra.mxu0 %v5306
      %5370 = vmatmul.bf16.gmra.mxu0 %v5309
      %v5371 = vpop.f32.mrf.mxu0
      %v5372 = vadd.f32 0.0, %v5371
      %v5373 = vpop.f32.mrf.mxu0
      %v5374 = vadd.f32 0.0, %v5373
      %5375 = vmatmul.bf16.gmra.mxu0 %v5312
      %v5376 = vpop.f32.mrf.mxu0
      %v5377 = vadd.f32 0.0, %v5376
      %v5378 = vpop.f32.mrf.mxu0
      %v5379 = vadd.f32 0.0, %v5378
      %5380 = vmatmul.bf16.gmra.mxu0 %v5315
      %v5381 = vpop.f32.mrf.mxu0
      %v5382 = vadd.f32 0.0, %v5381
      %v5383 = vpop.f32.mrf.mxu0
      %v5384 = vadd.f32 0.0, %v5383
      %5385 = vmatmul.bf16.gmra.mxu0 %v5318
      %v5386 = vpop.f32.mrf.mxu0
      %v5387 = vadd.f32 0.0, %v5386
      %v5388 = vpop.f32.mrf.mxu0
      %v5389 = vadd.f32 0.0, %v5388
      %5390 = vmatmul.bf16.gmra.mxu0 %v5321
      %v5391 = vpop.f32.mrf.mxu0
      %v5392 = vadd.f32 0.0, %v5391
      %v5393 = vpop.f32.mrf.mxu0
      %v5394 = vadd.f32 0.0, %v5393
      %5395 = vmatmul.bf16.gmra.mxu0 %v5324
      %v5396 = vpop.f32.mrf.mxu0
      %v5397 = vadd.f32 0.0, %v5396
      %v5398 = vpop.f32.mrf.mxu0
      %v5399 = vadd.f32 0.0, %v5398
      %5400 = vmatmul.bf16.gmra.mxu0 %v5327
      %v5401 = vpop.f32.mrf.mxu0
      %v5402 = vadd.f32 0.0, %v5401
      %v5403 = vpop.f32.mrf.mxu0
      %v5404 = vadd.f32 0.0, %v5403
      %5405 = vmatmul.bf16.gmra.mxu0 %v5330
      %v5406 = vpop.f32.mrf.mxu0
      %v5407 = vadd.f32 0.0, %v5406
      %v5408 = vpop.f32.mrf.mxu0
      %v5409 = vadd.f32 0.0, %v5408
      %5410 = vmatmul.bf16.gmra.mxu0 %v5333
      %v5411 = vpop.f32.mrf.mxu0
      %v5412 = vadd.f32 0.0, %v5411
      %v5413 = vpop.f32.mrf.mxu0
      %v5414 = vadd.f32 0.0, %v5413
      %5415 = vmatmul.bf16.gmra.mxu0 %v5336
      %v5416 = vpop.f32.mrf.mxu0
      %v5417 = vadd.f32 0.0, %v5416
      %v5418 = vpop.f32.mrf.mxu0
      %v5419 = vadd.f32 0.0, %v5418
      %5420 = vmatmul.bf16.gmra.mxu0 %v5339
      %v5421 = vpop.f32.mrf.mxu0
      %v5422 = vadd.f32 0.0, %v5421
      %v5423 = vpop.f32.mrf.mxu0
      %v5424 = vadd.f32 0.0, %v5423
      %5425 = vmatmul.bf16.gmra.mxu0 %v5342
      %v5426 = vpop.f32.mrf.mxu0
      %v5427 = vadd.f32 0.0, %v5426
      %v5428 = vpop.f32.mrf.mxu0
      %v5429 = vadd.f32 0.0, %v5428
      %5430 = vmatmul.bf16.gmra.mxu0 %v5345
      %v5431 = vpop.f32.mrf.mxu0
      %v5432 = vadd.f32 0.0, %v5431
      %v5433 = vpop.f32.mrf.mxu0
      %v5434 = vadd.f32 0.0, %v5433
      %5435 = vmatmul.bf16.gmra.mxu0 %v5348
      %v5436 = vpop.f32.mrf.mxu0
      %v5437 = vadd.f32 0.0, %v5436
      %v5438 = vpop.f32.mrf.mxu0
      %v5439 = vadd.f32 0.0, %v5438
      %5440 = vmatmul.bf16.gmra.mxu0 %v5351
      %v5441 = vpop.f32.mrf.mxu0
      %v5442 = vadd.f32 0.0, %v5441
      %v5443 = vpop.f32.mrf.mxu0
      %v5444 = vadd.f32 0.0, %v5443
      %5445 = vmatmul.bf16.gmra.mxu0 %v5354
      %v5446 = vpop.f32.mrf.mxu0
      %v5447 = vadd.f32 0.0, %v5446
      %v5448 = vpop.f32.mrf.mxu0
      %v5449 = vadd.f32 0.0, %v5448
      %5450 = vmatmul.bf16.gmra.mxu0 %v5357
      %v5451 = vpop.f32.mrf.mxu0
      %v5452 = vadd.f32 0.0, %v5451
      %v5453 = vpop.f32.mrf.mxu0
      %v5454 = vadd.f32 0.0, %v5453
      %5455 = vmatmul.bf16.gmra.mxu0 %v5360
      %v5456 = vpop.f32.mrf.mxu0
      %v5457 = vadd.f32 0.0, %v5456
      %v5458 = vpop.f32.mrf.mxu0
      %v5459 = vadd.f32 0.0, %v5458
      %5460 = vdwg.mxu0
      %v5461 = vadd.f32 %v5178, %v5372
      %v5462 = vadd.f32 %v5179, %v5374
      %v5463 = vadd.f32 %v5180, %v5377
      %v5464 = vadd.f32 %v5181, %v5379
      %v5465 = vadd.f32 %v5182, %v5382
      %v5466 = vadd.f32 %v5183, %v5384
      %v5467 = vadd.f32 %v5184, %v5387
      %v5468 = vadd.f32 %v5185, %v5389
      %v5469 = vadd.f32 %v5186, %v5392
      %v5470 = vadd.f32 %v5187, %v5394
      %v5471 = vadd.f32 %v5188, %v5397
      %v5472 = vadd.f32 %v5189, %v5399
      %v5473 = vadd.f32 %v5190, %v5402
      %v5474 = vadd.f32 %v5191, %v5404
      %v5475 = vadd.f32 %v5192, %v5407
      %v5476 = vadd.f32 %v5193, %v5409
      %v5477 = vadd.f32 %v5194, %v5412
      %v5478 = vadd.f32 %v5195, %v5414
      %v5479 = vadd.f32 %v5196, %v5417
      %v5480 = vadd.f32 %v5197, %v5419
      %v5481 = vadd.f32 %v5198, %v5422
      %v5482 = vadd.f32 %v5199, %v5424
      %v5483 = vadd.f32 %v5200, %v5427
      %v5484 = vadd.f32 %v5201, %v5429
      %v5485 = vadd.f32 %v5202, %v5432
      %v5486 = vadd.f32 %v5203, %v5434
      %v5487 = vadd.f32 %v5204, %v5437
      %v5488 = vadd.f32 %v5205, %v5439
      %v5489 = vadd.f32 %v5206, %v5442
      %v5490 = vadd.f32 %v5207, %v5444
      %v5491 = vadd.f32 %v5208, %v5447
      %v5492 = vadd.f32 %v5209, %v5449
      %v5493 = vadd.f32 %v5210, %v5452
      %v5494 = vadd.f32 %v5211, %v5454
      %v5495 = vadd.f32 %v5212, %v5457
      %v5496 = vadd.f32 %v5213, %v5459
      %s5497 = scalar_lea.vmem %s7, 40
      %v5498 = vld [vmem:[%s5497] sm:$0xf]
      %v5499 = vld [vmem:[%s5497 + $0x4] sm:$0xf]
      %vm5500 = vcmask 1045504
      %v5501 = vrot.slane %v3300, 2
      %v5502 = vrot.slane %v3301, 2
      %v5503 = vsel %vm5500, %v5501, %v5502
      %v5504 = vrot.slane %v3302, 2
      %v5505 = vsel %vm5500, %v5502, %v5504
      %v5506 = vrot.slane %v3303, 2
      %v5507 = vsel %vm5500, %v5504, %v5506
      %v5508 = vrot.slane %v3304, 2
      %v5509 = vsel %vm5500, %v5506, %v5508
      %v5510 = vrot.slane %v3305, 2
      %v5511 = vsel %vm5500, %v5508, %v5510
      %v5512 = vrot.slane %v3306, 2
      %v5513 = vsel %vm5500, %v5510, %v5512
      %v5514 = vrot.slane %v3307, 2
      %v5515 = vsel %vm5500, %v5512, %v5514
      %v5516 = vrot.slane %v3308, 2
      %v5517 = vsel %vm5500, %v5514, %v5516
      %v5518 = vrot.slane %v3309, 2
      %v5519 = vsel %vm5500, %v5516, %v5518
      %v5520 = vrot.slane %v3310, 2
      %v5521 = vsel %vm5500, %v5518, %v5520
      %v5522 = vrot.slane %v3311, 2
      %v5523 = vsel %vm5500, %v5520, %v5522
      %v5524 = vrot.slane %v3312, 2
      %v5525 = vsel %vm5500, %v5522, %v5524
      %v5526 = vrot.slane %v3313, 2
      %v5527 = vsel %vm5500, %v5524, %v5526
      %v5528 = vrot.slane %v3314, 2
      %v5529 = vsel %vm5500, %v5526, %v5528
      %v5530 = vrot.slane %v3315, 2
      %v5531 = vsel %vm5500, %v5528, %v5530
      %v5532 = vrot.slane %v3316, 2
      %v5533 = vsel %vm5500, %v5530, %v5532
      %v5534 = vrot.slane %v4617, 2
      %v5535 = vsel %vm5500, %v5532, %v5534
      %v5536 = vrot.slane %v4618, 2
      %v5537 = vsel %vm5500, %v5534, %v5536
      %v5540 = vunpack.c.l.b16 %v5498
      %v5541 = vunpack.c.l.b16 %v5499
      %v5542 = vpack.c.b16 %v5541, %v5540
      %v5545 = vsel %vm3073, %v5503, 0
      %v5548 = vsel %vm3073, %v5505, 0
      %v5551 = vsel %vm3073, %v5507, 0
      %v5554 = vsel %vm3073, %v5509, 0
      %v5557 = vsel %vm3073, %v5511, 0
      %v5560 = vsel %vm3073, %v5513, 0
      %v5563 = vsel %vm3073, %v5515, 0
      %v5566 = vsel %vm3073, %v5517, 0
      %v5569 = vsel %vm3073, %v5519, 0
      %v5572 = vsel %vm3073, %v5521, 0
      %v5575 = vsel %vm3073, %v5523, 0
      %v5578 = vsel %vm3073, %v5525, 0
      %v5581 = vsel %vm3073, %v5527, 0
      %v5584 = vsel %vm3073, %v5529, 0
      %v5587 = vsel %vm3073, %v5531, 0
      %v5590 = vsel %vm3073, %v5533, 0
      %v5593 = vsel %vm3073, %v5535, 0
      %v5596 = vsel %vm3073, %v5537, 0
      %5598 = vmatpush.bf16.msra.mxu0 0
      %5599 = vmatpush.bf16.msra.mxu0 0
      %5600 = vmatpush.bf16.msra.mxu0 0
      %5601 = vmatpush.bf16.msra.mxu0 0
      %5602 = vmatpush.bf16.msra.mxu0 0
      %5603 = vmatpush.bf16.msra.mxu0 0
      %5604 = vmatpush.bf16.msra.mxu0 0
      %5605 = vmatpush.bf16.msra.mxu0 %v5542
      %5606 = vmatmul.bf16.gmra.mxu0 %v5545
      %v5607 = vpop.f32.mrf.mxu0
      %v5608 = vadd.f32 0.0, %v5607
      %v5609 = vpop.f32.mrf.mxu0
      %v5610 = vadd.f32 0.0, %v5609
      %5611 = vmatmul.bf16.gmra.mxu0 %v5548
      %v5612 = vpop.f32.mrf.mxu0
      %v5613 = vadd.f32 0.0, %v5612
      %v5614 = vpop.f32.mrf.mxu0
      %v5615 = vadd.f32 0.0, %v5614
      %5616 = vmatmul.bf16.gmra.mxu0 %v5551
      %v5617 = vpop.f32.mrf.mxu0
      %v5618 = vadd.f32 0.0, %v5617
      %v5619 = vpop.f32.mrf.mxu0
      %v5620 = vadd.f32 0.0, %v5619
      %5621 = vmatmul.bf16.gmra.mxu0 %v5554
      %v5622 = vpop.f32.mrf.mxu0
      %v5623 = vadd.f32 0.0, %v5622
      %v5624 = vpop.f32.mrf.mxu0
      %v5625 = vadd.f32 0.0, %v5624
      %5626 = vmatmul.bf16.gmra.mxu0 %v5557
      %v5627 = vpop.f32.mrf.mxu0
      %v5628 = vadd.f32 0.0, %v5627
      %v5629 = vpop.f32.mrf.mxu0
      %v5630 = vadd.f32 0.0, %v5629
      %5631 = vmatmul.bf16.gmra.mxu0 %v5560
      %v5632 = vpop.f32.mrf.mxu0
      %v5633 = vadd.f32 0.0, %v5632
      %v5634 = vpop.f32.mrf.mxu0
      %v5635 = vadd.f32 0.0, %v5634
      %5636 = vmatmul.bf16.gmra.mxu0 %v5563
      %v5637 = vpop.f32.mrf.mxu0
      %v5638 = vadd.f32 0.0, %v5637
      %v5639 = vpop.f32.mrf.mxu0
      %v5640 = vadd.f32 0.0, %v5639
      %5641 = vmatmul.bf16.gmra.mxu0 %v5566
      %v5642 = vpop.f32.mrf.mxu0
      %v5643 = vadd.f32 0.0, %v5642
      %v5644 = vpop.f32.mrf.mxu0
      %v5645 = vadd.f32 0.0, %v5644
      %5646 = vmatmul.bf16.gmra.mxu0 %v5569
      %v5647 = vpop.f32.mrf.mxu0
      %v5648 = vadd.f32 0.0, %v5647
      %v5649 = vpop.f32.mrf.mxu0
      %v5650 = vadd.f32 0.0, %v5649
      %5651 = vmatmul.bf16.gmra.mxu0 %v5572
      %v5652 = vpop.f32.mrf.mxu0
      %v5653 = vadd.f32 0.0, %v5652
      %v5654 = vpop.f32.mrf.mxu0
      %v5655 = vadd.f32 0.0, %v5654
      %5656 = vmatmul.bf16.gmra.mxu0 %v5575
      %v5657 = vpop.f32.mrf.mxu0
      %v5658 = vadd.f32 0.0, %v5657
      %v5659 = vpop.f32.mrf.mxu0
      %v5660 = vadd.f32 0.0, %v5659
      %5661 = vmatmul.bf16.gmra.mxu0 %v5578
      %v5662 = vpop.f32.mrf.mxu0
      %v5663 = vadd.f32 0.0, %v5662
      %v5664 = vpop.f32.mrf.mxu0
      %v5665 = vadd.f32 0.0, %v5664
      %5666 = vmatmul.bf16.gmra.mxu0 %v5581
      %v5667 = vpop.f32.mrf.mxu0
      %v5668 = vadd.f32 0.0, %v5667
      %v5669 = vpop.f32.mrf.mxu0
      %v5670 = vadd.f32 0.0, %v5669
      %5671 = vmatmul.bf16.gmra.mxu0 %v5584
      %v5672 = vpop.f32.mrf.mxu0
      %v5673 = vadd.f32 0.0, %v5672
      %v5674 = vpop.f32.mrf.mxu0
      %v5675 = vadd.f32 0.0, %v5674
      %5676 = vmatmul.bf16.gmra.mxu0 %v5587
      %v5677 = vpop.f32.mrf.mxu0
      %v5678 = vadd.f32 0.0, %v5677
      %v5679 = vpop.f32.mrf.mxu0
      %v5680 = vadd.f32 0.0, %v5679
      %5681 = vmatmul.bf16.gmra.mxu0 %v5590
      %v5682 = vpop.f32.mrf.mxu0
      %v5683 = vadd.f32 0.0, %v5682
      %v5684 = vpop.f32.mrf.mxu0
      %v5685 = vadd.f32 0.0, %v5684
      %5686 = vmatmul.bf16.gmra.mxu0 %v5593
      %v5687 = vpop.f32.mrf.mxu0
      %v5688 = vadd.f32 0.0, %v5687
      %v5689 = vpop.f32.mrf.mxu0
      %v5690 = vadd.f32 0.0, %v5689
      %5691 = vmatmul.bf16.gmra.mxu0 %v5596
      %v5692 = vpop.f32.mrf.mxu0
      %v5693 = vadd.f32 0.0, %v5692
      %v5694 = vpop.f32.mrf.mxu0
      %v5695 = vadd.f32 0.0, %v5694
      %5696 = vdwg.mxu0
      %v5697 = vadd.f32 %v5461, %v5608
      %v5698 = vadd.f32 %v5462, %v5610
      %v5699 = vadd.f32 %v5463, %v5613
      %v5700 = vadd.f32 %v5464, %v5615
      %v5701 = vadd.f32 %v5465, %v5618
      %v5702 = vadd.f32 %v5466, %v5620
      %v5703 = vadd.f32 %v5467, %v5623
      %v5704 = vadd.f32 %v5468, %v5625
      %v5705 = vadd.f32 %v5469, %v5628
      %v5706 = vadd.f32 %v5470, %v5630
      %v5707 = vadd.f32 %v5471, %v5633
      %v5708 = vadd.f32 %v5472, %v5635
      %v5709 = vadd.f32 %v5473, %v5638
      %v5710 = vadd.f32 %v5474, %v5640
      %v5711 = vadd.f32 %v5475, %v5643
      %v5712 = vadd.f32 %v5476, %v5645
      %v5713 = vadd.f32 %v5477, %v5648
      %v5714 = vadd.f32 %v5478, %v5650
      %v5715 = vadd.f32 %v5479, %v5653
      %v5716 = vadd.f32 %v5480, %v5655
      %v5717 = vadd.f32 %v5481, %v5658
      %v5718 = vadd.f32 %v5482, %v5660
      %v5719 = vadd.f32 %v5483, %v5663
      %v5720 = vadd.f32 %v5484, %v5665
      %v5721 = vadd.f32 %v5485, %v5668
      %v5722 = vadd.f32 %v5486, %v5670
      %v5723 = vadd.f32 %v5487, %v5673
      %v5724 = vadd.f32 %v5488, %v5675
      %v5725 = vadd.f32 %v5489, %v5678
      %v5726 = vadd.f32 %v5490, %v5680
      %v5727 = vadd.f32 %v5491, %v5683
      %v5728 = vadd.f32 %v5492, %v5685
      %v5729 = vadd.f32 %v5493, %v5688
      %v5730 = vadd.f32 %v5494, %v5690
      %v5731 = vadd.f32 %v5495, %v5693
      %v5732 = vadd.f32 %v5496, %v5695
      %s5733 = scalar_lea.vmem %s8, 40
      %v5734 = vld [vmem:[%s5733] sm:$0xf]
      %v5735 = vld [vmem:[%s5733 + $0x4] sm:$0xf]
      %v5736 = vrot.slane %v3050, 2
      %v5737 = vrot.slane %v3051, 2
      %v5738 = vsel %vm5500, %v5736, %v5737
      %v5739 = vrot.slane %v3052, 2
      %v5740 = vsel %vm5500, %v5737, %v5739
      %v5741 = vrot.slane %v3053, 2
      %v5742 = vsel %vm5500, %v5739, %v5741
      %v5743 = vrot.slane %v3054, 2
      %v5744 = vsel %vm5500, %v5741, %v5743
      %v5745 = vrot.slane %v3055, 2
      %v5746 = vsel %vm5500, %v5743, %v5745
      %v5747 = vrot.slane %v3056, 2
      %v5748 = vsel %vm5500, %v5745, %v5747
      %v5749 = vrot.slane %v3057, 2
      %v5750 = vsel %vm5500, %v5747, %v5749
      %v5751 = vrot.slane %v3058, 2
      %v5752 = vsel %vm5500, %v5749, %v5751
      %v5753 = vrot.slane %v3059, 2
      %v5754 = vsel %vm5500, %v5751, %v5753
      %v5755 = vrot.slane %v3060, 2
      %v5756 = vsel %vm5500, %v5753, %v5755
      %v5757 = vrot.slane %v3061, 2
      %v5758 = vsel %vm5500, %v5755, %v5757
      %v5759 = vrot.slane %v3062, 2
      %v5760 = vsel %vm5500, %v5757, %v5759
      %v5761 = vrot.slane %v3063, 2
      %v5762 = vsel %vm5500, %v5759, %v5761
      %v5763 = vrot.slane %v3064, 2
      %v5764 = vsel %vm5500, %v5761, %v5763
      %v5765 = vrot.slane %v3065, 2
      %v5766 = vsel %vm5500, %v5763, %v5765
      %v5767 = vrot.slane %v3066, 2
      %v5768 = vsel %vm5500, %v5765, %v5767
      %v5769 = vrot.slane %v4777, 2
      %v5770 = vsel %vm5500, %v5767, %v5769
      %v5771 = vrot.slane %v4778, 2
      %v5772 = vsel %vm5500, %v5769, %v5771
      %v5775 = vunpack.c.l.b16 %v5734
      %v5776 = vunpack.c.l.b16 %v5735
      %v5777 = vpack.c.b16 %v5776, %v5775
      %v5780 = vsel %vm3073, %v5738, 0
      %v5783 = vsel %vm3073, %v5740, 0
      %v5786 = vsel %vm3073, %v5742, 0
      %v5789 = vsel %vm3073, %v5744, 0
      %v5792 = vsel %vm3073, %v5746, 0
      %v5795 = vsel %vm3073, %v5748, 0
      %v5798 = vsel %vm3073, %v5750, 0
      %v5801 = vsel %vm3073, %v5752, 0
      %v5804 = vsel %vm3073, %v5754, 0
      %v5807 = vsel %vm3073, %v5756, 0
      %v5810 = vsel %vm3073, %v5758, 0
      %v5813 = vsel %vm3073, %v5760, 0
      %v5816 = vsel %vm3073, %v5762, 0
      %v5819 = vsel %vm3073, %v5764, 0
      %v5822 = vsel %vm3073, %v5766, 0
      %v5825 = vsel %vm3073, %v5768, 0
      %v5828 = vsel %vm3073, %v5770, 0
      %v5831 = vsel %vm3073, %v5772, 0
      %5833 = vmatpush.bf16.msra.mxu0 0
      %5834 = vmatpush.bf16.msra.mxu0 0
      %5835 = vmatpush.bf16.msra.mxu0 0
      %5836 = vmatpush.bf16.msra.mxu0 0
      %5837 = vmatpush.bf16.msra.mxu0 0
      %5838 = vmatpush.bf16.msra.mxu0 0
      %5839 = vmatpush.bf16.msra.mxu0 0
      %5840 = vmatpush.bf16.msra.mxu0 %v5777
      %5841 = vmatmul.bf16.gmra.mxu0 %v5780
      %v5842 = vpop.f32.mrf.mxu0
      %v5843 = vadd.f32 0.0, %v5842
      %v5844 = vpop.f32.mrf.mxu0
      %v5845 = vadd.f32 0.0, %v5844
      %5846 = vmatmul.bf16.gmra.mxu0 %v5783
      %v5847 = vpop.f32.mrf.mxu0
      %v5848 = vadd.f32 0.0, %v5847
      %v5849 = vpop.f32.mrf.mxu0
      %v5850 = vadd.f32 0.0, %v5849
      %5851 = vmatmul.bf16.gmra.mxu0 %v5786
      %v5852 = vpop.f32.mrf.mxu0
      %v5853 = vadd.f32 0.0, %v5852
      %v5854 = vpop.f32.mrf.mxu0
      %v5855 = vadd.f32 0.0, %v5854
      %5856 = vmatmul.bf16.gmra.mxu0 %v5789
      %v5857 = vpop.f32.mrf.mxu0
      %v5858 = vadd.f32 0.0, %v5857
      %v5859 = vpop.f32.mrf.mxu0
      %v5860 = vadd.f32 0.0, %v5859
      %5861 = vmatmul.bf16.gmra.mxu0 %v5792
      %v5862 = vpop.f32.mrf.mxu0
      %v5863 = vadd.f32 0.0, %v5862
      %v5864 = vpop.f32.mrf.mxu0
      %v5865 = vadd.f32 0.0, %v5864
      %5866 = vmatmul.bf16.gmra.mxu0 %v5795
      %v5867 = vpop.f32.mrf.mxu0
      %v5868 = vadd.f32 0.0, %v5867
      %v5869 = vpop.f32.mrf.mxu0
      %v5870 = vadd.f32 0.0, %v5869
      %5871 = vmatmul.bf16.gmra.mxu0 %v5798
      %v5872 = vpop.f32.mrf.mxu0
      %v5873 = vadd.f32 0.0, %v5872
      %v5874 = vpop.f32.mrf.mxu0
      %v5875 = vadd.f32 0.0, %v5874
      %5876 = vmatmul.bf16.gmra.mxu0 %v5801
      %v5877 = vpop.f32.mrf.mxu0
      %v5878 = vadd.f32 0.0, %v5877
      %v5879 = vpop.f32.mrf.mxu0
      %v5880 = vadd.f32 0.0, %v5879
      %5881 = vmatmul.bf16.gmra.mxu0 %v5804
      %v5882 = vpop.f32.mrf.mxu0
      %v5883 = vadd.f32 0.0, %v5882
      %v5884 = vpop.f32.mrf.mxu0
      %v5885 = vadd.f32 0.0, %v5884
      %5886 = vmatmul.bf16.gmra.mxu0 %v5807
      %v5887 = vpop.f32.mrf.mxu0
      %v5888 = vadd.f32 0.0, %v5887
      %v5889 = vpop.f32.mrf.mxu0
      %v5890 = vadd.f32 0.0, %v5889
      %5891 = vmatmul.bf16.gmra.mxu0 %v5810
      %v5892 = vpop.f32.mrf.mxu0
      %v5893 = vadd.f32 0.0, %v5892
      %v5894 = vpop.f32.mrf.mxu0
      %v5895 = vadd.f32 0.0, %v5894
      %5896 = vmatmul.bf16.gmra.mxu0 %v5813
      %v5897 = vpop.f32.mrf.mxu0
      %v5898 = vadd.f32 0.0, %v5897
      %v5899 = vpop.f32.mrf.mxu0
      %v5900 = vadd.f32 0.0, %v5899
      %5901 = vmatmul.bf16.gmra.mxu0 %v5816
      %v5902 = vpop.f32.mrf.mxu0
      %v5903 = vadd.f32 0.0, %v5902
      %v5904 = vpop.f32.mrf.mxu0
      %v5905 = vadd.f32 0.0, %v5904
      %5906 = vmatmul.bf16.gmra.mxu0 %v5819
      %v5907 = vpop.f32.mrf.mxu0
      %v5908 = vadd.f32 0.0, %v5907
      %v5909 = vpop.f32.mrf.mxu0
      %v5910 = vadd.f32 0.0, %v5909
      %5911 = vmatmul.bf16.gmra.mxu0 %v5822
      %v5912 = vpop.f32.mrf.mxu0
      %v5913 = vadd.f32 0.0, %v5912
      %v5914 = vpop.f32.mrf.mxu0
      %v5915 = vadd.f32 0.0, %v5914
      %5916 = vmatmul.bf16.gmra.mxu0 %v5825
      %v5917 = vpop.f32.mrf.mxu0
      %v5918 = vadd.f32 0.0, %v5917
      %v5919 = vpop.f32.mrf.mxu0
      %v5920 = vadd.f32 0.0, %v5919
      %5921 = vmatmul.bf16.gmra.mxu0 %v5828
      %v5922 = vpop.f32.mrf.mxu0
      %v5923 = vadd.f32 0.0, %v5922
      %v5924 = vpop.f32.mrf.mxu0
      %v5925 = vadd.f32 0.0, %v5924
      %5926 = vmatmul.bf16.gmra.mxu0 %v5831
      %v5927 = vpop.f32.mrf.mxu0
      %v5928 = vadd.f32 0.0, %v5927
      %v5929 = vpop.f32.mrf.mxu0
      %v5930 = vadd.f32 0.0, %v5929
      %5931 = vdwg.mxu0
      %v5932 = vadd.f32 %v5697, %v5843
      %v5933 = vadd.f32 %v5698, %v5845
      %v5934 = vadd.f32 %v5699, %v5848
      %v5935 = vadd.f32 %v5700, %v5850
      %v5936 = vadd.f32 %v5701, %v5853
      %v5937 = vadd.f32 %v5702, %v5855
      %v5938 = vadd.f32 %v5703, %v5858
      %v5939 = vadd.f32 %v5704, %v5860
      %v5940 = vadd.f32 %v5705, %v5863
      %v5941 = vadd.f32 %v5706, %v5865
      %v5942 = vadd.f32 %v5707, %v5868
      %v5943 = vadd.f32 %v5708, %v5870
      %v5944 = vadd.f32 %v5709, %v5873
      %v5945 = vadd.f32 %v5710, %v5875
      %v5946 = vadd.f32 %v5711, %v5878
      %v5947 = vadd.f32 %v5712, %v5880
      %v5948 = vadd.f32 %v5713, %v5883
      %v5949 = vadd.f32 %v5714, %v5885
      %v5950 = vadd.f32 %v5715, %v5888
      %v5951 = vadd.f32 %v5716, %v5890
      %v5952 = vadd.f32 %v5717, %v5893
      %v5953 = vadd.f32 %v5718, %v5895
      %v5954 = vadd.f32 %v5719, %v5898
      %v5955 = vadd.f32 %v5720, %v5900
      %v5956 = vadd.f32 %v5721, %v5903
      %v5957 = vadd.f32 %v5722, %v5905
      %v5958 = vadd.f32 %v5723, %v5908
      %v5959 = vadd.f32 %v5724, %v5910
      %v5960 = vadd.f32 %v5725, %v5913
      %v5961 = vadd.f32 %v5726, %v5915
      %v5962 = vadd.f32 %v5727, %v5918
      %v5963 = vadd.f32 %v5728, %v5920
      %v5964 = vadd.f32 %v5729, %v5923
      %v5965 = vadd.f32 %v5730, %v5925
      %v5966 = vadd.f32 %v5731, %v5928
      %v5967 = vadd.f32 %v5732, %v5930
      %s5968 = scalar_lea.vmem %s7, 48
      %v5969 = vld [vmem:[%s5968] sm:$0xf]
      %v5970 = vld [vmem:[%s5968 + $0x4] sm:$0xf]
      %v5973 = vunpack.c.l.b16 %v2971
      %v5974 = vunpack.c.l.b16 %v2972
      %v5975 = vpack.c.b16 %v5973, %v4616
      %v5976 = vpack.c.b16 %v5974, %v5974
      %v5977 = vrot.slane %v5975, 2
      %v5978 = vsel %vm5500, %v5534, %v5977
      %v5979 = vrot.slane %v5976, 2
      %v5980 = vsel %vm5500, %v5977, %v5979
      %v5983 = vunpack.c.l.b16 %v5969
      %v5984 = vunpack.c.l.b16 %v5970
      %v5985 = vpack.c.b16 %v5984, %v5983
      %v5988 = vsel %vm3073, %v5978, 0
      %v5991 = vsel %vm3073, %v5980, 0
      %5993 = vmatpush.bf16.msra.mxu0 0
      %5994 = vmatpush.bf16.msra.mxu0 0
      %5995 = vmatpush.bf16.msra.mxu0 0
      %5996 = vmatpush.bf16.msra.mxu0 0
      %5997 = vmatpush.bf16.msra.mxu0 0
      %5998 = vmatpush.bf16.msra.mxu0 0
      %5999 = vmatpush.bf16.msra.mxu0 0
      %6000 = vmatpush.bf16.msra.mxu0 %v5985
      %6001 = vmatmul.bf16.gmra.mxu0 %v5548
      %v6002 = vpop.f32.mrf.mxu0
      %v6003 = vadd.f32 0.0, %v6002
      %v6004 = vpop.f32.mrf.mxu0
      %v6005 = vadd.f32 0.0, %v6004
      %6006 = vmatmul.bf16.gmra.mxu0 %v5551
      %v6007 = vpop.f32.mrf.mxu0
      %v6008 = vadd.f32 0.0, %v6007
      %v6009 = vpop.f32.mrf.mxu0
      %v6010 = vadd.f32 0.0, %v6009
      %6011 = vmatmul.bf16.gmra.mxu0 %v5554
      %v6012 = vpop.f32.mrf.mxu0
      %v6013 = vadd.f32 0.0, %v6012
      %v6014 = vpop.f32.mrf.mxu0
      %v6015 = vadd.f32 0.0, %v6014
      %6016 = vmatmul.bf16.gmra.mxu0 %v5557
      %v6017 = vpop.f32.mrf.mxu0
      %v6018 = vadd.f32 0.0, %v6017
      %v6019 = vpop.f32.mrf.mxu0
      %v6020 = vadd.f32 0.0, %v6019
      %6021 = vmatmul.bf16.gmra.mxu0 %v5560
      %v6022 = vpop.f32.mrf.mxu0
      %v6023 = vadd.f32 0.0, %v6022
      %v6024 = vpop.f32.mrf.mxu0
      %v6025 = vadd.f32 0.0, %v6024
      %6026 = vmatmul.bf16.gmra.mxu0 %v5563
      %v6027 = vpop.f32.mrf.mxu0
      %v6028 = vadd.f32 0.0, %v6027
      %v6029 = vpop.f32.mrf.mxu0
      %v6030 = vadd.f32 0.0, %v6029
      %6031 = vmatmul.bf16.gmra.mxu0 %v5566
      %v6032 = vpop.f32.mrf.mxu0
      %v6033 = vadd.f32 0.0, %v6032
      %v6034 = vpop.f32.mrf.mxu0
      %v6035 = vadd.f32 0.0, %v6034
      %6036 = vmatmul.bf16.gmra.mxu0 %v5569
      %v6037 = vpop.f32.mrf.mxu0
      %v6038 = vadd.f32 0.0, %v6037
      %v6039 = vpop.f32.mrf.mxu0
      %v6040 = vadd.f32 0.0, %v6039
      %6041 = vmatmul.bf16.gmra.mxu0 %v5572
      %v6042 = vpop.f32.mrf.mxu0
      %v6043 = vadd.f32 0.0, %v6042
      %v6044 = vpop.f32.mrf.mxu0
      %v6045 = vadd.f32 0.0, %v6044
      %6046 = vmatmul.bf16.gmra.mxu0 %v5575
      %v6047 = vpop.f32.mrf.mxu0
      %v6048 = vadd.f32 0.0, %v6047
      %v6049 = vpop.f32.mrf.mxu0
      %v6050 = vadd.f32 0.0, %v6049
      %6051 = vmatmul.bf16.gmra.mxu0 %v5578
      %v6052 = vpop.f32.mrf.mxu0
      %v6053 = vadd.f32 0.0, %v6052
      %v6054 = vpop.f32.mrf.mxu0
      %v6055 = vadd.f32 0.0, %v6054
      %6056 = vmatmul.bf16.gmra.mxu0 %v5581
      %v6057 = vpop.f32.mrf.mxu0
      %v6058 = vadd.f32 0.0, %v6057
      %v6059 = vpop.f32.mrf.mxu0
      %v6060 = vadd.f32 0.0, %v6059
      %6061 = vmatmul.bf16.gmra.mxu0 %v5584
      %v6062 = vpop.f32.mrf.mxu0
      %v6063 = vadd.f32 0.0, %v6062
      %v6064 = vpop.f32.mrf.mxu0
      %v6065 = vadd.f32 0.0, %v6064
      %6066 = vmatmul.bf16.gmra.mxu0 %v5587
      %v6067 = vpop.f32.mrf.mxu0
      %v6068 = vadd.f32 0.0, %v6067
      %v6069 = vpop.f32.mrf.mxu0
      %v6070 = vadd.f32 0.0, %v6069
      %6071 = vmatmul.bf16.gmra.mxu0 %v5590
      %v6072 = vpop.f32.mrf.mxu0
      %v6073 = vadd.f32 0.0, %v6072
      %v6074 = vpop.f32.mrf.mxu0
      %v6075 = vadd.f32 0.0, %v6074
      %6076 = vmatmul.bf16.gmra.mxu0 %v5593
      %v6077 = vpop.f32.mrf.mxu0
      %v6078 = vadd.f32 0.0, %v6077
      %v6079 = vpop.f32.mrf.mxu0
      %v6080 = vadd.f32 0.0, %v6079
      %6081 = vmatmul.bf16.gmra.mxu0 %v5988
      %v6082 = vpop.f32.mrf.mxu0
      %v6083 = vadd.f32 0.0, %v6082
      %v6084 = vpop.f32.mrf.mxu0
      %v6085 = vadd.f32 0.0, %v6084
      %6086 = vmatmul.bf16.gmra.mxu0 %v5991
      %v6087 = vpop.f32.mrf.mxu0
      %v6088 = vadd.f32 0.0, %v6087
      %v6089 = vpop.f32.mrf.mxu0
      %v6090 = vadd.f32 0.0, %v6089
      %6091 = vdwg.mxu0
      %v6092 = vadd.f32 %v5932, %v6003
      %v6093 = vadd.f32 %v5933, %v6005
      %v6094 = vadd.f32 %v5934, %v6008
      %v6095 = vadd.f32 %v5935, %v6010
      %v6096 = vadd.f32 %v5936, %v6013
      %v6097 = vadd.f32 %v5937, %v6015
      %v6098 = vadd.f32 %v5938, %v6018
      %v6099 = vadd.f32 %v5939, %v6020
      %v6100 = vadd.f32 %v5940, %v6023
      %v6101 = vadd.f32 %v5941, %v6025
      %v6102 = vadd.f32 %v5942, %v6028
      %v6103 = vadd.f32 %v5943, %v6030
      %v6104 = vadd.f32 %v5944, %v6033
      %v6105 = vadd.f32 %v5945, %v6035
      %v6106 = vadd.f32 %v5946, %v6038
      %v6107 = vadd.f32 %v5947, %v6040
      %v6108 = vadd.f32 %v5948, %v6043
      %v6109 = vadd.f32 %v5949, %v6045
      %v6110 = vadd.f32 %v5950, %v6048
      %v6111 = vadd.f32 %v5951, %v6050
      %v6112 = vadd.f32 %v5952, %v6053
      %v6113 = vadd.f32 %v5953, %v6055
      %v6114 = vadd.f32 %v5954, %v6058
      %v6115 = vadd.f32 %v5955, %v6060
      %v6116 = vadd.f32 %v5956, %v6063
      %v6117 = vadd.f32 %v5957, %v6065
      %v6118 = vadd.f32 %v5958, %v6068
      %v6119 = vadd.f32 %v5959, %v6070
      %v6120 = vadd.f32 %v5960, %v6073
      %v6121 = vadd.f32 %v5961, %v6075
      %v6122 = vadd.f32 %v5962, %v6078
      %v6123 = vadd.f32 %v5963, %v6080
      %v6124 = vadd.f32 %v5964, %v6083
      %v6125 = vadd.f32 %v5965, %v6085
      %v6126 = vadd.f32 %v5966, %v6088
      %v6127 = vadd.f32 %v5967, %v6090
      %s6128 = scalar_lea.vmem %s8, 48
      %v6129 = vld [vmem:[%s6128] sm:$0xf]
      %v6130 = vld [vmem:[%s6128 + $0x4] sm:$0xf]
      %v6133 = vunpack.c.l.b16 %v519
      %v6134 = vunpack.c.l.b16 %v520
      %v6135 = vpack.c.b16 %v6133, %v4776
      %v6136 = vpack.c.b16 %v6134, %v6134
      %v6137 = vrot.slane %v6135, 2
      %v6138 = vsel %vm5500, %v5769, %v6137
      %v6139 = vrot.slane %v6136, 2
      %v6140 = vsel %vm5500, %v6137, %v6139
      %v6143 = vunpack.c.l.b16 %v6129
      %v6144 = vunpack.c.l.b16 %v6130
      %v6145 = vpack.c.b16 %v6144, %v6143
      %v6148 = vsel %vm3073, %v6138, 0
      %v6151 = vsel %vm3073, %v6140, 0
      %6153 = vmatpush.bf16.msra.mxu0 0
      %6154 = vmatpush.bf16.msra.mxu0 0
      %6155 = vmatpush.bf16.msra.mxu0 0
      %6156 = vmatpush.bf16.msra.mxu0 0
      %6157 = vmatpush.bf16.msra.mxu0 0
      %6158 = vmatpush.bf16.msra.mxu0 0
      %6159 = vmatpush.bf16.msra.mxu0 0
      %6160 = vmatpush.bf16.msra.mxu0 %v6145
      %6161 = vmatmul.bf16.gmra.mxu0 %v5783
      %v6162 = vpop.f32.mrf.mxu0
      %v6163 = vadd.f32 0.0, %v6162
      %v6164 = vpop.f32.mrf.mxu0
      %v6165 = vadd.f32 0.0, %v6164
      %6166 = vmatmul.bf16.gmra.mxu0 %v5786
      %v6167 = vpop.f32.mrf.mxu0
      %v6168 = vadd.f32 0.0, %v6167
      %v6169 = vpop.f32.mrf.mxu0
      %v6170 = vadd.f32 0.0, %v6169
      %6171 = vmatmul.bf16.gmra.mxu0 %v5789
      %v6172 = vpop.f32.mrf.mxu0
      %v6173 = vadd.f32 0.0, %v6172
      %v6174 = vpop.f32.mrf.mxu0
      %v6175 = vadd.f32 0.0, %v6174
      %6176 = vmatmul.bf16.gmra.mxu0 %v5792
      %v6177 = vpop.f32.mrf.mxu0
      %v6178 = vadd.f32 0.0, %v6177
      %v6179 = vpop.f32.mrf.mxu0
      %v6180 = vadd.f32 0.0, %v6179
      %6181 = vmatmul.bf16.gmra.mxu0 %v5795
      %v6182 = vpop.f32.mrf.mxu0
      %v6183 = vadd.f32 0.0, %v6182
      %v6184 = vpop.f32.mrf.mxu0
      %v6185 = vadd.f32 0.0, %v6184
      %6186 = vmatmul.bf16.gmra.mxu0 %v5798
      %v6187 = vpop.f32.mrf.mxu0
      %v6188 = vadd.f32 0.0, %v6187
      %v6189 = vpop.f32.mrf.mxu0
      %v6190 = vadd.f32 0.0, %v6189
      %6191 = vmatmul.bf16.gmra.mxu0 %v5801
      %v6192 = vpop.f32.mrf.mxu0
      %v6193 = vadd.f32 0.0, %v6192
      %v6194 = vpop.f32.mrf.mxu0
      %v6195 = vadd.f32 0.0, %v6194
      %6196 = vmatmul.bf16.gmra.mxu0 %v5804
      %v6197 = vpop.f32.mrf.mxu0
      %v6198 = vadd.f32 0.0, %v6197
      %v6199 = vpop.f32.mrf.mxu0
      %v6200 = vadd.f32 0.0, %v6199
      %6201 = vmatmul.bf16.gmra.mxu0 %v5807
      %v6202 = vpop.f32.mrf.mxu0
      %v6203 = vadd.f32 0.0, %v6202
      %v6204 = vpop.f32.mrf.mxu0
      %v6205 = vadd.f32 0.0, %v6204
      %6206 = vmatmul.bf16.gmra.mxu0 %v5810
      %v6207 = vpop.f32.mrf.mxu0
      %v6208 = vadd.f32 0.0, %v6207
      %v6209 = vpop.f32.mrf.mxu0
      %v6210 = vadd.f32 0.0, %v6209
      %6211 = vmatmul.bf16.gmra.mxu0 %v5813
      %v6212 = vpop.f32.mrf.mxu0
      %v6213 = vadd.f32 0.0, %v6212
      %v6214 = vpop.f32.mrf.mxu0
      %v6215 = vadd.f32 0.0, %v6214
      %6216 = vmatmul.bf16.gmra.mxu0 %v5816
      %v6217 = vpop.f32.mrf.mxu0
      %v6218 = vadd.f32 0.0, %v6217
      %v6219 = vpop.f32.mrf.mxu0
      %v6220 = vadd.f32 0.0, %v6219
      %6221 = vmatmul.bf16.gmra.mxu0 %v5819
      %v6222 = vpop.f32.mrf.mxu0
      %v6223 = vadd.f32 0.0, %v6222
      %v6224 = vpop.f32.mrf.mxu0
      %v6225 = vadd.f32 0.0, %v6224
      %6226 = vmatmul.bf16.gmra.mxu0 %v5822
      %v6227 = vpop.f32.mrf.mxu0
      %v6228 = vadd.f32 0.0, %v6227
      %v6229 = vpop.f32.mrf.mxu0
      %v6230 = vadd.f32 0.0, %v6229
      %6231 = vmatmul.bf16.gmra.mxu0 %v5825
      %v6232 = vpop.f32.mrf.mxu0
      %v6233 = vadd.f32 0.0, %v6232
      %v6234 = vpop.f32.mrf.mxu0
      %v6235 = vadd.f32 0.0, %v6234
      %6236 = vmatmul.bf16.gmra.mxu0 %v5828
      %v6237 = vpop.f32.mrf.mxu0
      %v6238 = vadd.f32 0.0, %v6237
      %v6239 = vpop.f32.mrf.mxu0
      %v6240 = vadd.f32 0.0, %v6239
      %6241 = vmatmul.bf16.gmra.mxu0 %v6148
      %v6242 = vpop.f32.mrf.mxu0
      %v6243 = vadd.f32 0.0, %v6242
      %v6244 = vpop.f32.mrf.mxu0
      %v6245 = vadd.f32 0.0, %v6244
      %6246 = vmatmul.bf16.gmra.mxu0 %v6151
      %v6247 = vpop.f32.mrf.mxu0
      %v6248 = vadd.f32 0.0, %v6247
      %v6249 = vpop.f32.mrf.mxu0
      %v6250 = vadd.f32 0.0, %v6249
      %6251 = vdwg.mxu0
      %v6252 = vadd.f32 %v6092, %v6163
      %v6253 = vadd.f32 %v6093, %v6165
      %v6254 = vadd.f32 %v6094, %v6168
      %v6255 = vadd.f32 %v6095, %v6170
      %v6256 = vadd.f32 %v6096, %v6173
      %v6257 = vadd.f32 %v6097, %v6175
      %v6258 = vadd.f32 %v6098, %v6178
      %v6259 = vadd.f32 %v6099, %v6180
      %v6260 = vadd.f32 %v6100, %v6183
      %v6261 = vadd.f32 %v6101, %v6185
      %v6262 = vadd.f32 %v6102, %v6188
      %v6263 = vadd.f32 %v6103, %v6190
      %v6264 = vadd.f32 %v6104, %v6193
      %v6265 = vadd.f32 %v6105, %v6195
      %v6266 = vadd.f32 %v6106, %v6198
      %v6267 = vadd.f32 %v6107, %v6200
      %v6268 = vadd.f32 %v6108, %v6203
      %v6269 = vadd.f32 %v6109, %v6205
      %v6270 = vadd.f32 %v6110, %v6208
      %v6271 = vadd.f32 %v6111, %v6210
      %v6272 = vadd.f32 %v6112, %v6213
      %v6273 = vadd.f32 %v6113, %v6215
      %v6274 = vadd.f32 %v6114, %v6218
      %v6275 = vadd.f32 %v6115, %v6220
      %v6276 = vadd.f32 %v6116, %v6223
      %v6277 = vadd.f32 %v6117, %v6225
      %v6278 = vadd.f32 %v6118, %v6228
      %v6279 = vadd.f32 %v6119, %v6230
      %v6280 = vadd.f32 %v6120, %v6233
      %v6281 = vadd.f32 %v6121, %v6235
      %v6282 = vadd.f32 %v6122, %v6238
      %v6283 = vadd.f32 %v6123, %v6240
      %v6284 = vadd.f32 %v6124, %v6243
      %v6285 = vadd.f32 %v6125, %v6245
      %v6286 = vadd.f32 %v6126, %v6248
      %v6287 = vadd.f32 %v6127, %v6250
      %s6288 = scalar_lea.vmem %s7, 56
      %v6289 = vld [vmem:[%s6288] sm:$0xf]
      %v6290 = vld [vmem:[%s6288 + $0x4] sm:$0xf]
      %vm6291 = vsmask.f32 5376
      %v6292 = vrot.slane %v3500, 2
      %v6293 = vrot.slane %v3496, 3
      %v6294 = vor.u32 %v6292, %v6293
      %v6295 = vrot.slane %v3507, 2
      %v6296 = vrot.slane %v3503, 3
      %v6297 = vor.u32 %v6295, %v6296
      %v6298 = vsel %vm6291, %v6294, %v6297
      %v6299 = vrot.slane %v3514, 2
      %v6300 = vrot.slane %v3510, 3
      %v6301 = vor.u32 %v6299, %v6300
      %v6302 = vsel %vm6291, %v6297, %v6301
      %v6303 = vrot.slane %v3521, 2
      %v6304 = vrot.slane %v3517, 3
      %v6305 = vor.u32 %v6303, %v6304
      %v6306 = vsel %vm6291, %v6301, %v6305
      %v6307 = vrot.slane %v3528, 2
      %v6308 = vrot.slane %v3524, 3
      %v6309 = vor.u32 %v6307, %v6308
      %v6310 = vsel %vm6291, %v6305, %v6309
      %v6311 = vrot.slane %v3535, 2
      %v6312 = vrot.slane %v3531, 3
      %v6313 = vor.u32 %v6311, %v6312
      %v6314 = vsel %vm6291, %v6309, %v6313
      %v6315 = vrot.slane %v3542, 2
      %v6316 = vrot.slane %v3538, 3
      %v6317 = vor.u32 %v6315, %v6316
      %v6318 = vsel %vm6291, %v6313, %v6317
      %v6319 = vrot.slane %v3549, 2
      %v6320 = vrot.slane %v3545, 3
      %v6321 = vor.u32 %v6319, %v6320
      %v6322 = vsel %vm6291, %v6317, %v6321
      %v6323 = vrot.slane %v3556, 2
      %v6324 = vrot.slane %v3552, 3
      %v6325 = vor.u32 %v6323, %v6324
      %v6326 = vsel %vm6291, %v6321, %v6325
      %v6327 = vrot.slane %v3563, 2
      %v6328 = vrot.slane %v3559, 3
      %v6329 = vor.u32 %v6327, %v6328
      %v6330 = vsel %vm6291, %v6325, %v6329
      %v6331 = vrot.slane %v3570, 2
      %v6332 = vrot.slane %v3566, 3
      %v6333 = vor.u32 %v6331, %v6332
      %v6334 = vsel %vm6291, %v6329, %v6333
      %v6335 = vrot.slane %v3577, 2
      %v6336 = vrot.slane %v3573, 3
      %v6337 = vor.u32 %v6335, %v6336
      %v6338 = vsel %vm6291, %v6333, %v6337
      %v6339 = vrot.slane %v3584, 2
      %v6340 = vrot.slane %v3580, 3
      %v6341 = vor.u32 %v6339, %v6340
      %v6342 = vsel %vm6291, %v6337, %v6341
      %v6343 = vrot.slane %v3591, 2
      %v6344 = vrot.slane %v3587, 3
      %v6345 = vor.u32 %v6343, %v6344
      %v6346 = vsel %vm6291, %v6341, %v6345
      %v6347 = vrot.slane %v3598, 2
      %v6348 = vrot.slane %v3594, 3
      %v6349 = vor.u32 %v6347, %v6348
      %v6350 = vsel %vm6291, %v6345, %v6349
      %v6351 = vrot.slane %v3605, 2
      %v6352 = vrot.slane %v3601, 3
      %v6353 = vor.u32 %v6351, %v6352
      %v6354 = vsel %vm6291, %v6349, %v6353
      %v6355 = vrot.slane %v5002, 2
      %v6356 = vrot.slane %v5005, 3
      %v6357 = vor.u32 %v6355, %v6356
      %v6358 = vsel %vm6291, %v6353, %v6357
      %v6360 = vshrl.u32 %v5975, 16
      %v6362 = vrot.slane %v6360, 2
      %v6363 = vshll.u32 %v5975, 16
      %v6365 = vrot.slane %v6363, 3
      %v6366 = vor.u32 %v6362, %v6365
      %v6367 = vsel %vm6291, %v6357, %v6366
      %v6369 = vshrl.u32 %v5976, 16
      %v6371 = vrot.slane %v6369, 2
      %v6372 = vshll.u32 %v5976, 16
      %v6374 = vrot.slane %v6372, 3
      %v6375 = vor.u32 %v6371, %v6374
      %v6376 = vsel %vm6291, %v6366, %v6375
      %v6379 = vunpack.c.l.b16 %v6289
      %v6380 = vunpack.c.l.b16 %v6290
      %v6381 = vpack.c.b16 %v6380, %v6379
      %v6384 = vsel %vm3073, %v6298, 0
      %v6387 = vsel %vm3073, %v6302, 0
      %v6390 = vsel %vm3073, %v6306, 0
      %v6393 = vsel %vm3073, %v6310, 0
      %v6396 = vsel %vm3073, %v6314, 0
      %v6399 = vsel %vm3073, %v6318, 0
      %v6402 = vsel %vm3073, %v6322, 0
      %v6405 = vsel %vm3073, %v6326, 0
      %v6408 = vsel %vm3073, %v6330, 0
      %v6411 = vsel %vm3073, %v6334, 0
      %v6414 = vsel %vm3073, %v6338, 0
      %v6417 = vsel %vm3073, %v6342, 0
      %v6420 = vsel %vm3073, %v6346, 0
      %v6423 = vsel %vm3073, %v6350, 0
      %v6426 = vsel %vm3073, %v6354, 0
      %v6429 = vsel %vm3073, %v6358, 0
      %v6432 = vsel %vm3073, %v6367, 0
      %v6435 = vsel %vm3073, %v6376, 0
      %6437 = vmatpush.bf16.msra.mxu0 0
      %6438 = vmatpush.bf16.msra.mxu0 0
      %6439 = vmatpush.bf16.msra.mxu0 0
      %6440 = vmatpush.bf16.msra.mxu0 0
      %6441 = vmatpush.bf16.msra.mxu0 0
      %6442 = vmatpush.bf16.msra.mxu0 0
      %6443 = vmatpush.bf16.msra.mxu0 0
      %6444 = vmatpush.bf16.msra.mxu0 %v6381
      %6445 = vmatmul.bf16.gmra.mxu0 %v6384
      %v6446 = vpop.f32.mrf.mxu0
      %v6447 = vadd.f32 0.0, %v6446
      %v6448 = vpop.f32.mrf.mxu0
      %v6449 = vadd.f32 0.0, %v6448
      %6450 = vmatmul.bf16.gmra.mxu0 %v6387
      %v6451 = vpop.f32.mrf.mxu0
      %v6452 = vadd.f32 0.0, %v6451
      %v6453 = vpop.f32.mrf.mxu0
      %v6454 = vadd.f32 0.0, %v6453
      %6455 = vmatmul.bf16.gmra.mxu0 %v6390
      %v6456 = vpop.f32.mrf.mxu0
      %v6457 = vadd.f32 0.0, %v6456
      %v6458 = vpop.f32.mrf.mxu0
      %v6459 = vadd.f32 0.0, %v6458
      %6460 = vmatmul.bf16.gmra.mxu0 %v6393
      %v6461 = vpop.f32.mrf.mxu0
      %v6462 = vadd.f32 0.0, %v6461
      %v6463 = vpop.f32.mrf.mxu0
      %v6464 = vadd.f32 0.0, %v6463
      %6465 = vmatmul.bf16.gmra.mxu0 %v6396
      %v6466 = vpop.f32.mrf.mxu0
      %v6467 = vadd.f32 0.0, %v6466
      %v6468 = vpop.f32.mrf.mxu0
      %v6469 = vadd.f32 0.0, %v6468
      %6470 = vmatmul.bf16.gmra.mxu0 %v6399
      %v6471 = vpop.f32.mrf.mxu0
      %v6472 = vadd.f32 0.0, %v6471
      %v6473 = vpop.f32.mrf.mxu0
      %v6474 = vadd.f32 0.0, %v6473
      %6475 = vmatmul.bf16.gmra.mxu0 %v6402
      %v6476 = vpop.f32.mrf.mxu0
      %v6477 = vadd.f32 0.0, %v6476
      %v6478 = vpop.f32.mrf.mxu0
      %v6479 = vadd.f32 0.0, %v6478
      %6480 = vmatmul.bf16.gmra.mxu0 %v6405
      %v6481 = vpop.f32.mrf.mxu0
      %v6482 = vadd.f32 0.0, %v6481
      %v6483 = vpop.f32.mrf.mxu0
      %v6484 = vadd.f32 0.0, %v6483
      %6485 = vmatmul.bf16.gmra.mxu0 %v6408
      %v6486 = vpop.f32.mrf.mxu0
      %v6487 = vadd.f32 0.0, %v6486
      %v6488 = vpop.f32.mrf.mxu0
      %v6489 = vadd.f32 0.0, %v6488
      %6490 = vmatmul.bf16.gmra.mxu0 %v6411
      %v6491 = vpop.f32.mrf.mxu0
      %v6492 = vadd.f32 0.0, %v6491
      %v6493 = vpop.f32.mrf.mxu0
      %v6494 = vadd.f32 0.0, %v6493
      %6495 = vmatmul.bf16.gmra.mxu0 %v6414
      %v6496 = vpop.f32.mrf.mxu0
      %v6497 = vadd.f32 0.0, %v6496
      %v6498 = vpop.f32.mrf.mxu0
      %v6499 = vadd.f32 0.0, %v6498
      %6500 = vmatmul.bf16.gmra.mxu0 %v6417
      %v6501 = vpop.f32.mrf.mxu0
      %v6502 = vadd.f32 0.0, %v6501
      %v6503 = vpop.f32.mrf.mxu0
      %v6504 = vadd.f32 0.0, %v6503
      %6505 = vmatmul.bf16.gmra.mxu0 %v6420
      %v6506 = vpop.f32.mrf.mxu0
      %v6507 = vadd.f32 0.0, %v6506
      %v6508 = vpop.f32.mrf.mxu0
      %v6509 = vadd.f32 0.0, %v6508
      %6510 = vmatmul.bf16.gmra.mxu0 %v6423
      %v6511 = vpop.f32.mrf.mxu0
      %v6512 = vadd.f32 0.0, %v6511
      %v6513 = vpop.f32.mrf.mxu0
      %v6514 = vadd.f32 0.0, %v6513
      %6515 = vmatmul.bf16.gmra.mxu0 %v6426
      %v6516 = vpop.f32.mrf.mxu0
      %v6517 = vadd.f32 0.0, %v6516
      %v6518 = vpop.f32.mrf.mxu0
      %v6519 = vadd.f32 0.0, %v6518
      %6520 = vmatmul.bf16.gmra.mxu0 %v6429
      %v6521 = vpop.f32.mrf.mxu0
      %v6522 = vadd.f32 0.0, %v6521
      %v6523 = vpop.f32.mrf.mxu0
      %v6524 = vadd.f32 0.0, %v6523
      %6525 = vmatmul.bf16.gmra.mxu0 %v6432
      %v6526 = vpop.f32.mrf.mxu0
      %v6527 = vadd.f32 0.0, %v6526
      %v6528 = vpop.f32.mrf.mxu0
      %v6529 = vadd.f32 0.0, %v6528
      %6530 = vmatmul.bf16.gmra.mxu0 %v6435
      %v6531 = vpop.f32.mrf.mxu0
      %v6532 = vadd.f32 0.0, %v6531
      %v6533 = vpop.f32.mrf.mxu0
      %v6534 = vadd.f32 0.0, %v6533
      %6535 = vdwg.mxu0
      %v6536 = vadd.f32 %v6252, %v6447
      %v6537 = vadd.f32 %v6253, %v6449
      %v6538 = vadd.f32 %v6254, %v6452
      %v6539 = vadd.f32 %v6255, %v6454
      %v6540 = vadd.f32 %v6256, %v6457
      %v6541 = vadd.f32 %v6257, %v6459
      %v6542 = vadd.f32 %v6258, %v6462
      %v6543 = vadd.f32 %v6259, %v6464
      %v6544 = vadd.f32 %v6260, %v6467
      %v6545 = vadd.f32 %v6261, %v6469
      %v6546 = vadd.f32 %v6262, %v6472
      %v6547 = vadd.f32 %v6263, %v6474
      %v6548 = vadd.f32 %v6264, %v6477
      %v6549 = vadd.f32 %v6265, %v6479
      %v6550 = vadd.f32 %v6266, %v6482
      %v6551 = vadd.f32 %v6267, %v6484
      %v6552 = vadd.f32 %v6268, %v6487
      %v6553 = vadd.f32 %v6269, %v6489
      %v6554 = vadd.f32 %v6270, %v6492
      %v6555 = vadd.f32 %v6271, %v6494
      %v6556 = vadd.f32 %v6272, %v6497
      %v6557 = vadd.f32 %v6273, %v6499
      %v6558 = vadd.f32 %v6274, %v6502
      %v6559 = vadd.f32 %v6275, %v6504
      %v6560 = vadd.f32 %v6276, %v6507
      %v6561 = vadd.f32 %v6277, %v6509
      %v6562 = vadd.f32 %v6278, %v6512
      %v6563 = vadd.f32 %v6279, %v6514
      %v6564 = vadd.f32 %v6280, %v6517
      %v6565 = vadd.f32 %v6281, %v6519
      %v6566 = vadd.f32 %v6282, %v6522
      %v6567 = vadd.f32 %v6283, %v6524
      %v6568 = vadd.f32 %v6284, %v6527
      %v6569 = vadd.f32 %v6285, %v6529
      %v6570 = vadd.f32 %v6286, %v6532
      %v6571 = vadd.f32 %v6287, %v6534
      %s6572 = scalar_lea.vmem %s8, 56
      %v6573 = vld [vmem:[%s6572] sm:$0xf]
      %v6574 = vld [vmem:[%s6572 + $0x4] sm:$0xf]
      %v6575 = vrot.slane %v3831, 2
      %v6576 = vrot.slane %v3827, 3
      %v6577 = vor.u32 %v6575, %v6576
      %v6578 = vrot.slane %v3838, 2
      %v6579 = vrot.slane %v3834, 3
      %v6580 = vor.u32 %v6578, %v6579
      %v6581 = vsel %vm6291, %v6577, %v6580
      %v6582 = vrot.slane %v3845, 2
      %v6583 = vrot.slane %v3841, 3
      %v6584 = vor.u32 %v6582, %v6583
      %v6585 = vsel %vm6291, %v6580, %v6584
      %v6586 = vrot.slane %v3852, 2
      %v6587 = vrot.slane %v3848, 3
      %v6588 = vor.u32 %v6586, %v6587
      %v6589 = vsel %vm6291, %v6584, %v6588
      %v6590 = vrot.slane %v3859, 2
      %v6591 = vrot.slane %v3855, 3
      %v6592 = vor.u32 %v6590, %v6591
      %v6593 = vsel %vm6291, %v6588, %v6592
      %v6594 = vrot.slane %v3866, 2
      %v6595 = vrot.slane %v3862, 3
      %v6596 = vor.u32 %v6594, %v6595
      %v6597 = vsel %vm6291, %v6592, %v6596
      %v6598 = vrot.slane %v3873, 2
      %v6599 = vrot.slane %v3869, 3
      %v6600 = vor.u32 %v6598, %v6599
      %v6601 = vsel %vm6291, %v6596, %v6600
      %v6602 = vrot.slane %v3880, 2
      %v6603 = vrot.slane %v3876, 3
      %v6604 = vor.u32 %v6602, %v6603
      %v6605 = vsel %vm6291, %v6600, %v6604
      %v6606 = vrot.slane %v3887, 2
      %v6607 = vrot.slane %v3883, 3
      %v6608 = vor.u32 %v6606, %v6607
      %v6609 = vsel %vm6291, %v6604, %v6608
      %v6610 = vrot.slane %v3894, 2
      %v6611 = vrot.slane %v3890, 3
      %v6612 = vor.u32 %v6610, %v6611
      %v6613 = vsel %vm6291, %v6608, %v6612
      %v6614 = vrot.slane %v3901, 2
      %v6615 = vrot.slane %v3897, 3
      %v6616 = vor.u32 %v6614, %v6615
      %v6617 = vsel %vm6291, %v6612, %v6616
      %v6618 = vrot.slane %v3908, 2
      %v6619 = vrot.slane %v3904, 3
      %v6620 = vor.u32 %v6618, %v6619
      %v6621 = vsel %vm6291, %v6616, %v6620
      %v6622 = vrot.slane %v3915, 2
      %v6623 = vrot.slane %v3911, 3
      %v6624 = vor.u32 %v6622, %v6623
      %v6625 = vsel %vm6291, %v6620, %v6624
      %v6626 = vrot.slane %v3922, 2
      %v6627 = vrot.slane %v3918, 3
      %v6628 = vor.u32 %v6626, %v6627
      %v6629 = vsel %vm6291, %v6624, %v6628
      %v6630 = vrot.slane %v3929, 2
      %v6631 = vrot.slane %v3925, 3
      %v6632 = vor.u32 %v6630, %v6631
      %v6633 = vsel %vm6291, %v6628, %v6632
      %v6634 = vrot.slane %v3936, 2
      %v6635 = vrot.slane %v3932, 3
      %v6636 = vor.u32 %v6634, %v6635
      %v6637 = vsel %vm6291, %v6632, %v6636
      %v6638 = vrot.slane %v5285, 2
      %v6639 = vrot.slane %v5288, 3
      %v6640 = vor.u32 %v6638, %v6639
      %v6641 = vsel %vm6291, %v6636, %v6640
      %v6643 = vshrl.u32 %v6135, 16
      %v6645 = vrot.slane %v6643, 2
      %v6646 = vshll.u32 %v6135, 16
      %v6648 = vrot.slane %v6646, 3
      %v6649 = vor.u32 %v6645, %v6648
      %v6650 = vsel %vm6291, %v6640, %v6649
      %v6652 = vshrl.u32 %v6136, 16
      %v6654 = vrot.slane %v6652, 2
      %v6655 = vshll.u32 %v6136, 16
      %v6657 = vrot.slane %v6655, 3
      %v6658 = vor.u32 %v6654, %v6657
      %v6659 = vsel %vm6291, %v6649, %v6658
      %v6662 = vunpack.c.l.b16 %v6573
      %v6663 = vunpack.c.l.b16 %v6574
      %v6664 = vpack.c.b16 %v6663, %v6662
      %v6667 = vsel %vm3073, %v6581, 0
      %v6670 = vsel %vm3073, %v6585, 0
      %v6673 = vsel %vm3073, %v6589, 0
      %v6676 = vsel %vm3073, %v6593, 0
      %v6679 = vsel %vm3073, %v6597, 0
      %v6682 = vsel %vm3073, %v6601, 0
      %v6685 = vsel %vm3073, %v6605, 0
      %v6688 = vsel %vm3073, %v6609, 0
      %v6691 = vsel %vm3073, %v6613, 0
      %v6694 = vsel %vm3073, %v6617, 0
      %v6697 = vsel %vm3073, %v6621, 0
      %v6700 = vsel %vm3073, %v6625, 0
      %v6703 = vsel %vm3073, %v6629, 0
      %v6706 = vsel %vm3073, %v6633, 0
      %v6709 = vsel %vm3073, %v6637, 0
      %v6712 = vsel %vm3073, %v6641, 0
      %v6715 = vsel %vm3073, %v6650, 0
      %v6718 = vsel %vm3073, %v6659, 0
      %6720 = vmatpush.bf16.msra.mxu0 0
      %6721 = vmatpush.bf16.msra.mxu0 0
      %6722 = vmatpush.bf16.msra.mxu0 0
      %6723 = vmatpush.bf16.msra.mxu0 0
      %6724 = vmatpush.bf16.msra.mxu0 0
      %6725 = vmatpush.bf16.msra.mxu0 0
      %6726 = vmatpush.bf16.msra.mxu0 0
      %6727 = vmatpush.bf16.msra.mxu0 %v6664
      %6728 = vmatmul.bf16.gmra.mxu0 %v6667
      %v6729 = vpop.f32.mrf.mxu0
      %v6730 = vadd.f32 0.0, %v6729
      %v6731 = vpop.f32.mrf.mxu0
      %v6732 = vadd.f32 0.0, %v6731
      %6733 = vmatmul.bf16.gmra.mxu0 %v6670
      %v6734 = vpop.f32.mrf.mxu0
      %v6735 = vadd.f32 0.0, %v6734
      %v6736 = vpop.f32.mrf.mxu0
      %v6737 = vadd.f32 0.0, %v6736
      %6738 = vmatmul.bf16.gmra.mxu0 %v6673
      %v6739 = vpop.f32.mrf.mxu0
      %v6740 = vadd.f32 0.0, %v6739
      %v6741 = vpop.f32.mrf.mxu0
      %v6742 = vadd.f32 0.0, %v6741
      %6743 = vmatmul.bf16.gmra.mxu0 %v6676
      %v6744 = vpop.f32.mrf.mxu0
      %v6745 = vadd.f32 0.0, %v6744
      %v6746 = vpop.f32.mrf.mxu0
      %v6747 = vadd.f32 0.0, %v6746
      %6748 = vmatmul.bf16.gmra.mxu0 %v6679
      %v6749 = vpop.f32.mrf.mxu0
      %v6750 = vadd.f32 0.0, %v6749
      %v6751 = vpop.f32.mrf.mxu0
      %v6752 = vadd.f32 0.0, %v6751
      %6753 = vmatmul.bf16.gmra.mxu0 %v6682
      %v6754 = vpop.f32.mrf.mxu0
      %v6755 = vadd.f32 0.0, %v6754
      %v6756 = vpop.f32.mrf.mxu0
      %v6757 = vadd.f32 0.0, %v6756
      %6758 = vmatmul.bf16.gmra.mxu0 %v6685
      %v6759 = vpop.f32.mrf.mxu0
      %v6760 = vadd.f32 0.0, %v6759
      %v6761 = vpop.f32.mrf.mxu0
      %v6762 = vadd.f32 0.0, %v6761
      %6763 = vmatmul.bf16.gmra.mxu0 %v6688
      %v6764 = vpop.f32.mrf.mxu0
      %v6765 = vadd.f32 0.0, %v6764
      %v6766 = vpop.f32.mrf.mxu0
      %v6767 = vadd.f32 0.0, %v6766
      %6768 = vmatmul.bf16.gmra.mxu0 %v6691
      %v6769 = vpop.f32.mrf.mxu0
      %v6770 = vadd.f32 0.0, %v6769
      %v6771 = vpop.f32.mrf.mxu0
      %v6772 = vadd.f32 0.0, %v6771
      %6773 = vmatmul.bf16.gmra.mxu0 %v6694
      %v6774 = vpop.f32.mrf.mxu0
      %v6775 = vadd.f32 0.0, %v6774
      %v6776 = vpop.f32.mrf.mxu0
      %v6777 = vadd.f32 0.0, %v6776
      %6778 = vmatmul.bf16.gmra.mxu0 %v6697
      %v6779 = vpop.f32.mrf.mxu0
      %v6780 = vadd.f32 0.0, %v6779
      %v6781 = vpop.f32.mrf.mxu0
      %v6782 = vadd.f32 0.0, %v6781
      %6783 = vmatmul.bf16.gmra.mxu0 %v6700
      %v6784 = vpop.f32.mrf.mxu0
      %v6785 = vadd.f32 0.0, %v6784
      %v6786 = vpop.f32.mrf.mxu0
      %v6787 = vadd.f32 0.0, %v6786
      %6788 = vmatmul.bf16.gmra.mxu0 %v6703
      %v6789 = vpop.f32.mrf.mxu0
      %v6790 = vadd.f32 0.0, %v6789
      %v6791 = vpop.f32.mrf.mxu0
      %v6792 = vadd.f32 0.0, %v6791
      %6793 = vmatmul.bf16.gmra.mxu0 %v6706
      %v6794 = vpop.f32.mrf.mxu0
      %v6795 = vadd.f32 0.0, %v6794
      %v6796 = vpop.f32.mrf.mxu0
      %v6797 = vadd.f32 0.0, %v6796
      %6798 = vmatmul.bf16.gmra.mxu0 %v6709
      %v6799 = vpop.f32.mrf.mxu0
      %v6800 = vadd.f32 0.0, %v6799
      %v6801 = vpop.f32.mrf.mxu0
      %v6802 = vadd.f32 0.0, %v6801
      %6803 = vmatmul.bf16.gmra.mxu0 %v6712
      %v6804 = vpop.f32.mrf.mxu0
      %v6805 = vadd.f32 0.0, %v6804
      %v6806 = vpop.f32.mrf.mxu0
      %v6807 = vadd.f32 0.0, %v6806
      %6808 = vmatmul.bf16.gmra.mxu0 %v6715
      %v6809 = vpop.f32.mrf.mxu0
      %v6810 = vadd.f32 0.0, %v6809
      %v6811 = vpop.f32.mrf.mxu0
      %v6812 = vadd.f32 0.0, %v6811
      %6813 = vmatmul.bf16.gmra.mxu0 %v6718
      %v6814 = vpop.f32.mrf.mxu0
      %v6815 = vadd.f32 0.0, %v6814
      %v6816 = vpop.f32.mrf.mxu0
      %v6817 = vadd.f32 0.0, %v6816
      %6818 = vdwg.mxu0
      %v6819 = vadd.f32 %v6536, %v6730
      %v6820 = vadd.f32 %v6537, %v6732
      %v6821 = vadd.f32 %v6538, %v6735
      %v6822 = vadd.f32 %v6539, %v6737
      %v6823 = vadd.f32 %v6540, %v6740
      %v6824 = vadd.f32 %v6541, %v6742
      %v6825 = vadd.f32 %v6542, %v6745
      %v6826 = vadd.f32 %v6543, %v6747
      %v6827 = vadd.f32 %v6544, %v6750
      %v6828 = vadd.f32 %v6545, %v6752
      %v6829 = vadd.f32 %v6546, %v6755
      %v6830 = vadd.f32 %v6547, %v6757
      %v6831 = vadd.f32 %v6548, %v6760
      %v6832 = vadd.f32 %v6549, %v6762
      %v6833 = vadd.f32 %v6550, %v6765
      %v6834 = vadd.f32 %v6551, %v6767
      %v6835 = vadd.f32 %v6552, %v6770
      %v6836 = vadd.f32 %v6553, %v6772
      %v6837 = vadd.f32 %v6554, %v6775
      %v6838 = vadd.f32 %v6555, %v6777
      %v6839 = vadd.f32 %v6556, %v6780
      %v6840 = vadd.f32 %v6557, %v6782
      %v6841 = vadd.f32 %v6558, %v6785
      %v6842 = vadd.f32 %v6559, %v6787
      %v6843 = vadd.f32 %v6560, %v6790
      %v6844 = vadd.f32 %v6561, %v6792
      %v6845 = vadd.f32 %v6562, %v6795
      %v6846 = vadd.f32 %v6563, %v6797
      %v6847 = vadd.f32 %v6564, %v6800
      %v6848 = vadd.f32 %v6565, %v6802
      %v6849 = vadd.f32 %v6566, %v6805
      %v6850 = vadd.f32 %v6567, %v6807
      %v6851 = vadd.f32 %v6568, %v6810
      %v6852 = vadd.f32 %v6569, %v6812
      %v6853 = vadd.f32 %v6570, %v6815
      %v6854 = vadd.f32 %v6571, %v6817
      %s6855 = scalar_lea.vmem %s7, 64
      %v6856 = vld [vmem:[%s6855] sm:$0xf]
      %v6857 = vld [vmem:[%s6855 + $0x4] sm:$0xf]
      %vm6858 = vcmask 1044480
      %v6859 = vrot.slane %v3301, 3
      %v6860 = vrot.slane %v3302, 3
      %v6861 = vsel %vm6858, %v6859, %v6860
      %v6862 = vrot.slane %v3303, 3
      %v6863 = vsel %vm6858, %v6860, %v6862
      %v6864 = vrot.slane %v3304, 3
      %v6865 = vsel %vm6858, %v6862, %v6864
      %v6866 = vrot.slane %v3305, 3
      %v6867 = vsel %vm6858, %v6864, %v6866
      %v6868 = vrot.slane %v3306, 3
      %v6869 = vsel %vm6858, %v6866, %v6868
      %v6870 = vrot.slane %v3307, 3
      %v6871 = vsel %vm6858, %v6868, %v6870
      %v6872 = vrot.slane %v3308, 3
      %v6873 = vsel %vm6858, %v6870, %v6872
      %v6874 = vrot.slane %v3309, 3
      %v6875 = vsel %vm6858, %v6872, %v6874
      %v6876 = vrot.slane %v3310, 3
      %v6877 = vsel %vm6858, %v6874, %v6876
      %v6878 = vrot.slane %v3311, 3
      %v6879 = vsel %vm6858, %v6876, %v6878
      %v6880 = vrot.slane %v3312, 3
      %v6881 = vsel %vm6858, %v6878, %v6880
      %v6882 = vrot.slane %v3313, 3
      %v6883 = vsel %vm6858, %v6880, %v6882
      %v6884 = vrot.slane %v3314, 3
      %v6885 = vsel %vm6858, %v6882, %v6884
      %v6886 = vrot.slane %v3315, 3
      %v6887 = vsel %vm6858, %v6884, %v6886
      %v6888 = vrot.slane %v3316, 3
      %v6889 = vsel %vm6858, %v6886, %v6888
      %v6890 = vrot.slane %v4617, 3
      %v6891 = vsel %vm6858, %v6888, %v6890
      %v6892 = vrot.slane %v5975, 3
      %v6893 = vsel %vm6858, %v6890, %v6892
      %v6894 = vrot.slane %v5976, 3
      %v6895 = vsel %vm6858, %v6892, %v6894
      %v6898 = vunpack.c.l.b16 %v6856
      %v6899 = vunpack.c.l.b16 %v6857
      %v6900 = vpack.c.b16 %v6899, %v6898
      %v6903 = vsel %vm3073, %v6861, 0
      %v6906 = vsel %vm3073, %v6863, 0
      %v6909 = vsel %vm3073, %v6865, 0
      %v6912 = vsel %vm3073, %v6867, 0
      %v6915 = vsel %vm3073, %v6869, 0
      %v6918 = vsel %vm3073, %v6871, 0
      %v6921 = vsel %vm3073, %v6873, 0
      %v6924 = vsel %vm3073, %v6875, 0
      %v6927 = vsel %vm3073, %v6877, 0
      %v6930 = vsel %vm3073, %v6879, 0
      %v6933 = vsel %vm3073, %v6881, 0
      %v6936 = vsel %vm3073, %v6883, 0
      %v6939 = vsel %vm3073, %v6885, 0
      %v6942 = vsel %vm3073, %v6887, 0
      %v6945 = vsel %vm3073, %v6889, 0
      %v6948 = vsel %vm3073, %v6891, 0
      %v6951 = vsel %vm3073, %v6893, 0
      %v6954 = vsel %vm3073, %v6895, 0
      %6956 = vmatpush.bf16.msra.mxu0 0
      %6957 = vmatpush.bf16.msra.mxu0 0
      %6958 = vmatpush.bf16.msra.mxu0 0
      %6959 = vmatpush.bf16.msra.mxu0 0
      %6960 = vmatpush.bf16.msra.mxu0 0
      %6961 = vmatpush.bf16.msra.mxu0 0
      %6962 = vmatpush.bf16.msra.mxu0 0
      %6963 = vmatpush.bf16.msra.mxu0 %v6900
      %6964 = vmatmul.bf16.gmra.mxu0 %v6903
      %v6965 = vpop.f32.mrf.mxu0
      %v6966 = vadd.f32 0.0, %v6965
      %v6967 = vpop.f32.mrf.mxu0
      %v6968 = vadd.f32 0.0, %v6967
      %6969 = vmatmul.bf16.gmra.mxu0 %v6906
      %v6970 = vpop.f32.mrf.mxu0
      %v6971 = vadd.f32 0.0, %v6970
      %v6972 = vpop.f32.mrf.mxu0
      %v6973 = vadd.f32 0.0, %v6972
      %6974 = vmatmul.bf16.gmra.mxu0 %v6909
      %v6975 = vpop.f32.mrf.mxu0
      %v6976 = vadd.f32 0.0, %v6975
      %v6977 = vpop.f32.mrf.mxu0
      %v6978 = vadd.f32 0.0, %v6977
      %6979 = vmatmul.bf16.gmra.mxu0 %v6912
      %v6980 = vpop.f32.mrf.mxu0
      %v6981 = vadd.f32 0.0, %v6980
      %v6982 = vpop.f32.mrf.mxu0
      %v6983 = vadd.f32 0.0, %v6982
      %6984 = vmatmul.bf16.gmra.mxu0 %v6915
      %v6985 = vpop.f32.mrf.mxu0
      %v6986 = vadd.f32 0.0, %v6985
      %v6987 = vpop.f32.mrf.mxu0
      %v6988 = vadd.f32 0.0, %v6987
      %6989 = vmatmul.bf16.gmra.mxu0 %v6918
      %v6990 = vpop.f32.mrf.mxu0
      %v6991 = vadd.f32 0.0, %v6990
      %v6992 = vpop.f32.mrf.mxu0
      %v6993 = vadd.f32 0.0, %v6992
      %6994 = vmatmul.bf16.gmra.mxu0 %v6921
      %v6995 = vpop.f32.mrf.mxu0
      %v6996 = vadd.f32 0.0, %v6995
      %v6997 = vpop.f32.mrf.mxu0
      %v6998 = vadd.f32 0.0, %v6997
      %6999 = vmatmul.bf16.gmra.mxu0 %v6924
      %v7000 = vpop.f32.mrf.mxu0
      %v7001 = vadd.f32 0.0, %v7000
      %v7002 = vpop.f32.mrf.mxu0
      %v7003 = vadd.f32 0.0, %v7002
      %7004 = vmatmul.bf16.gmra.mxu0 %v6927
      %v7005 = vpop.f32.mrf.mxu0
      %v7006 = vadd.f32 0.0, %v7005
      %v7007 = vpop.f32.mrf.mxu0
      %v7008 = vadd.f32 0.0, %v7007
      %7009 = vmatmul.bf16.gmra.mxu0 %v6930
      %v7010 = vpop.f32.mrf.mxu0
      %v7011 = vadd.f32 0.0, %v7010
      %v7012 = vpop.f32.mrf.mxu0
      %v7013 = vadd.f32 0.0, %v7012
      %7014 = vmatmul.bf16.gmra.mxu0 %v6933
      %v7015 = vpop.f32.mrf.mxu0
      %v7016 = vadd.f32 0.0, %v7015
      %v7017 = vpop.f32.mrf.mxu0
      %v7018 = vadd.f32 0.0, %v7017
      %7019 = vmatmul.bf16.gmra.mxu0 %v6936
      %v7020 = vpop.f32.mrf.mxu0
      %v7021 = vadd.f32 0.0, %v7020
      %v7022 = vpop.f32.mrf.mxu0
      %v7023 = vadd.f32 0.0, %v7022
      %7024 = vmatmul.bf16.gmra.mxu0 %v6939
      %v7025 = vpop.f32.mrf.mxu0
      %v7026 = vadd.f32 0.0, %v7025
      %v7027 = vpop.f32.mrf.mxu0
      %v7028 = vadd.f32 0.0, %v7027
      %7029 = vmatmul.bf16.gmra.mxu0 %v6942
      %v7030 = vpop.f32.mrf.mxu0
      %v7031 = vadd.f32 0.0, %v7030
      %v7032 = vpop.f32.mrf.mxu0
      %v7033 = vadd.f32 0.0, %v7032
      %7034 = vmatmul.bf16.gmra.mxu0 %v6945
      %v7035 = vpop.f32.mrf.mxu0
      %v7036 = vadd.f32 0.0, %v7035
      %v7037 = vpop.f32.mrf.mxu0
      %v7038 = vadd.f32 0.0, %v7037
      %7039 = vmatmul.bf16.gmra.mxu0 %v6948
      %v7040 = vpop.f32.mrf.mxu0
      %v7041 = vadd.f32 0.0, %v7040
      %v7042 = vpop.f32.mrf.mxu0
      %v7043 = vadd.f32 0.0, %v7042
      %7044 = vmatmul.bf16.gmra.mxu0 %v6951
      %v7045 = vpop.f32.mrf.mxu0
      %v7046 = vadd.f32 0.0, %v7045
      %v7047 = vpop.f32.mrf.mxu0
      %v7048 = vadd.f32 0.0, %v7047
      %7049 = vmatmul.bf16.gmra.mxu0 %v6954
      %v7050 = vpop.f32.mrf.mxu0
      %v7051 = vadd.f32 0.0, %v7050
      %v7052 = vpop.f32.mrf.mxu0
      %v7053 = vadd.f32 0.0, %v7052
      %7054 = vdwg.mxu0
      %v7055 = vadd.f32 %v6819, %v6966
      %v7056 = vadd.f32 %v6820, %v6968
      %v7057 = vadd.f32 %v6821, %v6971
      %v7058 = vadd.f32 %v6822, %v6973
      %v7059 = vadd.f32 %v6823, %v6976
      %v7060 = vadd.f32 %v6824, %v6978
      %v7061 = vadd.f32 %v6825, %v6981
      %v7062 = vadd.f32 %v6826, %v6983
      %v7063 = vadd.f32 %v6827, %v6986
      %v7064 = vadd.f32 %v6828, %v6988
      %v7065 = vadd.f32 %v6829, %v6991
      %v7066 = vadd.f32 %v6830, %v6993
      %v7067 = vadd.f32 %v6831, %v6996
      %v7068 = vadd.f32 %v6832, %v6998
      %v7069 = vadd.f32 %v6833, %v7001
      %v7070 = vadd.f32 %v6834, %v7003
      %v7071 = vadd.f32 %v6835, %v7006
      %v7072 = vadd.f32 %v6836, %v7008
      %v7073 = vadd.f32 %v6837, %v7011
      %v7074 = vadd.f32 %v6838, %v7013
      %v7075 = vadd.f32 %v6839, %v7016
      %v7076 = vadd.f32 %v6840, %v7018
      %v7077 = vadd.f32 %v6841, %v7021
      %v7078 = vadd.f32 %v6842, %v7023
      %v7079 = vadd.f32 %v6843, %v7026
      %v7080 = vadd.f32 %v6844, %v7028
      %v7081 = vadd.f32 %v6845, %v7031
      %v7082 = vadd.f32 %v6846, %v7033
      %v7083 = vadd.f32 %v6847, %v7036
      %v7084 = vadd.f32 %v6848, %v7038
      %v7085 = vadd.f32 %v6849, %v7041
      %v7086 = vadd.f32 %v6850, %v7043
      %v7087 = vadd.f32 %v6851, %v7046
      %v7088 = vadd.f32 %v6852, %v7048
      %v7089 = vadd.f32 %v6853, %v7051
      %v7090 = vadd.f32 %v6854, %v7053
      %s7091 = scalar_lea.vmem %s8, 64
      %v7092 = vld [vmem:[%s7091] sm:$0xf]
      %v7093 = vld [vmem:[%s7091 + $0x4] sm:$0xf]
      %v7094 = vrot.slane %v3051, 3
      %v7095 = vrot.slane %v3052, 3
      %v7096 = vsel %vm6858, %v7094, %v7095
      %v7097 = vrot.slane %v3053, 3
      %v7098 = vsel %vm6858, %v7095, %v7097
      %v7099 = vrot.slane %v3054, 3
      %v7100 = vsel %vm6858, %v7097, %v7099
      %v7101 = vrot.slane %v3055, 3
      %v7102 = vsel %vm6858, %v7099, %v7101
      %v7103 = vrot.slane %v3056, 3
      %v7104 = vsel %vm6858, %v7101, %v7103
      %v7105 = vrot.slane %v3057, 3
      %v7106 = vsel %vm6858, %v7103, %v7105
      %v7107 = vrot.slane %v3058, 3
      %v7108 = vsel %vm6858, %v7105, %v7107
      %v7109 = vrot.slane %v3059, 3
      %v7110 = vsel %vm6858, %v7107, %v7109
      %v7111 = vrot.slane %v3060, 3
      %v7112 = vsel %vm6858, %v7109, %v7111
      %v7113 = vrot.slane %v3061, 3
      %v7114 = vsel %vm6858, %v7111, %v7113
      %v7115 = vrot.slane %v3062, 3
      %v7116 = vsel %vm6858, %v7113, %v7115
      %v7117 = vrot.slane %v3063, 3
      %v7118 = vsel %vm6858, %v7115, %v7117
      %v7119 = vrot.slane %v3064, 3
      %v7120 = vsel %vm6858, %v7117, %v7119
      %v7121 = vrot.slane %v3065, 3
      %v7122 = vsel %vm6858, %v7119, %v7121
      %v7123 = vrot.slane %v3066, 3
      %v7124 = vsel %vm6858, %v7121, %v7123
      %v7125 = vrot.slane %v4777, 3
      %v7126 = vsel %vm6858, %v7123, %v7125
      %v7127 = vrot.slane %v6135, 3
      %v7128 = vsel %vm6858, %v7125, %v7127
      %v7129 = vrot.slane %v6136, 3
      %v7130 = vsel %vm6858, %v7127, %v7129
      %v7133 = vunpack.c.l.b16 %v7092
      %v7134 = vunpack.c.l.b16 %v7093
      %v7135 = vpack.c.b16 %v7134, %v7133
      %v7138 = vsel %vm3073, %v7096, 0
      %v7141 = vsel %vm3073, %v7098, 0
      %v7144 = vsel %vm3073, %v7100, 0
      %v7147 = vsel %vm3073, %v7102, 0
      %v7150 = vsel %vm3073, %v7104, 0
      %v7153 = vsel %vm3073, %v7106, 0
      %v7156 = vsel %vm3073, %v7108, 0
      %v7159 = vsel %vm3073, %v7110, 0
      %v7162 = vsel %vm3073, %v7112, 0
      %v7165 = vsel %vm3073, %v7114, 0
      %v7168 = vsel %vm3073, %v7116, 0
      %v7171 = vsel %vm3073, %v7118, 0
      %v7174 = vsel %vm3073, %v7120, 0
      %v7177 = vsel %vm3073, %v7122, 0
      %v7180 = vsel %vm3073, %v7124, 0
      %v7183 = vsel %vm3073, %v7126, 0
      %v7186 = vsel %vm3073, %v7128, 0
      %v7189 = vsel %vm3073, %v7130, 0
      %7191 = vmatpush.bf16.msra.mxu0 0
      %7192 = vmatpush.bf16.msra.mxu0 0
      %7193 = vmatpush.bf16.msra.mxu0 0
      %7194 = vmatpush.bf16.msra.mxu0 0
      %7195 = vmatpush.bf16.msra.mxu0 0
      %7196 = vmatpush.bf16.msra.mxu0 0
      %7197 = vmatpush.bf16.msra.mxu0 0
      %7198 = vmatpush.bf16.msra.mxu0 %v7135
      %7199 = vmatmul.bf16.gmra.mxu0 %v7138
      %v7200 = vpop.f32.mrf.mxu0
      %v7201 = vadd.f32 0.0, %v7200
      %v7202 = vpop.f32.mrf.mxu0
      %v7203 = vadd.f32 0.0, %v7202
      %7204 = vmatmul.bf16.gmra.mxu0 %v7141
      %v7205 = vpop.f32.mrf.mxu0
      %v7206 = vadd.f32 0.0, %v7205
      %v7207 = vpop.f32.mrf.mxu0
      %v7208 = vadd.f32 0.0, %v7207
      %7209 = vmatmul.bf16.gmra.mxu0 %v7144
      %v7210 = vpop.f32.mrf.mxu0
      %v7211 = vadd.f32 0.0, %v7210
      %v7212 = vpop.f32.mrf.mxu0
      %v7213 = vadd.f32 0.0, %v7212
      %7214 = vmatmul.bf16.gmra.mxu0 %v7147
      %v7215 = vpop.f32.mrf.mxu0
      %v7216 = vadd.f32 0.0, %v7215
      %v7217 = vpop.f32.mrf.mxu0
      %v7218 = vadd.f32 0.0, %v7217
      %7219 = vmatmul.bf16.gmra.mxu0 %v7150
      %v7220 = vpop.f32.mrf.mxu0
      %v7221 = vadd.f32 0.0, %v7220
      %v7222 = vpop.f32.mrf.mxu0
      %v7223 = vadd.f32 0.0, %v7222
      %7224 = vmatmul.bf16.gmra.mxu0 %v7153
      %v7225 = vpop.f32.mrf.mxu0
      %v7226 = vadd.f32 0.0, %v7225
      %v7227 = vpop.f32.mrf.mxu0
      %v7228 = vadd.f32 0.0, %v7227
      %7229 = vmatmul.bf16.gmra.mxu0 %v7156
      %v7230 = vpop.f32.mrf.mxu0
      %v7231 = vadd.f32 0.0, %v7230
      %v7232 = vpop.f32.mrf.mxu0
      %v7233 = vadd.f32 0.0, %v7232
      %7234 = vmatmul.bf16.gmra.mxu0 %v7159
      %v7235 = vpop.f32.mrf.mxu0
      %v7236 = vadd.f32 0.0, %v7235
      %v7237 = vpop.f32.mrf.mxu0
      %v7238 = vadd.f32 0.0, %v7237
      %7239 = vmatmul.bf16.gmra.mxu0 %v7162
      %v7240 = vpop.f32.mrf.mxu0
      %v7241 = vadd.f32 0.0, %v7240
      %v7242 = vpop.f32.mrf.mxu0
      %v7243 = vadd.f32 0.0, %v7242
      %7244 = vmatmul.bf16.gmra.mxu0 %v7165
      %v7245 = vpop.f32.mrf.mxu0
      %v7246 = vadd.f32 0.0, %v7245
      %v7247 = vpop.f32.mrf.mxu0
      %v7248 = vadd.f32 0.0, %v7247
      %7249 = vmatmul.bf16.gmra.mxu0 %v7168
      %v7250 = vpop.f32.mrf.mxu0
      %v7251 = vadd.f32 0.0, %v7250
      %v7252 = vpop.f32.mrf.mxu0
      %v7253 = vadd.f32 0.0, %v7252
      %7254 = vmatmul.bf16.gmra.mxu0 %v7171
      %v7255 = vpop.f32.mrf.mxu0
      %v7256 = vadd.f32 0.0, %v7255
      %v7257 = vpop.f32.mrf.mxu0
      %v7258 = vadd.f32 0.0, %v7257
      %7259 = vmatmul.bf16.gmra.mxu0 %v7174
      %v7260 = vpop.f32.mrf.mxu0
      %v7261 = vadd.f32 0.0, %v7260
      %v7262 = vpop.f32.mrf.mxu0
      %v7263 = vadd.f32 0.0, %v7262
      %7264 = vmatmul.bf16.gmra.mxu0 %v7177
      %v7265 = vpop.f32.mrf.mxu0
      %v7266 = vadd.f32 0.0, %v7265
      %v7267 = vpop.f32.mrf.mxu0
      %v7268 = vadd.f32 0.0, %v7267
      %7269 = vmatmul.bf16.gmra.mxu0 %v7180
      %v7270 = vpop.f32.mrf.mxu0
      %v7271 = vadd.f32 0.0, %v7270
      %v7272 = vpop.f32.mrf.mxu0
      %v7273 = vadd.f32 0.0, %v7272
      %7274 = vmatmul.bf16.gmra.mxu0 %v7183
      %v7275 = vpop.f32.mrf.mxu0
      %v7276 = vadd.f32 0.0, %v7275
      %v7277 = vpop.f32.mrf.mxu0
      %v7278 = vadd.f32 0.0, %v7277
      %7279 = vmatmul.bf16.gmra.mxu0 %v7186
      %v7280 = vpop.f32.mrf.mxu0
      %v7281 = vadd.f32 0.0, %v7280
      %v7282 = vpop.f32.mrf.mxu0
      %v7283 = vadd.f32 0.0, %v7282
      %7284 = vmatmul.bf16.gmra.mxu0 %v7189
      %v7285 = vpop.f32.mrf.mxu0
      %v7286 = vadd.f32 0.0, %v7285
      %v7287 = vpop.f32.mrf.mxu0
      %v7288 = vadd.f32 0.0, %v7287
      %7289 = vdwg.mxu0
      %v7290 = vadd.f32 %v7055, %v7201
      %v7291 = vadd.f32 %v7056, %v7203
      %v7292 = vadd.f32 %v7057, %v7206
      %v7293 = vadd.f32 %v7058, %v7208
      %v7294 = vadd.f32 %v7059, %v7211
      %v7295 = vadd.f32 %v7060, %v7213
      %v7296 = vadd.f32 %v7061, %v7216
      %v7297 = vadd.f32 %v7062, %v7218
      %v7298 = vadd.f32 %v7063, %v7221
      %v7299 = vadd.f32 %v7064, %v7223
      %v7300 = vadd.f32 %v7065, %v7226
      %v7301 = vadd.f32 %v7066, %v7228
      %v7302 = vadd.f32 %v7067, %v7231
      %v7303 = vadd.f32 %v7068, %v7233
      %v7304 = vadd.f32 %v7069, %v7236
      %v7305 = vadd.f32 %v7070, %v7238
      %v7306 = vadd.f32 %v7071, %v7241
      %v7307 = vadd.f32 %v7072, %v7243
      %v7308 = vadd.f32 %v7073, %v7246
      %v7309 = vadd.f32 %v7074, %v7248
      %v7310 = vadd.f32 %v7075, %v7251
      %v7311 = vadd.f32 %v7076, %v7253
      %v7312 = vadd.f32 %v7077, %v7256
      %v7313 = vadd.f32 %v7078, %v7258
      %v7314 = vadd.f32 %v7079, %v7261
      %v7315 = vadd.f32 %v7080, %v7263
      %v7316 = vadd.f32 %v7081, %v7266
      %v7317 = vadd.f32 %v7082, %v7268
      %v7318 = vadd.f32 %v7083, %v7271
      %v7319 = vadd.f32 %v7084, %v7273
      %v7320 = vadd.f32 %v7085, %v7276
      %v7321 = vadd.f32 %v7086, %v7278
      %v7322 = vadd.f32 %v7087, %v7281
      %v7323 = vadd.f32 %v7088, %v7283
      %v7324 = vadd.f32 %v7089, %v7286
      %v7325 = vadd.f32 %v7090, %v7288
      %v7326 = vld [vmem:[%s9] sm:$0x1]
      %v7328 = vperm.slane %v7326, 0
      %v7330 = vadd.f32 %v7290, %v7328
      %v7331 = vadd.f32 %v7291, %v7328
      %v7332 = vadd.f32 %v7292, %v7328
      %v7333 = vadd.f32 %v7293, %v7328
      %v7334 = vadd.f32 %v7294, %v7328
      %v7335 = vadd.f32 %v7295, %v7328
      %v7336 = vadd.f32 %v7296, %v7328
      %v7337 = vadd.f32 %v7297, %v7328
      %v7338 = vadd.f32 %v7298, %v7328
      %v7339 = vadd.f32 %v7299, %v7328
      %v7340 = vadd.f32 %v7300, %v7328
      %v7341 = vadd.f32 %v7301, %v7328
      %v7342 = vadd.f32 %v7302, %v7328
      %v7343 = vadd.f32 %v7303, %v7328
      %v7344 = vadd.f32 %v7304, %v7328
      %v7345 = vadd.f32 %v7305, %v7328
      %v7346 = vadd.f32 %v7306, %v7328
      %v7347 = vadd.f32 %v7307, %v7328
      %v7348 = vadd.f32 %v7308, %v7328
      %v7349 = vadd.f32 %v7309, %v7328
      %v7350 = vadd.f32 %v7310, %v7328
      %v7351 = vadd.f32 %v7311, %v7328
      %v7352 = vadd.f32 %v7312, %v7328
      %v7353 = vadd.f32 %v7313, %v7328
      %v7354 = vadd.f32 %v7314, %v7328
      %v7355 = vadd.f32 %v7315, %v7328
      %v7356 = vadd.f32 %v7316, %v7328
      %v7357 = vadd.f32 %v7317, %v7328
      %v7358 = vadd.f32 %v7318, %v7328
      %v7359 = vadd.f32 %v7319, %v7328
      %v7360 = vadd.f32 %v7320, %v7328
      %v7361 = vadd.f32 %v7321, %v7328
      %v7362 = vadd.f32 %v7322, %v7328
      %v7363 = vadd.f32 %v7323, %v7328
      %v7364 = vadd.f32 %v7324, %v7328
      %v7365 = vadd.f32 %v7325, %v7328
      %v7366 = vmax.f32 %v7330, 0.0
      %v7367 = vmax.f32 %v7331, 0.0
      %v7368 = vmax.f32 %v7332, 0.0
      %v7369 = vmax.f32 %v7333, 0.0
      %v7370 = vmax.f32 %v7334, 0.0
      %v7371 = vmax.f32 %v7335, 0.0
      %v7372 = vmax.f32 %v7336, 0.0
      %v7373 = vmax.f32 %v7337, 0.0
      %v7374 = vmax.f32 %v7338, 0.0
      %v7375 = vmax.f32 %v7339, 0.0
      %v7376 = vmax.f32 %v7340, 0.0
      %v7377 = vmax.f32 %v7341, 0.0
      %v7378 = vmax.f32 %v7342, 0.0
      %v7379 = vmax.f32 %v7343, 0.0
      %v7380 = vmax.f32 %v7344, 0.0
      %v7381 = vmax.f32 %v7345, 0.0
      %v7382 = vmax.f32 %v7346, 0.0
      %v7383 = vmax.f32 %v7347, 0.0
      %v7384 = vmax.f32 %v7348, 0.0
      %v7385 = vmax.f32 %v7349, 0.0
      %v7386 = vmax.f32 %v7350, 0.0
      %v7387 = vmax.f32 %v7351, 0.0
      %v7388 = vmax.f32 %v7352, 0.0
      %v7389 = vmax.f32 %v7353, 0.0
      %v7390 = vmax.f32 %v7354, 0.0
      %v7391 = vmax.f32 %v7355, 0.0
      %v7392 = vmax.f32 %v7356, 0.0
      %v7393 = vmax.f32 %v7357, 0.0
      %v7394 = vmax.f32 %v7358, 0.0
      %v7395 = vmax.f32 %v7359, 0.0
      %v7396 = vmax.f32 %v7360, 0.0
      %v7397 = vmax.f32 %v7361, 0.0
      %v7398 = vmax.f32 %v7362, 0.0
      %v7399 = vmax.f32 %v7363, 0.0
      %v7400 = vmax.f32 %v7364, 0.0
      %v7401 = vmax.f32 %v7365, 0.0
      %vm7402 = vcmask 125952
      %7403 = vst.msk [vmem:[#allocation2] sm:$0xf] %vm7402, 0
      %7404 = vst.msk [vmem:[#allocation2 + $0x4] sm:$0xf] %vm7402, 0
      %7405 = vst.msk [vmem:[#allocation2 + $0x8] sm:$0xf] %vm7402, 0
      %7406 = vst.msk [vmem:[#allocation2 + $0xc] sm:$0xf] %vm7402, 0
      %7407 = vst.msk [vmem:[#allocation2 + $0x10] sm:$0xf] %vm7402, 0
      %7408 = vst.msk [vmem:[#allocation2 + $0x14] sm:$0xf] %vm7402, 0
      %7409 = vst.msk [vmem:[#allocation2 + $0x18] sm:$0xf] %vm7402, 0
      %7410 = vst.msk [vmem:[#allocation2 + $0x1c] sm:$0xf] %vm7402, 0
      %7411 = vst.msk [vmem:[#allocation2 + $0x20] sm:$0xf] %vm7402, 0
      %7412 = vst.msk [vmem:[#allocation2 + $0x24] sm:$0xf] %vm7402, 0
      %7413 = vst.msk [vmem:[#allocation2 + $0x28] sm:$0xf] %vm7402, 0
      %7414 = vst.msk [vmem:[#allocation2 + $0x2c] sm:$0xf] %vm7402, 0
      %7415 = vst.msk [vmem:[#allocation2 + $0x30] sm:$0xf] %vm7402, 0
      %7416 = vst.msk [vmem:[#allocation2 + $0x34] sm:$0xf] %vm7402, 0
      %7417 = vst.msk [vmem:[#allocation2 + $0x38] sm:$0xf] %vm7402, 0
      %7418 = vst.msk [vmem:[#allocation2 + $0x3c] sm:$0xf] %vm7402, 0
      %7419 = vst.msk [vmem:[#allocation2 + $0x40] sm:$0xf] %vm7402, 0
      %7420 = vst.msk [vmem:[#allocation2 + $0x44] sm:$0xf] %vm7402, 0
      %7421 = vst.msk [vmem:[#allocation2 + $0x48] sm:$0xf] %vm7402, 0
      %7422 = vst.msk [vmem:[#allocation2 + $0x4c] sm:$0xf] %vm7402, 0
      %7423 = vst.msk [vmem:[#allocation2 + $0x50] sm:$0xf] %vm7402, 0
      %7424 = vst.msk [vmem:[#allocation2 + $0x54] sm:$0xf] %vm7402, 0
      %7425 = vst.msk [vmem:[#allocation2 + $0x58] sm:$0xf] %vm7402, 0
      %7426 = vst.msk [vmem:[#allocation2 + $0x5c] sm:$0xf] %vm7402, 0
      %7427 = vst.msk [vmem:[#allocation2 + $0x60] sm:$0xf] %vm7402, 0
      %7428 = vst.msk [vmem:[#allocation2 + $0x64] sm:$0xf] %vm7402, 0
      %7429 = vst.msk [vmem:[#allocation2 + $0x68] sm:$0xf] %vm7402, 0
      %7430 = vst.msk [vmem:[#allocation2 + $0x6c] sm:$0xf] %vm7402, 0
      %7431 = vst.msk [vmem:[#allocation2 + $0x70] sm:$0xf] %vm7402, 0
      %7432 = vst.msk [vmem:[#allocation2 + $0x74] sm:$0xf] %vm7402, 0
      %7433 = vst.msk [vmem:[#allocation2 + $0x78] sm:$0xf] %vm7402, 0
      %7434 = vst.msk [vmem:[#allocation2 + $0x7c] sm:$0xf] %vm7402, 0
      %7435 = vst.msk [vmem:[#allocation2 + $0x80] sm:$0xf] %vm7402, 0
      %7436 = vst.msk [vmem:[#allocation2 + $0x84] sm:$0xf] %vm7402, 0
      %7437 = vst.msk [vmem:[#allocation2 + $0x88] sm:$0xf] %vm7402, 0
      %7438 = vst.msk [vmem:[#allocation2 + $0x8c] sm:$0xf] %vm7402, 0
      %7439 = vst.msk [vmem:[#allocation2 + $0x90] sm:$0xf] %vm7402, 0
      %7440 = vst.msk [vmem:[#allocation2 + $0x94] sm:$0xf] %vm7402, 0
      %7441 = vst.msk [vmem:[#allocation2 + $0x98] sm:$0xf] %vm7402, 0
      %7442 = vst.msk [vmem:[#allocation2 + $0x9c] sm:$0xf] %vm7402, 0
      %7443 = vst.msk [vmem:[#allocation2 + $0xa0] sm:$0xf] %vm7402, 0
      %7444 = vst.msk [vmem:[#allocation2 + $0xa4] sm:$0xf] %vm7402, 0
      %7445 = vst.msk [vmem:[#allocation2 + $0xa8] sm:$0xf] %vm7402, 0
      %7446 = vst.msk [vmem:[#allocation2 + $0xac] sm:$0xf] %vm7402, 0
      %7447 = vst.msk [vmem:[#allocation2 + $0xb0] sm:$0xf] %vm7402, 0
      %vm7448 = vcmask 1044480
      %v7449 = vrot.slane %v2699, 3
      %v7450 = vrot.slane %v2704, 3
      %v7451 = vsel %vm7448, %v7449, %v7450
      %v7452 = vrot.slane %v2709, 3
      %v7453 = vsel %vm7448, %v7450, %v7452
      %v7454 = vrot.slane %v2714, 3
      %v7455 = vsel %vm7448, %v7452, %v7454
      %v7456 = vrot.slane %v2719, 3
      %v7457 = vsel %vm7448, %v7454, %v7456
      %v7458 = vrot.slane %v2724, 3
      %v7459 = vsel %vm7448, %v7456, %v7458
      %v7460 = vrot.slane %v2729, 3
      %v7461 = vsel %vm7448, %v7458, %v7460
      %v7462 = vrot.slane %v2734, 3
      %v7463 = vsel %vm7448, %v7460, %v7462
      %v7464 = vrot.slane %v2739, 3
      %v7465 = vsel %vm7448, %v7462, %v7464
      %v7466 = vrot.slane %v2744, 3
      %v7467 = vsel %vm7448, %v7464, %v7466
      %v7468 = vrot.slane %v2749, 3
      %v7469 = vsel %vm7448, %v7466, %v7468
      %v7470 = vrot.slane %v2754, 3
      %v7471 = vsel %vm7448, %v7468, %v7470
      %v7472 = vrot.slane %v2759, 3
      %v7473 = vsel %vm7448, %v7470, %v7472
      %v7474 = vrot.slane %v2764, 3
      %v7475 = vsel %vm7448, %v7472, %v7474
      %v7476 = vrot.slane %v2769, 3
      %v7477 = vsel %vm7448, %v7474, %v7476
      %v7478 = vrot.slane %v2774, 3
      %v7479 = vsel %vm7448, %v7476, %v7478
      %v7480 = vrot.slane %v2779, 3
      %v7481 = vsel %vm7448, %v7478, %v7480
      %v7482 = vrot.slane %v2784, 3
      %v7483 = vsel %vm7448, %v7480, %v7482
      %v7484 = vrot.slane %v2789, 3
      %v7485 = vsel %vm7448, %v7482, %v7484
      %v7486 = vrot.slane %v2794, 3
      %v7487 = vsel %vm7448, %v7484, %v7486
      %v7488 = vrot.slane %v2799, 3
      %v7489 = vsel %vm7448, %v7486, %v7488
      %v7490 = vrot.slane %v2804, 3
      %v7491 = vsel %vm7448, %v7488, %v7490
      %v7492 = vrot.slane %v2809, 3
      %v7493 = vsel %vm7448, %v7490, %v7492
      %v7494 = vrot.slane %v2814, 3
      %v7495 = vsel %vm7448, %v7492, %v7494
      %v7496 = vrot.slane %v2819, 3
      %v7497 = vsel %vm7448, %v7494, %v7496
      %v7498 = vrot.slane %v2824, 3
      %v7499 = vsel %vm7448, %v7496, %v7498
      %v7500 = vrot.slane %v2829, 3
      %v7501 = vsel %vm7448, %v7498, %v7500
      %v7502 = vrot.slane %v2834, 3
      %v7503 = vsel %vm7448, %v7500, %v7502
      %v7504 = vrot.slane %v2839, 3
      %v7505 = vsel %vm7448, %v7502, %v7504
      %v7506 = vrot.slane %v2844, 3
      %v7507 = vsel %vm7448, %v7504, %v7506
      %v7508 = vrot.slane %v2849, 3
      %v7509 = vsel %vm7448, %v7506, %v7508
      %v7510 = vrot.slane %v2854, 3
      %v7511 = vsel %vm7448, %v7508, %v7510
      %v7512 = vrot.slane %v2859, 3
      %v7513 = vsel %vm7448, %v7510, %v7512
      %v7514 = vrot.slane %v2864, 3
      %v7515 = vsel %vm7448, %v7512, %v7514
      %v7516 = vrot.slane %v2869, 3
      %v7517 = vsel %vm7448, %v7514, %v7516
      %v7518 = vrot.slane %v2874, 3
      %v7519 = vsel %vm7448, %v7516, %v7518
      %v7520 = vrot.slane %v2879, 3
      %v7521 = vsel %vm7448, %v7518, %v7520
      %v7558 = vmul.f32 %v7366, %v7451
      %v7559 = vmul.f32 %v7367, %v7453
      %v7560 = vmul.f32 %v7368, %v7455
      %v7561 = vmul.f32 %v7369, %v7457
      %v7562 = vmul.f32 %v7370, %v7459
      %v7563 = vmul.f32 %v7371, %v7461
      %v7564 = vmul.f32 %v7372, %v7463
      %v7565 = vmul.f32 %v7373, %v7465
      %v7566 = vmul.f32 %v7374, %v7467
      %v7567 = vmul.f32 %v7375, %v7469
      %v7568 = vmul.f32 %v7376, %v7471
      %v7569 = vmul.f32 %v7377, %v7473
      %v7570 = vmul.f32 %v7378, %v7475
      %v7571 = vmul.f32 %v7379, %v7477
      %v7572 = vmul.f32 %v7380, %v7479
      %v7573 = vmul.f32 %v7381, %v7481
      %v7574 = vmul.f32 %v7382, %v7483
      %v7575 = vmul.f32 %v7383, %v7485
      %v7576 = vmul.f32 %v7384, %v7487
      %v7577 = vmul.f32 %v7385, %v7489
      %v7578 = vmul.f32 %v7386, %v7491
      %v7579 = vmul.f32 %v7387, %v7493
      %v7580 = vmul.f32 %v7388, %v7495
      %v7581 = vmul.f32 %v7389, %v7497
      %v7582 = vmul.f32 %v7390, %v7499
      %v7583 = vmul.f32 %v7391, %v7501
      %v7584 = vmul.f32 %v7392, %v7503
      %v7585 = vmul.f32 %v7393, %v7505
      %v7586 = vmul.f32 %v7394, %v7507
      %v7587 = vmul.f32 %v7395, %v7509
      %v7588 = vmul.f32 %v7396, %v7511
      %v7589 = vmul.f32 %v7397, %v7513
      %v7590 = vmul.f32 %v7398, %v7515
      %v7591 = vmul.f32 %v7399, %v7517
      %v7592 = vmul.f32 %v7400, %v7519
      %v7593 = vmul.f32 %v7401, %v7521
      %v7594 = vpack.c.bf16 %v7558, %v7558
      %v7595 = vpack.c.bf16 %v7559, %v7559
      %v7596 = vpack.c.bf16 %v7560, %v7560
      %v7597 = vpack.c.bf16 %v7561, %v7561
      %v7598 = vpack.c.bf16 %v7562, %v7562
      %v7599 = vpack.c.bf16 %v7563, %v7563
      %v7600 = vpack.c.bf16 %v7564, %v7564
      %v7601 = vpack.c.bf16 %v7565, %v7565
      %v7602 = vpack.c.bf16 %v7566, %v7566
      %v7603 = vpack.c.bf16 %v7567, %v7567
      %v7604 = vpack.c.bf16 %v7568, %v7568
      %v7605 = vpack.c.bf16 %v7569, %v7569
      %v7606 = vpack.c.bf16 %v7570, %v7570
      %v7607 = vpack.c.bf16 %v7571, %v7571
      %v7608 = vpack.c.bf16 %v7572, %v7572
      %v7609 = vpack.c.bf16 %v7573, %v7573
      %v7610 = vpack.c.bf16 %v7574, %v7574
      %v7611 = vpack.c.bf16 %v7575, %v7575
      %v7612 = vpack.c.bf16 %v7576, %v7576
      %v7613 = vpack.c.bf16 %v7577, %v7577
      %v7614 = vpack.c.bf16 %v7578, %v7578
      %v7615 = vpack.c.bf16 %v7579, %v7579
      %v7616 = vpack.c.bf16 %v7580, %v7580
      %v7617 = vpack.c.bf16 %v7581, %v7581
      %v7618 = vpack.c.bf16 %v7582, %v7582
      %v7619 = vpack.c.bf16 %v7583, %v7583
      %v7620 = vpack.c.bf16 %v7584, %v7584
      %v7621 = vpack.c.bf16 %v7585, %v7585
      %v7622 = vpack.c.bf16 %v7586, %v7586
      %v7623 = vpack.c.bf16 %v7587, %v7587
      %v7624 = vpack.c.bf16 %v7588, %v7588
      %v7625 = vpack.c.bf16 %v7589, %v7589
      %v7626 = vpack.c.bf16 %v7590, %v7590
      %v7627 = vpack.c.bf16 %v7591, %v7591
      %v7628 = vpack.c.bf16 %v7592, %v7592
      %v7629 = vpack.c.bf16 %v7593, %v7593
      %vm7630 = vsmask.f32 1280
      %vm7631 = vsmask.f32 5392
      %vm7632 = vmor %vm7630, %vm7631
      %v7634 = vshrl.u32 %v7594, 16
      %v7636 = vrot.slane %v7634, 6
      %v7637 = vshll.u32 %v7594, 16
      %v7639 = vrot.slane %v7637, 7
      %v7640 = vor.u32 %v7636, %v7639
      %v7641 = vrot.slane %v7640, 4
      %v7643 = vshrl.u32 %v7595, 16
      %v7645 = vrot.slane %v7643, 6
      %v7646 = vshll.u32 %v7595, 16
      %v7648 = vrot.slane %v7646, 7
      %v7649 = vor.u32 %v7645, %v7648
      %v7650 = vsel %vm7632, %v7641, %v7649
      %v7651 = vrot.slane %v7649, 4
      %v7653 = vshrl.u32 %v7596, 16
      %v7655 = vrot.slane %v7653, 6
      %v7656 = vshll.u32 %v7596, 16
      %v7658 = vrot.slane %v7656, 7
      %v7659 = vor.u32 %v7655, %v7658
      %v7660 = vsel %vm7632, %v7651, %v7659
      %v7661 = vrot.slane %v7659, 4
      %v7663 = vshrl.u32 %v7597, 16
      %v7665 = vrot.slane %v7663, 6
      %v7666 = vshll.u32 %v7597, 16
      %v7668 = vrot.slane %v7666, 7
      %v7669 = vor.u32 %v7665, %v7668
      %v7670 = vsel %vm7632, %v7661, %v7669
      %v7671 = vrot.slane %v7669, 4
      %v7673 = vshrl.u32 %v7598, 16
      %v7675 = vrot.slane %v7673, 6
      %v7676 = vshll.u32 %v7598, 16
      %v7678 = vrot.slane %v7676, 7
      %v7679 = vor.u32 %v7675, %v7678
      %v7680 = vsel %vm7632, %v7671, %v7679
      %v7681 = vrot.slane %v7679, 4
      %v7683 = vshrl.u32 %v7599, 16
      %v7685 = vrot.slane %v7683, 6
      %v7686 = vshll.u32 %v7599, 16
      %v7688 = vrot.slane %v7686, 7
      %v7689 = vor.u32 %v7685, %v7688
      %v7690 = vsel %vm7632, %v7681, %v7689
      %v7691 = vrot.slane %v7689, 4
      %v7693 = vshrl.u32 %v7600, 16
      %v7695 = vrot.slane %v7693, 6
      %v7696 = vshll.u32 %v7600, 16
      %v7698 = vrot.slane %v7696, 7
      %v7699 = vor.u32 %v7695, %v7698
      %v7700 = vsel %vm7632, %v7691, %v7699
      %v7701 = vrot.slane %v7699, 4
      %v7703 = vshrl.u32 %v7601, 16
      %v7705 = vrot.slane %v7703, 6
      %v7706 = vshll.u32 %v7601, 16
      %v7708 = vrot.slane %v7706, 7
      %v7709 = vor.u32 %v7705, %v7708
      %v7710 = vsel %vm7632, %v7701, %v7709
      %v7711 = vrot.slane %v7709, 4
      %v7713 = vshrl.u32 %v7602, 16
      %v7715 = vrot.slane %v7713, 6
      %v7716 = vshll.u32 %v7602, 16
      %v7718 = vrot.slane %v7716, 7
      %v7719 = vor.u32 %v7715, %v7718
      %v7720 = vsel %vm7632, %v7711, %v7719
      %v7721 = vrot.slane %v7719, 4
      %v7723 = vshrl.u32 %v7603, 16
      %v7725 = vrot.slane %v7723, 6
      %v7726 = vshll.u32 %v7603, 16
      %v7728 = vrot.slane %v7726, 7
      %v7729 = vor.u32 %v7725, %v7728
      %v7730 = vsel %vm7632, %v7721, %v7729
      %v7731 = vrot.slane %v7729, 4
      %v7733 = vshrl.u32 %v7604, 16
      %v7735 = vrot.slane %v7733, 6
      %v7736 = vshll.u32 %v7604, 16
      %v7738 = vrot.slane %v7736, 7
      %v7739 = vor.u32 %v7735, %v7738
      %v7740 = vsel %vm7632, %v7731, %v7739
      %v7741 = vrot.slane %v7739, 4
      %v7743 = vshrl.u32 %v7605, 16
      %v7745 = vrot.slane %v7743, 6
      %v7746 = vshll.u32 %v7605, 16
      %v7748 = vrot.slane %v7746, 7
      %v7749 = vor.u32 %v7745, %v7748
      %v7750 = vsel %vm7632, %v7741, %v7749
      %v7751 = vrot.slane %v7749, 4
      %v7753 = vshrl.u32 %v7606, 16
      %v7755 = vrot.slane %v7753, 6
      %v7756 = vshll.u32 %v7606, 16
      %v7758 = vrot.slane %v7756, 7
      %v7759 = vor.u32 %v7755, %v7758
      %v7760 = vsel %vm7632, %v7751, %v7759
      %v7761 = vrot.slane %v7759, 4
      %v7763 = vshrl.u32 %v7607, 16
      %v7765 = vrot.slane %v7763, 6
      %v7766 = vshll.u32 %v7607, 16
      %v7768 = vrot.slane %v7766, 7
      %v7769 = vor.u32 %v7765, %v7768
      %v7770 = vsel %vm7632, %v7761, %v7769
      %v7771 = vrot.slane %v7769, 4
      %v7773 = vshrl.u32 %v7608, 16
      %v7775 = vrot.slane %v7773, 6
      %v7776 = vshll.u32 %v7608, 16
      %v7778 = vrot.slane %v7776, 7
      %v7779 = vor.u32 %v7775, %v7778
      %v7780 = vsel %vm7632, %v7771, %v7779
      %v7781 = vrot.slane %v7779, 4
      %v7783 = vshrl.u32 %v7609, 16
      %v7785 = vrot.slane %v7783, 6
      %v7786 = vshll.u32 %v7609, 16
      %v7788 = vrot.slane %v7786, 7
      %v7789 = vor.u32 %v7785, %v7788
      %v7790 = vsel %vm7632, %v7781, %v7789
      %v7791 = vrot.slane %v7789, 4
      %v7793 = vshrl.u32 %v7610, 16
      %v7795 = vrot.slane %v7793, 6
      %v7796 = vshll.u32 %v7610, 16
      %v7798 = vrot.slane %v7796, 7
      %v7799 = vor.u32 %v7795, %v7798
      %v7800 = vsel %vm7632, %v7791, %v7799
      %v7801 = vrot.slane %v7799, 4
      %v7803 = vshrl.u32 %v7611, 16
      %v7805 = vrot.slane %v7803, 6
      %v7806 = vshll.u32 %v7611, 16
      %v7808 = vrot.slane %v7806, 7
      %v7809 = vor.u32 %v7805, %v7808
      %v7810 = vsel %vm7632, %v7801, %v7809
      %v7811 = vrot.slane %v7809, 4
      %v7813 = vshrl.u32 %v7612, 16
      %v7815 = vrot.slane %v7813, 6
      %v7816 = vshll.u32 %v7612, 16
      %v7818 = vrot.slane %v7816, 7
      %v7819 = vor.u32 %v7815, %v7818
      %v7820 = vsel %vm7632, %v7811, %v7819
      %v7821 = vrot.slane %v7819, 4
      %v7823 = vshrl.u32 %v7613, 16
      %v7825 = vrot.slane %v7823, 6
      %v7826 = vshll.u32 %v7613, 16
      %v7828 = vrot.slane %v7826, 7
      %v7829 = vor.u32 %v7825, %v7828
      %v7830 = vsel %vm7632, %v7821, %v7829
      %v7831 = vrot.slane %v7829, 4
      %v7833 = vshrl.u32 %v7614, 16
      %v7835 = vrot.slane %v7833, 6
      %v7836 = vshll.u32 %v7614, 16
      %v7838 = vrot.slane %v7836, 7
      %v7839 = vor.u32 %v7835, %v7838
      %v7840 = vsel %vm7632, %v7831, %v7839
      %v7841 = vrot.slane %v7839, 4
      %v7843 = vshrl.u32 %v7615, 16
      %v7845 = vrot.slane %v7843, 6
      %v7846 = vshll.u32 %v7615, 16
      %v7848 = vrot.slane %v7846, 7
      %v7849 = vor.u32 %v7845, %v7848
      %v7850 = vsel %vm7632, %v7841, %v7849
      %v7851 = vrot.slane %v7849, 4
      %v7853 = vshrl.u32 %v7616, 16
      %v7855 = vrot.slane %v7853, 6
      %v7856 = vshll.u32 %v7616, 16
      %v7858 = vrot.slane %v7856, 7
      %v7859 = vor.u32 %v7855, %v7858
      %v7860 = vsel %vm7632, %v7851, %v7859
      %v7861 = vrot.slane %v7859, 4
      %v7863 = vshrl.u32 %v7617, 16
      %v7865 = vrot.slane %v7863, 6
      %v7866 = vshll.u32 %v7617, 16
      %v7868 = vrot.slane %v7866, 7
      %v7869 = vor.u32 %v7865, %v7868
      %v7870 = vsel %vm7632, %v7861, %v7869
      %v7871 = vrot.slane %v7869, 4
      %v7873 = vshrl.u32 %v7618, 16
      %v7875 = vrot.slane %v7873, 6
      %v7876 = vshll.u32 %v7618, 16
      %v7878 = vrot.slane %v7876, 7
      %v7879 = vor.u32 %v7875, %v7878
      %v7880 = vsel %vm7632, %v7871, %v7879
      %v7881 = vrot.slane %v7879, 4
      %v7883 = vshrl.u32 %v7619, 16
      %v7885 = vrot.slane %v7883, 6
      %v7886 = vshll.u32 %v7619, 16
      %v7888 = vrot.slane %v7886, 7
      %v7889 = vor.u32 %v7885, %v7888
      %v7890 = vsel %vm7632, %v7881, %v7889
      %v7891 = vrot.slane %v7889, 4
      %v7893 = vshrl.u32 %v7620, 16
      %v7895 = vrot.slane %v7893, 6
      %v7896 = vshll.u32 %v7620, 16
      %v7898 = vrot.slane %v7896, 7
      %v7899 = vor.u32 %v7895, %v7898
      %v7900 = vsel %vm7632, %v7891, %v7899
      %v7901 = vrot.slane %v7899, 4
      %v7903 = vshrl.u32 %v7621, 16
      %v7905 = vrot.slane %v7903, 6
      %v7906 = vshll.u32 %v7621, 16
      %v7908 = vrot.slane %v7906, 7
      %v7909 = vor.u32 %v7905, %v7908
      %v7910 = vsel %vm7632, %v7901, %v7909
      %v7911 = vrot.slane %v7909, 4
      %v7913 = vshrl.u32 %v7622, 16
      %v7915 = vrot.slane %v7913, 6
      %v7916 = vshll.u32 %v7622, 16
      %v7918 = vrot.slane %v7916, 7
      %v7919 = vor.u32 %v7915, %v7918
      %v7920 = vsel %vm7632, %v7911, %v7919
      %v7921 = vrot.slane %v7919, 4
      %v7923 = vshrl.u32 %v7623, 16
      %v7925 = vrot.slane %v7923, 6
      %v7926 = vshll.u32 %v7623, 16
      %v7928 = vrot.slane %v7926, 7
      %v7929 = vor.u32 %v7925, %v7928
      %v7930 = vsel %vm7632, %v7921, %v7929
      %v7931 = vrot.slane %v7929, 4
      %v7933 = vshrl.u32 %v7624, 16
      %v7935 = vrot.slane %v7933, 6
      %v7936 = vshll.u32 %v7624, 16
      %v7938 = vrot.slane %v7936, 7
      %v7939 = vor.u32 %v7935, %v7938
      %v7940 = vsel %vm7632, %v7931, %v7939
      %v7941 = vrot.slane %v7939, 4
      %v7943 = vshrl.u32 %v7625, 16
      %v7945 = vrot.slane %v7943, 6
      %v7946 = vshll.u32 %v7625, 16
      %v7948 = vrot.slane %v7946, 7
      %v7949 = vor.u32 %v7945, %v7948
      %v7950 = vsel %vm7632, %v7941, %v7949
      %v7951 = vrot.slane %v7949, 4
      %v7953 = vshrl.u32 %v7626, 16
      %v7955 = vrot.slane %v7953, 6
      %v7956 = vshll.u32 %v7626, 16
      %v7958 = vrot.slane %v7956, 7
      %v7959 = vor.u32 %v7955, %v7958
      %v7960 = vsel %vm7632, %v7951, %v7959
      %v7961 = vrot.slane %v7959, 4
      %v7963 = vshrl.u32 %v7627, 16
      %v7965 = vrot.slane %v7963, 6
      %v7966 = vshll.u32 %v7627, 16
      %v7968 = vrot.slane %v7966, 7
      %v7969 = vor.u32 %v7965, %v7968
      %v7970 = vsel %vm7632, %v7961, %v7969
      %v7971 = vrot.slane %v7969, 4
      %v7973 = vshrl.u32 %v7628, 16
      %v7975 = vrot.slane %v7973, 6
      %v7976 = vshll.u32 %v7628, 16
      %v7978 = vrot.slane %v7976, 7
      %v7979 = vor.u32 %v7975, %v7978
      %v7980 = vsel %vm7632, %v7971, %v7979
      %v7981 = vrot.slane %v7979, 4
      %v7983 = vshrl.u32 %v7629, 16
      %v7985 = vrot.slane %v7983, 6
      %v7986 = vshll.u32 %v7629, 16
      %v7988 = vrot.slane %v7986, 7
      %v7989 = vor.u32 %v7985, %v7988
      %v7990 = vsel %vm7632, %v7981, %v7989
      %v7991 = vrot.slane %v7989, 4
      %vm8029 = vcmask 125953
      %vm8030 = vsmask.f32 7942
      %vm8031 = vmand %vm8029, %vm8030
      %v8032 = vld [vmem:[#allocation2 + $0x8] sm:$0xe]
      %v8033 = vsel %vm8031, %v7640, %v8032
      %8034 = vst [vmem:[#allocation2 + $0x8] sm:$0xe] %v8033
      %8035 = vst.msk [vmem:[#allocation2 + $0xc] sm:$0xf] %vm7402, %v7650
      %8036 = vst.msk [vmem:[#allocation2 + $0x10] sm:$0xf] %vm7402, %v7660
      %8037 = vst.msk [vmem:[#allocation2 + $0x14] sm:$0xf] %vm7402, %v7670
      %8038 = vst.msk [vmem:[#allocation2 + $0x18] sm:$0xf] %vm7402, %v7680
      %8039 = vst.msk [vmem:[#allocation2 + $0x1c] sm:$0xf] %vm7402, %v7690
      %8040 = vst.msk [vmem:[#allocation2 + $0x20] sm:$0xf] %vm7402, %v7700
      %8041 = vst.msk [vmem:[#allocation2 + $0x24] sm:$0xf] %vm7402, %v7710
      %8042 = vst.msk [vmem:[#allocation2 + $0x28] sm:$0xf] %vm7402, %v7720
      %8043 = vst.msk [vmem:[#allocation2 + $0x2c] sm:$0xf] %vm7402, %v7730
      %8044 = vst.msk [vmem:[#allocation2 + $0x30] sm:$0xf] %vm7402, %v7740
      %8045 = vst.msk [vmem:[#allocation2 + $0x34] sm:$0xf] %vm7402, %v7750
      %8046 = vst.msk [vmem:[#allocation2 + $0x38] sm:$0xf] %vm7402, %v7760
      %8047 = vst.msk [vmem:[#allocation2 + $0x3c] sm:$0xf] %vm7402, %v7770
      %8048 = vst.msk [vmem:[#allocation2 + $0x40] sm:$0xf] %vm7402, %v7780
      %8049 = vst.msk [vmem:[#allocation2 + $0x44] sm:$0xf] %vm7402, %v7790
      %8050 = vst.msk [vmem:[#allocation2 + $0x48] sm:$0xf] %vm7402, %v7800
      %8051 = vst.msk [vmem:[#allocation2 + $0x4c] sm:$0xf] %vm7402, %v7810
      %8052 = vst.msk [vmem:[#allocation2 + $0x50] sm:$0xf] %vm7402, %v7820
      %8053 = vst.msk [vmem:[#allocation2 + $0x54] sm:$0xf] %vm7402, %v7830
      %8054 = vst.msk [vmem:[#allocation2 + $0x58] sm:$0xf] %vm7402, %v7840
      %8055 = vst.msk [vmem:[#allocation2 + $0x5c] sm:$0xf] %vm7402, %v7850
      %8056 = vst.msk [vmem:[#allocation2 + $0x60] sm:$0xf] %vm7402, %v7860
      %8057 = vst.msk [vmem:[#allocation2 + $0x64] sm:$0xf] %vm7402, %v7870
      %8058 = vst.msk [vmem:[#allocation2 + $0x68] sm:$0xf] %vm7402, %v7880
      %8059 = vst.msk [vmem:[#allocation2 + $0x6c] sm:$0xf] %vm7402, %v7890
      %8060 = vst.msk [vmem:[#allocation2 + $0x70] sm:$0xf] %vm7402, %v7900
      %8061 = vst.msk [vmem:[#allocation2 + $0x74] sm:$0xf] %vm7402, %v7910
      %8062 = vst.msk [vmem:[#allocation2 + $0x78] sm:$0xf] %vm7402, %v7920
      %8063 = vst.msk [vmem:[#allocation2 + $0x7c] sm:$0xf] %vm7402, %v7930
      %8064 = vst.msk [vmem:[#allocation2 + $0x80] sm:$0xf] %vm7402, %v7940
      %8065 = vst.msk [vmem:[#allocation2 + $0x84] sm:$0xf] %vm7402, %v7950
      %8066 = vst.msk [vmem:[#allocation2 + $0x88] sm:$0xf] %vm7402, %v7960
      %8067 = vst.msk [vmem:[#allocation2 + $0x8c] sm:$0xf] %vm7402, %v7970
      %8068 = vst.msk [vmem:[#allocation2 + $0x90] sm:$0xf] %vm7402, %v7980
      %8069 = vst.msk [vmem:[#allocation2 + $0x94] sm:$0xf] %vm7402, %v7990
      %vm8070 = vcmask 123904
      %vm8071 = vmand %vm8070, %vm7630
      %v8072 = vld [vmem:[#allocation2 + $0x98] sm:$0x3]
      %v8073 = vsel %vm8071, %v7991, %v8072
      %8074 = vst [vmem:[#allocation2 + $0x98] sm:$0x3] %v8073
      %v8075 = vld [vmem:[#allocation2] sm:$0xf]
      %v8076 = vld [vmem:[#allocation2 + $0x4] sm:$0xf]
      %v8077 = vld [vmem:[#allocation2 + $0x8] sm:$0xf]
      %v8078 = vld [vmem:[#allocation2 + $0xc] sm:$0xf]
      %v8079 = vld [vmem:[#allocation2 + $0x10] sm:$0xf]
      %v8080 = vld [vmem:[#allocation2 + $0x14] sm:$0xf]
      %v8081 = vld [vmem:[#allocation2 + $0x18] sm:$0xf]
      %v8082 = vld [vmem:[#allocation2 + $0x1c] sm:$0xf]
      %v8083 = vld [vmem:[#allocation2 + $0x20] sm:$0xf]
      %v8084 = vld [vmem:[#allocation2 + $0x24] sm:$0xf]
      %v8085 = vld [vmem:[#allocation2 + $0x28] sm:$0xf]
      %v8086 = vld [vmem:[#allocation2 + $0x2c] sm:$0xf]
      %v8087 = vld [vmem:[#allocation2 + $0x30] sm:$0xf]
      %v8088 = vld [vmem:[#allocation2 + $0x34] sm:$0xf]
      %v8089 = vld [vmem:[#allocation2 + $0x38] sm:$0xf]
      %v8090 = vld [vmem:[#allocation2 + $0x3c] sm:$0xf]
      %v8091 = vld [vmem:[#allocation2 + $0x40] sm:$0xf]
      %v8092 = vld [vmem:[#allocation2 + $0x44] sm:$0xf]
      %v8093 = vld [vmem:[#allocation2 + $0x48] sm:$0xf]
      %v8094 = vld [vmem:[#allocation2 + $0x4c] sm:$0xf]
      %v8095 = vld [vmem:[#allocation2 + $0x50] sm:$0xf]
      %v8096 = vld [vmem:[#allocation2 + $0x54] sm:$0xf]
      %v8097 = vld [vmem:[#allocation2 + $0x58] sm:$0xf]
      %v8098 = vld [vmem:[#allocation2 + $0x5c] sm:$0xf]
      %v8099 = vld [vmem:[#allocation2 + $0x60] sm:$0xf]
      %v8100 = vld [vmem:[#allocation2 + $0x64] sm:$0xf]
      %v8101 = vld [vmem:[#allocation2 + $0x68] sm:$0xf]
      %v8102 = vld [vmem:[#allocation2 + $0x6c] sm:$0xf]
      %v8103 = vld [vmem:[#allocation2 + $0x70] sm:$0xf]
      %v8104 = vld [vmem:[#allocation2 + $0x74] sm:$0xf]
      %v8105 = vld [vmem:[#allocation2 + $0x78] sm:$0xf]
      %v8106 = vld [vmem:[#allocation2 + $0x7c] sm:$0xf]
      %v8107 = vld [vmem:[#allocation2 + $0x80] sm:$0xf]
      %v8108 = vld [vmem:[#allocation2 + $0x84] sm:$0xf]
      %v8109 = vld [vmem:[#allocation2 + $0x88] sm:$0xf]
      %v8110 = vld [vmem:[#allocation2 + $0x8c] sm:$0xf]
      %v8111 = vld [vmem:[%s10] sm:$0xf]
      %v8112 = vld [vmem:[%s10 + $0x4] sm:$0xf]
      %v8113 = vld [vmem:[#allocation2 + $0x90] sm:$0x1]
      %s8114 = scalar_lea.vmem %s10, 8
      %v8115 = vld [vmem:[%s8114] sm:$0xf]
      %v8116 = vld [vmem:[%s8114 + $0x4] sm:$0xf]
      %v8154 = vunpack.c.l.b16 %v8075
      %v8155 = vunpack.c.l.b16 %v8076
      %v8156 = vunpack.c.l.b16 %v8077
      %v8157 = vunpack.c.l.b16 %v8078
      %v8158 = vunpack.c.l.b16 %v8079
      %v8159 = vunpack.c.l.b16 %v8080
      %v8160 = vunpack.c.l.b16 %v8081
      %v8161 = vunpack.c.l.b16 %v8082
      %v8162 = vunpack.c.l.b16 %v8083
      %v8163 = vunpack.c.l.b16 %v8084
      %v8164 = vunpack.c.l.b16 %v8085
      %v8165 = vunpack.c.l.b16 %v8086
      %v8166 = vunpack.c.l.b16 %v8087
      %v8167 = vunpack.c.l.b16 %v8088
      %v8168 = vunpack.c.l.b16 %v8089
      %v8169 = vunpack.c.l.b16 %v8090
      %v8170 = vunpack.c.l.b16 %v8091
      %v8171 = vunpack.c.l.b16 %v8092
      %v8172 = vunpack.c.l.b16 %v8093
      %v8173 = vunpack.c.l.b16 %v8094
      %v8174 = vunpack.c.l.b16 %v8095
      %v8175 = vunpack.c.l.b16 %v8096
      %v8176 = vunpack.c.l.b16 %v8097
      %v8177 = vunpack.c.l.b16 %v8098
      %v8178 = vunpack.c.l.b16 %v8099
      %v8179 = vunpack.c.l.b16 %v8100
      %v8180 = vunpack.c.l.b16 %v8101
      %v8181 = vunpack.c.l.b16 %v8102
      %v8182 = vunpack.c.l.b16 %v8103
      %v8183 = vunpack.c.l.b16 %v8104
      %v8184 = vunpack.c.l.b16 %v8105
      %v8185 = vunpack.c.l.b16 %v8106
      %v8186 = vunpack.c.l.b16 %v8107
      %v8187 = vunpack.c.l.b16 %v8108
      %v8188 = vunpack.c.l.b16 %v8109
      %v8189 = vunpack.c.l.b16 %v8110
      %v8190 = vunpack.c.l.b16 %v8113
      %v8191 = vpack.c.b16 %v8155, %v8154
      %v8192 = vpack.c.b16 %v8157, %v8156
      %v8193 = vpack.c.b16 %v8159, %v8158
      %v8194 = vpack.c.b16 %v8161, %v8160
      %v8195 = vpack.c.b16 %v8163, %v8162
      %v8196 = vpack.c.b16 %v8165, %v8164
      %v8197 = vpack.c.b16 %v8167, %v8166
      %v8198 = vpack.c.b16 %v8169, %v8168
      %v8199 = vpack.c.b16 %v8171, %v8170
      %v8200 = vpack.c.b16 %v8173, %v8172
      %v8201 = vpack.c.b16 %v8175, %v8174
      %v8202 = vpack.c.b16 %v8177, %v8176
      %v8203 = vpack.c.b16 %v8179, %v8178
      %v8204 = vpack.c.b16 %v8181, %v8180
      %v8205 = vpack.c.b16 %v8183, %v8182
      %v8206 = vpack.c.b16 %v8185, %v8184
      %v8207 = vpack.c.b16 %v8187, %v8186
      %v8208 = vpack.c.b16 %v8189, %v8188
      %v8209 = vpack.c.b16 %v8190, %v8190
      %v8211 = vshrl.u32 %v8191, 16
      %v8213 = vshll.u32 %v8191, 16
      %v8215 = vrot.slane %v8213, 1
      %v8216 = vor.u32 %v8211, %v8215
      %v8218 = vshll.u32 %v8192, 16
      %v8220 = vrot.slane %v8218, 1
      %v8221 = vsel %vm3482, %v8216, %v8220
      %v8222 = vshrl.u32 %v8192, 16
      %v8224 = vor.u32 %v8222, %v8220
      %v8226 = vshll.u32 %v8193, 16
      %v8228 = vrot.slane %v8226, 1
      %v8229 = vsel %vm3482, %v8224, %v8228
      %v8230 = vshrl.u32 %v8193, 16
      %v8232 = vor.u32 %v8230, %v8228
      %v8234 = vshll.u32 %v8194, 16
      %v8236 = vrot.slane %v8234, 1
      %v8237 = vsel %vm3482, %v8232, %v8236
      %v8238 = vshrl.u32 %v8194, 16
      %v8240 = vor.u32 %v8238, %v8236
      %v8242 = vshll.u32 %v8195, 16
      %v8244 = vrot.slane %v8242, 1
      %v8245 = vsel %vm3482, %v8240, %v8244
      %v8246 = vshrl.u32 %v8195, 16
      %v8248 = vor.u32 %v8246, %v8244
      %v8250 = vshll.u32 %v8196, 16
      %v8252 = vrot.slane %v8250, 1
      %v8253 = vsel %vm3482, %v8248, %v8252
      %v8254 = vshrl.u32 %v8196, 16
      %v8256 = vor.u32 %v8254, %v8252
      %v8258 = vshll.u32 %v8197, 16
      %v8260 = vrot.slane %v8258, 1
      %v8261 = vsel %vm3482, %v8256, %v8260
      %v8262 = vshrl.u32 %v8197, 16
      %v8264 = vor.u32 %v8262, %v8260
      %v8266 = vshll.u32 %v8198, 16
      %v8268 = vrot.slane %v8266, 1
      %v8269 = vsel %vm3482, %v8264, %v8268
      %v8270 = vshrl.u32 %v8198, 16
      %v8272 = vor.u32 %v8270, %v8268
      %v8274 = vshll.u32 %v8199, 16
      %v8276 = vrot.slane %v8274, 1
      %v8277 = vsel %vm3482, %v8272, %v8276
      %v8278 = vshrl.u32 %v8199, 16
      %v8280 = vor.u32 %v8278, %v8276
      %v8282 = vshll.u32 %v8200, 16
      %v8284 = vrot.slane %v8282, 1
      %v8285 = vsel %vm3482, %v8280, %v8284
      %v8286 = vshrl.u32 %v8200, 16
      %v8288 = vor.u32 %v8286, %v8284
      %v8290 = vshll.u32 %v8201, 16
      %v8292 = vrot.slane %v8290, 1
      %v8293 = vsel %vm3482, %v8288, %v8292
      %v8294 = vshrl.u32 %v8201, 16
      %v8296 = vor.u32 %v8294, %v8292
      %v8298 = vshll.u32 %v8202, 16
      %v8300 = vrot.slane %v8298, 1
      %v8301 = vsel %vm3482, %v8296, %v8300
      %v8302 = vshrl.u32 %v8202, 16
      %v8304 = vor.u32 %v8302, %v8300
      %v8306 = vshll.u32 %v8203, 16
      %v8308 = vrot.slane %v8306, 1
      %v8309 = vsel %vm3482, %v8304, %v8308
      %v8310 = vshrl.u32 %v8203, 16
      %v8312 = vor.u32 %v8310, %v8308
      %v8314 = vshll.u32 %v8204, 16
      %v8316 = vrot.slane %v8314, 1
      %v8317 = vsel %vm3482, %v8312, %v8316
      %v8318 = vshrl.u32 %v8204, 16
      %v8320 = vor.u32 %v8318, %v8316
      %v8322 = vshll.u32 %v8205, 16
      %v8324 = vrot.slane %v8322, 1
      %v8325 = vsel %vm3482, %v8320, %v8324
      %v8326 = vshrl.u32 %v8205, 16
      %v8328 = vor.u32 %v8326, %v8324
      %v8330 = vshll.u32 %v8206, 16
      %v8332 = vrot.slane %v8330, 1
      %v8333 = vsel %vm3482, %v8328, %v8332
      %v8334 = vshrl.u32 %v8206, 16
      %v8336 = vor.u32 %v8334, %v8332
      %v8338 = vshll.u32 %v8207, 16
      %v8340 = vrot.slane %v8338, 1
      %v8341 = vsel %vm3482, %v8336, %v8340
      %v8342 = vshrl.u32 %v8207, 16
      %v8344 = vor.u32 %v8342, %v8340
      %v8346 = vshll.u32 %v8208, 16
      %v8348 = vrot.slane %v8346, 1
      %v8349 = vsel %vm3482, %v8344, %v8348
      %v8350 = vshrl.u32 %v8208, 16
      %v8352 = vor.u32 %v8350, %v8348
      %v8354 = vshll.u32 %v8209, 16
      %v8356 = vrot.slane %v8354, 1
      %v8357 = vsel %vm3482, %v8352, %v8356
      %v8360 = vunpack.c.l.b16 %v8115
      %v8361 = vunpack.c.l.b16 %v8116
      %v8362 = vpack.c.b16 %v8361, %v8360
      %v8365 = vsel %vm3073, %v8221, 0
      %v8368 = vsel %vm3073, %v8229, 0
      %v8371 = vsel %vm3073, %v8237, 0
      %v8374 = vsel %vm3073, %v8245, 0
      %v8377 = vsel %vm3073, %v8253, 0
      %v8380 = vsel %vm3073, %v8261, 0
      %v8383 = vsel %vm3073, %v8269, 0
      %v8386 = vsel %vm3073, %v8277, 0
      %v8389 = vsel %vm3073, %v8285, 0
      %v8392 = vsel %vm3073, %v8293, 0
      %v8395 = vsel %vm3073, %v8301, 0
      %v8398 = vsel %vm3073, %v8309, 0
      %v8401 = vsel %vm3073, %v8317, 0
      %v8404 = vsel %vm3073, %v8325, 0
      %v8407 = vsel %vm3073, %v8333, 0
      %v8410 = vsel %vm3073, %v8341, 0
      %v8413 = vsel %vm3073, %v8349, 0
      %v8416 = vsel %vm3073, %v8357, 0
      %8418 = vmatpush.bf16.msra.mxu0 0
      %8419 = vmatpush.bf16.msra.mxu0 0
      %8420 = vmatpush.bf16.msra.mxu0 0
      %8421 = vmatpush.bf16.msra.mxu0 0
      %8422 = vmatpush.bf16.msra.mxu0 0
      %8423 = vmatpush.bf16.msra.mxu0 0
      %8424 = vmatpush.bf16.msra.mxu0 0
      %8425 = vmatpush.bf16.msra.mxu0 %v8362
      %8426 = vmatmul.bf16.gmra.mxu0 %v8365
      %v8427 = vpop.f32.mrf.mxu0
      %v8428 = vadd.f32 0.0, %v8427
      %v8429 = vpop.f32.mrf.mxu0
      %v8430 = vadd.f32 0.0, %v8429
      %8431 = vmatmul.bf16.gmra.mxu0 %v8368
      %v8432 = vpop.f32.mrf.mxu0
      %v8433 = vadd.f32 0.0, %v8432
      %v8434 = vpop.f32.mrf.mxu0
      %v8435 = vadd.f32 0.0, %v8434
      %8436 = vmatmul.bf16.gmra.mxu0 %v8371
      %v8437 = vpop.f32.mrf.mxu0
      %v8438 = vadd.f32 0.0, %v8437
      %v8439 = vpop.f32.mrf.mxu0
      %v8440 = vadd.f32 0.0, %v8439
      %8441 = vmatmul.bf16.gmra.mxu0 %v8374
      %v8442 = vpop.f32.mrf.mxu0
      %v8443 = vadd.f32 0.0, %v8442
      %v8444 = vpop.f32.mrf.mxu0
      %v8445 = vadd.f32 0.0, %v8444
      %8446 = vmatmul.bf16.gmra.mxu0 %v8377
      %v8447 = vpop.f32.mrf.mxu0
      %v8448 = vadd.f32 0.0, %v8447
      %v8449 = vpop.f32.mrf.mxu0
      %v8450 = vadd.f32 0.0, %v8449
      %8451 = vmatmul.bf16.gmra.mxu0 %v8380
      %v8452 = vpop.f32.mrf.mxu0
      %v8453 = vadd.f32 0.0, %v8452
      %v8454 = vpop.f32.mrf.mxu0
      %v8455 = vadd.f32 0.0, %v8454
      %8456 = vmatmul.bf16.gmra.mxu0 %v8383
      %v8457 = vpop.f32.mrf.mxu0
      %v8458 = vadd.f32 0.0, %v8457
      %v8459 = vpop.f32.mrf.mxu0
      %v8460 = vadd.f32 0.0, %v8459
      %8461 = vmatmul.bf16.gmra.mxu0 %v8386
      %v8462 = vpop.f32.mrf.mxu0
      %v8463 = vadd.f32 0.0, %v8462
      %v8464 = vpop.f32.mrf.mxu0
      %v8465 = vadd.f32 0.0, %v8464
      %8466 = vmatmul.bf16.gmra.mxu0 %v8389
      %v8467 = vpop.f32.mrf.mxu0
      %v8468 = vadd.f32 0.0, %v8467
      %v8469 = vpop.f32.mrf.mxu0
      %v8470 = vadd.f32 0.0, %v8469
      %8471 = vmatmul.bf16.gmra.mxu0 %v8392
      %v8472 = vpop.f32.mrf.mxu0
      %v8473 = vadd.f32 0.0, %v8472
      %v8474 = vpop.f32.mrf.mxu0
      %v8475 = vadd.f32 0.0, %v8474
      %8476 = vmatmul.bf16.gmra.mxu0 %v8395
      %v8477 = vpop.f32.mrf.mxu0
      %v8478 = vadd.f32 0.0, %v8477
      %v8479 = vpop.f32.mrf.mxu0
      %v8480 = vadd.f32 0.0, %v8479
      %8481 = vmatmul.bf16.gmra.mxu0 %v8398
      %v8482 = vpop.f32.mrf.mxu0
      %v8483 = vadd.f32 0.0, %v8482
      %v8484 = vpop.f32.mrf.mxu0
      %v8485 = vadd.f32 0.0, %v8484
      %8486 = vmatmul.bf16.gmra.mxu0 %v8401
      %v8487 = vpop.f32.mrf.mxu0
      %v8488 = vadd.f32 0.0, %v8487
      %v8489 = vpop.f32.mrf.mxu0
      %v8490 = vadd.f32 0.0, %v8489
      %8491 = vmatmul.bf16.gmra.mxu0 %v8404
      %v8492 = vpop.f32.mrf.mxu0
      %v8493 = vadd.f32 0.0, %v8492
      %v8494 = vpop.f32.mrf.mxu0
      %v8495 = vadd.f32 0.0, %v8494
      %8496 = vmatmul.bf16.gmra.mxu0 %v8407
      %v8497 = vpop.f32.mrf.mxu0
      %v8498 = vadd.f32 0.0, %v8497
      %v8499 = vpop.f32.mrf.mxu0
      %v8500 = vadd.f32 0.0, %v8499
      %8501 = vmatmul.bf16.gmra.mxu0 %v8410
      %v8502 = vpop.f32.mrf.mxu0
      %v8503 = vadd.f32 0.0, %v8502
      %v8504 = vpop.f32.mrf.mxu0
      %v8505 = vadd.f32 0.0, %v8504
      %8506 = vmatmul.bf16.gmra.mxu0 %v8413
      %v8507 = vpop.f32.mrf.mxu0
      %v8508 = vadd.f32 0.0, %v8507
      %v8509 = vpop.f32.mrf.mxu0
      %v8510 = vadd.f32 0.0, %v8509
      %8511 = vmatmul.bf16.gmra.mxu0 %v8416
      %v8512 = vpop.f32.mrf.mxu0
      %v8513 = vadd.f32 0.0, %v8512
      %v8514 = vpop.f32.mrf.mxu0
      %v8515 = vadd.f32 0.0, %v8514
      %8516 = vdwg.mxu0
      %v8519 = vunpack.c.l.b16 %v8111
      %v8520 = vunpack.c.l.b16 %v8112
      %v8521 = vpack.c.b16 %v8520, %v8519
      %v8523 = vsel %vm3073, %v8191, 0
      %v8525 = vsel %vm3073, %v8192, 0
      %v8527 = vsel %vm3073, %v8193, 0
      %v8529 = vsel %vm3073, %v8194, 0
      %v8531 = vsel %vm3073, %v8195, 0
      %v8533 = vsel %vm3073, %v8196, 0
      %v8535 = vsel %vm3073, %v8197, 0
      %v8537 = vsel %vm3073, %v8198, 0
      %v8539 = vsel %vm3073, %v8199, 0
      %v8541 = vsel %vm3073, %v8200, 0
      %v8543 = vsel %vm3073, %v8201, 0
      %v8545 = vsel %vm3073, %v8202, 0
      %v8547 = vsel %vm3073, %v8203, 0
      %v8549 = vsel %vm3073, %v8204, 0
      %v8551 = vsel %vm3073, %v8205, 0
      %v8553 = vsel %vm3073, %v8206, 0
      %v8555 = vsel %vm3073, %v8207, 0
      %v8557 = vsel %vm3073, %v8208, 0
      %8559 = vmatpush.bf16.msra.mxu0 0
      %8560 = vmatpush.bf16.msra.mxu0 0
      %8561 = vmatpush.bf16.msra.mxu0 0
      %8562 = vmatpush.bf16.msra.mxu0 0
      %8563 = vmatpush.bf16.msra.mxu0 0
      %8564 = vmatpush.bf16.msra.mxu0 0
      %8565 = vmatpush.bf16.msra.mxu0 0
      %8566 = vmatpush.bf16.msra.mxu0 %v8521
      %8567 = vmatmul.bf16.gmra.mxu0 %v8523
      %v8568 = vpop.f32.mrf.mxu0
      %v8569 = vadd.f32 %v8428, %v8568
      %v8570 = vpop.f32.mrf.mxu0
      %v8571 = vadd.f32 %v8430, %v8570
      %8572 = vmatmul.bf16.gmra.mxu0 %v8525
      %v8573 = vpop.f32.mrf.mxu0
      %v8574 = vadd.f32 %v8433, %v8573
      %v8575 = vpop.f32.mrf.mxu0
      %v8576 = vadd.f32 %v8435, %v8575
      %8577 = vmatmul.bf16.gmra.mxu0 %v8527
      %v8578 = vpop.f32.mrf.mxu0
      %v8579 = vadd.f32 %v8438, %v8578
      %v8580 = vpop.f32.mrf.mxu0
      %v8581 = vadd.f32 %v8440, %v8580
      %8582 = vmatmul.bf16.gmra.mxu0 %v8529
      %v8583 = vpop.f32.mrf.mxu0
      %v8584 = vadd.f32 %v8443, %v8583
      %v8585 = vpop.f32.mrf.mxu0
      %v8586 = vadd.f32 %v8445, %v8585
      %8587 = vmatmul.bf16.gmra.mxu0 %v8531
      %v8588 = vpop.f32.mrf.mxu0
      %v8589 = vadd.f32 %v8448, %v8588
      %v8590 = vpop.f32.mrf.mxu0
      %v8591 = vadd.f32 %v8450, %v8590
      %8592 = vmatmul.bf16.gmra.mxu0 %v8533
      %v8593 = vpop.f32.mrf.mxu0
      %v8594 = vadd.f32 %v8453, %v8593
      %v8595 = vpop.f32.mrf.mxu0
      %v8596 = vadd.f32 %v8455, %v8595
      %8597 = vmatmul.bf16.gmra.mxu0 %v8535
      %v8598 = vpop.f32.mrf.mxu0
      %v8599 = vadd.f32 %v8458, %v8598
      %v8600 = vpop.f32.mrf.mxu0
      %v8601 = vadd.f32 %v8460, %v8600
      %8602 = vmatmul.bf16.gmra.mxu0 %v8537
      %v8603 = vpop.f32.mrf.mxu0
      %v8604 = vadd.f32 %v8463, %v8603
      %v8605 = vpop.f32.mrf.mxu0
      %v8606 = vadd.f32 %v8465, %v8605
      %8607 = vmatmul.bf16.gmra.mxu0 %v8539
      %v8608 = vpop.f32.mrf.mxu0
      %v8609 = vadd.f32 %v8468, %v8608
      %v8610 = vpop.f32.mrf.mxu0
      %v8611 = vadd.f32 %v8470, %v8610
      %8612 = vmatmul.bf16.gmra.mxu0 %v8541
      %v8613 = vpop.f32.mrf.mxu0
      %v8614 = vadd.f32 %v8473, %v8613
      %v8615 = vpop.f32.mrf.mxu0
      %v8616 = vadd.f32 %v8475, %v8615
      %8617 = vmatmul.bf16.gmra.mxu0 %v8543
      %v8618 = vpop.f32.mrf.mxu0
      %v8619 = vadd.f32 %v8478, %v8618
      %v8620 = vpop.f32.mrf.mxu0
      %v8621 = vadd.f32 %v8480, %v8620
      %8622 = vmatmul.bf16.gmra.mxu0 %v8545
      %v8623 = vpop.f32.mrf.mxu0
      %v8624 = vadd.f32 %v8483, %v8623
      %v8625 = vpop.f32.mrf.mxu0
      %v8626 = vadd.f32 %v8485, %v8625
      %8627 = vmatmul.bf16.gmra.mxu0 %v8547
      %v8628 = vpop.f32.mrf.mxu0
      %v8629 = vadd.f32 %v8488, %v8628
      %v8630 = vpop.f32.mrf.mxu0
      %v8631 = vadd.f32 %v8490, %v8630
      %8632 = vmatmul.bf16.gmra.mxu0 %v8549
      %v8633 = vpop.f32.mrf.mxu0
      %v8634 = vadd.f32 %v8493, %v8633
      %v8635 = vpop.f32.mrf.mxu0
      %v8636 = vadd.f32 %v8495, %v8635
      %8637 = vmatmul.bf16.gmra.mxu0 %v8551
      %v8638 = vpop.f32.mrf.mxu0
      %v8639 = vadd.f32 %v8498, %v8638
      %v8640 = vpop.f32.mrf.mxu0
      %v8641 = vadd.f32 %v8500, %v8640
      %8642 = vmatmul.bf16.gmra.mxu0 %v8553
      %v8643 = vpop.f32.mrf.mxu0
      %v8644 = vadd.f32 %v8503, %v8643
      %v8645 = vpop.f32.mrf.mxu0
      %v8646 = vadd.f32 %v8505, %v8645
      %8647 = vmatmul.bf16.gmra.mxu0 %v8555
      %v8648 = vpop.f32.mrf.mxu0
      %v8649 = vadd.f32 %v8508, %v8648
      %v8650 = vpop.f32.mrf.mxu0
      %v8651 = vadd.f32 %v8510, %v8650
      %8652 = vmatmul.bf16.gmra.mxu0 %v8557
      %v8653 = vpop.f32.mrf.mxu0
      %v8654 = vadd.f32 %v8513, %v8653
      %v8655 = vpop.f32.mrf.mxu0
      %v8656 = vadd.f32 %v8515, %v8655
      %8657 = vdwg.mxu0
      %v8658 = vld [vmem:[#allocation2] sm:$0xe]
      %s8659 = scalar_lea.vmem %s10, 16
      %v8660 = vld [vmem:[%s8659] sm:$0xf]
      %v8661 = vld [vmem:[%s8659 + $0x4] sm:$0xf]
      %v8663 = vunpack.c.l.b16 %v8658
      %v8664 = vpack.c.b16 %v8155, %v8663
      %v8665 = vrot.slane %v8664, 1
      %v8666 = vrot.slane %v8192, 1
      %v8667 = vsel %vm4142, %v8665, %v8666
      %v8668 = vrot.slane %v8193, 1
      %v8669 = vsel %vm4142, %v8666, %v8668
      %v8670 = vrot.slane %v8194, 1
      %v8671 = vsel %vm4142, %v8668, %v8670
      %v8672 = vrot.slane %v8195, 1
      %v8673 = vsel %vm4142, %v8670, %v8672
      %v8674 = vrot.slane %v8196, 1
      %v8675 = vsel %vm4142, %v8672, %v8674
      %v8676 = vrot.slane %v8197, 1
      %v8677 = vsel %vm4142, %v8674, %v8676
      %v8678 = vrot.slane %v8198, 1
      %v8679 = vsel %vm4142, %v8676, %v8678
      %v8680 = vrot.slane %v8199, 1
      %v8681 = vsel %vm4142, %v8678, %v8680
      %v8682 = vrot.slane %v8200, 1
      %v8683 = vsel %vm4142, %v8680, %v8682
      %v8684 = vrot.slane %v8201, 1
      %v8685 = vsel %vm4142, %v8682, %v8684
      %v8686 = vrot.slane %v8202, 1
      %v8687 = vsel %vm4142, %v8684, %v8686
      %v8688 = vrot.slane %v8203, 1
      %v8689 = vsel %vm4142, %v8686, %v8688
      %v8690 = vrot.slane %v8204, 1
      %v8691 = vsel %vm4142, %v8688, %v8690
      %v8692 = vrot.slane %v8205, 1
      %v8693 = vsel %vm4142, %v8690, %v8692
      %v8694 = vrot.slane %v8206, 1
      %v8695 = vsel %vm4142, %v8692, %v8694
      %v8696 = vrot.slane %v8207, 1
      %v8697 = vsel %vm4142, %v8694, %v8696
      %v8698 = vrot.slane %v8208, 1
      %v8699 = vsel %vm4142, %v8696, %v8698
      %v8700 = vrot.slane %v8209, 1
      %v8701 = vsel %vm4142, %v8698, %v8700
      %v8704 = vunpack.c.l.b16 %v8660
      %v8705 = vunpack.c.l.b16 %v8661
      %v8706 = vpack.c.b16 %v8705, %v8704
      %v8709 = vsel %vm3073, %v8667, 0
      %v8712 = vsel %vm3073, %v8669, 0
      %v8715 = vsel %vm3073, %v8671, 0
      %v8718 = vsel %vm3073, %v8673, 0
      %v8721 = vsel %vm3073, %v8675, 0
      %v8724 = vsel %vm3073, %v8677, 0
      %v8727 = vsel %vm3073, %v8679, 0
      %v8730 = vsel %vm3073, %v8681, 0
      %v8733 = vsel %vm3073, %v8683, 0
      %v8736 = vsel %vm3073, %v8685, 0
      %v8739 = vsel %vm3073, %v8687, 0
      %v8742 = vsel %vm3073, %v8689, 0
      %v8745 = vsel %vm3073, %v8691, 0
      %v8748 = vsel %vm3073, %v8693, 0
      %v8751 = vsel %vm3073, %v8695, 0
      %v8754 = vsel %vm3073, %v8697, 0
      %v8757 = vsel %vm3073, %v8699, 0
      %v8760 = vsel %vm3073, %v8701, 0
      %8762 = vmatpush.bf16.msra.mxu0 0
      %8763 = vmatpush.bf16.msra.mxu0 0
      %8764 = vmatpush.bf16.msra.mxu0 0
      %8765 = vmatpush.bf16.msra.mxu0 0
      %8766 = vmatpush.bf16.msra.mxu0 0
      %8767 = vmatpush.bf16.msra.mxu0 0
      %8768 = vmatpush.bf16.msra.mxu0 0
      %8769 = vmatpush.bf16.msra.mxu0 %v8706
      %8770 = vmatmul.bf16.gmra.mxu0 %v8709
      %v8771 = vpop.f32.mrf.mxu0
      %v8772 = vadd.f32 0.0, %v8771
      %v8773 = vpop.f32.mrf.mxu0
      %v8774 = vadd.f32 0.0, %v8773
      %8775 = vmatmul.bf16.gmra.mxu0 %v8712
      %v8776 = vpop.f32.mrf.mxu0
      %v8777 = vadd.f32 0.0, %v8776
      %v8778 = vpop.f32.mrf.mxu0
      %v8779 = vadd.f32 0.0, %v8778
      %8780 = vmatmul.bf16.gmra.mxu0 %v8715
      %v8781 = vpop.f32.mrf.mxu0
      %v8782 = vadd.f32 0.0, %v8781
      %v8783 = vpop.f32.mrf.mxu0
      %v8784 = vadd.f32 0.0, %v8783
      %8785 = vmatmul.bf16.gmra.mxu0 %v8718
      %v8786 = vpop.f32.mrf.mxu0
      %v8787 = vadd.f32 0.0, %v8786
      %v8788 = vpop.f32.mrf.mxu0
      %v8789 = vadd.f32 0.0, %v8788
      %8790 = vmatmul.bf16.gmra.mxu0 %v8721
      %v8791 = vpop.f32.mrf.mxu0
      %v8792 = vadd.f32 0.0, %v8791
      %v8793 = vpop.f32.mrf.mxu0
      %v8794 = vadd.f32 0.0, %v8793
      %8795 = vmatmul.bf16.gmra.mxu0 %v8724
      %v8796 = vpop.f32.mrf.mxu0
      %v8797 = vadd.f32 0.0, %v8796
      %v8798 = vpop.f32.mrf.mxu0
      %v8799 = vadd.f32 0.0, %v8798
      %8800 = vmatmul.bf16.gmra.mxu0 %v8727
      %v8801 = vpop.f32.mrf.mxu0
      %v8802 = vadd.f32 0.0, %v8801
      %v8803 = vpop.f32.mrf.mxu0
      %v8804 = vadd.f32 0.0, %v8803
      %8805 = vmatmul.bf16.gmra.mxu0 %v8730
      %v8806 = vpop.f32.mrf.mxu0
      %v8807 = vadd.f32 0.0, %v8806
      %v8808 = vpop.f32.mrf.mxu0
      %v8809 = vadd.f32 0.0, %v8808
      %8810 = vmatmul.bf16.gmra.mxu0 %v8733
      %v8811 = vpop.f32.mrf.mxu0
      %v8812 = vadd.f32 0.0, %v8811
      %v8813 = vpop.f32.mrf.mxu0
      %v8814 = vadd.f32 0.0, %v8813
      %8815 = vmatmul.bf16.gmra.mxu0 %v8736
      %v8816 = vpop.f32.mrf.mxu0
      %v8817 = vadd.f32 0.0, %v8816
      %v8818 = vpop.f32.mrf.mxu0
      %v8819 = vadd.f32 0.0, %v8818
      %8820 = vmatmul.bf16.gmra.mxu0 %v8739
      %v8821 = vpop.f32.mrf.mxu0
      %v8822 = vadd.f32 0.0, %v8821
      %v8823 = vpop.f32.mrf.mxu0
      %v8824 = vadd.f32 0.0, %v8823
      %8825 = vmatmul.bf16.gmra.mxu0 %v8742
      %v8826 = vpop.f32.mrf.mxu0
      %v8827 = vadd.f32 0.0, %v8826
      %v8828 = vpop.f32.mrf.mxu0
      %v8829 = vadd.f32 0.0, %v8828
      %8830 = vmatmul.bf16.gmra.mxu0 %v8745
      %v8831 = vpop.f32.mrf.mxu0
      %v8832 = vadd.f32 0.0, %v8831
      %v8833 = vpop.f32.mrf.mxu0
      %v8834 = vadd.f32 0.0, %v8833
      %8835 = vmatmul.bf16.gmra.mxu0 %v8748
      %v8836 = vpop.f32.mrf.mxu0
      %v8837 = vadd.f32 0.0, %v8836
      %v8838 = vpop.f32.mrf.mxu0
      %v8839 = vadd.f32 0.0, %v8838
      %8840 = vmatmul.bf16.gmra.mxu0 %v8751
      %v8841 = vpop.f32.mrf.mxu0
      %v8842 = vadd.f32 0.0, %v8841
      %v8843 = vpop.f32.mrf.mxu0
      %v8844 = vadd.f32 0.0, %v8843
      %8845 = vmatmul.bf16.gmra.mxu0 %v8754
      %v8846 = vpop.f32.mrf.mxu0
      %v8847 = vadd.f32 0.0, %v8846
      %v8848 = vpop.f32.mrf.mxu0
      %v8849 = vadd.f32 0.0, %v8848
      %8850 = vmatmul.bf16.gmra.mxu0 %v8757
      %v8851 = vpop.f32.mrf.mxu0
      %v8852 = vadd.f32 0.0, %v8851
      %v8853 = vpop.f32.mrf.mxu0
      %v8854 = vadd.f32 0.0, %v8853
      %8855 = vmatmul.bf16.gmra.mxu0 %v8760
      %v8856 = vpop.f32.mrf.mxu0
      %v8857 = vadd.f32 0.0, %v8856
      %v8858 = vpop.f32.mrf.mxu0
      %v8859 = vadd.f32 0.0, %v8858
      %8860 = vdwg.mxu0
      %v8861 = vadd.f32 %v8569, %v8772
      %v8862 = vadd.f32 %v8571, %v8774
      %v8863 = vadd.f32 %v8574, %v8777
      %v8864 = vadd.f32 %v8576, %v8779
      %v8865 = vadd.f32 %v8579, %v8782
      %v8866 = vadd.f32 %v8581, %v8784
      %v8867 = vadd.f32 %v8584, %v8787
      %v8868 = vadd.f32 %v8586, %v8789
      %v8869 = vadd.f32 %v8589, %v8792
      %v8870 = vadd.f32 %v8591, %v8794
      %v8871 = vadd.f32 %v8594, %v8797
      %v8872 = vadd.f32 %v8596, %v8799
      %v8873 = vadd.f32 %v8599, %v8802
      %v8874 = vadd.f32 %v8601, %v8804
      %v8875 = vadd.f32 %v8604, %v8807
      %v8876 = vadd.f32 %v8606, %v8809
      %v8877 = vadd.f32 %v8609, %v8812
      %v8878 = vadd.f32 %v8611, %v8814
      %v8879 = vadd.f32 %v8614, %v8817
      %v8880 = vadd.f32 %v8616, %v8819
      %v8881 = vadd.f32 %v8619, %v8822
      %v8882 = vadd.f32 %v8621, %v8824
      %v8883 = vadd.f32 %v8624, %v8827
      %v8884 = vadd.f32 %v8626, %v8829
      %v8885 = vadd.f32 %v8629, %v8832
      %v8886 = vadd.f32 %v8631, %v8834
      %v8887 = vadd.f32 %v8634, %v8837
      %v8888 = vadd.f32 %v8636, %v8839
      %v8889 = vadd.f32 %v8639, %v8842
      %v8890 = vadd.f32 %v8641, %v8844
      %v8891 = vadd.f32 %v8644, %v8847
      %v8892 = vadd.f32 %v8646, %v8849
      %v8893 = vadd.f32 %v8649, %v8852
      %v8894 = vadd.f32 %v8651, %v8854
      %v8895 = vadd.f32 %v8654, %v8857
      %v8896 = vadd.f32 %v8656, %v8859
      %v8897 = vld [vmem:[#allocation2 + $0x8] sm:$0xe]
      %v8898 = vld [vmem:[#allocation2 + $0xc] sm:$0xf]
      %v8899 = vld [vmem:[#allocation2 + $0x10] sm:$0xf]
      %v8900 = vld [vmem:[#allocation2 + $0x14] sm:$0xf]
      %v8901 = vld [vmem:[#allocation2 + $0x18] sm:$0xf]
      %v8902 = vld [vmem:[#allocation2 + $0x1c] sm:$0xf]
      %v8903 = vld [vmem:[#allocation2 + $0x20] sm:$0xf]
      %v8904 = vld [vmem:[#allocation2 + $0x24] sm:$0xf]
      %v8905 = vld [vmem:[#allocation2 + $0x28] sm:$0xf]
      %v8906 = vld [vmem:[#allocation2 + $0x2c] sm:$0xf]
      %v8907 = vld [vmem:[#allocation2 + $0x30] sm:$0xf]
      %v8908 = vld [vmem:[#allocation2 + $0x34] sm:$0xf]
      %v8909 = vld [vmem:[#allocation2 + $0x38] sm:$0xf]
      %v8910 = vld [vmem:[#allocation2 + $0x3c] sm:$0xf]
      %v8911 = vld [vmem:[#allocation2 + $0x40] sm:$0xf]
      %v8912 = vld [vmem:[#allocation2 + $0x44] sm:$0xf]
      %v8913 = vld [vmem:[#allocation2 + $0x48] sm:$0xf]
      %v8914 = vld [vmem:[#allocation2 + $0x4c] sm:$0xf]
      %v8915 = vld [vmem:[#allocation2 + $0x50] sm:$0xf]
      %v8916 = vld [vmem:[#allocation2 + $0x54] sm:$0xf]
      %v8917 = vld [vmem:[#allocation2 + $0x58] sm:$0xf]
      %v8918 = vld [vmem:[#allocation2 + $0x5c] sm:$0xf]
      %v8919 = vld [vmem:[#allocation2 + $0x60] sm:$0xf]
      %v8920 = vld [vmem:[#allocation2 + $0x64] sm:$0xf]
      %v8921 = vld [vmem:[#allocation2 + $0x68] sm:$0xf]
      %v8922 = vld [vmem:[#allocation2 + $0x6c] sm:$0xf]
      %v8923 = vld [vmem:[#allocation2 + $0x70] sm:$0xf]
      %v8924 = vld [vmem:[#allocation2 + $0x74] sm:$0xf]
      %v8925 = vld [vmem:[#allocation2 + $0x78] sm:$0xf]
      %v8926 = vld [vmem:[#allocation2 + $0x7c] sm:$0xf]
      %v8927 = vld [vmem:[#allocation2 + $0x80] sm:$0xf]
      %v8928 = vld [vmem:[#allocation2 + $0x84] sm:$0xf]
      %v8929 = vld [vmem:[#allocation2 + $0x88] sm:$0xf]
      %v8930 = vld [vmem:[#allocation2 + $0x8c] sm:$0xf]
      %v8931 = vld [vmem:[#allocation2 + $0x90] sm:$0xf]
      %v8932 = vld [vmem:[#allocation2 + $0x94] sm:$0xf]
      %v8933 = vld [vmem:[#allocation2 + $0x98] sm:$0x1]
      %s8934 = scalar_lea.vmem %s10, 24
      %v8935 = vld [vmem:[%s8934] sm:$0xf]
      %v8936 = vld [vmem:[%s8934 + $0x4] sm:$0xf]
      %v8974 = vunpack.c.l.b16 %v8897
      %v8975 = vunpack.c.l.b16 %v8898
      %v8976 = vunpack.c.l.b16 %v8899
      %v8977 = vunpack.c.l.b16 %v8900
      %v8978 = vunpack.c.l.b16 %v8901
      %v8979 = vunpack.c.l.b16 %v8902
      %v8980 = vunpack.c.l.b16 %v8903
      %v8981 = vunpack.c.l.b16 %v8904
      %v8982 = vunpack.c.l.b16 %v8905
      %v8983 = vunpack.c.l.b16 %v8906
      %v8984 = vunpack.c.l.b16 %v8907
      %v8985 = vunpack.c.l.b16 %v8908
      %v8986 = vunpack.c.l.b16 %v8909
      %v8987 = vunpack.c.l.b16 %v8910
      %v8988 = vunpack.c.l.b16 %v8911
      %v8989 = vunpack.c.l.b16 %v8912
      %v8990 = vunpack.c.l.b16 %v8913
      %v8991 = vunpack.c.l.b16 %v8914
      %v8992 = vunpack.c.l.b16 %v8915
      %v8993 = vunpack.c.l.b16 %v8916
      %v8994 = vunpack.c.l.b16 %v8917
      %v8995 = vunpack.c.l.b16 %v8918
      %v8996 = vunpack.c.l.b16 %v8919
      %v8997 = vunpack.c.l.b16 %v8920
      %v8998 = vunpack.c.l.b16 %v8921
      %v8999 = vunpack.c.l.b16 %v8922
      %v9000 = vunpack.c.l.b16 %v8923
      %v9001 = vunpack.c.l.b16 %v8924
      %v9002 = vunpack.c.l.b16 %v8925
      %v9003 = vunpack.c.l.b16 %v8926
      %v9004 = vunpack.c.l.b16 %v8927
      %v9005 = vunpack.c.l.b16 %v8928
      %v9006 = vunpack.c.l.b16 %v8929
      %v9007 = vunpack.c.l.b16 %v8930
      %v9008 = vunpack.c.l.b16 %v8931
      %v9009 = vunpack.c.l.b16 %v8932
      %v9010 = vunpack.c.l.b16 %v8933
      %v9011 = vpack.c.b16 %v8975, %v8974
      %v9012 = vpack.c.b16 %v8977, %v8976
      %v9013 = vpack.c.b16 %v8979, %v8978
      %v9014 = vpack.c.b16 %v8981, %v8980
      %v9015 = vpack.c.b16 %v8983, %v8982
      %v9016 = vpack.c.b16 %v8985, %v8984
      %v9017 = vpack.c.b16 %v8987, %v8986
      %v9018 = vpack.c.b16 %v8989, %v8988
      %v9019 = vpack.c.b16 %v8991, %v8990
      %v9020 = vpack.c.b16 %v8993, %v8992
      %v9021 = vpack.c.b16 %v8995, %v8994
      %v9022 = vpack.c.b16 %v8997, %v8996
      %v9023 = vpack.c.b16 %v8999, %v8998
      %v9024 = vpack.c.b16 %v9001, %v9000
      %v9025 = vpack.c.b16 %v9003, %v9002
      %v9026 = vpack.c.b16 %v9005, %v9004
      %v9027 = vpack.c.b16 %v9007, %v9006
      %v9028 = vpack.c.b16 %v9009, %v9008
      %v9029 = vpack.c.b16 %v9010, %v9010
      %v9030 = vrot.slane %v9011, 1
      %v9031 = vrot.slane %v9012, 1
      %v9032 = vsel %vm4142, %v9030, %v9031
      %v9033 = vrot.slane %v9013, 1
      %v9034 = vsel %vm4142, %v9031, %v9033
      %v9035 = vrot.slane %v9014, 1
      %v9036 = vsel %vm4142, %v9033, %v9035
      %v9037 = vrot.slane %v9015, 1
      %v9038 = vsel %vm4142, %v9035, %v9037
      %v9039 = vrot.slane %v9016, 1
      %v9040 = vsel %vm4142, %v9037, %v9039
      %v9041 = vrot.slane %v9017, 1
      %v9042 = vsel %vm4142, %v9039, %v9041
      %v9043 = vrot.slane %v9018, 1
      %v9044 = vsel %vm4142, %v9041, %v9043
      %v9045 = vrot.slane %v9019, 1
      %v9046 = vsel %vm4142, %v9043, %v9045
      %v9047 = vrot.slane %v9020, 1
      %v9048 = vsel %vm4142, %v9045, %v9047
      %v9049 = vrot.slane %v9021, 1
      %v9050 = vsel %vm4142, %v9047, %v9049
      %v9051 = vrot.slane %v9022, 1
      %v9052 = vsel %vm4142, %v9049, %v9051
      %v9053 = vrot.slane %v9023, 1
      %v9054 = vsel %vm4142, %v9051, %v9053
      %v9055 = vrot.slane %v9024, 1
      %v9056 = vsel %vm4142, %v9053, %v9055
      %v9057 = vrot.slane %v9025, 1
      %v9058 = vsel %vm4142, %v9055, %v9057
      %v9059 = vrot.slane %v9026, 1
      %v9060 = vsel %vm4142, %v9057, %v9059
      %v9061 = vrot.slane %v9027, 1
      %v9062 = vsel %vm4142, %v9059, %v9061
      %v9063 = vrot.slane %v9028, 1
      %v9064 = vsel %vm4142, %v9061, %v9063
      %v9065 = vrot.slane %v9029, 1
      %v9066 = vsel %vm4142, %v9063, %v9065
      %v9069 = vunpack.c.l.b16 %v8935
      %v9070 = vunpack.c.l.b16 %v8936
      %v9071 = vpack.c.b16 %v9070, %v9069
      %v9074 = vsel %vm3073, %v9032, 0
      %v9077 = vsel %vm3073, %v9034, 0
      %v9080 = vsel %vm3073, %v9036, 0
      %v9083 = vsel %vm3073, %v9038, 0
      %v9086 = vsel %vm3073, %v9040, 0
      %v9089 = vsel %vm3073, %v9042, 0
      %v9092 = vsel %vm3073, %v9044, 0
      %v9095 = vsel %vm3073, %v9046, 0
      %v9098 = vsel %vm3073, %v9048, 0
      %v9101 = vsel %vm3073, %v9050, 0
      %v9104 = vsel %vm3073, %v9052, 0
      %v9107 = vsel %vm3073, %v9054, 0
      %v9110 = vsel %vm3073, %v9056, 0
      %v9113 = vsel %vm3073, %v9058, 0
      %v9116 = vsel %vm3073, %v9060, 0
      %v9119 = vsel %vm3073, %v9062, 0
      %v9122 = vsel %vm3073, %v9064, 0
      %v9125 = vsel %vm3073, %v9066, 0
      %9127 = vmatpush.bf16.msra.mxu0 0
      %9128 = vmatpush.bf16.msra.mxu0 0
      %9129 = vmatpush.bf16.msra.mxu0 0
      %9130 = vmatpush.bf16.msra.mxu0 0
      %9131 = vmatpush.bf16.msra.mxu0 0
      %9132 = vmatpush.bf16.msra.mxu0 0
      %9133 = vmatpush.bf16.msra.mxu0 0
      %9134 = vmatpush.bf16.msra.mxu0 %v9071
      %9135 = vmatmul.bf16.gmra.mxu0 %v9074
      %v9136 = vpop.f32.mrf.mxu0
      %v9137 = vadd.f32 0.0, %v9136
      %v9138 = vpop.f32.mrf.mxu0
      %v9139 = vadd.f32 0.0, %v9138
      %9140 = vmatmul.bf16.gmra.mxu0 %v9077
      %v9141 = vpop.f32.mrf.mxu0
      %v9142 = vadd.f32 0.0, %v9141
      %v9143 = vpop.f32.mrf.mxu0
      %v9144 = vadd.f32 0.0, %v9143
      %9145 = vmatmul.bf16.gmra.mxu0 %v9080
      %v9146 = vpop.f32.mrf.mxu0
      %v9147 = vadd.f32 0.0, %v9146
      %v9148 = vpop.f32.mrf.mxu0
      %v9149 = vadd.f32 0.0, %v9148
      %9150 = vmatmul.bf16.gmra.mxu0 %v9083
      %v9151 = vpop.f32.mrf.mxu0
      %v9152 = vadd.f32 0.0, %v9151
      %v9153 = vpop.f32.mrf.mxu0
      %v9154 = vadd.f32 0.0, %v9153
      %9155 = vmatmul.bf16.gmra.mxu0 %v9086
      %v9156 = vpop.f32.mrf.mxu0
      %v9157 = vadd.f32 0.0, %v9156
      %v9158 = vpop.f32.mrf.mxu0
      %v9159 = vadd.f32 0.0, %v9158
      %9160 = vmatmul.bf16.gmra.mxu0 %v9089
      %v9161 = vpop.f32.mrf.mxu0
      %v9162 = vadd.f32 0.0, %v9161
      %v9163 = vpop.f32.mrf.mxu0
      %v9164 = vadd.f32 0.0, %v9163
      %9165 = vmatmul.bf16.gmra.mxu0 %v9092
      %v9166 = vpop.f32.mrf.mxu0
      %v9167 = vadd.f32 0.0, %v9166
      %v9168 = vpop.f32.mrf.mxu0
      %v9169 = vadd.f32 0.0, %v9168
      %9170 = vmatmul.bf16.gmra.mxu0 %v9095
      %v9171 = vpop.f32.mrf.mxu0
      %v9172 = vadd.f32 0.0, %v9171
      %v9173 = vpop.f32.mrf.mxu0
      %v9174 = vadd.f32 0.0, %v9173
      %9175 = vmatmul.bf16.gmra.mxu0 %v9098
      %v9176 = vpop.f32.mrf.mxu0
      %v9177 = vadd.f32 0.0, %v9176
      %v9178 = vpop.f32.mrf.mxu0
      %v9179 = vadd.f32 0.0, %v9178
      %9180 = vmatmul.bf16.gmra.mxu0 %v9101
      %v9181 = vpop.f32.mrf.mxu0
      %v9182 = vadd.f32 0.0, %v9181
      %v9183 = vpop.f32.mrf.mxu0
      %v9184 = vadd.f32 0.0, %v9183
      %9185 = vmatmul.bf16.gmra.mxu0 %v9104
      %v9186 = vpop.f32.mrf.mxu0
      %v9187 = vadd.f32 0.0, %v9186
      %v9188 = vpop.f32.mrf.mxu0
      %v9189 = vadd.f32 0.0, %v9188
      %9190 = vmatmul.bf16.gmra.mxu0 %v9107
      %v9191 = vpop.f32.mrf.mxu0
      %v9192 = vadd.f32 0.0, %v9191
      %v9193 = vpop.f32.mrf.mxu0
      %v9194 = vadd.f32 0.0, %v9193
      %9195 = vmatmul.bf16.gmra.mxu0 %v9110
      %v9196 = vpop.f32.mrf.mxu0
      %v9197 = vadd.f32 0.0, %v9196
      %v9198 = vpop.f32.mrf.mxu0
      %v9199 = vadd.f32 0.0, %v9198
      %9200 = vmatmul.bf16.gmra.mxu0 %v9113
      %v9201 = vpop.f32.mrf.mxu0
      %v9202 = vadd.f32 0.0, %v9201
      %v9203 = vpop.f32.mrf.mxu0
      %v9204 = vadd.f32 0.0, %v9203
      %9205 = vmatmul.bf16.gmra.mxu0 %v9116
      %v9206 = vpop.f32.mrf.mxu0
      %v9207 = vadd.f32 0.0, %v9206
      %v9208 = vpop.f32.mrf.mxu0
      %v9209 = vadd.f32 0.0, %v9208
      %9210 = vmatmul.bf16.gmra.mxu0 %v9119
      %v9211 = vpop.f32.mrf.mxu0
      %v9212 = vadd.f32 0.0, %v9211
      %v9213 = vpop.f32.mrf.mxu0
      %v9214 = vadd.f32 0.0, %v9213
      %9215 = vmatmul.bf16.gmra.mxu0 %v9122
      %v9216 = vpop.f32.mrf.mxu0
      %v9217 = vadd.f32 0.0, %v9216
      %v9218 = vpop.f32.mrf.mxu0
      %v9219 = vadd.f32 0.0, %v9218
      %9220 = vmatmul.bf16.gmra.mxu0 %v9125
      %v9221 = vpop.f32.mrf.mxu0
      %v9222 = vadd.f32 0.0, %v9221
      %v9223 = vpop.f32.mrf.mxu0
      %v9224 = vadd.f32 0.0, %v9223
      %9225 = vdwg.mxu0
      %v9226 = vadd.f32 %v8861, %v9137
      %v9227 = vadd.f32 %v8862, %v9139
      %v9228 = vadd.f32 %v8863, %v9142
      %v9229 = vadd.f32 %v8864, %v9144
      %v9230 = vadd.f32 %v8865, %v9147
      %v9231 = vadd.f32 %v8866, %v9149
      %v9232 = vadd.f32 %v8867, %v9152
      %v9233 = vadd.f32 %v8868, %v9154
      %v9234 = vadd.f32 %v8869, %v9157
      %v9235 = vadd.f32 %v8870, %v9159
      %v9236 = vadd.f32 %v8871, %v9162
      %v9237 = vadd.f32 %v8872, %v9164
      %v9238 = vadd.f32 %v8873, %v9167
      %v9239 = vadd.f32 %v8874, %v9169
      %v9240 = vadd.f32 %v8875, %v9172
      %v9241 = vadd.f32 %v8876, %v9174
      %v9242 = vadd.f32 %v8877, %v9177
      %v9243 = vadd.f32 %v8878, %v9179
      %v9244 = vadd.f32 %v8879, %v9182
      %v9245 = vadd.f32 %v8880, %v9184
      %v9246 = vadd.f32 %v8881, %v9187
      %v9247 = vadd.f32 %v8882, %v9189
      %v9248 = vadd.f32 %v8883, %v9192
      %v9249 = vadd.f32 %v8884, %v9194
      %v9250 = vadd.f32 %v8885, %v9197
      %v9251 = vadd.f32 %v8886, %v9199
      %v9252 = vadd.f32 %v8887, %v9202
      %v9253 = vadd.f32 %v8888, %v9204
      %v9254 = vadd.f32 %v8889, %v9207
      %v9255 = vadd.f32 %v8890, %v9209
      %v9256 = vadd.f32 %v8891, %v9212
      %v9257 = vadd.f32 %v8892, %v9214
      %v9258 = vadd.f32 %v8893, %v9217
      %v9259 = vadd.f32 %v8894, %v9219
      %v9260 = vadd.f32 %v8895, %v9222
      %v9261 = vadd.f32 %v8896, %v9224
      %v9262 = vld [vmem:[#allocation2 + $0x98] sm:$0x3]
      %s9263 = scalar_lea.vmem %s10, 32
      %v9264 = vld [vmem:[%s9263] sm:$0xf]
      %v9265 = vld [vmem:[%s9263 + $0x4] sm:$0xf]
      %v9267 = vunpack.c.l.b16 %v9262
      %v9268 = vpack.c.b16 %v9267, %v9267
      %v9270 = vshrl.u32 %v9011, 16
      %v9272 = vrot.slane %v9270, 1
      %v9273 = vshll.u32 %v9011, 16
      %v9275 = vrot.slane %v9273, 2
      %v9276 = vor.u32 %v9272, %v9275
      %v9278 = vshrl.u32 %v9012, 16
      %v9280 = vrot.slane %v9278, 1
      %v9281 = vshll.u32 %v9012, 16
      %v9283 = vrot.slane %v9281, 2
      %v9284 = vor.u32 %v9280, %v9283
      %v9285 = vsel %vm4933, %v9276, %v9284
      %v9287 = vshrl.u32 %v9013, 16
      %v9289 = vrot.slane %v9287, 1
      %v9290 = vshll.u32 %v9013, 16
      %v9292 = vrot.slane %v9290, 2
      %v9293 = vor.u32 %v9289, %v9292
      %v9294 = vsel %vm4933, %v9284, %v9293
      %v9296 = vshrl.u32 %v9014, 16
      %v9298 = vrot.slane %v9296, 1
      %v9299 = vshll.u32 %v9014, 16
      %v9301 = vrot.slane %v9299, 2
      %v9302 = vor.u32 %v9298, %v9301
      %v9303 = vsel %vm4933, %v9293, %v9302
      %v9305 = vshrl.u32 %v9015, 16
      %v9307 = vrot.slane %v9305, 1
      %v9308 = vshll.u32 %v9015, 16
      %v9310 = vrot.slane %v9308, 2
      %v9311 = vor.u32 %v9307, %v9310
      %v9312 = vsel %vm4933, %v9302, %v9311
      %v9314 = vshrl.u32 %v9016, 16
      %v9316 = vrot.slane %v9314, 1
      %v9317 = vshll.u32 %v9016, 16
      %v9319 = vrot.slane %v9317, 2
      %v9320 = vor.u32 %v9316, %v9319
      %v9321 = vsel %vm4933, %v9311, %v9320
      %v9323 = vshrl.u32 %v9017, 16
      %v9325 = vrot.slane %v9323, 1
      %v9326 = vshll.u32 %v9017, 16
      %v9328 = vrot.slane %v9326, 2
      %v9329 = vor.u32 %v9325, %v9328
      %v9330 = vsel %vm4933, %v9320, %v9329
      %v9332 = vshrl.u32 %v9018, 16
      %v9334 = vrot.slane %v9332, 1
      %v9335 = vshll.u32 %v9018, 16
      %v9337 = vrot.slane %v9335, 2
      %v9338 = vor.u32 %v9334, %v9337
      %v9339 = vsel %vm4933, %v9329, %v9338
      %v9341 = vshrl.u32 %v9019, 16
      %v9343 = vrot.slane %v9341, 1
      %v9344 = vshll.u32 %v9019, 16
      %v9346 = vrot.slane %v9344, 2
      %v9347 = vor.u32 %v9343, %v9346
      %v9348 = vsel %vm4933, %v9338, %v9347
      %v9350 = vshrl.u32 %v9020, 16
      %v9352 = vrot.slane %v9350, 1
      %v9353 = vshll.u32 %v9020, 16
      %v9355 = vrot.slane %v9353, 2
      %v9356 = vor.u32 %v9352, %v9355
      %v9357 = vsel %vm4933, %v9347, %v9356
      %v9359 = vshrl.u32 %v9021, 16
      %v9361 = vrot.slane %v9359, 1
      %v9362 = vshll.u32 %v9021, 16
      %v9364 = vrot.slane %v9362, 2
      %v9365 = vor.u32 %v9361, %v9364
      %v9366 = vsel %vm4933, %v9356, %v9365
      %v9368 = vshrl.u32 %v9022, 16
      %v9370 = vrot.slane %v9368, 1
      %v9371 = vshll.u32 %v9022, 16
      %v9373 = vrot.slane %v9371, 2
      %v9374 = vor.u32 %v9370, %v9373
      %v9375 = vsel %vm4933, %v9365, %v9374
      %v9377 = vshrl.u32 %v9023, 16
      %v9379 = vrot.slane %v9377, 1
      %v9380 = vshll.u32 %v9023, 16
      %v9382 = vrot.slane %v9380, 2
      %v9383 = vor.u32 %v9379, %v9382
      %v9384 = vsel %vm4933, %v9374, %v9383
      %v9386 = vshrl.u32 %v9024, 16
      %v9388 = vrot.slane %v9386, 1
      %v9389 = vshll.u32 %v9024, 16
      %v9391 = vrot.slane %v9389, 2
      %v9392 = vor.u32 %v9388, %v9391
      %v9393 = vsel %vm4933, %v9383, %v9392
      %v9395 = vshrl.u32 %v9025, 16
      %v9397 = vrot.slane %v9395, 1
      %v9398 = vshll.u32 %v9025, 16
      %v9400 = vrot.slane %v9398, 2
      %v9401 = vor.u32 %v9397, %v9400
      %v9402 = vsel %vm4933, %v9392, %v9401
      %v9404 = vshrl.u32 %v9026, 16
      %v9406 = vrot.slane %v9404, 1
      %v9407 = vshll.u32 %v9026, 16
      %v9409 = vrot.slane %v9407, 2
      %v9410 = vor.u32 %v9406, %v9409
      %v9411 = vsel %vm4933, %v9401, %v9410
      %v9413 = vshrl.u32 %v9027, 16
      %v9415 = vrot.slane %v9413, 1
      %v9416 = vshll.u32 %v9027, 16
      %v9418 = vrot.slane %v9416, 2
      %v9419 = vor.u32 %v9415, %v9418
      %v9420 = vsel %vm4933, %v9410, %v9419
      %v9422 = vshrl.u32 %v9028, 16
      %v9424 = vrot.slane %v9422, 1
      %v9425 = vshll.u32 %v9028, 16
      %v9427 = vrot.slane %v9425, 2
      %v9428 = vor.u32 %v9424, %v9427
      %v9429 = vsel %vm4933, %v9419, %v9428
      %v9431 = vshrl.u32 %v9268, 16
      %v9433 = vrot.slane %v9431, 1
      %v9434 = vshll.u32 %v9268, 16
      %v9436 = vrot.slane %v9434, 2
      %v9437 = vor.u32 %v9433, %v9436
      %v9438 = vsel %vm4933, %v9428, %v9437
      %v9441 = vunpack.c.l.b16 %v9264
      %v9442 = vunpack.c.l.b16 %v9265
      %v9443 = vpack.c.b16 %v9442, %v9441
      %v9446 = vsel %vm3073, %v9285, 0
      %v9449 = vsel %vm3073, %v9294, 0
      %v9452 = vsel %vm3073, %v9303, 0
      %v9455 = vsel %vm3073, %v9312, 0
      %v9458 = vsel %vm3073, %v9321, 0
      %v9461 = vsel %vm3073, %v9330, 0
      %v9464 = vsel %vm3073, %v9339, 0
      %v9467 = vsel %vm3073, %v9348, 0
      %v9470 = vsel %vm3073, %v9357, 0
      %v9473 = vsel %vm3073, %v9366, 0
      %v9476 = vsel %vm3073, %v9375, 0
      %v9479 = vsel %vm3073, %v9384, 0
      %v9482 = vsel %vm3073, %v9393, 0
      %v9485 = vsel %vm3073, %v9402, 0
      %v9488 = vsel %vm3073, %v9411, 0
      %v9491 = vsel %vm3073, %v9420, 0
      %v9494 = vsel %vm3073, %v9429, 0
      %v9497 = vsel %vm3073, %v9438, 0
      %9499 = vmatpush.bf16.msra.mxu0 0
      %9500 = vmatpush.bf16.msra.mxu0 0
      %9501 = vmatpush.bf16.msra.mxu0 0
      %9502 = vmatpush.bf16.msra.mxu0 0
      %9503 = vmatpush.bf16.msra.mxu0 0
      %9504 = vmatpush.bf16.msra.mxu0 0
      %9505 = vmatpush.bf16.msra.mxu0 0
      %9506 = vmatpush.bf16.msra.mxu0 %v9443
      %9507 = vmatmul.bf16.gmra.mxu0 %v9446
      %v9508 = vpop.f32.mrf.mxu0
      %v9509 = vadd.f32 0.0, %v9508
      %v9510 = vpop.f32.mrf.mxu0
      %v9511 = vadd.f32 0.0, %v9510
      %9512 = vmatmul.bf16.gmra.mxu0 %v9449
      %v9513 = vpop.f32.mrf.mxu0
      %v9514 = vadd.f32 0.0, %v9513
      %v9515 = vpop.f32.mrf.mxu0
      %v9516 = vadd.f32 0.0, %v9515
      %9517 = vmatmul.bf16.gmra.mxu0 %v9452
      %v9518 = vpop.f32.mrf.mxu0
      %v9519 = vadd.f32 0.0, %v9518
      %v9520 = vpop.f32.mrf.mxu0
      %v9521 = vadd.f32 0.0, %v9520
      %9522 = vmatmul.bf16.gmra.mxu0 %v9455
      %v9523 = vpop.f32.mrf.mxu0
      %v9524 = vadd.f32 0.0, %v9523
      %v9525 = vpop.f32.mrf.mxu0
      %v9526 = vadd.f32 0.0, %v9525
      %9527 = vmatmul.bf16.gmra.mxu0 %v9458
      %v9528 = vpop.f32.mrf.mxu0
      %v9529 = vadd.f32 0.0, %v9528
      %v9530 = vpop.f32.mrf.mxu0
      %v9531 = vadd.f32 0.0, %v9530
      %9532 = vmatmul.bf16.gmra.mxu0 %v9461
      %v9533 = vpop.f32.mrf.mxu0
      %v9534 = vadd.f32 0.0, %v9533
      %v9535 = vpop.f32.mrf.mxu0
      %v9536 = vadd.f32 0.0, %v9535
      %9537 = vmatmul.bf16.gmra.mxu0 %v9464
      %v9538 = vpop.f32.mrf.mxu0
      %v9539 = vadd.f32 0.0, %v9538
      %v9540 = vpop.f32.mrf.mxu0
      %v9541 = vadd.f32 0.0, %v9540
      %9542 = vmatmul.bf16.gmra.mxu0 %v9467
      %v9543 = vpop.f32.mrf.mxu0
      %v9544 = vadd.f32 0.0, %v9543
      %v9545 = vpop.f32.mrf.mxu0
      %v9546 = vadd.f32 0.0, %v9545
      %9547 = vmatmul.bf16.gmra.mxu0 %v9470
      %v9548 = vpop.f32.mrf.mxu0
      %v9549 = vadd.f32 0.0, %v9548
      %v9550 = vpop.f32.mrf.mxu0
      %v9551 = vadd.f32 0.0, %v9550
      %9552 = vmatmul.bf16.gmra.mxu0 %v9473
      %v9553 = vpop.f32.mrf.mxu0
      %v9554 = vadd.f32 0.0, %v9553
      %v9555 = vpop.f32.mrf.mxu0
      %v9556 = vadd.f32 0.0, %v9555
      %9557 = vmatmul.bf16.gmra.mxu0 %v9476
      %v9558 = vpop.f32.mrf.mxu0
      %v9559 = vadd.f32 0.0, %v9558
      %v9560 = vpop.f32.mrf.mxu0
      %v9561 = vadd.f32 0.0, %v9560
      %9562 = vmatmul.bf16.gmra.mxu0 %v9479
      %v9563 = vpop.f32.mrf.mxu0
      %v9564 = vadd.f32 0.0, %v9563
      %v9565 = vpop.f32.mrf.mxu0
      %v9566 = vadd.f32 0.0, %v9565
      %9567 = vmatmul.bf16.gmra.mxu0 %v9482
      %v9568 = vpop.f32.mrf.mxu0
      %v9569 = vadd.f32 0.0, %v9568
      %v9570 = vpop.f32.mrf.mxu0
      %v9571 = vadd.f32 0.0, %v9570
      %9572 = vmatmul.bf16.gmra.mxu0 %v9485
      %v9573 = vpop.f32.mrf.mxu0
      %v9574 = vadd.f32 0.0, %v9573
      %v9575 = vpop.f32.mrf.mxu0
      %v9576 = vadd.f32 0.0, %v9575
      %9577 = vmatmul.bf16.gmra.mxu0 %v9488
      %v9578 = vpop.f32.mrf.mxu0
      %v9579 = vadd.f32 0.0, %v9578
      %v9580 = vpop.f32.mrf.mxu0
      %v9581 = vadd.f32 0.0, %v9580
      %9582 = vmatmul.bf16.gmra.mxu0 %v9491
      %v9583 = vpop.f32.mrf.mxu0
      %v9584 = vadd.f32 0.0, %v9583
      %v9585 = vpop.f32.mrf.mxu0
      %v9586 = vadd.f32 0.0, %v9585
      %9587 = vmatmul.bf16.gmra.mxu0 %v9494
      %v9588 = vpop.f32.mrf.mxu0
      %v9589 = vadd.f32 0.0, %v9588
      %v9590 = vpop.f32.mrf.mxu0
      %v9591 = vadd.f32 0.0, %v9590
      %9592 = vmatmul.bf16.gmra.mxu0 %v9497
      %v9593 = vpop.f32.mrf.mxu0
      %v9594 = vadd.f32 0.0, %v9593
      %v9595 = vpop.f32.mrf.mxu0
      %v9596 = vadd.f32 0.0, %v9595
      %9597 = vdwg.mxu0
      %v9598 = vadd.f32 %v9226, %v9509
      %v9599 = vadd.f32 %v9227, %v9511
      %v9600 = vadd.f32 %v9228, %v9514
      %v9601 = vadd.f32 %v9229, %v9516
      %v9602 = vadd.f32 %v9230, %v9519
      %v9603 = vadd.f32 %v9231, %v9521
      %v9604 = vadd.f32 %v9232, %v9524
      %v9605 = vadd.f32 %v9233, %v9526
      %v9606 = vadd.f32 %v9234, %v9529
      %v9607 = vadd.f32 %v9235, %v9531
      %v9608 = vadd.f32 %v9236, %v9534
      %v9609 = vadd.f32 %v9237, %v9536
      %v9610 = vadd.f32 %v9238, %v9539
      %v9611 = vadd.f32 %v9239, %v9541
      %v9612 = vadd.f32 %v9240, %v9544
      %v9613 = vadd.f32 %v9241, %v9546
      %v9614 = vadd.f32 %v9242, %v9549
      %v9615 = vadd.f32 %v9243, %v9551
      %v9616 = vadd.f32 %v9244, %v9554
      %v9617 = vadd.f32 %v9245, %v9556
      %v9618 = vadd.f32 %v9246, %v9559
      %v9619 = vadd.f32 %v9247, %v9561
      %v9620 = vadd.f32 %v9248, %v9564
      %v9621 = vadd.f32 %v9249, %v9566
      %v9622 = vadd.f32 %v9250, %v9569
      %v9623 = vadd.f32 %v9251, %v9571
      %v9624 = vadd.f32 %v9252, %v9574
      %v9625 = vadd.f32 %v9253, %v9576
      %v9626 = vadd.f32 %v9254, %v9579
      %v9627 = vadd.f32 %v9255, %v9581
      %v9628 = vadd.f32 %v9256, %v9584
      %v9629 = vadd.f32 %v9257, %v9586
      %v9630 = vadd.f32 %v9258, %v9589
      %v9631 = vadd.f32 %v9259, %v9591
      %v9632 = vadd.f32 %v9260, %v9594
      %v9633 = vadd.f32 %v9261, %v9596
      %v9634 = vld [vmem:[#allocation2 + $0x8] sm:$0xc]
      %s9635 = scalar_lea.vmem %s10, 40
      %v9636 = vld [vmem:[%s9635] sm:$0xf]
      %v9637 = vld [vmem:[%s9635 + $0x4] sm:$0xf]
      %v9639 = vunpack.c.l.b16 %v9634
      %v9640 = vpack.c.b16 %v8975, %v9639
      %v9641 = vrot.slane %v9640, 2
      %v9642 = vrot.slane %v9012, 2
      %v9643 = vsel %vm5500, %v9641, %v9642
      %v9644 = vrot.slane %v9013, 2
      %v9645 = vsel %vm5500, %v9642, %v9644
      %v9646 = vrot.slane %v9014, 2
      %v9647 = vsel %vm5500, %v9644, %v9646
      %v9648 = vrot.slane %v9015, 2
      %v9649 = vsel %vm5500, %v9646, %v9648
      %v9650 = vrot.slane %v9016, 2
      %v9651 = vsel %vm5500, %v9648, %v9650
      %v9652 = vrot.slane %v9017, 2
      %v9653 = vsel %vm5500, %v9650, %v9652
      %v9654 = vrot.slane %v9018, 2
      %v9655 = vsel %vm5500, %v9652, %v9654
      %v9656 = vrot.slane %v9019, 2
      %v9657 = vsel %vm5500, %v9654, %v9656
      %v9658 = vrot.slane %v9020, 2
      %v9659 = vsel %vm5500, %v9656, %v9658
      %v9660 = vrot.slane %v9021, 2
      %v9661 = vsel %vm5500, %v9658, %v9660
      %v9662 = vrot.slane %v9022, 2
      %v9663 = vsel %vm5500, %v9660, %v9662
      %v9664 = vrot.slane %v9023, 2
      %v9665 = vsel %vm5500, %v9662, %v9664
      %v9666 = vrot.slane %v9024, 2
      %v9667 = vsel %vm5500, %v9664, %v9666
      %v9668 = vrot.slane %v9025, 2
      %v9669 = vsel %vm5500, %v9666, %v9668
      %v9670 = vrot.slane %v9026, 2
      %v9671 = vsel %vm5500, %v9668, %v9670
      %v9672 = vrot.slane %v9027, 2
      %v9673 = vsel %vm5500, %v9670, %v9672
      %v9674 = vrot.slane %v9028, 2
      %v9675 = vsel %vm5500, %v9672, %v9674
      %v9676 = vrot.slane %v9268, 2
      %v9677 = vsel %vm5500, %v9674, %v9676
      %v9680 = vunpack.c.l.b16 %v9636
      %v9681 = vunpack.c.l.b16 %v9637
      %v9682 = vpack.c.b16 %v9681, %v9680
      %v9685 = vsel %vm3073, %v9643, 0
      %v9688 = vsel %vm3073, %v9645, 0
      %v9691 = vsel %vm3073, %v9647, 0
      %v9694 = vsel %vm3073, %v9649, 0
      %v9697 = vsel %vm3073, %v9651, 0
      %v9700 = vsel %vm3073, %v9653, 0
      %v9703 = vsel %vm3073, %v9655, 0
      %v9706 = vsel %vm3073, %v9657, 0
      %v9709 = vsel %vm3073, %v9659, 0
      %v9712 = vsel %vm3073, %v9661, 0
      %v9715 = vsel %vm3073, %v9663, 0
      %v9718 = vsel %vm3073, %v9665, 0
      %v9721 = vsel %vm3073, %v9667, 0
      %v9724 = vsel %vm3073, %v9669, 0
      %v9727 = vsel %vm3073, %v9671, 0
      %v9730 = vsel %vm3073, %v9673, 0
      %v9733 = vsel %vm3073, %v9675, 0
      %v9736 = vsel %vm3073, %v9677, 0
      %9738 = vmatpush.bf16.msra.mxu0 0
      %9739 = vmatpush.bf16.msra.mxu0 0
      %9740 = vmatpush.bf16.msra.mxu0 0
      %9741 = vmatpush.bf16.msra.mxu0 0
      %9742 = vmatpush.bf16.msra.mxu0 0
      %9743 = vmatpush.bf16.msra.mxu0 0
      %9744 = vmatpush.bf16.msra.mxu0 0
      %9745 = vmatpush.bf16.msra.mxu0 %v9682
      %9746 = vmatmul.bf16.gmra.mxu0 %v9685
      %v9747 = vpop.f32.mrf.mxu0
      %v9748 = vadd.f32 0.0, %v9747
      %v9749 = vpop.f32.mrf.mxu0
      %v9750 = vadd.f32 0.0, %v9749
      %9751 = vmatmul.bf16.gmra.mxu0 %v9688
      %v9752 = vpop.f32.mrf.mxu0
      %v9753 = vadd.f32 0.0, %v9752
      %v9754 = vpop.f32.mrf.mxu0
      %v9755 = vadd.f32 0.0, %v9754
      %9756 = vmatmul.bf16.gmra.mxu0 %v9691
      %v9757 = vpop.f32.mrf.mxu0
      %v9758 = vadd.f32 0.0, %v9757
      %v9759 = vpop.f32.mrf.mxu0
      %v9760 = vadd.f32 0.0, %v9759
      %9761 = vmatmul.bf16.gmra.mxu0 %v9694
      %v9762 = vpop.f32.mrf.mxu0
      %v9763 = vadd.f32 0.0, %v9762
      %v9764 = vpop.f32.mrf.mxu0
      %v9765 = vadd.f32 0.0, %v9764
      %9766 = vmatmul.bf16.gmra.mxu0 %v9697
      %v9767 = vpop.f32.mrf.mxu0
      %v9768 = vadd.f32 0.0, %v9767
      %v9769 = vpop.f32.mrf.mxu0
      %v9770 = vadd.f32 0.0, %v9769
      %9771 = vmatmul.bf16.gmra.mxu0 %v9700
      %v9772 = vpop.f32.mrf.mxu0
      %v9773 = vadd.f32 0.0, %v9772
      %v9774 = vpop.f32.mrf.mxu0
      %v9775 = vadd.f32 0.0, %v9774
      %9776 = vmatmul.bf16.gmra.mxu0 %v9703
      %v9777 = vpop.f32.mrf.mxu0
      %v9778 = vadd.f32 0.0, %v9777
      %v9779 = vpop.f32.mrf.mxu0
      %v9780 = vadd.f32 0.0, %v9779
      %9781 = vmatmul.bf16.gmra.mxu0 %v9706
      %v9782 = vpop.f32.mrf.mxu0
      %v9783 = vadd.f32 0.0, %v9782
      %v9784 = vpop.f32.mrf.mxu0
      %v9785 = vadd.f32 0.0, %v9784
      %9786 = vmatmul.bf16.gmra.mxu0 %v9709
      %v9787 = vpop.f32.mrf.mxu0
      %v9788 = vadd.f32 0.0, %v9787
      %v9789 = vpop.f32.mrf.mxu0
      %v9790 = vadd.f32 0.0, %v9789
      %9791 = vmatmul.bf16.gmra.mxu0 %v9712
      %v9792 = vpop.f32.mrf.mxu0
      %v9793 = vadd.f32 0.0, %v9792
      %v9794 = vpop.f32.mrf.mxu0
      %v9795 = vadd.f32 0.0, %v9794
      %9796 = vmatmul.bf16.gmra.mxu0 %v9715
      %v9797 = vpop.f32.mrf.mxu0
      %v9798 = vadd.f32 0.0, %v9797
      %v9799 = vpop.f32.mrf.mxu0
      %v9800 = vadd.f32 0.0, %v9799
      %9801 = vmatmul.bf16.gmra.mxu0 %v9718
      %v9802 = vpop.f32.mrf.mxu0
      %v9803 = vadd.f32 0.0, %v9802
      %v9804 = vpop.f32.mrf.mxu0
      %v9805 = vadd.f32 0.0, %v9804
      %9806 = vmatmul.bf16.gmra.mxu0 %v9721
      %v9807 = vpop.f32.mrf.mxu0
      %v9808 = vadd.f32 0.0, %v9807
      %v9809 = vpop.f32.mrf.mxu0
      %v9810 = vadd.f32 0.0, %v9809
      %9811 = vmatmul.bf16.gmra.mxu0 %v9724
      %v9812 = vpop.f32.mrf.mxu0
      %v9813 = vadd.f32 0.0, %v9812
      %v9814 = vpop.f32.mrf.mxu0
      %v9815 = vadd.f32 0.0, %v9814
      %9816 = vmatmul.bf16.gmra.mxu0 %v9727
      %v9817 = vpop.f32.mrf.mxu0
      %v9818 = vadd.f32 0.0, %v9817
      %v9819 = vpop.f32.mrf.mxu0
      %v9820 = vadd.f32 0.0, %v9819
      %9821 = vmatmul.bf16.gmra.mxu0 %v9730
      %v9822 = vpop.f32.mrf.mxu0
      %v9823 = vadd.f32 0.0, %v9822
      %v9824 = vpop.f32.mrf.mxu0
      %v9825 = vadd.f32 0.0, %v9824
      %9826 = vmatmul.bf16.gmra.mxu0 %v9733
      %v9827 = vpop.f32.mrf.mxu0
      %v9828 = vadd.f32 0.0, %v9827
      %v9829 = vpop.f32.mrf.mxu0
      %v9830 = vadd.f32 0.0, %v9829
      %9831 = vmatmul.bf16.gmra.mxu0 %v9736
      %v9832 = vpop.f32.mrf.mxu0
      %v9833 = vadd.f32 0.0, %v9832
      %v9834 = vpop.f32.mrf.mxu0
      %v9835 = vadd.f32 0.0, %v9834
      %9836 = vdwg.mxu0
      %v9837 = vadd.f32 %v9598, %v9748
      %v9838 = vadd.f32 %v9599, %v9750
      %v9839 = vadd.f32 %v9600, %v9753
      %v9840 = vadd.f32 %v9601, %v9755
      %v9841 = vadd.f32 %v9602, %v9758
      %v9842 = vadd.f32 %v9603, %v9760
      %v9843 = vadd.f32 %v9604, %v9763
      %v9844 = vadd.f32 %v9605, %v9765
      %v9845 = vadd.f32 %v9606, %v9768
      %v9846 = vadd.f32 %v9607, %v9770
      %v9847 = vadd.f32 %v9608, %v9773
      %v9848 = vadd.f32 %v9609, %v9775
      %v9849 = vadd.f32 %v9610, %v9778
      %v9850 = vadd.f32 %v9611, %v9780
      %v9851 = vadd.f32 %v9612, %v9783
      %v9852 = vadd.f32 %v9613, %v9785
      %v9853 = vadd.f32 %v9614, %v9788
      %v9854 = vadd.f32 %v9615, %v9790
      %v9855 = vadd.f32 %v9616, %v9793
      %v9856 = vadd.f32 %v9617, %v9795
      %v9857 = vadd.f32 %v9618, %v9798
      %v9858 = vadd.f32 %v9619, %v9800
      %v9859 = vadd.f32 %v9620, %v9803
      %v9860 = vadd.f32 %v9621, %v9805
      %v9861 = vadd.f32 %v9622, %v9808
      %v9862 = vadd.f32 %v9623, %v9810
      %v9863 = vadd.f32 %v9624, %v9813
      %v9864 = vadd.f32 %v9625, %v9815
      %v9865 = vadd.f32 %v9626, %v9818
      %v9866 = vadd.f32 %v9627, %v9820
      %v9867 = vadd.f32 %v9628, %v9823
      %v9868 = vadd.f32 %v9629, %v9825
      %v9869 = vadd.f32 %v9630, %v9828
      %v9870 = vadd.f32 %v9631, %v9830
      %v9871 = vadd.f32 %v9632, %v9833
      %v9872 = vadd.f32 %v9633, %v9835
      %v9873 = vld [vmem:[#allocation2 + $0x10] sm:$0xc]
      %v9874 = vld [vmem:[#allocation2 + $0x14] sm:$0xf]
      %v9875 = vld [vmem:[#allocation2 + $0x18] sm:$0xf]
      %v9876 = vld [vmem:[#allocation2 + $0x1c] sm:$0xf]
      %v9877 = vld [vmem:[#allocation2 + $0x20] sm:$0xf]
      %v9878 = vld [vmem:[#allocation2 + $0x24] sm:$0xf]
      %v9879 = vld [vmem:[#allocation2 + $0x28] sm:$0xf]
      %v9880 = vld [vmem:[#allocation2 + $0x2c] sm:$0xf]
      %v9881 = vld [vmem:[#allocation2 + $0x30] sm:$0xf]
      %v9882 = vld [vmem:[#allocation2 + $0x34] sm:$0xf]
      %v9883 = vld [vmem:[#allocation2 + $0x38] sm:$0xf]
      %v9884 = vld [vmem:[#allocation2 + $0x3c] sm:$0xf]
      %v9885 = vld [vmem:[#allocation2 + $0x40] sm:$0xf]
      %v9886 = vld [vmem:[#allocation2 + $0x44] sm:$0xf]
      %v9887 = vld [vmem:[#allocation2 + $0x48] sm:$0xf]
      %v9888 = vld [vmem:[#allocation2 + $0x4c] sm:$0xf]
      %v9889 = vld [vmem:[#allocation2 + $0x50] sm:$0xf]
      %v9890 = vld [vmem:[#allocation2 + $0x54] sm:$0xf]
      %v9891 = vld [vmem:[#allocation2 + $0x58] sm:$0xf]
      %v9892 = vld [vmem:[#allocation2 + $0x5c] sm:$0xf]
      %v9893 = vld [vmem:[#allocation2 + $0x60] sm:$0xf]
      %v9894 = vld [vmem:[#allocation2 + $0x64] sm:$0xf]
      %v9895 = vld [vmem:[#allocation2 + $0x68] sm:$0xf]
      %v9896 = vld [vmem:[#allocation2 + $0x6c] sm:$0xf]
      %v9897 = vld [vmem:[#allocation2 + $0x70] sm:$0xf]
      %v9898 = vld [vmem:[#allocation2 + $0x74] sm:$0xf]
      %v9899 = vld [vmem:[#allocation2 + $0x78] sm:$0xf]
      %v9900 = vld [vmem:[#allocation2 + $0x7c] sm:$0xf]
      %v9901 = vld [vmem:[#allocation2 + $0x80] sm:$0xf]
      %v9902 = vld [vmem:[#allocation2 + $0x84] sm:$0xf]
      %v9903 = vld [vmem:[#allocation2 + $0x88] sm:$0xf]
      %v9904 = vld [vmem:[#allocation2 + $0x8c] sm:$0xf]
      %v9905 = vld [vmem:[#allocation2 + $0x90] sm:$0xf]
      %v9906 = vld [vmem:[#allocation2 + $0x94] sm:$0xf]
      %v9907 = vld [vmem:[#allocation2 + $0x98] sm:$0xf]
      %v9908 = vld [vmem:[#allocation2 + $0x9c] sm:$0xf]
      %v9909 = vld [vmem:[#allocation2 + $0xa0] sm:$0x3]
      %s9910 = scalar_lea.vmem %s10, 48
      %v9911 = vld [vmem:[%s9910] sm:$0xf]
      %v9912 = vld [vmem:[%s9910 + $0x4] sm:$0xf]
      %v9950 = vunpack.c.l.b16 %v9873
      %v9951 = vunpack.c.l.b16 %v9874
      %v9952 = vunpack.c.l.b16 %v9875
      %v9953 = vunpack.c.l.b16 %v9876
      %v9954 = vunpack.c.l.b16 %v9877
      %v9955 = vunpack.c.l.b16 %v9878
      %v9956 = vunpack.c.l.b16 %v9879
      %v9957 = vunpack.c.l.b16 %v9880
      %v9958 = vunpack.c.l.b16 %v9881
      %v9959 = vunpack.c.l.b16 %v9882
      %v9960 = vunpack.c.l.b16 %v9883
      %v9961 = vunpack.c.l.b16 %v9884
      %v9962 = vunpack.c.l.b16 %v9885
      %v9963 = vunpack.c.l.b16 %v9886
      %v9964 = vunpack.c.l.b16 %v9887
      %v9965 = vunpack.c.l.b16 %v9888
      %v9966 = vunpack.c.l.b16 %v9889
      %v9967 = vunpack.c.l.b16 %v9890
      %v9968 = vunpack.c.l.b16 %v9891
      %v9969 = vunpack.c.l.b16 %v9892
      %v9970 = vunpack.c.l.b16 %v9893
      %v9971 = vunpack.c.l.b16 %v9894
      %v9972 = vunpack.c.l.b16 %v9895
      %v9973 = vunpack.c.l.b16 %v9896
      %v9974 = vunpack.c.l.b16 %v9897
      %v9975 = vunpack.c.l.b16 %v9898
      %v9976 = vunpack.c.l.b16 %v9899
      %v9977 = vunpack.c.l.b16 %v9900
      %v9978 = vunpack.c.l.b16 %v9901
      %v9979 = vunpack.c.l.b16 %v9902
      %v9980 = vunpack.c.l.b16 %v9903
      %v9981 = vunpack.c.l.b16 %v9904
      %v9982 = vunpack.c.l.b16 %v9905
      %v9983 = vunpack.c.l.b16 %v9906
      %v9984 = vunpack.c.l.b16 %v9907
      %v9985 = vunpack.c.l.b16 %v9908
      %v9986 = vunpack.c.l.b16 %v9909
      %v9987 = vpack.c.b16 %v9951, %v9950
      %v9988 = vpack.c.b16 %v9953, %v9952
      %v9989 = vpack.c.b16 %v9955, %v9954
      %v9990 = vpack.c.b16 %v9957, %v9956
      %v9991 = vpack.c.b16 %v9959, %v9958
      %v9992 = vpack.c.b16 %v9961, %v9960
      %v9993 = vpack.c.b16 %v9963, %v9962
      %v9994 = vpack.c.b16 %v9965, %v9964
      %v9995 = vpack.c.b16 %v9967, %v9966
      %v9996 = vpack.c.b16 %v9969, %v9968
      %v9997 = vpack.c.b16 %v9971, %v9970
      %v9998 = vpack.c.b16 %v9973, %v9972
      %v9999 = vpack.c.b16 %v9975, %v9974
      %v10000 = vpack.c.b16 %v9977, %v9976
      %v10001 = vpack.c.b16 %v9979, %v9978
      %v10002 = vpack.c.b16 %v9981, %v9980
      %v10003 = vpack.c.b16 %v9983, %v9982
      %v10004 = vpack.c.b16 %v9985, %v9984
      %v10005 = vpack.c.b16 %v9986, %v9986
      %v10006 = vrot.slane %v9987, 2
      %v10007 = vrot.slane %v9988, 2
      %v10008 = vsel %vm5500, %v10006, %v10007
      %v10009 = vrot.slane %v9989, 2
      %v10010 = vsel %vm5500, %v10007, %v10009
      %v10011 = vrot.slane %v9990, 2
      %v10012 = vsel %vm5500, %v10009, %v10011
      %v10013 = vrot.slane %v9991, 2
      %v10014 = vsel %vm5500, %v10011, %v10013
      %v10015 = vrot.slane %v9992, 2
      %v10016 = vsel %vm5500, %v10013, %v10015
      %v10017 = vrot.slane %v9993, 2
      %v10018 = vsel %vm5500, %v10015, %v10017
      %v10019 = vrot.slane %v9994, 2
      %v10020 = vsel %vm5500, %v10017, %v10019
      %v10021 = vrot.slane %v9995, 2
      %v10022 = vsel %vm5500, %v10019, %v10021
      %v10023 = vrot.slane %v9996, 2
      %v10024 = vsel %vm5500, %v10021, %v10023
      %v10025 = vrot.slane %v9997, 2
      %v10026 = vsel %vm5500, %v10023, %v10025
      %v10027 = vrot.slane %v9998, 2
      %v10028 = vsel %vm5500, %v10025, %v10027
      %v10029 = vrot.slane %v9999, 2
      %v10030 = vsel %vm5500, %v10027, %v10029
      %v10031 = vrot.slane %v10000, 2
      %v10032 = vsel %vm5500, %v10029, %v10031
      %v10033 = vrot.slane %v10001, 2
      %v10034 = vsel %vm5500, %v10031, %v10033
      %v10035 = vrot.slane %v10002, 2
      %v10036 = vsel %vm5500, %v10033, %v10035
      %v10037 = vrot.slane %v10003, 2
      %v10038 = vsel %vm5500, %v10035, %v10037
      %v10039 = vrot.slane %v10004, 2
      %v10040 = vsel %vm5500, %v10037, %v10039
      %v10041 = vrot.slane %v10005, 2
      %v10042 = vsel %vm5500, %v10039, %v10041
      %v10045 = vunpack.c.l.b16 %v9911
      %v10046 = vunpack.c.l.b16 %v9912
      %v10047 = vpack.c.b16 %v10046, %v10045
      %v10050 = vsel %vm3073, %v10008, 0
      %v10053 = vsel %vm3073, %v10010, 0
      %v10056 = vsel %vm3073, %v10012, 0
      %v10059 = vsel %vm3073, %v10014, 0
      %v10062 = vsel %vm3073, %v10016, 0
      %v10065 = vsel %vm3073, %v10018, 0
      %v10068 = vsel %vm3073, %v10020, 0
      %v10071 = vsel %vm3073, %v10022, 0
      %v10074 = vsel %vm3073, %v10024, 0
      %v10077 = vsel %vm3073, %v10026, 0
      %v10080 = vsel %vm3073, %v10028, 0
      %v10083 = vsel %vm3073, %v10030, 0
      %v10086 = vsel %vm3073, %v10032, 0
      %v10089 = vsel %vm3073, %v10034, 0
      %v10092 = vsel %vm3073, %v10036, 0
      %v10095 = vsel %vm3073, %v10038, 0
      %v10098 = vsel %vm3073, %v10040, 0
      %v10101 = vsel %vm3073, %v10042, 0
      %10103 = vmatpush.bf16.msra.mxu0 0
      %10104 = vmatpush.bf16.msra.mxu0 0
      %10105 = vmatpush.bf16.msra.mxu0 0
      %10106 = vmatpush.bf16.msra.mxu0 0
      %10107 = vmatpush.bf16.msra.mxu0 0
      %10108 = vmatpush.bf16.msra.mxu0 0
      %10109 = vmatpush.bf16.msra.mxu0 0
      %10110 = vmatpush.bf16.msra.mxu0 %v10047
      %10111 = vmatmul.bf16.gmra.mxu0 %v10050
      %v10112 = vpop.f32.mrf.mxu0
      %v10113 = vadd.f32 0.0, %v10112
      %v10114 = vpop.f32.mrf.mxu0
      %v10115 = vadd.f32 0.0, %v10114
      %10116 = vmatmul.bf16.gmra.mxu0 %v10053
      %v10117 = vpop.f32.mrf.mxu0
      %v10118 = vadd.f32 0.0, %v10117
      %v10119 = vpop.f32.mrf.mxu0
      %v10120 = vadd.f32 0.0, %v10119
      %10121 = vmatmul.bf16.gmra.mxu0 %v10056
      %v10122 = vpop.f32.mrf.mxu0
      %v10123 = vadd.f32 0.0, %v10122
      %v10124 = vpop.f32.mrf.mxu0
      %v10125 = vadd.f32 0.0, %v10124
      %10126 = vmatmul.bf16.gmra.mxu0 %v10059
      %v10127 = vpop.f32.mrf.mxu0
      %v10128 = vadd.f32 0.0, %v10127
      %v10129 = vpop.f32.mrf.mxu0
      %v10130 = vadd.f32 0.0, %v10129
      %10131 = vmatmul.bf16.gmra.mxu0 %v10062
      %v10132 = vpop.f32.mrf.mxu0
      %v10133 = vadd.f32 0.0, %v10132
      %v10134 = vpop.f32.mrf.mxu0
      %v10135 = vadd.f32 0.0, %v10134
      %10136 = vmatmul.bf16.gmra.mxu0 %v10065
      %v10137 = vpop.f32.mrf.mxu0
      %v10138 = vadd.f32 0.0, %v10137
      %v10139 = vpop.f32.mrf.mxu0
      %v10140 = vadd.f32 0.0, %v10139
      %10141 = vmatmul.bf16.gmra.mxu0 %v10068
      %v10142 = vpop.f32.mrf.mxu0
      %v10143 = vadd.f32 0.0, %v10142
      %v10144 = vpop.f32.mrf.mxu0
      %v10145 = vadd.f32 0.0, %v10144
      %10146 = vmatmul.bf16.gmra.mxu0 %v10071
      %v10147 = vpop.f32.mrf.mxu0
      %v10148 = vadd.f32 0.0, %v10147
      %v10149 = vpop.f32.mrf.mxu0
      %v10150 = vadd.f32 0.0, %v10149
      %10151 = vmatmul.bf16.gmra.mxu0 %v10074
      %v10152 = vpop.f32.mrf.mxu0
      %v10153 = vadd.f32 0.0, %v10152
      %v10154 = vpop.f32.mrf.mxu0
      %v10155 = vadd.f32 0.0, %v10154
      %10156 = vmatmul.bf16.gmra.mxu0 %v10077
      %v10157 = vpop.f32.mrf.mxu0
      %v10158 = vadd.f32 0.0, %v10157
      %v10159 = vpop.f32.mrf.mxu0
      %v10160 = vadd.f32 0.0, %v10159
      %10161 = vmatmul.bf16.gmra.mxu0 %v10080
      %v10162 = vpop.f32.mrf.mxu0
      %v10163 = vadd.f32 0.0, %v10162
      %v10164 = vpop.f32.mrf.mxu0
      %v10165 = vadd.f32 0.0, %v10164
      %10166 = vmatmul.bf16.gmra.mxu0 %v10083
      %v10167 = vpop.f32.mrf.mxu0
      %v10168 = vadd.f32 0.0, %v10167
      %v10169 = vpop.f32.mrf.mxu0
      %v10170 = vadd.f32 0.0, %v10169
      %10171 = vmatmul.bf16.gmra.mxu0 %v10086
      %v10172 = vpop.f32.mrf.mxu0
      %v10173 = vadd.f32 0.0, %v10172
      %v10174 = vpop.f32.mrf.mxu0
      %v10175 = vadd.f32 0.0, %v10174
      %10176 = vmatmul.bf16.gmra.mxu0 %v10089
      %v10177 = vpop.f32.mrf.mxu0
      %v10178 = vadd.f32 0.0, %v10177
      %v10179 = vpop.f32.mrf.mxu0
      %v10180 = vadd.f32 0.0, %v10179
      %10181 = vmatmul.bf16.gmra.mxu0 %v10092
      %v10182 = vpop.f32.mrf.mxu0
      %v10183 = vadd.f32 0.0, %v10182
      %v10184 = vpop.f32.mrf.mxu0
      %v10185 = vadd.f32 0.0, %v10184
      %10186 = vmatmul.bf16.gmra.mxu0 %v10095
      %v10187 = vpop.f32.mrf.mxu0
      %v10188 = vadd.f32 0.0, %v10187
      %v10189 = vpop.f32.mrf.mxu0
      %v10190 = vadd.f32 0.0, %v10189
      %10191 = vmatmul.bf16.gmra.mxu0 %v10098
      %v10192 = vpop.f32.mrf.mxu0
      %v10193 = vadd.f32 0.0, %v10192
      %v10194 = vpop.f32.mrf.mxu0
      %v10195 = vadd.f32 0.0, %v10194
      %10196 = vmatmul.bf16.gmra.mxu0 %v10101
      %v10197 = vpop.f32.mrf.mxu0
      %v10198 = vadd.f32 0.0, %v10197
      %v10199 = vpop.f32.mrf.mxu0
      %v10200 = vadd.f32 0.0, %v10199
      %10201 = vdwg.mxu0
      %v10202 = vadd.f32 %v9837, %v10113
      %v10203 = vadd.f32 %v9838, %v10115
      %v10204 = vadd.f32 %v9839, %v10118
      %v10205 = vadd.f32 %v9840, %v10120
      %v10206 = vadd.f32 %v9841, %v10123
      %v10207 = vadd.f32 %v9842, %v10125
      %v10208 = vadd.f32 %v9843, %v10128
      %v10209 = vadd.f32 %v9844, %v10130
      %v10210 = vadd.f32 %v9845, %v10133
      %v10211 = vadd.f32 %v9846, %v10135
      %v10212 = vadd.f32 %v9847, %v10138
      %v10213 = vadd.f32 %v9848, %v10140
      %v10214 = vadd.f32 %v9849, %v10143
      %v10215 = vadd.f32 %v9850, %v10145
      %v10216 = vadd.f32 %v9851, %v10148
      %v10217 = vadd.f32 %v9852, %v10150
      %v10218 = vadd.f32 %v9853, %v10153
      %v10219 = vadd.f32 %v9854, %v10155
      %v10220 = vadd.f32 %v9855, %v10158
      %v10221 = vadd.f32 %v9856, %v10160
      %v10222 = vadd.f32 %v9857, %v10163
      %v10223 = vadd.f32 %v9858, %v10165
      %v10224 = vadd.f32 %v9859, %v10168
      %v10225 = vadd.f32 %v9860, %v10170
      %v10226 = vadd.f32 %v9861, %v10173
      %v10227 = vadd.f32 %v9862, %v10175
      %v10228 = vadd.f32 %v9863, %v10178
      %v10229 = vadd.f32 %v9864, %v10180
      %v10230 = vadd.f32 %v9865, %v10183
      %v10231 = vadd.f32 %v9866, %v10185
      %v10232 = vadd.f32 %v9867, %v10188
      %v10233 = vadd.f32 %v9868, %v10190
      %v10234 = vadd.f32 %v9869, %v10193
      %v10235 = vadd.f32 %v9870, %v10195
      %v10236 = vadd.f32 %v9871, %v10198
      %v10237 = vadd.f32 %v9872, %v10200
      %v10238 = vld [vmem:[#allocation2 + $0xa0] sm:$0x7]
      %s10239 = scalar_lea.vmem %s10, 56
      %v10240 = vld [vmem:[%s10239] sm:$0xf]
      %v10241 = vld [vmem:[%s10239 + $0x4] sm:$0xf]
      %v10243 = vunpack.c.l.b16 %v10238
      %v10244 = vpack.c.b16 %v10243, %v10243
      %v10246 = vshrl.u32 %v9987, 16
      %v10248 = vrot.slane %v10246, 2
      %v10249 = vshll.u32 %v9987, 16
      %v10251 = vrot.slane %v10249, 3
      %v10252 = vor.u32 %v10248, %v10251
      %v10254 = vshrl.u32 %v9988, 16
      %v10256 = vrot.slane %v10254, 2
      %v10257 = vshll.u32 %v9988, 16
      %v10259 = vrot.slane %v10257, 3
      %v10260 = vor.u32 %v10256, %v10259
      %v10261 = vsel %vm6291, %v10252, %v10260
      %v10263 = vshrl.u32 %v9989, 16
      %v10265 = vrot.slane %v10263, 2
      %v10266 = vshll.u32 %v9989, 16
      %v10268 = vrot.slane %v10266, 3
      %v10269 = vor.u32 %v10265, %v10268
      %v10270 = vsel %vm6291, %v10260, %v10269
      %v10272 = vshrl.u32 %v9990, 16
      %v10274 = vrot.slane %v10272, 2
      %v10275 = vshll.u32 %v9990, 16
      %v10277 = vrot.slane %v10275, 3
      %v10278 = vor.u32 %v10274, %v10277
      %v10279 = vsel %vm6291, %v10269, %v10278
      %v10281 = vshrl.u32 %v9991, 16
      %v10283 = vrot.slane %v10281, 2
      %v10284 = vshll.u32 %v9991, 16
      %v10286 = vrot.slane %v10284, 3
      %v10287 = vor.u32 %v10283, %v10286
      %v10288 = vsel %vm6291, %v10278, %v10287
      %v10290 = vshrl.u32 %v9992, 16
      %v10292 = vrot.slane %v10290, 2
      %v10293 = vshll.u32 %v9992, 16
      %v10295 = vrot.slane %v10293, 3
      %v10296 = vor.u32 %v10292, %v10295
      %v10297 = vsel %vm6291, %v10287, %v10296
      %v10299 = vshrl.u32 %v9993, 16
      %v10301 = vrot.slane %v10299, 2
      %v10302 = vshll.u32 %v9993, 16
      %v10304 = vrot.slane %v10302, 3
      %v10305 = vor.u32 %v10301, %v10304
      %v10306 = vsel %vm6291, %v10296, %v10305
      %v10308 = vshrl.u32 %v9994, 16
      %v10310 = vrot.slane %v10308, 2
      %v10311 = vshll.u32 %v9994, 16
      %v10313 = vrot.slane %v10311, 3
      %v10314 = vor.u32 %v10310, %v10313
      %v10315 = vsel %vm6291, %v10305, %v10314
      %v10317 = vshrl.u32 %v9995, 16
      %v10319 = vrot.slane %v10317, 2
      %v10320 = vshll.u32 %v9995, 16
      %v10322 = vrot.slane %v10320, 3
      %v10323 = vor.u32 %v10319, %v10322
      %v10324 = vsel %vm6291, %v10314, %v10323
      %v10326 = vshrl.u32 %v9996, 16
      %v10328 = vrot.slane %v10326, 2
      %v10329 = vshll.u32 %v9996, 16
      %v10331 = vrot.slane %v10329, 3
      %v10332 = vor.u32 %v10328, %v10331
      %v10333 = vsel %vm6291, %v10323, %v10332
      %v10335 = vshrl.u32 %v9997, 16
      %v10337 = vrot.slane %v10335, 2
      %v10338 = vshll.u32 %v9997, 16
      %v10340 = vrot.slane %v10338, 3
      %v10341 = vor.u32 %v10337, %v10340
      %v10342 = vsel %vm6291, %v10332, %v10341
      %v10344 = vshrl.u32 %v9998, 16
      %v10346 = vrot.slane %v10344, 2
      %v10347 = vshll.u32 %v9998, 16
      %v10349 = vrot.slane %v10347, 3
      %v10350 = vor.u32 %v10346, %v10349
      %v10351 = vsel %vm6291, %v10341, %v10350
      %v10353 = vshrl.u32 %v9999, 16
      %v10355 = vrot.slane %v10353, 2
      %v10356 = vshll.u32 %v9999, 16
      %v10358 = vrot.slane %v10356, 3
      %v10359 = vor.u32 %v10355, %v10358
      %v10360 = vsel %vm6291, %v10350, %v10359
      %v10362 = vshrl.u32 %v10000, 16
      %v10364 = vrot.slane %v10362, 2
      %v10365 = vshll.u32 %v10000, 16
      %v10367 = vrot.slane %v10365, 3
      %v10368 = vor.u32 %v10364, %v10367
      %v10369 = vsel %vm6291, %v10359, %v10368
      %v10371 = vshrl.u32 %v10001, 16
      %v10373 = vrot.slane %v10371, 2
      %v10374 = vshll.u32 %v10001, 16
      %v10376 = vrot.slane %v10374, 3
      %v10377 = vor.u32 %v10373, %v10376
      %v10378 = vsel %vm6291, %v10368, %v10377
      %v10380 = vshrl.u32 %v10002, 16
      %v10382 = vrot.slane %v10380, 2
      %v10383 = vshll.u32 %v10002, 16
      %v10385 = vrot.slane %v10383, 3
      %v10386 = vor.u32 %v10382, %v10385
      %v10387 = vsel %vm6291, %v10377, %v10386
      %v10389 = vshrl.u32 %v10003, 16
      %v10391 = vrot.slane %v10389, 2
      %v10392 = vshll.u32 %v10003, 16
      %v10394 = vrot.slane %v10392, 3
      %v10395 = vor.u32 %v10391, %v10394
      %v10396 = vsel %vm6291, %v10386, %v10395
      %v10398 = vshrl.u32 %v10004, 16
      %v10400 = vrot.slane %v10398, 2
      %v10401 = vshll.u32 %v10004, 16
      %v10403 = vrot.slane %v10401, 3
      %v10404 = vor.u32 %v10400, %v10403
      %v10405 = vsel %vm6291, %v10395, %v10404
      %v10407 = vshrl.u32 %v10244, 16
      %v10409 = vrot.slane %v10407, 2
      %v10410 = vshll.u32 %v10244, 16
      %v10412 = vrot.slane %v10410, 3
      %v10413 = vor.u32 %v10409, %v10412
      %v10414 = vsel %vm6291, %v10404, %v10413
      %v10417 = vunpack.c.l.b16 %v10240
      %v10418 = vunpack.c.l.b16 %v10241
      %v10419 = vpack.c.b16 %v10418, %v10417
      %v10422 = vsel %vm3073, %v10261, 0
      %v10425 = vsel %vm3073, %v10270, 0
      %v10428 = vsel %vm3073, %v10279, 0
      %v10431 = vsel %vm3073, %v10288, 0
      %v10434 = vsel %vm3073, %v10297, 0
      %v10437 = vsel %vm3073, %v10306, 0
      %v10440 = vsel %vm3073, %v10315, 0
      %v10443 = vsel %vm3073, %v10324, 0
      %v10446 = vsel %vm3073, %v10333, 0
      %v10449 = vsel %vm3073, %v10342, 0
      %v10452 = vsel %vm3073, %v10351, 0
      %v10455 = vsel %vm3073, %v10360, 0
      %v10458 = vsel %vm3073, %v10369, 0
      %v10461 = vsel %vm3073, %v10378, 0
      %v10464 = vsel %vm3073, %v10387, 0
      %v10467 = vsel %vm3073, %v10396, 0
      %v10470 = vsel %vm3073, %v10405, 0
      %v10473 = vsel %vm3073, %v10414, 0
      %10475 = vmatpush.bf16.msra.mxu0 0
      %10476 = vmatpush.bf16.msra.mxu0 0
      %10477 = vmatpush.bf16.msra.mxu0 0
      %10478 = vmatpush.bf16.msra.mxu0 0
      %10479 = vmatpush.bf16.msra.mxu0 0
      %10480 = vmatpush.bf16.msra.mxu0 0
      %10481 = vmatpush.bf16.msra.mxu0 0
      %10482 = vmatpush.bf16.msra.mxu0 %v10419
      %10483 = vmatmul.bf16.gmra.mxu0 %v10422
      %v10484 = vpop.f32.mrf.mxu0
      %v10485 = vadd.f32 0.0, %v10484
      %v10486 = vpop.f32.mrf.mxu0
      %v10487 = vadd.f32 0.0, %v10486
      %10488 = vmatmul.bf16.gmra.mxu0 %v10425
      %v10489 = vpop.f32.mrf.mxu0
      %v10490 = vadd.f32 0.0, %v10489
      %v10491 = vpop.f32.mrf.mxu0
      %v10492 = vadd.f32 0.0, %v10491
      %10493 = vmatmul.bf16.gmra.mxu0 %v10428
      %v10494 = vpop.f32.mrf.mxu0
      %v10495 = vadd.f32 0.0, %v10494
      %v10496 = vpop.f32.mrf.mxu0
      %v10497 = vadd.f32 0.0, %v10496
      %10498 = vmatmul.bf16.gmra.mxu0 %v10431
      %v10499 = vpop.f32.mrf.mxu0
      %v10500 = vadd.f32 0.0, %v10499
      %v10501 = vpop.f32.mrf.mxu0
      %v10502 = vadd.f32 0.0, %v10501
      %10503 = vmatmul.bf16.gmra.mxu0 %v10434
      %v10504 = vpop.f32.mrf.mxu0
      %v10505 = vadd.f32 0.0, %v10504
      %v10506 = vpop.f32.mrf.mxu0
      %v10507 = vadd.f32 0.0, %v10506
      %10508 = vmatmul.bf16.gmra.mxu0 %v10437
      %v10509 = vpop.f32.mrf.mxu0
      %v10510 = vadd.f32 0.0, %v10509
      %v10511 = vpop.f32.mrf.mxu0
      %v10512 = vadd.f32 0.0, %v10511
      %10513 = vmatmul.bf16.gmra.mxu0 %v10440
      %v10514 = vpop.f32.mrf.mxu0
      %v10515 = vadd.f32 0.0, %v10514
      %v10516 = vpop.f32.mrf.mxu0
      %v10517 = vadd.f32 0.0, %v10516
      %10518 = vmatmul.bf16.gmra.mxu0 %v10443
      %v10519 = vpop.f32.mrf.mxu0
      %v10520 = vadd.f32 0.0, %v10519
      %v10521 = vpop.f32.mrf.mxu0
      %v10522 = vadd.f32 0.0, %v10521
      %10523 = vmatmul.bf16.gmra.mxu0 %v10446
      %v10524 = vpop.f32.mrf.mxu0
      %v10525 = vadd.f32 0.0, %v10524
      %v10526 = vpop.f32.mrf.mxu0
      %v10527 = vadd.f32 0.0, %v10526
      %10528 = vmatmul.bf16.gmra.mxu0 %v10449
      %v10529 = vpop.f32.mrf.mxu0
      %v10530 = vadd.f32 0.0, %v10529
      %v10531 = vpop.f32.mrf.mxu0
      %v10532 = vadd.f32 0.0, %v10531
      %10533 = vmatmul.bf16.gmra.mxu0 %v10452
      %v10534 = vpop.f32.mrf.mxu0
      %v10535 = vadd.f32 0.0, %v10534
      %v10536 = vpop.f32.mrf.mxu0
      %v10537 = vadd.f32 0.0, %v10536
      %10538 = vmatmul.bf16.gmra.mxu0 %v10455
      %v10539 = vpop.f32.mrf.mxu0
      %v10540 = vadd.f32 0.0, %v10539
      %v10541 = vpop.f32.mrf.mxu0
      %v10542 = vadd.f32 0.0, %v10541
      %10543 = vmatmul.bf16.gmra.mxu0 %v10458
      %v10544 = vpop.f32.mrf.mxu0
      %v10545 = vadd.f32 0.0, %v10544
      %v10546 = vpop.f32.mrf.mxu0
      %v10547 = vadd.f32 0.0, %v10546
      %10548 = vmatmul.bf16.gmra.mxu0 %v10461
      %v10549 = vpop.f32.mrf.mxu0
      %v10550 = vadd.f32 0.0, %v10549
      %v10551 = vpop.f32.mrf.mxu0
      %v10552 = vadd.f32 0.0, %v10551
      %10553 = vmatmul.bf16.gmra.mxu0 %v10464
      %v10554 = vpop.f32.mrf.mxu0
      %v10555 = vadd.f32 0.0, %v10554
      %v10556 = vpop.f32.mrf.mxu0
      %v10557 = vadd.f32 0.0, %v10556
      %10558 = vmatmul.bf16.gmra.mxu0 %v10467
      %v10559 = vpop.f32.mrf.mxu0
      %v10560 = vadd.f32 0.0, %v10559
      %v10561 = vpop.f32.mrf.mxu0
      %v10562 = vadd.f32 0.0, %v10561
      %10563 = vmatmul.bf16.gmra.mxu0 %v10470
      %v10564 = vpop.f32.mrf.mxu0
      %v10565 = vadd.f32 0.0, %v10564
      %v10566 = vpop.f32.mrf.mxu0
      %v10567 = vadd.f32 0.0, %v10566
      %10568 = vmatmul.bf16.gmra.mxu0 %v10473
      %v10569 = vpop.f32.mrf.mxu0
      %v10570 = vadd.f32 0.0, %v10569
      %v10571 = vpop.f32.mrf.mxu0
      %v10572 = vadd.f32 0.0, %v10571
      %10573 = vdwg.mxu0
      %v10574 = vadd.f32 %v10202, %v10485
      %v10575 = vadd.f32 %v10203, %v10487
      %v10576 = vadd.f32 %v10204, %v10490
      %v10577 = vadd.f32 %v10205, %v10492
      %v10578 = vadd.f32 %v10206, %v10495
      %v10579 = vadd.f32 %v10207, %v10497
      %v10580 = vadd.f32 %v10208, %v10500
      %v10581 = vadd.f32 %v10209, %v10502
      %v10582 = vadd.f32 %v10210, %v10505
      %v10583 = vadd.f32 %v10211, %v10507
      %v10584 = vadd.f32 %v10212, %v10510
      %v10585 = vadd.f32 %v10213, %v10512
      %v10586 = vadd.f32 %v10214, %v10515
      %v10587 = vadd.f32 %v10215, %v10517
      %v10588 = vadd.f32 %v10216, %v10520
      %v10589 = vadd.f32 %v10217, %v10522
      %v10590 = vadd.f32 %v10218, %v10525
      %v10591 = vadd.f32 %v10219, %v10527
      %v10592 = vadd.f32 %v10220, %v10530
      %v10593 = vadd.f32 %v10221, %v10532
      %v10594 = vadd.f32 %v10222, %v10535
      %v10595 = vadd.f32 %v10223, %v10537
      %v10596 = vadd.f32 %v10224, %v10540
      %v10597 = vadd.f32 %v10225, %v10542
      %v10598 = vadd.f32 %v10226, %v10545
      %v10599 = vadd.f32 %v10227, %v10547
      %v10600 = vadd.f32 %v10228, %v10550
      %v10601 = vadd.f32 %v10229, %v10552
      %v10602 = vadd.f32 %v10230, %v10555
      %v10603 = vadd.f32 %v10231, %v10557
      %v10604 = vadd.f32 %v10232, %v10560
      %v10605 = vadd.f32 %v10233, %v10562
      %v10606 = vadd.f32 %v10234, %v10565
      %v10607 = vadd.f32 %v10235, %v10567
      %v10608 = vadd.f32 %v10236, %v10570
      %v10609 = vadd.f32 %v10237, %v10572
      %v10610 = vld [vmem:[#allocation2 + $0x10] sm:$0x8]
      %s10611 = scalar_lea.vmem %s10, 64
      %v10612 = vld [vmem:[%s10611] sm:$0xf]
      %v10613 = vld [vmem:[%s10611 + $0x4] sm:$0xf]
      %v10615 = vunpack.c.l.b16 %v10610
      %v10616 = vpack.c.b16 %v9951, %v10615
      %v10617 = vrot.slane %v10616, 3
      %v10618 = vrot.slane %v9988, 3
      %v10619 = vsel %vm6858, %v10617, %v10618
      %v10620 = vrot.slane %v9989, 3
      %v10621 = vsel %vm6858, %v10618, %v10620
      %v10622 = vrot.slane %v9990, 3
      %v10623 = vsel %vm6858, %v10620, %v10622
      %v10624 = vrot.slane %v9991, 3
      %v10625 = vsel %vm6858, %v10622, %v10624
      %v10626 = vrot.slane %v9992, 3
      %v10627 = vsel %vm6858, %v10624, %v10626
      %v10628 = vrot.slane %v9993, 3
      %v10629 = vsel %vm6858, %v10626, %v10628
      %v10630 = vrot.slane %v9994, 3
      %v10631 = vsel %vm6858, %v10628, %v10630
      %v10632 = vrot.slane %v9995, 3
      %v10633 = vsel %vm6858, %v10630, %v10632
      %v10634 = vrot.slane %v9996, 3
      %v10635 = vsel %vm6858, %v10632, %v10634
      %v10636 = vrot.slane %v9997, 3
      %v10637 = vsel %vm6858, %v10634, %v10636
      %v10638 = vrot.slane %v9998, 3
      %v10639 = vsel %vm6858, %v10636, %v10638
      %v10640 = vrot.slane %v9999, 3
      %v10641 = vsel %vm6858, %v10638, %v10640
      %v10642 = vrot.slane %v10000, 3
      %v10643 = vsel %vm6858, %v10640, %v10642
      %v10644 = vrot.slane %v10001, 3
      %v10645 = vsel %vm6858, %v10642, %v10644
      %v10646 = vrot.slane %v10002, 3
      %v10647 = vsel %vm6858, %v10644, %v10646
      %v10648 = vrot.slane %v10003, 3
      %v10649 = vsel %vm6858, %v10646, %v10648
      %v10650 = vrot.slane %v10004, 3
      %v10651 = vsel %vm6858, %v10648, %v10650
      %v10652 = vrot.slane %v10244, 3
      %v10653 = vsel %vm6858, %v10650, %v10652
      %v10656 = vunpack.c.l.b16 %v10612
      %v10657 = vunpack.c.l.b16 %v10613
      %v10658 = vpack.c.b16 %v10657, %v10656
      %v10661 = vsel %vm3073, %v10619, 0
      %v10664 = vsel %vm3073, %v10621, 0
      %v10667 = vsel %vm3073, %v10623, 0
      %v10670 = vsel %vm3073, %v10625, 0
      %v10673 = vsel %vm3073, %v10627, 0
      %v10676 = vsel %vm3073, %v10629, 0
      %v10679 = vsel %vm3073, %v10631, 0
      %v10682 = vsel %vm3073, %v10633, 0
      %v10685 = vsel %vm3073, %v10635, 0
      %v10688 = vsel %vm3073, %v10637, 0
      %v10691 = vsel %vm3073, %v10639, 0
      %v10694 = vsel %vm3073, %v10641, 0
      %v10697 = vsel %vm3073, %v10643, 0
      %v10700 = vsel %vm3073, %v10645, 0
      %v10703 = vsel %vm3073, %v10647, 0
      %v10706 = vsel %vm3073, %v10649, 0
      %v10709 = vsel %vm3073, %v10651, 0
      %v10712 = vsel %vm3073, %v10653, 0
      %10714 = vmatpush.bf16.msra.mxu0 0
      %10715 = vmatpush.bf16.msra.mxu0 0
      %10716 = vmatpush.bf16.msra.mxu0 0
      %10717 = vmatpush.bf16.msra.mxu0 0
      %10718 = vmatpush.bf16.msra.mxu0 0
      %10719 = vmatpush.bf16.msra.mxu0 0
      %10720 = vmatpush.bf16.msra.mxu0 0
      %10721 = vmatpush.bf16.msra.mxu0 %v10658
      %10722 = vmatmul.bf16.gmra.mxu0 %v10661
      %v10723 = vpop.f32.mrf.mxu0
      %v10724 = vadd.f32 0.0, %v10723
      %v10725 = vpop.f32.mrf.mxu0
      %v10726 = vadd.f32 0.0, %v10725
      %10727 = vmatmul.bf16.gmra.mxu0 %v10664
      %v10728 = vpop.f32.mrf.mxu0
      %v10729 = vadd.f32 0.0, %v10728
      %v10730 = vpop.f32.mrf.mxu0
      %v10731 = vadd.f32 0.0, %v10730
      %10732 = vmatmul.bf16.gmra.mxu0 %v10667
      %v10733 = vpop.f32.mrf.mxu0
      %v10734 = vadd.f32 0.0, %v10733
      %v10735 = vpop.f32.mrf.mxu0
      %v10736 = vadd.f32 0.0, %v10735
      %10737 = vmatmul.bf16.gmra.mxu0 %v10670
      %v10738 = vpop.f32.mrf.mxu0
      %v10739 = vadd.f32 0.0, %v10738
      %v10740 = vpop.f32.mrf.mxu0
      %v10741 = vadd.f32 0.0, %v10740
      %10742 = vmatmul.bf16.gmra.mxu0 %v10673
      %v10743 = vpop.f32.mrf.mxu0
      %v10744 = vadd.f32 0.0, %v10743
      %v10745 = vpop.f32.mrf.mxu0
      %v10746 = vadd.f32 0.0, %v10745
      %10747 = vmatmul.bf16.gmra.mxu0 %v10676
      %v10748 = vpop.f32.mrf.mxu0
      %v10749 = vadd.f32 0.0, %v10748
      %v10750 = vpop.f32.mrf.mxu0
      %v10751 = vadd.f32 0.0, %v10750
      %10752 = vmatmul.bf16.gmra.mxu0 %v10679
      %v10753 = vpop.f32.mrf.mxu0
      %v10754 = vadd.f32 0.0, %v10753
      %v10755 = vpop.f32.mrf.mxu0
      %v10756 = vadd.f32 0.0, %v10755
      %10757 = vmatmul.bf16.gmra.mxu0 %v10682
      %v10758 = vpop.f32.mrf.mxu0
      %v10759 = vadd.f32 0.0, %v10758
      %v10760 = vpop.f32.mrf.mxu0
      %v10761 = vadd.f32 0.0, %v10760
      %10762 = vmatmul.bf16.gmra.mxu0 %v10685
      %v10763 = vpop.f32.mrf.mxu0
      %v10764 = vadd.f32 0.0, %v10763
      %v10765 = vpop.f32.mrf.mxu0
      %v10766 = vadd.f32 0.0, %v10765
      %10767 = vmatmul.bf16.gmra.mxu0 %v10688
      %v10768 = vpop.f32.mrf.mxu0
      %v10769 = vadd.f32 0.0, %v10768
      %v10770 = vpop.f32.mrf.mxu0
      %v10771 = vadd.f32 0.0, %v10770
      %10772 = vmatmul.bf16.gmra.mxu0 %v10691
      %v10773 = vpop.f32.mrf.mxu0
      %v10774 = vadd.f32 0.0, %v10773
      %v10775 = vpop.f32.mrf.mxu0
      %v10776 = vadd.f32 0.0, %v10775
      %10777 = vmatmul.bf16.gmra.mxu0 %v10694
      %v10778 = vpop.f32.mrf.mxu0
      %v10779 = vadd.f32 0.0, %v10778
      %v10780 = vpop.f32.mrf.mxu0
      %v10781 = vadd.f32 0.0, %v10780
      %10782 = vmatmul.bf16.gmra.mxu0 %v10697
      %v10783 = vpop.f32.mrf.mxu0
      %v10784 = vadd.f32 0.0, %v10783
      %v10785 = vpop.f32.mrf.mxu0
      %v10786 = vadd.f32 0.0, %v10785
      %10787 = vmatmul.bf16.gmra.mxu0 %v10700
      %v10788 = vpop.f32.mrf.mxu0
      %v10789 = vadd.f32 0.0, %v10788
      %v10790 = vpop.f32.mrf.mxu0
      %v10791 = vadd.f32 0.0, %v10790
      %10792 = vmatmul.bf16.gmra.mxu0 %v10703
      %v10793 = vpop.f32.mrf.mxu0
      %v10794 = vadd.f32 0.0, %v10793
      %v10795 = vpop.f32.mrf.mxu0
      %v10796 = vadd.f32 0.0, %v10795
      %10797 = vmatmul.bf16.gmra.mxu0 %v10706
      %v10798 = vpop.f32.mrf.mxu0
      %v10799 = vadd.f32 0.0, %v10798
      %v10800 = vpop.f32.mrf.mxu0
      %v10801 = vadd.f32 0.0, %v10800
      %10802 = vmatmul.bf16.gmra.mxu0 %v10709
      %v10803 = vpop.f32.mrf.mxu0
      %v10804 = vadd.f32 0.0, %v10803
      %v10805 = vpop.f32.mrf.mxu0
      %v10806 = vadd.f32 0.0, %v10805
      %10807 = vmatmul.bf16.gmra.mxu0 %v10712
      %v10808 = vpop.f32.mrf.mxu0
      %v10809 = vadd.f32 0.0, %v10808
      %v10810 = vpop.f32.mrf.mxu0
      %v10811 = vadd.f32 0.0, %v10810
      %10812 = vdwg.mxu0
      %v10813 = vadd.f32 %v10574, %v10724
      %v10814 = vadd.f32 %v10575, %v10726
      %v10815 = vadd.f32 %v10576, %v10729
      %v10816 = vadd.f32 %v10577, %v10731
      %v10817 = vadd.f32 %v10578, %v10734
      %v10818 = vadd.f32 %v10579, %v10736
      %v10819 = vadd.f32 %v10580, %v10739
      %v10820 = vadd.f32 %v10581, %v10741
      %v10821 = vadd.f32 %v10582, %v10744
      %v10822 = vadd.f32 %v10583, %v10746
      %v10823 = vadd.f32 %v10584, %v10749
      %v10824 = vadd.f32 %v10585, %v10751
      %v10825 = vadd.f32 %v10586, %v10754
      %v10826 = vadd.f32 %v10587, %v10756
      %v10827 = vadd.f32 %v10588, %v10759
      %v10828 = vadd.f32 %v10589, %v10761
      %v10829 = vadd.f32 %v10590, %v10764
      %v10830 = vadd.f32 %v10591, %v10766
      %v10831 = vadd.f32 %v10592, %v10769
      %v10832 = vadd.f32 %v10593, %v10771
      %v10833 = vadd.f32 %v10594, %v10774
      %v10834 = vadd.f32 %v10595, %v10776
      %v10835 = vadd.f32 %v10596, %v10779
      %v10836 = vadd.f32 %v10597, %v10781
      %v10837 = vadd.f32 %v10598, %v10784
      %v10838 = vadd.f32 %v10599, %v10786
      %v10839 = vadd.f32 %v10600, %v10789
      %v10840 = vadd.f32 %v10601, %v10791
      %v10841 = vadd.f32 %v10602, %v10794
      %v10842 = vadd.f32 %v10603, %v10796
      %v10843 = vadd.f32 %v10604, %v10799
      %v10844 = vadd.f32 %v10605, %v10801
      %v10845 = vadd.f32 %v10606, %v10804
      %v10846 = vadd.f32 %v10607, %v10806
      %v10847 = vadd.f32 %v10608, %v10809
      %v10848 = vadd.f32 %v10609, %v10811
      %v10849 = vld [vmem:[%s11] sm:$0x1]
      %v10851 = vperm.slane %v10849, 0
      %v10853 = vadd.f32 %v10813, %v10851
      %v10854 = vadd.f32 %v10814, %v10851
      %v10855 = vadd.f32 %v10815, %v10851
      %v10856 = vadd.f32 %v10816, %v10851
      %v10857 = vadd.f32 %v10817, %v10851
      %v10858 = vadd.f32 %v10818, %v10851
      %v10859 = vadd.f32 %v10819, %v10851
      %v10860 = vadd.f32 %v10820, %v10851
      %v10861 = vadd.f32 %v10821, %v10851
      %v10862 = vadd.f32 %v10822, %v10851
      %v10863 = vadd.f32 %v10823, %v10851
      %v10864 = vadd.f32 %v10824, %v10851
      %v10865 = vadd.f32 %v10825, %v10851
      %v10866 = vadd.f32 %v10826, %v10851
      %v10867 = vadd.f32 %v10827, %v10851
      %v10868 = vadd.f32 %v10828, %v10851
      %v10869 = vadd.f32 %v10829, %v10851
      %v10870 = vadd.f32 %v10830, %v10851
      %v10871 = vadd.f32 %v10831, %v10851
      %v10872 = vadd.f32 %v10832, %v10851
      %v10873 = vadd.f32 %v10833, %v10851
      %v10874 = vadd.f32 %v10834, %v10851
      %v10875 = vadd.f32 %v10835, %v10851
      %v10876 = vadd.f32 %v10836, %v10851
      %v10877 = vadd.f32 %v10837, %v10851
      %v10878 = vadd.f32 %v10838, %v10851
      %v10879 = vadd.f32 %v10839, %v10851
      %v10880 = vadd.f32 %v10840, %v10851
      %v10881 = vadd.f32 %v10841, %v10851
      %v10882 = vadd.f32 %v10842, %v10851
      %v10883 = vadd.f32 %v10843, %v10851
      %v10884 = vadd.f32 %v10844, %v10851
      %v10885 = vadd.f32 %v10845, %v10851
      %v10886 = vadd.f32 %v10846, %v10851
      %v10887 = vadd.f32 %v10847, %v10851
      %v10888 = vadd.f32 %v10848, %v10851
      %v10889 = vmax.f32 %v10853, 0.0
      %v10890 = vmax.f32 %v10854, 0.0
      %v10891 = vmax.f32 %v10855, 0.0
      %v10892 = vmax.f32 %v10856, 0.0
      %v10893 = vmax.f32 %v10857, 0.0
      %v10894 = vmax.f32 %v10858, 0.0
      %v10895 = vmax.f32 %v10859, 0.0
      %v10896 = vmax.f32 %v10860, 0.0
      %v10897 = vmax.f32 %v10861, 0.0
      %v10898 = vmax.f32 %v10862, 0.0
      %v10899 = vmax.f32 %v10863, 0.0
      %v10900 = vmax.f32 %v10864, 0.0
      %v10901 = vmax.f32 %v10865, 0.0
      %v10902 = vmax.f32 %v10866, 0.0
      %v10903 = vmax.f32 %v10867, 0.0
      %v10904 = vmax.f32 %v10868, 0.0
      %v10905 = vmax.f32 %v10869, 0.0
      %v10906 = vmax.f32 %v10870, 0.0
      %v10907 = vmax.f32 %v10871, 0.0
      %v10908 = vmax.f32 %v10872, 0.0
      %v10909 = vmax.f32 %v10873, 0.0
      %v10910 = vmax.f32 %v10874, 0.0
      %v10911 = vmax.f32 %v10875, 0.0
      %v10912 = vmax.f32 %v10876, 0.0
      %v10913 = vmax.f32 %v10877, 0.0
      %v10914 = vmax.f32 %v10878, 0.0
      %v10915 = vmax.f32 %v10879, 0.0
      %v10916 = vmax.f32 %v10880, 0.0
      %v10917 = vmax.f32 %v10881, 0.0
      %v10918 = vmax.f32 %v10882, 0.0
      %v10919 = vmax.f32 %v10883, 0.0
      %v10920 = vmax.f32 %v10884, 0.0
      %v10921 = vmax.f32 %v10885, 0.0
      %v10922 = vmax.f32 %v10886, 0.0
      %v10923 = vmax.f32 %v10887, 0.0
      %v10924 = vmax.f32 %v10888, 0.0
      %10925 = vst.msk [vmem:[%s433] sm:$0xff] %vm3073, %v10889
      %10926 = vst.msk [vmem:[%s433 + $0x8] sm:$0xff] %vm3073, %v10890
      %10927 = vst.msk [vmem:[%s433 + $0x10] sm:$0xff] %vm3073, %v10891
      %10928 = vst.msk [vmem:[%s433 + $0x18] sm:$0xff] %vm3073, %v10892
      %10929 = vst.msk [vmem:[%s433 + $0x20] sm:$0xff] %vm3073, %v10893
      %10930 = vst.msk [vmem:[%s433 + $0x28] sm:$0xff] %vm3073, %v10894
      %10931 = vst.msk [vmem:[%s433 + $0x30] sm:$0xff] %vm3073, %v10895
      %10932 = vst.msk [vmem:[%s433 + $0x38] sm:$0xff] %vm3073, %v10896
      %10933 = vst.msk [vmem:[%s433 + $0x40] sm:$0xff] %vm3073, %v10897
      %10934 = vst.msk [vmem:[%s433 + $0x48] sm:$0xff] %vm3073, %v10898
      %10935 = vst.msk [vmem:[%s433 + $0x50] sm:$0xff] %vm3073, %v10899
      %10936 = vst.msk [vmem:[%s433 + $0x58] sm:$0xff] %vm3073, %v10900
      %10937 = vst.msk [vmem:[%s433 + $0x60] sm:$0xff] %vm3073, %v10901
      %10938 = vst.msk [vmem:[%s433 + $0x68] sm:$0xff] %vm3073, %v10902
      %10939 = vst.msk [vmem:[%s433 + $0x70] sm:$0xff] %vm3073, %v10903
      %10940 = vst.msk [vmem:[%s433 + $0x78] sm:$0xff] %vm3073, %v10904
      %10941 = vst.msk [vmem:[%s433 + $0x80] sm:$0xff] %vm3073, %v10905
      %10942 = vst.msk [vmem:[%s433 + $0x88] sm:$0xff] %vm3073, %v10906
      %10943 = vst.msk [vmem:[%s433 + $0x90] sm:$0xff] %vm3073, %v10907
      %10944 = vst.msk [vmem:[%s433 + $0x98] sm:$0xff] %vm3073, %v10908
      %10945 = vst.msk [vmem:[%s433 + $0xa0] sm:$0xff] %vm3073, %v10909
      %10946 = vst.msk [vmem:[%s433 + $0xa8] sm:$0xff] %vm3073, %v10910
      %10947 = vst.msk [vmem:[%s433 + $0xb0] sm:$0xff] %vm3073, %v10911
      %10948 = vst.msk [vmem:[%s433 + $0xb8] sm:$0xff] %vm3073, %v10912
      %10949 = vst.msk [vmem:[%s433 + $0xc0] sm:$0xff] %vm3073, %v10913
      %10950 = vst.msk [vmem:[%s433 + $0xc8] sm:$0xff] %vm3073, %v10914
      %10951 = vst.msk [vmem:[%s433 + $0xd0] sm:$0xff] %vm3073, %v10915
      %10952 = vst.msk [vmem:[%s433 + $0xd8] sm:$0xff] %vm3073, %v10916
      %10953 = vst.msk [vmem:[%s433 + $0xe0] sm:$0xff] %vm3073, %v10917
      %10954 = vst.msk [vmem:[%s433 + $0xe8] sm:$0xff] %vm3073, %v10918
      %10955 = vst.msk [vmem:[%s433 + $0xf0] sm:$0xff] %vm3073, %v10919
      %10956 = vst.msk [vmem:[%s433 + $0xf8] sm:$0xff] %vm3073, %v10920
      %10957 = vst.msk [vmem:[%s433 + $0x100] sm:$0xff] %vm3073, %v10921
      %10958 = vst.msk [vmem:[%s433 + $0x108] sm:$0xff] %vm3073, %v10922
      %10959 = vst.msk [vmem:[%s433 + $0x110] sm:$0xff] %vm3073, %v10923
      %10960 = vst.msk [vmem:[%s433 + $0x118] sm:$0xff] %vm3073, %v10924
      %p10961 = scmp.lt.s32.totalorder %s23, 1
      %s10962 = scalar_select %p10961, %s23, 1
      %s10963 = smul.addr %s10962, 36
      %s10964 = smul.addr %s10963, 8
      %s10965 = scalar_lea.vmem %s12, %s10964
      // Predicated region
      $region69: #{decoder_block_forward.1} parent=67 // pred_check
        %p10966 = pneg %p303
      $region70: #{decoder_block_forward.1} parent=67 // pred_check_branch
        %10968 = sbr.rel (%p10966) target = $region72
      $region71: #{decoder_block_forward.1} parent=67 // pred_region
        _
      $region72: #{decoder_block_forward.1} parent=67 // pred_fallthru
        _
    $region68: #{decoder_block_forward.1} parent=5 // pred_fallthru
      _
    %p10969 = scmp.le.s32.totalorder 2, %s18
    // Predicated region
    $region73: #{decoder_block_forward.1} parent=5 // pred_check
      %p10970 = pneg %p10969
    $region74: #{decoder_block_forward.1} parent=5 // pred_check_branch
      %10972 = sbr.rel (%p10970) target = $region76
    $region75: #{decoder_block_forward.1} parent=5 // pred_region
      %s10973 = ssub.s32 %s18, 2
      // Predicated region
      $region77: #{decoder_block_forward.1} parent=75 // pred_check
        %p10974 = pneg %p309
      $region78: #{decoder_block_forward.1} parent=75 // pred_check_branch
        %10976 = sbr.rel (%p10974) target = $region80
      $region79: #{decoder_block_forward.1} parent=75 // pred_region
        %p10977 = scmp.lt.s32.totalorder %s24, 1
        %s10978 = scalar_select %p10977, %s24, 1
        %s10979 = smul.addr %s10978, 36
        %s10980 = smul.addr %s10979, 8
        %s10981 = scalar_lea.vmem %s12, %s10980
      $region80: #{decoder_block_forward.1} parent=75 // pred_fallthru
        _
    $region76: #{decoder_block_forward.1} parent=5 // pred_fallthru
      _
  $region6: #{decoder_block_forward.1} parent=0 // loop_footer
    %s22 = sadd.s32 1, %s18
  $region7: #{decoder_block_forward.1} parent=0 // loop_footer_branch
    %17 = sbr.rel target = $region3
  $region8: #{decoder_block_forward.1} parent=0 // loop_exit
    _

</llo_original>
